<compile_context>
chip_gen: v5e
topology: v5e:2x2
jax: 0.10.0
libtpu: 0.0.40
codegen_flags: <defaults>
</compile_context>

<pallas_src>
import numpy as np
import jax
import jax.numpy as jnp
from jax.experimental import pallas as pl
from jax.experimental.pallas import tpu as pltpu

_LANE = 128


def _round_up(n, m):
    return ((n + m - 1) // m) * m


# ----------------------------------------------------------------------------
# Host-side folding: ConvTranspose2d (+ eval-mode BN) -> dense matrix + shift
# ----------------------------------------------------------------------------
def _dense_conv_transpose(wt, bias, bn_scale, bn_shift, *, stride, padding,
                          output_padding, hin, win):
    """Fold ConvTranspose2d (weight (Cin, Cout, K, K)) followed by a per-channel
    affine (eval-mode BatchNorm) into a dense matrix D and a shift row so that,
    with the layer input flattened channel-major as x[(ci*Hin+h)*Win + w],

        out[(co*Hout+ho)*Wout + wo] = (x @ D + shift)[(co*Hout+ho)*Wout + wo]

    using the ConvTranspose2d scatter rule ho = h*stride - padding + kh."""
    wt = np.asarray(wt, np.float32)          # (Cin, Cout, K, K)
    bias = np.asarray(bias, np.float32)      # (Cout,)
    scale = np.asarray(bn_scale, np.float32)
    shift = np.asarray(bn_shift, np.float32)
    cin, cout, k, _ = wt.shape
    hout = (hin - 1) * stride - 2 * padding + k + output_padding
    wout = (win - 1) * stride - 2 * padding + k + output_padding
    dmat = np.zeros((cin * hin * win, cout * hout * wout), np.float32)
    co_idx = np.arange(cout)
    for h in range(hin):
        for kh in range(k):
            ho = h * stride - padding + kh
            if not (0 <= ho < hout):
                continue
            for w in range(win):
                for kw in range(k):
                    wo = w * stride - padding + kw
                    if not (0 <= wo < wout):
                        continue
                    cols = (co_idx * hout + ho) * wout + wo
                    for ci in range(cin):
                        row = (ci * hin + h) * win + w
                        dmat[row, cols] += wt[ci, :, kh, kw] * scale
    shift_row = np.repeat(bias * scale + shift,
                          hout * wout).reshape(1, cout * hout * wout)
    return dmat, shift_row.astype(np.float32), hout, wout


# ----------------------------------------------------------------------------
# The fused decoder kernel (one grid step == one batch tile of B_TILE samples)
# ----------------------------------------------------------------------------
def _decoder_kernel(x_ref, w1_ref, w2_ref, d1_ref, d2_ref, d3_ref, bias_ref,
                    out_ref):
    def mm(a, w_ref):
        w = w_ref[...]
        return jnp.dot(a.astype(w.dtype), w, preferred_element_type=jnp.float32)

    # packed bias / shift rows (static slices of the single packed operand)
    b1 = bias_ref[0:1, 0:128]
    b2 = bias_ref[1:2, 0:288]
    s1 = bias_ref[2:3, 0:784]
    s2 = bias_ref[3:4, 0:1568]
    s3 = bias_ref[4:5, 0:896]

    h = jnp.maximum(mm(x_ref[...], w1_ref) + b1, 0.0)   # Linear(E,128)+ReLU      (BT,128)
    h = jnp.maximum(mm(h, w2_ref) + b2, 0.0)            # Linear(128,288)+ReLU    (BT,288)
    h = jnp.maximum(mm(h, d1_ref) + s1, 0.0)            # convT(32->16)+BN+ReLU   (BT,784)
    h = jnp.maximum(mm(h, d2_ref) + s2, 0.0)            # convT(16->8)+BN+ReLU    (BT,1568)
    y = mm(h, d3_ref) + s3                               # convT(8->1), lane-pad   (BT,896)
    # sigmoid: exp on the EUP, exact reciprocal (approx=True would eat the
    # 1e-3 tolerance margin and the kernel is not VPU-bound here).
    out_ref[...] = pl.reciprocal(1.0 + jnp.exp(-y), approx=False)


def decoder_forward(x, kp, *, b_tile=8):
    B, E = x.shape
    Bp = _round_up(B, b_tile)
    if Bp != B:
        x = jnp.pad(x, ((0, Bp - B), (0, 0)))
    grid = (Bp // b_tile,)

    weights = [kp["w1"], kp["w2"], kp["d1"], kp["d2"], kp["d3"], kp["bias"]]

    def const_spec(a):          # full-array block, DMA'd into VMEM once
        return pl.BlockSpec(a.shape, lambda i: (0, 0))

    in_specs = ([pl.BlockSpec((b_tile, E), lambda i: (i, 0))]
                + [const_spec(a) for a in weights])

    n_out = 896
    flops = 2 * Bp * (E * 128 + 128 * 288 + 288 * 784 + 784 * 1568
                      + 1568 * n_out)
    w_bytes = sum(int(np.prod(a.shape)) * a.dtype.itemsize for a in weights)
    cost = pl.CostEstimate(
        flops=flops,
        transcendentals=Bp * n_out,
        bytes_accessed=w_bytes + Bp * E * 4 + Bp * n_out * 4)

    out = pl.pallas_call(
        _decoder_kernel,
        out_shape=jax.ShapeDtypeStruct((Bp, n_out), jnp.float32),
        grid=grid,
        in_specs=in_specs,
        out_specs=pl.BlockSpec((b_tile, n_out), lambda i: (i, 0)),
        compiler_params=pltpu.CompilerParams(
            dimension_semantics=("parallel",),
            vmem_limit_bytes=48 * 1024 * 1024),
        cost_estimate=cost,
    )(x, *weights)

    # drop batch/lane padding; return PyTorch's NCHW convention (B, 1, 28, 28)
    return out[:B, :784].reshape(B, 1, 28, 28)


# ----------------------------------------------------------------------------
# Parameter construction + host-side precomputation of the kernel operands
# ----------------------------------------------------------------------------
def make_params(encoded_space_dim, key):
    ks = jax.random.split(key, 16)
    std = 0.05
    p = {}
    p["w1"] = std * jax.random.normal(ks[0], (encoded_space_dim, 128), jnp.float32)
    p["b1"] = std * jax.random.normal(ks[1], (128,), jnp.float32)
    p["w2"] = std * jax.random.normal(ks[2], (128, 288), jnp.float32)
    p["b2"] = std * jax.random.normal(ks[3], (288,), jnp.float32)
    p["wct1"] = std * jax.random.normal(ks[4], (32, 16, 3, 3), jnp.float32)
    p["bct1"] = std * jax.random.normal(ks[5], (16,), jnp.float32)
    p["wct2"] = std * jax.random.normal(ks[6], (16, 8, 3, 3), jnp.float32)
    p["bct2"] = std * jax.random.normal(ks[7], (8,), jnp.float32)
    p["wct3"] = std * jax.random.normal(ks[8], (8, 1, 3, 3), jnp.float32)
    p["bct3"] = std * jax.random.normal(ks[9], (1,), jnp.float32)
    p["bn1_gamma"] = 1.0 + std * jax.random.normal(ks[10], (16,), jnp.float32)
    p["bn1_beta"] = std * jax.random.normal(ks[11], (16,), jnp.float32)
    p["bn2_gamma"] = 1.0 + std * jax.random.normal(ks[12], (8,), jnp.float32)
    p["bn2_beta"] = std * jax.random.normal(ks[13], (8,), jnp.float32)
    return p


def prepare_kernel_params(p, dtype=jnp.float32):
    eps = 1e-5
    # eval-mode BN with a fresh module's running stats (mean=0, var=1)
    s1 = np.asarray(p["bn1_gamma"]) / np.sqrt(1.0 + eps)
    t1 = np.asarray(p["bn1_beta"])
    s2 = np.asarray(p["bn2_gamma"]) / np.sqrt(1.0 + eps)
    t2 = np.asarray(p["bn2_beta"])
    one = np.ones((1,), np.float32)
    zero = np.zeros((1,), np.float32)

    d1, sh1, h, w = _dense_conv_transpose(
        p["wct1"], p["bct1"], s1, t1,
        stride=2, padding=0, output_padding=0, hin=3, win=3)
    assert (h, w) == (7, 7) and d1.shape == (288, 784)
    d2, sh2, h, w = _dense_conv_transpose(
        p["wct2"], p["bct2"], s2, t2,
        stride=2, padding=1, output_padding=1, hin=7, win=7)
    assert (h, w) == (14, 14) and d2.shape == (784, 1568)
    d3, sh3, h, w = _dense_conv_transpose(
        p["wct3"], p["bct3"], one, zero,
        stride=2, padding=1, output_padding=1, hin=14, win=14)
    assert (h, w) == (28, 28) and d3.shape == (1568, 784)

    # lane-pad the last layer 784 -> 896 so the kernel's HBM store is unmasked
    pad = _round_up(784, _LANE) - 784
    d3 = np.pad(d3, ((0, 0), (0, pad)))
    sh3 = np.pad(sh3, ((0, 0), (0, pad)))

    # pack the five bias / shift rows into one (8, 1568) operand
    bias_pack = np.zeros((8, 1568), np.float32)
    bias_pack[0, :128] = np.asarray(p["b1"], np.float32)
    bias_pack[1, :288] = np.asarray(p["b2"], np.float32)
    bias_pack[2, :784] = sh1[0]
    bias_pack[3, :1568] = sh2[0]
    bias_pack[4, :896] = sh3[0]

    ja = lambda a: jnp.asarray(np.asarray(a, np.float32), dtype)
    return dict(
        w1=ja(p["w1"]), w2=ja(p["w2"]),
        d1=ja(d1), d2=ja(d2), d3=ja(d3),
        bias=jnp.asarray(bias_pack, jnp.float32),   # bias adds stay f32
    )


# ----------------------------------------------------------------------------
# Pure-JAX reference (same semantics, no Pallas) for numerical validation
# ----------------------------------------------------------------------------
def _convT_ref(x_nchw, wt, bias, stride, padding, output_padding):
    k = wt.shape[2]
    lo = k - 1 - padding
    hi = k - 1 - padding + output_padding
    y = jax.lax.conv_general_dilated(
        x_nchw, jnp.flip(wt, (2, 3)),
        window_strides=(1, 1),
        padding=[(lo, hi), (lo, hi)],
        lhs_dilation=(stride, stride),
        rhs_dilation=(1, 1),
        dimension_numbers=("NCHW", "IOHW", "NCHW"),
        precision=jax.lax.Precision.HIGHEST)
    return y + bias.reshape(1, -1, 1, 1)


def decoder_reference(x, p):
    eps = 1e-5
    hp = jax.lax.Precision.HIGHEST
    h = jnp.maximum(jnp.dot(x, p["w1"], precision=hp) + p["b1"], 0.0)
    h = jnp.maximum(jnp.dot(h, p["w2"], precision=hp) + p["b2"], 0.0)
    h = h.reshape(x.shape[0], 32, 3, 3)
    y = _convT_ref(h, p["wct1"], p["bct1"], 2, 0, 0)
    s = (p["bn1_gamma"] / jnp.sqrt(1.0 + eps)).reshape(1, -1, 1, 1)
    y = jnp.maximum(y * s + p["bn1_beta"].reshape(1, -1, 1, 1), 0.0)
    y = _convT_ref(y, p["wct2"], p["bct2"], 2, 1, 1)
    s = (p["bn2_gamma"] / jnp.sqrt(1.0 + eps)).reshape(1, -1, 1, 1)
    y = jnp.maximum(y * s + p["bn2_beta"].reshape(1, -1, 1, 1), 0.0)
    y = _convT_ref(y, p["wct3"], p["bct3"], 2, 1, 1)
    return jax.nn.sigmoid(y)


if __name__ == "__main__":
    B = 16
    encoded_space_dim = 4        # fc2_input_dim is unused by Decoder.forward
    key = jax.random.PRNGKey(0)
    k_in, k_par = jax.random.split(key)

    x = jax.random.normal(k_in, (B, encoded_space_dim), jnp.float32)
    params = make_params(encoded_space_dim, k_par)
    kparams = prepare_kernel_params(params)       # f32 weights (safe tolerance)

    fwd = jax.jit(lambda xb, kp: decoder_forward(xb, kp, b_tile=8))
    out = jax.block_until_ready(fwd(x, kparams))

    assert out.shape == (B, 1, 28, 28), out.shape
    assert bool(jnp.all(jnp.isfinite(out)))
    assert bool(jnp.all((out > 0.0) & (out < 1.0)))      # sigmoid output range

    ref = jax.block_until_ready(decoder_reference(x, params))
    err = float(jnp.max(jnp.abs(out - ref)))
    assert err < 1e-3, f"max|kernel - reference| = {err}"

    print("KERNEL_OK")
</pallas_src>

<mosaic_0001>
module attributes {stable_mosaic.version = 11 : i64} {
  func.func @_decoder_kernel(%arg0: i32, %arg1: memref<8x4xf32, #tpu.memory_space<vmem>>, %arg2: memref<4x128xf32, #tpu.memory_space<vmem>>, %arg3: memref<128x288xf32, #tpu.memory_space<vmem>>, %arg4: memref<288x784xf32, #tpu.memory_space<vmem>>, %arg5: memref<784x1568xf32, #tpu.memory_space<vmem>>, %arg6: memref<1568x896xf32, #tpu.memory_space<vmem>>, %arg7: memref<8x1568xf32, #tpu.memory_space<vmem>>, %arg8: memref<8x896xf32, #tpu.memory_space<vmem>>) attributes {dimension_semantics = [#tpu.dimension_semantics<parallel>], iteration_bounds = array<i64: 2>, scalar_prefetch = 0 : i64, scratch_operands = 0 : i64, tpu.core_type = #tpu.core_type<tc>, window_params = [{transform_indices = @transform_0, window_bounds = array<i64: 8, 4>}, {pipeline_mode = #tpu.pipeline_mode<synchronous>, transform_indices = @transform_1, window_bounds = array<i64: 4, 128>}, {pipeline_mode = #tpu.pipeline_mode<synchronous>, transform_indices = @transform_2, window_bounds = array<i64: 128, 288>}, {pipeline_mode = #tpu.pipeline_mode<synchronous>, transform_indices = @transform_3, window_bounds = array<i64: 288, 784>}, {pipeline_mode = #tpu.pipeline_mode<synchronous>, transform_indices = @transform_4, window_bounds = array<i64: 784, 1568>}, {pipeline_mode = #tpu.pipeline_mode<synchronous>, transform_indices = @transform_5, window_bounds = array<i64: 1568, 896>}, {pipeline_mode = #tpu.pipeline_mode<synchronous>, transform_indices = @transform_6, window_bounds = array<i64: 8, 1568>}, {transform_indices = @transform_7, window_bounds = array<i64: 8, 896>}]} {
    %c0 = arith.constant 0 : index
    %c0_0 = arith.constant 0 : index
    %0 = vector.load %arg7[%c0, %c0_0] : memref<8x1568xf32, #tpu.memory_space<vmem>>, vector<1x128xf32>
    %c1 = arith.constant 1 : index
    %c0_1 = arith.constant 0 : index
    %1 = vector.load %arg7[%c1, %c0_1] : memref<8x1568xf32, #tpu.memory_space<vmem>>, vector<1x288xf32>
    %c2 = arith.constant 2 : index
    %c0_2 = arith.constant 0 : index
    %2 = vector.load %arg7[%c2, %c0_2] : memref<8x1568xf32, #tpu.memory_space<vmem>>, vector<1x784xf32>
    %c3 = arith.constant 3 : index
    %c0_3 = arith.constant 0 : index
    %3 = vector.load %arg7[%c3, %c0_3] : memref<8x1568xf32, #tpu.memory_space<vmem>>, vector<1x1568xf32>
    %c4 = arith.constant 4 : index
    %c0_4 = arith.constant 0 : index
    %4 = vector.load %arg7[%c4, %c0_4] : memref<8x1568xf32, #tpu.memory_space<vmem>>, vector<1x896xf32>
    %c0_5 = arith.constant 0 : index
    %c0_6 = arith.constant 0 : index
    %5 = vector.load %arg1[%c0_5, %c0_6] : memref<8x4xf32, #tpu.memory_space<vmem>>, vector<8x4xf32>
    %c0_7 = arith.constant 0 : index
    %c0_8 = arith.constant 0 : index
    %6 = vector.load %arg2[%c0_7, %c0_8] : memref<4x128xf32, #tpu.memory_space<vmem>>, vector<4x128xf32>
    %cst = arith.constant dense<0.000000e+00> : vector<8x128xf32>
    %7 = tpu.matmul %5, %6, %cst {dimension_numbers = #tpu.dot_dimension_numbers<[1], [0], [0], [1], [0, 0, 1, 1], [], []>} : vector<8x4xf32>, vector<4x128xf32>, vector<8x128xf32> -> vector<8x128xf32>
    %8 = vector.broadcast %0 : vector<1x128xf32> to vector<8x128xf32>
    %9 = arith.addf %7, %8 : vector<8x128xf32>
    %cst_9 = arith.constant 0.000000e+00 : f32
    %10 = vector.broadcast %cst_9 : f32 to vector<8x128xf32>
    %11 = arith.maximumf %9, %10 : vector<8x128xf32>
    %c0_10 = arith.constant 0 : index
    %c0_11 = arith.constant 0 : index
    %12 = vector.load %arg3[%c0_10, %c0_11] : memref<128x288xf32, #tpu.memory_space<vmem>>, vector<128x288xf32>
    %cst_12 = arith.constant dense<0.000000e+00> : vector<8x288xf32>
    %13 = tpu.matmul %11, %12, %cst_12 {dimension_numbers = #tpu.dot_dimension_numbers<[1], [0], [0], [1], [0, 0, 1, 1], [], []>} : vector<8x128xf32>, vector<128x288xf32>, vector<8x288xf32> -> vector<8x288xf32>
    %14 = vector.broadcast %1 : vector<1x288xf32> to vector<8x288xf32>
    %15 = arith.addf %13, %14 : vector<8x288xf32>
    %cst_13 = arith.constant 0.000000e+00 : f32
    %16 = vector.broadcast %cst_13 : f32 to vector<8x288xf32>
    %17 = arith.maximumf %15, %16 : vector<8x288xf32>
    %c0_14 = arith.constant 0 : index
    %c0_15 = arith.constant 0 : index
    %18 = vector.load %arg4[%c0_14, %c0_15] : memref<288x784xf32, #tpu.memory_space<vmem>>, vector<288x784xf32>
    %cst_16 = arith.constant dense<0.000000e+00> : vector<8x784xf32>
    %19 = tpu.matmul %17, %18, %cst_16 {dimension_numbers = #tpu.dot_dimension_numbers<[1], [0], [0], [1], [0, 0, 1, 1], [], []>} : vector<8x288xf32>, vector<288x784xf32>, vector<8x784xf32> -> vector<8x784xf32>
    %20 = vector.broadcast %2 : vector<1x784xf32> to vector<8x784xf32>
    %21 = arith.addf %19, %20 : vector<8x784xf32>
    %cst_17 = arith.constant 0.000000e+00 : f32
    %22 = vector.broadcast %cst_17 : f32 to vector<8x784xf32>
    %23 = arith.maximumf %21, %22 : vector<8x784xf32>
    %c0_18 = arith.constant 0 : index
    %c0_19 = arith.constant 0 : index
    %24 = vector.load %arg5[%c0_18, %c0_19] : memref<784x1568xf32, #tpu.memory_space<vmem>>, vector<784x1568xf32>
    %cst_20 = arith.constant dense<0.000000e+00> : vector<8x1568xf32>
    %25 = tpu.matmul %23, %24, %cst_20 {dimension_numbers = #tpu.dot_dimension_numbers<[1], [0], [0], [1], [0, 0, 1, 1], [], []>} : vector<8x784xf32>, vector<784x1568xf32>, vector<8x1568xf32> -> vector<8x1568xf32>
    %26 = vector.broadcast %3 : vector<1x1568xf32> to vector<8x1568xf32>
    %27 = arith.addf %25, %26 : vector<8x1568xf32>
    %cst_21 = arith.constant 0.000000e+00 : f32
    %28 = vector.broadcast %cst_21 : f32 to vector<8x1568xf32>
    %29 = arith.maximumf %27, %28 : vector<8x1568xf32>
    %c0_22 = arith.constant 0 : index
    %c0_23 = arith.constant 0 : index
    %30 = vector.load %arg6[%c0_22, %c0_23] : memref<1568x896xf32, #tpu.memory_space<vmem>>, vector<1568x896xf32>
    %cst_24 = arith.constant dense<0.000000e+00> : vector<8x896xf32>
    %31 = tpu.matmul %29, %30, %cst_24 {dimension_numbers = #tpu.dot_dimension_numbers<[1], [0], [0], [1], [0, 0, 1, 1], [], []>} : vector<8x1568xf32>, vector<1568x896xf32>, vector<8x896xf32> -> vector<8x896xf32>
    %32 = vector.broadcast %4 : vector<1x896xf32> to vector<8x896xf32>
    %33 = arith.addf %31, %32 : vector<8x896xf32>
    %cst_25 = arith.constant 0.000000e+00 : f32
    %34 = vector.broadcast %cst_25 : f32 to vector<8x896xf32>
    %35 = arith.subf %34, %33 : vector<8x896xf32>
    %36 = math.exp %35 : vector<8x896xf32>
    %cst_26 = arith.constant 1.000000e+00 : f32
    %37 = vector.broadcast %cst_26 : f32 to vector<8x896xf32>
    %38 = arith.addf %37, %36 : vector<8x896xf32>
    %39 = tpu.reciprocal %38 : vector<8x896xf32> -> vector<8x896xf32>
    %c0_27 = arith.constant 0 : index
    %c0_28 = arith.constant 0 : index
    %40 = vector.load %arg8[%c0_27, %c0_28] : memref<8x896xf32, #tpu.memory_space<vmem>>, vector<8x896xf32>
    tpu.vector_store %arg8[%c0_27, %c0_28], %39 {strides = array<i32>} : memref<8x896xf32, #tpu.memory_space<vmem>>, vector<8x896xf32>,
    return
  }
  func.func @transform_0(%arg0: i32) -> (i32, i32) {
    %c0_i32 = arith.constant 0 : i32
    %c0_i32_0 = arith.constant 0 : i32
    return %arg0, %c0_i32 : i32, i32
  }
  func.func @transform_1(%arg0: i32) -> (i32, i32) {
    %c0_i32 = arith.constant 0 : i32
    %c0_i32_0 = arith.constant 0 : i32
    %c0_i32_1 = arith.constant 0 : i32
    return %c0_i32, %c0_i32_0 : i32, i32
  }
  func.func @transform_2(%arg0: i32) -> (i32, i32) {
    %c0_i32 = arith.constant 0 : i32
    %c0_i32_0 = arith.constant 0 : i32
    %c0_i32_1 = arith.constant 0 : i32
    return %c0_i32, %c0_i32_0 : i32, i32
  }
  func.func @transform_3(%arg0: i32) -> (i32, i32) {
    %c0_i32 = arith.constant 0 : i32
    %c0_i32_0 = arith.constant 0 : i32
    %c0_i32_1 = arith.constant 0 : i32
    return %c0_i32, %c0_i32_0 : i32, i32
  }
  func.func @transform_4(%arg0: i32) -> (i32, i32) {
    %c0_i32 = arith.constant 0 : i32
    %c0_i32_0 = arith.constant 0 : i32
    %c0_i32_1 = arith.constant 0 : i32
    return %c0_i32, %c0_i32_0 : i32, i32
  }
  func.func @transform_5(%arg0: i32) -> (i32, i32) {
    %c0_i32 = arith.constant 0 : i32
    %c0_i32_0 = arith.constant 0 : i32
    %c0_i32_1 = arith.constant 0 : i32
    return %c0_i32, %c0_i32_0 : i32, i32
  }
  func.func @transform_6(%arg0: i32) -> (i32, i32) {
    %c0_i32 = arith.constant 0 : i32
    %c0_i32_0 = arith.constant 0 : i32
    %c0_i32_1 = arith.constant 0 : i32
    return %c0_i32, %c0_i32_0 : i32, i32
  }
  func.func @transform_7(%arg0: i32) -> (i32, i32) {
    %c0_i32 = arith.constant 0 : i32
    %c0_i32_0 = arith.constant 0 : i32
    return %arg0, %c0_i32 : i32, i32
  }
}

</mosaic_0001>

<llo_original>
// kernel: _lambda_.1
$region0: #{_lambda_.1}
  #allocation0 [shape = 'u32[]', space=smem, size = 0x4, offset = 0x4, fixed_abs, tag = 'smem constant byte address 0x4 - core index']
  #allocation1 [shape = 'u32[72,128]{1,0:T(1,128)}', space=vmem, size = 0x9000, scoped, tag = 'internal scratch']
  %s0 = inlined_call_operand.vmem [shape: f32[16,4], index: 0, kind: input, shape index: {}]
  %s1 = inlined_call_operand.hbm [shape: f32[4,128], index: 1, kind: input, shape index: {}]
  %s2 = inlined_call_operand.vmem [shape: f32[128,288], index: 2, kind: input, shape index: {}]
  %s3 = inlined_call_operand.hbm [shape: f32[288,784], index: 3, kind: input, shape index: {}]
  %s4 = inlined_call_operand.hbm [shape: f32[784,1568], index: 4, kind: input, shape index: {}]
  %s5 = inlined_call_operand.hbm [shape: f32[1568,896], index: 5, kind: input, shape index: {}]
  %s6 = inlined_call_operand.hbm [shape: f32[8,1568], index: 6, kind: input, shape index: {}]
  %s7 = inlined_call_operand.vmem [shape: f32[16,896], index: 7, kind: output, shape index: {}]
  %s8 = sld [smem:[#allocation0]]
  $region81: #{_lambda_.1} parent=0
    _
  %s10 = ssub.s32 1, %s8
  %s11 = scalar_select 0, %s10, %s8
  $region1: #{_lambda_.1} parent=0
    #allocation2 [shape = 'u8[2048]{0}', space=vmem, size = 0x800, scoped, tag = 'input window, operand 1, single buffered']
    #allocation3 [shape = 's32[2]{0}', space=sflag, size = 0x8, scoped, tag = 'scoped memory for _lambda_.1']
    #allocation4 [shape = 'u8[1032192]{0}', space=vmem, size = 0xfc000, scoped, tag = 'input window, operand 3, single buffered']
    #allocation5 [shape = 's32[1]{0}', space=sflag, size = 0x4, scoped, tag = 'scoped memory for _lambda_.1']
    #allocation6 [shape = 'u8[5218304]{0}', space=vmem, size = 0x4fa000, scoped, tag = 'input window, operand 4, single buffered']
    #allocation7 [shape = 'u8[5619712]{0}', space=vmem, size = 0x55c000, scoped, tag = 'input window, operand 5, single buffered']
    #allocation8 [shape = 's32[1]{0}', space=sflag, size = 0x4, scoped, tag = 'scoped memory for _lambda_.1']
    #allocation9 [shape = 'u8[53248]{0}', space=vmem, size = 0xd000, scoped, tag = 'input window, operand 6, single buffered']
    %12 = vsyncpa [#allocation3], 0
    %13 = vsyncpa [#allocation5], 0
    %14 = vsyncpa [#allocation8], 0
    loop: start=0, step=1, limit=4
    $region2: #{_lambda_.1} parent=1 // loop_pre_header
      _
    $region3: #{_lambda_.1} parent=1 // loop_header
      %s16 = sphi 0, %s20
      %p17 = scmp.ge.s32.totalorder %s16, 4
      %s26 = sphi 0, %s28
      %s29 = sphi 0, %s26
      %s30 = sphi 0, %s29
      %s46 = sphi 0, %s30
      %s50 = sphi 0, %s50
      %s52 = sphi 0, %s50
      %s53 = sphi 0, %s52
      %s67 = sphi 0, %s53
      %s71 = sphi 0, %s71
      %s73 = sphi 0, %s71
      %s74 = sphi 0, %s73
      %s88 = sphi 0, %s74
      %s92 = sphi 0, %s92
      %s94 = sphi 0, %s92
      %s95 = sphi 0, %s94
      %s109 = sphi 0, %s95
      %s113 = sphi 0, %s113
      %s115 = sphi 0, %s113
      %s116 = sphi 0, %s115
      %s130 = sphi 0, %s116
      %s134 = sphi 0, %s134
      %s136 = sphi 0, %s134
      %s137 = sphi 0, %s136
      %s151 = sphi 0, %s137
      %s155 = sphi 0, %s155
      %s157 = sphi 0, %s155
      %s158 = sphi 0, %s157
      %s172 = sphi 0, %s158
      %s178 = sphi 0, %s180
      %s181 = sphi 0, %s178
      %s182 = sphi 0, %s181
      %s198 = sphi 0, %s182
    $region4: #{_lambda_.1} parent=1 // loop_header_branch
      %19 = sbr.rel (%p17) target = $region8
    $region5: #{_lambda_.1} parent=1 // loop_body
      %s21 = ssub.s32 %s16, 1
      %s22 = ssub.s32 %s16, 2
      %s23 = sadd.s32 %s16, 1
      %s24 = ssub.s32 %s16, %s23
      %p25 = scmp.eq.s32.totalorder %s24, 0
      %s27 = sadd.s32 %s26, 1
      %s28 = scalar_select %p25, %s26, %s27
      %p31 = pneg %p25
      %p32 = scmp.eq.s32.totalorder %s16, 1
      %p33 = por %p31, %p32
      %p34 = scmp.ne.s32.totalorder %s26, %s29
      %p35 = scmp.eq.s32.totalorder %s16, 0
      %p36 = por %p34, %p35
      %p37 = scmp.ne.s32.totalorder %s26, %s29
      %p38 = scmp.eq.s32.totalorder %s21, 1
      %p39 = por %p37, %p38
      %p40 = scmp.ne.s32.totalorder %s29, %s30
      %p41 = scmp.eq.s32.totalorder %s21, 0
      %p42 = por %p40, %p41
      %p43 = scmp.ne.s32.totalorder %s29, %s30
      %p44 = scmp.eq.s32.totalorder %s22, 1
      %p45 = por %p43, %p44
      %p47 = scmp.ne.s32.totalorder %s30, %s46
      %p48 = scmp.eq.s32.totalorder %s22, 0
      %p49 = por %p47, %p48
      %s51 = sadd.s32 %s50, 1
      %p54 = scmp.eq.s32.totalorder %s16, 1
      %p55 = scmp.ne.s32.totalorder %s50, %s52
      %p56 = scmp.eq.s32.totalorder %s16, 0
      %p57 = por %p55, %p56
      %p58 = scmp.ne.s32.totalorder %s50, %s52
      %p59 = scmp.eq.s32.totalorder %s21, 1
      %p60 = por %p58, %p59
      %p61 = scmp.ne.s32.totalorder %s52, %s53
      %p62 = scmp.eq.s32.totalorder %s21, 0
      %p63 = por %p61, %p62
      %p64 = scmp.ne.s32.totalorder %s52, %s53
      %p65 = scmp.eq.s32.totalorder %s22, 1
      %p66 = por %p64, %p65
      %p68 = scmp.ne.s32.totalorder %s53, %s67
      %p69 = scmp.eq.s32.totalorder %s22, 0
      %p70 = por %p68, %p69
      %s72 = sadd.s32 %s71, 1
      %p75 = scmp.eq.s32.totalorder %s16, 1
      %p76 = scmp.ne.s32.totalorder %s71, %s73
      %p77 = scmp.eq.s32.totalorder %s16, 0
      %p78 = por %p76, %p77
      %p79 = scmp.ne.s32.totalorder %s71, %s73
      %p80 = scmp.eq.s32.totalorder %s21, 1
      %p81 = por %p79, %p80
      %p82 = scmp.ne.s32.totalorder %s73, %s74
      %p83 = scmp.eq.s32.totalorder %s21, 0
      %p84 = por %p82, %p83
      %p85 = scmp.ne.s32.totalorder %s73, %s74
      %p86 = scmp.eq.s32.totalorder %s22, 1
      %p87 = por %p85, %p86
      %p89 = scmp.ne.s32.totalorder %s74, %s88
      %p90 = scmp.eq.s32.totalorder %s22, 0
      %p91 = por %p89, %p90
      %s93 = sadd.s32 %s92, 1
      %p96 = scmp.eq.s32.totalorder %s16, 1
      %p97 = scmp.ne.s32.totalorder %s92, %s94
      %p98 = scmp.eq.s32.totalorder %s16, 0
      %p99 = por %p97, %p98
      %p100 = scmp.ne.s32.totalorder %s92, %s94
      %p101 = scmp.eq.s32.totalorder %s21, 1
      %p102 = por %p100, %p101
      %p103 = scmp.ne.s32.totalorder %s94, %s95
      %p104 = scmp.eq.s32.totalorder %s21, 0
      %p105 = por %p103, %p104
      %p106 = scmp.ne.s32.totalorder %s94, %s95
      %p107 = scmp.eq.s32.totalorder %s22, 1
      %p108 = por %p106, %p107
      %p110 = scmp.ne.s32.totalorder %s95, %s109
      %p111 = scmp.eq.s32.totalorder %s22, 0
      %p112 = por %p110, %p111
      %s114 = sadd.s32 %s113, 1
      %p117 = scmp.eq.s32.totalorder %s16, 1
      %p118 = scmp.ne.s32.totalorder %s113, %s115
      %p119 = scmp.eq.s32.totalorder %s16, 0
      %p120 = por %p118, %p119
      %p121 = scmp.ne.s32.totalorder %s113, %s115
      %p122 = scmp.eq.s32.totalorder %s21, 1
      %p123 = por %p121, %p122
      %p124 = scmp.ne.s32.totalorder %s115, %s116
      %p125 = scmp.eq.s32.totalorder %s21, 0
      %p126 = por %p124, %p125
      %p127 = scmp.ne.s32.totalorder %s115, %s116
      %p128 = scmp.eq.s32.totalorder %s22, 1
      %p129 = por %p127, %p128
      %p131 = scmp.ne.s32.totalorder %s116, %s130
      %p132 = scmp.eq.s32.totalorder %s22, 0
      %p133 = por %p131, %p132
      %s135 = sadd.s32 %s134, 1
      %p138 = scmp.eq.s32.totalorder %s16, 1
      %p139 = scmp.ne.s32.totalorder %s134, %s136
      %p140 = scmp.eq.s32.totalorder %s16, 0
      %p141 = por %p139, %p140
      %p142 = scmp.ne.s32.totalorder %s134, %s136
      %p143 = scmp.eq.s32.totalorder %s21, 1
      %p144 = por %p142, %p143
      %p145 = scmp.ne.s32.totalorder %s136, %s137
      %p146 = scmp.eq.s32.totalorder %s21, 0
      %p147 = por %p145, %p146
      %p148 = scmp.ne.s32.totalorder %s136, %s137
      %p149 = scmp.eq.s32.totalorder %s22, 1
      %p150 = por %p148, %p149
      %p152 = scmp.ne.s32.totalorder %s137, %s151
      %p153 = scmp.eq.s32.totalorder %s22, 0
      %p154 = por %p152, %p153
      %s156 = sadd.s32 %s155, 1
      %p159 = scmp.eq.s32.totalorder %s16, 1
      %p160 = scmp.ne.s32.totalorder %s155, %s157
      %p161 = scmp.eq.s32.totalorder %s16, 0
      %p162 = por %p160, %p161
      %p163 = scmp.ne.s32.totalorder %s155, %s157
      %p164 = scmp.eq.s32.totalorder %s21, 1
      %p165 = por %p163, %p164
      %p166 = scmp.ne.s32.totalorder %s157, %s158
      %p167 = scmp.eq.s32.totalorder %s21, 0
      %p168 = por %p166, %p167
      %p169 = scmp.ne.s32.totalorder %s157, %s158
      %p170 = scmp.eq.s32.totalorder %s22, 1
      %p171 = por %p169, %p170
      %p173 = scmp.ne.s32.totalorder %s158, %s172
      %p174 = scmp.eq.s32.totalorder %s22, 0
      %p175 = por %p173, %p174
      %s176 = ssub.s32 %s16, %s23
      %p177 = scmp.eq.s32.totalorder %s176, 0
      %s179 = sadd.s32 %s178, 1
      %s180 = scalar_select %p177, %s178, %s179
      %p183 = pneg %p177
      %p184 = scmp.eq.s32.totalorder %s16, 1
      %p185 = por %p183, %p184
      %p186 = scmp.ne.s32.totalorder %s178, %s181
      %p187 = scmp.eq.s32.totalorder %s16, 0
      %p188 = por %p186, %p187
      %p189 = scmp.ne.s32.totalorder %s178, %s181
      %p190 = scmp.eq.s32.totalorder %s21, 1
      %p191 = por %p189, %p190
      %p192 = scmp.ne.s32.totalorder %s181, %s182
      %p193 = scmp.eq.s32.totalorder %s21, 0
      %p194 = por %p192, %p193
      %p195 = scmp.ne.s32.totalorder %s181, %s182
      %p196 = scmp.eq.s32.totalorder %s22, 1
      %p197 = por %p195, %p196
      %p199 = scmp.ne.s32.totalorder %s182, %s198
      %p200 = scmp.eq.s32.totalorder %s22, 0
      %p201 = por %p199, %p200
      %p202 = scmp.le.s32.totalorder 1, %s16
      %p203 = scmp.lt.s32.totalorder %s16, 3
      %p204 = pnand %p202, %p203
      %p205 = pneg %p204
      // Predicated region
      $region9: #{_lambda_.1} parent=5 // pred_check
        _
      $region10: #{_lambda_.1} parent=5 // pred_check_branch
        %207 = sbr.rel (%p204) target = $region12
      $region11: #{_lambda_.1} parent=5 // pred_region
        %s208 = ssub.s32 %s16, 1
        // Predicated region
        $region13: #{_lambda_.1} parent=11 // pred_check
          %p209 = pneg %p63
        $region14: #{_lambda_.1} parent=11 // pred_check_branch
          %211 = sbr.rel (%p209) target = $region16
        $region15: #{_lambda_.1} parent=11 // pred_region
          %213 = vsyncadd [#allocation3], 0
          %s215 = sshll.u32 %s1, 4
          %s216 = int_to_ptr.hbm [resolvable:$true] %s215
          %s217 = sshll.u32 [#allocation2], 4
          %s218 = int_to_ptr.vmem [resolvable:$true] %s217
          %220 = dma.hbm_to_vmem [thread:$0]  %s216, 64, %s218, [#allocation3]
        $region16: #{_lambda_.1} parent=11 // pred_fallthru
          _
        // Predicated region
        $region17: #{_lambda_.1} parent=11 // pred_check
          %p221 = pneg %p84
        $region18: #{_lambda_.1} parent=11 // pred_check_branch
          %223 = sbr.rel (%p221) target = $region20
        $region19: #{_lambda_.1} parent=11 // pred_region
          _
        $region20: #{_lambda_.1} parent=11 // pred_fallthru
          _
        // Predicated region
        $region21: #{_lambda_.1} parent=11 // pred_check
          %p224 = pneg %p105
        $region22: #{_lambda_.1} parent=11 // pred_check_branch
          %226 = sbr.rel (%p224) target = $region24
        $region23: #{_lambda_.1} parent=11 // pred_region
          %228 = vsyncadd [#allocation5], 0
          %s229 = sshll.u32 %s3, 4
          %s230 = int_to_ptr.hbm [resolvable:$true] %s229
          %s231 = sshll.u32 [#allocation4], 4
          %s232 = int_to_ptr.vmem [resolvable:$true] %s231
          %237 = dma.hbm_to_vmem [thread:$0]  %s230, 32256, %s232, [#allocation5], 896, 896, 56
        $region24: #{_lambda_.1} parent=11 // pred_fallthru
          _
        // Predicated region
        $region25: #{_lambda_.1} parent=11 // pred_check
          %p238 = pneg %p126
        $region26: #{_lambda_.1} parent=11 // pred_check_branch
          %240 = sbr.rel (%p238) target = $region28
        $region27: #{_lambda_.1} parent=11 // pred_region
          %242 = vsyncadd [#allocation5], 0
          %s243 = sshll.u32 %s4, 4
          %s244 = int_to_ptr.hbm [resolvable:$true] %s243
          %s245 = sshll.u32 [#allocation6], 4
          %s246 = int_to_ptr.vmem [resolvable:$true] %s245
          %251 = dma.hbm_to_vmem [thread:$0]  %s244, 163072, %s246, [#allocation5], 1664, 1664, 104
        $region28: #{_lambda_.1} parent=11 // pred_fallthru
          _
        // Predicated region
        $region29: #{_lambda_.1} parent=11 // pred_check
          %p252 = pneg %p147
        $region30: #{_lambda_.1} parent=11 // pred_check_branch
          %254 = sbr.rel (%p252) target = $region32
        $region31: #{_lambda_.1} parent=11 // pred_region
          %256 = vsyncadd [#allocation8], 0
          %s257 = sshll.u32 %s5, 4
          %s258 = int_to_ptr.hbm [resolvable:$true] %s257
          %s259 = sshll.u32 [#allocation7], 4
          %s260 = int_to_ptr.vmem [resolvable:$true] %s259
          %265 = dma.hbm_to_vmem [thread:$0]  %s258, 175616, %s260, [#allocation8], 896, 896, 56
        $region32: #{_lambda_.1} parent=11 // pred_fallthru
          _
        // Predicated region
        $region33: #{_lambda_.1} parent=11 // pred_check
          %p266 = pneg %p168
        $region34: #{_lambda_.1} parent=11 // pred_check_branch
          %268 = sbr.rel (%p266) target = $region36
        $region35: #{_lambda_.1} parent=11 // pred_region
          %270 = vsyncadd [#allocation8], 0
          %s272 = sshll.u32 %s6, 4
          %s273 = int_to_ptr.hbm [resolvable:$true] %s272
          %s274 = sshll.u32 [#allocation9], 4
          %s275 = int_to_ptr.vmem [resolvable:$true] %s274
          %277 = dma.hbm_to_vmem [thread:$0]  %s273, 1664, %s275, [#allocation8]
        $region36: #{_lambda_.1} parent=11 // pred_fallthru
          _
      $region12: #{_lambda_.1} parent=5 // pred_fallthru
        _
      %p278 = scmp.lt.s32.totalorder %s16, 2
      // Predicated region
      $region37: #{_lambda_.1} parent=5 // pred_check
        %p279 = pneg %p278
      $region38: #{_lambda_.1} parent=5 // pred_check_branch
        %281 = sbr.rel (%p279) target = $region40
      $region39: #{_lambda_.1} parent=5 // pred_region
        // Predicated region
        $region41: #{_lambda_.1} parent=39 // pred_check
          %p282 = pneg %p36
        $region42: #{_lambda_.1} parent=39 // pred_check_branch
          %284 = sbr.rel (%p282) target = $region44
        $region43: #{_lambda_.1} parent=39 // pred_region
          %p285 = scmp.lt.s32.totalorder %s16, 1
          %s286 = scalar_select %p285, %s16, 1
          %s287 = smul.addr %s286, 8
          %s288 = scalar_lea.vmem %s0, %s287
        $region44: #{_lambda_.1} parent=39 // pred_fallthru
          _
      $region40: #{_lambda_.1} parent=5 // pred_fallthru
        _
      %p289 = scmp.le.s32.totalorder 1, %s16
      %p290 = scmp.lt.s32.totalorder %s16, 3
      %p291 = pnand %p289, %p290
      %p292 = pneg %p291
      // Predicated region
      $region45: #{_lambda_.1} parent=5 // pred_check
        _
      $region46: #{_lambda_.1} parent=5 // pred_check_branch
        %294 = sbr.rel (%p291) target = $region48
      $region47: #{_lambda_.1} parent=5 // pred_region
        %s295 = ssub.s32 %s16, 1
        // Predicated region
        $region49: #{_lambda_.1} parent=47 // pred_check
          %p296 = pneg %p63
        $region50: #{_lambda_.1} parent=47 // pred_check_branch
          %298 = sbr.rel (%p296) target = $region52
        $region51: #{_lambda_.1} parent=47 // pred_region
          %300 = dma.done [#allocation3], 64
        $region52: #{_lambda_.1} parent=47 // pred_fallthru
          _
        // Predicated region
        $region53: #{_lambda_.1} parent=47 // pred_check
          %p301 = pneg %p105
        $region54: #{_lambda_.1} parent=47 // pred_check_branch
          %303 = sbr.rel (%p301) target = $region56
        $region55: #{_lambda_.1} parent=47 // pred_region
          %305 = dma.done [#allocation5], 32256
        $region56: #{_lambda_.1} parent=47 // pred_fallthru
          _
        // Predicated region
        $region57: #{_lambda_.1} parent=47 // pred_check
          %p306 = pneg %p126
        $region58: #{_lambda_.1} parent=47 // pred_check_branch
          %308 = sbr.rel (%p306) target = $region60
        $region59: #{_lambda_.1} parent=47 // pred_region
          %310 = dma.done [#allocation5], 163072
        $region60: #{_lambda_.1} parent=47 // pred_fallthru
          _
        // Predicated region
        $region61: #{_lambda_.1} parent=47 // pred_check
          %p311 = pneg %p147
        $region62: #{_lambda_.1} parent=47 // pred_check_branch
          %313 = sbr.rel (%p311) target = $region64
        $region63: #{_lambda_.1} parent=47 // pred_region
          %315 = dma.done [#allocation8], 175616
        $region64: #{_lambda_.1} parent=47 // pred_fallthru
          _
        // Predicated region
        $region65: #{_lambda_.1} parent=47 // pred_check
          %p316 = pneg %p168
        $region66: #{_lambda_.1} parent=47 // pred_check_branch
          %318 = sbr.rel (%p316) target = $region68
        $region67: #{_lambda_.1} parent=47 // pred_region
          %320 = dma.done [#allocation8], 1664
        $region68: #{_lambda_.1} parent=47 // pred_fallthru
          _
        %p321 = scmp.lt.s32.totalorder %s21, 1
        %s322 = scalar_select %p321, %s21, 1
        %s323 = smul.addr %s322, 8
        %s324 = scalar_lea.vmem %s0, %s323
        %p325 = pneg %p42
        %p326 = pneg %p39
        %p327 = pneg %p63
        %p328 = pneg %p60
        %p329 = pneg %p84
        %p330 = pneg %p81
        %p331 = pneg %p105
        %p332 = pneg %p102
        %p333 = pneg %p126
        %p334 = pneg %p123
        %p335 = pneg %p147
        %p336 = pneg %p144
        %p337 = pneg %p168
        %p338 = pneg %p165
        %p339 = pneg %p194
        %p340 = pneg %p191
        %p341 = scmp.lt.s32.totalorder %s21, 1
        %s342 = scalar_select %p341, %s21, 1
        %s343 = smul.addr %s342, 7
        %s344 = smul.addr %s343, 8
        %s345 = scalar_lea.vmem %s7, %s344
        %p346 = scmp.lt.s32.totalorder %s21, 1
        %s347 = scalar_select %p346, %s21, 1
        %s348 = smul.addr %s347, 8
        %s349 = scalar_lea.vmem %s0, %s348
        %p350 = scmp.lt.s32.totalorder %s21, 1
        %s351 = scalar_select %p350, %s21, 1
        %s352 = smul.addr %s351, 7
        %s353 = smul.addr %s352, 8
        %s354 = scalar_lea.vmem %s7, %s353
        %v355 = vld [vmem:[#allocation9] ss:$0 sm:$0xff]
        %s356 = scalar_lea.vmem [#allocation9], 1
        %v357 = vld [vmem:[%s356] ss:$8 sm:$0x7]
        %s358 = scalar_lea.vmem [#allocation9], 2
        %v359 = vld [vmem:[%s358] ss:$8 sm:$0xf]
        %v360 = vld [vmem:[%s358] ss:$8 sm:$0x70]
        %v361 = vor.u32 %v359, %v360
        %s362 = scalar_lea.vmem [#allocation9], 3
        %v363 = vld [vmem:[%s362] ss:$8 sm:$0xf]
        %v364 = vld [vmem:[%s362] ss:$8 sm:$0xf0]
        %v365 = vor.u32 %v363, %v364
        %s366 = scalar_lea.vmem [#allocation9], 67
        %v367 = vld [vmem:[%s366] ss:$8 sm:$0xf]
        %v368 = vld [vmem:[%s366] ss:$8 sm:$0x10]
        %v369 = vor.u32 %v367, %v368
        %s370 = scalar_lea.vmem [#allocation9], 4
        %v371 = vld [vmem:[%s370] ss:$8 sm:$0xf]
        %v372 = vld [vmem:[%s370] ss:$8 sm:$0xf0]
        %v373 = vor.u32 %v371, %v372
        %v374 = vld [vmem:[%s349] sm:$0xff]
        %v375 = vld [vmem:[#allocation2] sm:$0xf]
        %vm376 = vcmask 31744
        %v378 = vsel %vm376, %v374, 0
        %vm380 = vcmask 1043456
        %v382 = vsel %vm380, %v375, 0
        %384 = vmatpush.msra.mxu0 0.0
        %385 = vmatpush.msra.mxu0 0.0
        %386 = vmatpush.msra.mxu0 0.0
        %387 = vmatpush.msra.mxu0 0.0
        %388 = vmatpush.msra.mxu0 0.0
        %389 = vmatpush.msra.mxu0 0.0
        %390 = vmatpush.msra.mxu0 0.0
        %391 = vmatpush.msra.mxu0 0.0
        %392 = vmatpush.msra.mxu0 0.0
        %393 = vmatpush.msra.mxu0 0.0
        %394 = vmatpush.msra.mxu0 0.0
        %395 = vmatpush.msra.mxu0 0.0
        %396 = vmatpush.msra.mxu0 0.0
        %397 = vmatpush.msra.mxu0 0.0
        %398 = vmatpush.msra.mxu0 0.0
        %399 = vmatpush.msra.mxu0 %v382
        %400 = vmatmul.f32.gmra.mxu0 %v378
        %v401 = vpop.f32.mrf.mxu0
        %v402 = vadd.f32 %v355, %v401
        %403 = vdwg.mxu0
        %v404 = vmax.f32 %v402, 0.0
        %v405 = vld [vmem:[%s2] sm:$0xff]
        %v406 = vld [vmem:[%s2 + $0x8] sm:$0xff]
        %v407 = vld [vmem:[%s2 + $0x10] sm:$0xff]
        %v408 = vld [vmem:[%s2 + $0x18] sm:$0xff]
        %v409 = vld [vmem:[%s2 + $0x20] sm:$0xff]
        %v410 = vld [vmem:[%s2 + $0x28] sm:$0xff]
        %v411 = vld [vmem:[%s2 + $0x30] sm:$0xff]
        %v412 = vld [vmem:[%s2 + $0x38] sm:$0xff]
        %v413 = vld [vmem:[%s2 + $0x40] sm:$0xff]
        %v414 = vld [vmem:[%s2 + $0x48] sm:$0xff]
        %v415 = vld [vmem:[%s2 + $0x50] sm:$0xff]
        %v416 = vld [vmem:[%s2 + $0x58] sm:$0xff]
        %v417 = vld [vmem:[%s2 + $0x60] sm:$0xff]
        %v418 = vld [vmem:[%s2 + $0x68] sm:$0xff]
        %v419 = vld [vmem:[%s2 + $0x70] sm:$0xff]
        %v420 = vld [vmem:[%s2 + $0x78] sm:$0xff]
        %v421 = vld [vmem:[%s2 + $0x80] sm:$0xff]
        %v422 = vld [vmem:[%s2 + $0x88] sm:$0xff]
        %v423 = vld [vmem:[%s2 + $0x90] sm:$0xff]
        %v424 = vld [vmem:[%s2 + $0x98] sm:$0xff]
        %v425 = vld [vmem:[%s2 + $0xa0] sm:$0xff]
        %v426 = vld [vmem:[%s2 + $0xa8] sm:$0xff]
        %v427 = vld [vmem:[%s2 + $0xb0] sm:$0xff]
        %v428 = vld [vmem:[%s2 + $0xb8] sm:$0xff]
        %v429 = vld [vmem:[%s2 + $0xc0] sm:$0xff]
        %v430 = vld [vmem:[%s2 + $0xc8] sm:$0xff]
        %v431 = vld [vmem:[%s2 + $0xd0] sm:$0xff]
        %v432 = vld [vmem:[%s2 + $0xd8] sm:$0xff]
        %v433 = vld [vmem:[%s2 + $0xe0] sm:$0xff]
        %v434 = vld [vmem:[%s2 + $0xe8] sm:$0xff]
        %v435 = vld [vmem:[%s2 + $0xf0] sm:$0xff]
        %v436 = vld [vmem:[%s2 + $0xf8] sm:$0xff]
        %v437 = vld [vmem:[%s2 + $0x100] sm:$0xff]
        %v438 = vld [vmem:[%s2 + $0x108] sm:$0xff]
        %v439 = vld [vmem:[%s2 + $0x110] sm:$0xff]
        %v440 = vld [vmem:[%s2 + $0x118] sm:$0xff]
        %v441 = vld [vmem:[%s2 + $0x120] sm:$0xff]
        %v442 = vld [vmem:[%s2 + $0x128] sm:$0xff]
        %v443 = vld [vmem:[%s2 + $0x130] sm:$0xff]
        %v444 = vld [vmem:[%s2 + $0x138] sm:$0xff]
        %v445 = vld [vmem:[%s2 + $0x140] sm:$0xff]
        %v446 = vld [vmem:[%s2 + $0x148] sm:$0xff]
        %v447 = vld [vmem:[%s2 + $0x150] sm:$0xff]
        %v448 = vld [vmem:[%s2 + $0x158] sm:$0xff]
        %v449 = vld [vmem:[%s2 + $0x160] sm:$0xff]
        %v450 = vld [vmem:[%s2 + $0x168] sm:$0xff]
        %v451 = vld [vmem:[%s2 + $0x170] sm:$0xff]
        %v452 = vld [vmem:[%s2 + $0x178] sm:$0xff]
        %v454 = vperm.slane %v357, 0
        %v455 = vperm.slane %v357, 1
        %v456 = vperm.slane %v357, 2
        %460 = vmatpush.msra.mxu0 %v450
        %461 = vmatpush.msra.mxu0 %v447
        %462 = vmatpush.msra.mxu0 %v444
        %463 = vmatpush.msra.mxu0 %v441
        %464 = vmatpush.msra.mxu0 %v438
        %465 = vmatpush.msra.mxu0 %v435
        %466 = vmatpush.msra.mxu0 %v432
        %467 = vmatpush.msra.mxu0 %v429
        %468 = vmatpush.msra.mxu0 %v426
        %469 = vmatpush.msra.mxu0 %v423
        %470 = vmatpush.msra.mxu0 %v420
        %471 = vmatpush.msra.mxu0 %v417
        %472 = vmatpush.msra.mxu0 %v414
        %473 = vmatpush.msra.mxu0 %v411
        %474 = vmatpush.msra.mxu0 %v408
        %475 = vmatpush.msra.mxu0 %v405
        %476 = vmatmul.f32.gmra.mxu0 %v404
        %v477 = vpop.f32.mrf.mxu0
        %v478 = vadd.f32 %v454, %v477
        %479 = vdwg.mxu0
        %480 = vmatpush.msra.mxu0 %v451
        %481 = vmatpush.msra.mxu0 %v448
        %482 = vmatpush.msra.mxu0 %v445
        %483 = vmatpush.msra.mxu0 %v442
        %484 = vmatpush.msra.mxu0 %v439
        %485 = vmatpush.msra.mxu0 %v436
        %486 = vmatpush.msra.mxu0 %v433
        %487 = vmatpush.msra.mxu0 %v430
        %488 = vmatpush.msra.mxu0 %v427
        %489 = vmatpush.msra.mxu0 %v424
        %490 = vmatpush.msra.mxu0 %v421
        %491 = vmatpush.msra.mxu0 %v418
        %492 = vmatpush.msra.mxu0 %v415
        %493 = vmatpush.msra.mxu0 %v412
        %494 = vmatpush.msra.mxu0 %v409
        %495 = vmatpush.msra.mxu0 %v406
        %496 = vmatmul.f32.gmra.mxu0 %v404
        %v497 = vpop.f32.mrf.mxu0
        %v498 = vadd.f32 %v455, %v497
        %499 = vdwg.mxu0
        %500 = vmatpush.msra.mxu0 %v452
        %501 = vmatpush.msra.mxu0 %v449
        %502 = vmatpush.msra.mxu0 %v446
        %503 = vmatpush.msra.mxu0 %v443
        %504 = vmatpush.msra.mxu0 %v440
        %505 = vmatpush.msra.mxu0 %v437
        %506 = vmatpush.msra.mxu0 %v434
        %507 = vmatpush.msra.mxu0 %v431
        %508 = vmatpush.msra.mxu0 %v428
        %509 = vmatpush.msra.mxu0 %v425
        %510 = vmatpush.msra.mxu0 %v422
        %511 = vmatpush.msra.mxu0 %v419
        %512 = vmatpush.msra.mxu0 %v416
        %513 = vmatpush.msra.mxu0 %v413
        %514 = vmatpush.msra.mxu0 %v410
        %515 = vmatpush.msra.mxu0 %v407
        %516 = vmatmul.f32.gmra.mxu0 %v404
        %v517 = vpop.f32.mrf.mxu0
        %v518 = vadd.f32 %v456, %v517
        %519 = vdwg.mxu0
        %v520 = vmax.f32 %v478, 0.0
        %v521 = vmax.f32 %v498, 0.0
        %v522 = vmax.f32 %v518, 0.0
        %v523 = vld [vmem:[#allocation4] sm:$0xff]
        %v524 = vld [vmem:[#allocation4 + $0x8] sm:$0xff]
        %v525 = vld [vmem:[#allocation4 + $0x10] sm:$0xff]
        %v526 = vld [vmem:[#allocation4 + $0x18] sm:$0xff]
        %v527 = vld [vmem:[#allocation4 + $0x20] sm:$0xff]
        %v528 = vld [vmem:[#allocation4 + $0x28] sm:$0xff]
        %v529 = vld [vmem:[#allocation4 + $0x30] sm:$0xff]
        %v530 = vld [vmem:[#allocation4 + $0x38] sm:$0xff]
        %v531 = vld [vmem:[#allocation4 + $0x40] sm:$0xff]
        %v532 = vld [vmem:[#allocation4 + $0x48] sm:$0xff]
        %v533 = vld [vmem:[#allocation4 + $0x50] sm:$0xff]
        %v534 = vld [vmem:[#allocation4 + $0x58] sm:$0xff]
        %v535 = vld [vmem:[#allocation4 + $0x60] sm:$0xff]
        %v536 = vld [vmem:[#allocation4 + $0x68] sm:$0xff]
        %v537 = vld [vmem:[#allocation4 + $0x70] sm:$0xff]
        %v538 = vld [vmem:[#allocation4 + $0x78] sm:$0xff]
        %v539 = vld [vmem:[#allocation4 + $0x80] sm:$0xff]
        %v540 = vld [vmem:[#allocation4 + $0x88] sm:$0xff]
        %v541 = vld [vmem:[#allocation4 + $0x90] sm:$0xff]
        %v542 = vld [vmem:[#allocation4 + $0x98] sm:$0xff]
        %v543 = vld [vmem:[#allocation4 + $0xa0] sm:$0xff]
        %v544 = vld [vmem:[#allocation4 + $0xa8] sm:$0xff]
        %v545 = vld [vmem:[#allocation4 + $0xb0] sm:$0xff]
        %v546 = vld [vmem:[#allocation4 + $0xb8] sm:$0xff]
        %v547 = vld [vmem:[#allocation4 + $0xc0] sm:$0xff]
        %v548 = vld [vmem:[#allocation4 + $0xc8] sm:$0xff]
        %v549 = vld [vmem:[#allocation4 + $0xd0] sm:$0xff]
        %v550 = vld [vmem:[#allocation4 + $0xd8] sm:$0xff]
        %v551 = vld [vmem:[#allocation4 + $0xe0] sm:$0xff]
        %v552 = vld [vmem:[#allocation4 + $0xe8] sm:$0xff]
        %v553 = vld [vmem:[#allocation4 + $0xf0] sm:$0xff]
        %v554 = vld [vmem:[#allocation4 + $0xf8] sm:$0xff]
        %v555 = vld [vmem:[#allocation4 + $0x100] sm:$0xff]
        %v556 = vld [vmem:[#allocation4 + $0x108] sm:$0xff]
        %v557 = vld [vmem:[#allocation4 + $0x110] sm:$0xff]
        %v558 = vld [vmem:[#allocation4 + $0x118] sm:$0xff]
        %v559 = vld [vmem:[#allocation4 + $0x120] sm:$0xff]
        %v560 = vld [vmem:[#allocation4 + $0x128] sm:$0xff]
        %v561 = vld [vmem:[#allocation4 + $0x130] sm:$0xff]
        %v562 = vld [vmem:[#allocation4 + $0x138] sm:$0xff]
        %v563 = vld [vmem:[#allocation4 + $0x140] sm:$0xff]
        %v564 = vld [vmem:[#allocation4 + $0x148] sm:$0xff]
        %v565 = vld [vmem:[#allocation4 + $0x150] sm:$0xff]
        %v566 = vld [vmem:[#allocation4 + $0x158] sm:$0xff]
        %v567 = vld [vmem:[#allocation4 + $0x160] sm:$0xff]
        %v568 = vld [vmem:[#allocation4 + $0x168] sm:$0xff]
        %v569 = vld [vmem:[#allocation4 + $0x170] sm:$0xff]
        %v570 = vld [vmem:[#allocation4 + $0x178] sm:$0xff]
        %v571 = vld [vmem:[#allocation4 + $0x180] sm:$0xff]
        %v572 = vld [vmem:[#allocation4 + $0x188] sm:$0xff]
        %v573 = vld [vmem:[#allocation4 + $0x190] sm:$0xff]
        %v574 = vld [vmem:[#allocation4 + $0x198] sm:$0xff]
        %v575 = vld [vmem:[#allocation4 + $0x1a0] sm:$0xff]
        %v576 = vld [vmem:[#allocation4 + $0x1a8] sm:$0xff]
        %v577 = vld [vmem:[#allocation4 + $0x1b0] sm:$0xff]
        %v578 = vld [vmem:[#allocation4 + $0x1b8] sm:$0xff]
        %v579 = vld [vmem:[#allocation4 + $0x1c0] sm:$0xff]
        %v580 = vld [vmem:[#allocation4 + $0x1c8] sm:$0xff]
        %v581 = vld [vmem:[#allocation4 + $0x1d0] sm:$0xff]
        %v582 = vld [vmem:[#allocation4 + $0x1d8] sm:$0xff]
        %v583 = vld [vmem:[#allocation4 + $0x1e0] sm:$0xff]
        %v584 = vld [vmem:[#allocation4 + $0x1e8] sm:$0xff]
        %v585 = vld [vmem:[#allocation4 + $0x1f0] sm:$0xff]
        %v586 = vld [vmem:[#allocation4 + $0x1f8] sm:$0xff]
        %v587 = vld [vmem:[#allocation4 + $0x200] sm:$0xff]
        %v588 = vld [vmem:[#allocation4 + $0x208] sm:$0xff]
        %v589 = vld [vmem:[#allocation4 + $0x210] sm:$0xff]
        %v590 = vld [vmem:[#allocation4 + $0x218] sm:$0xff]
        %v591 = vld [vmem:[#allocation4 + $0x220] sm:$0xff]
        %v592 = vld [vmem:[#allocation4 + $0x228] sm:$0xff]
        %v593 = vld [vmem:[#allocation4 + $0x230] sm:$0xff]
        %v594 = vld [vmem:[#allocation4 + $0x238] sm:$0xff]
        %v595 = vld [vmem:[#allocation4 + $0x240] sm:$0xff]
        %v596 = vld [vmem:[#allocation4 + $0x248] sm:$0xff]
        %v597 = vld [vmem:[#allocation4 + $0x250] sm:$0xff]
        %v598 = vld [vmem:[#allocation4 + $0x258] sm:$0xff]
        %v599 = vld [vmem:[#allocation4 + $0x260] sm:$0xff]
        %v600 = vld [vmem:[#allocation4 + $0x268] sm:$0xff]
        %v601 = vld [vmem:[#allocation4 + $0x270] sm:$0xff]
        %v602 = vld [vmem:[#allocation4 + $0x278] sm:$0xff]
        %v603 = vld [vmem:[#allocation4 + $0x280] sm:$0xff]
        %v604 = vld [vmem:[#allocation4 + $0x288] sm:$0xff]
        %v605 = vld [vmem:[#allocation4 + $0x290] sm:$0xff]
        %v606 = vld [vmem:[#allocation4 + $0x298] sm:$0xff]
        %v607 = vld [vmem:[#allocation4 + $0x2a0] sm:$0xff]
        %v608 = vld [vmem:[#allocation4 + $0x2a8] sm:$0xff]
        %v609 = vld [vmem:[#allocation4 + $0x2b0] sm:$0xff]
        %v610 = vld [vmem:[#allocation4 + $0x2b8] sm:$0xff]
        %v611 = vld [vmem:[#allocation4 + $0x2c0] sm:$0xff]
        %v612 = vld [vmem:[#allocation4 + $0x2c8] sm:$0xff]
        %v613 = vld [vmem:[#allocation4 + $0x2d0] sm:$0xff]
        %v614 = vld [vmem:[#allocation4 + $0x2d8] sm:$0xff]
        %v615 = vld [vmem:[#allocation4 + $0x2e0] sm:$0xff]
        %v616 = vld [vmem:[#allocation4 + $0x2e8] sm:$0xff]
        %v617 = vld [vmem:[#allocation4 + $0x2f0] sm:$0xff]
        %v618 = vld [vmem:[#allocation4 + $0x2f8] sm:$0xff]
        %v619 = vld [vmem:[#allocation4 + $0x300] sm:$0xff]
        %v620 = vld [vmem:[#allocation4 + $0x308] sm:$0xff]
        %v621 = vld [vmem:[#allocation4 + $0x310] sm:$0xff]
        %v622 = vld [vmem:[#allocation4 + $0x318] sm:$0xff]
        %v623 = vld [vmem:[#allocation4 + $0x320] sm:$0xff]
        %v624 = vld [vmem:[#allocation4 + $0x328] sm:$0xff]
        %v625 = vld [vmem:[#allocation4 + $0x330] sm:$0xff]
        %v626 = vld [vmem:[#allocation4 + $0x338] sm:$0xff]
        %v627 = vld [vmem:[#allocation4 + $0x340] sm:$0xff]
        %v628 = vld [vmem:[#allocation4 + $0x348] sm:$0xff]
        %v629 = vld [vmem:[#allocation4 + $0x350] sm:$0xff]
        %v630 = vld [vmem:[#allocation4 + $0x358] sm:$0xff]
        %v631 = vld [vmem:[#allocation4 + $0x360] sm:$0xff]
        %v632 = vld [vmem:[#allocation4 + $0x368] sm:$0xff]
        %v633 = vld [vmem:[#allocation4 + $0x370] sm:$0xff]
        %v634 = vld [vmem:[#allocation4 + $0x378] sm:$0xff]
        %v635 = vld [vmem:[#allocation4 + $0x380] sm:$0xff]
        %v636 = vld [vmem:[#allocation4 + $0x388] sm:$0xff]
        %v637 = vld [vmem:[#allocation4 + $0x390] sm:$0xff]
        %v638 = vld [vmem:[#allocation4 + $0x398] sm:$0xff]
        %v639 = vld [vmem:[#allocation4 + $0x3a0] sm:$0xff]
        %v640 = vld [vmem:[#allocation4 + $0x3a8] sm:$0xff]
        %v641 = vld [vmem:[#allocation4 + $0x3b0] sm:$0xff]
        %v642 = vld [vmem:[#allocation4 + $0x3b8] sm:$0xff]
        %v643 = vld [vmem:[#allocation4 + $0x3c0] sm:$0xff]
        %v644 = vld [vmem:[#allocation4 + $0x3c8] sm:$0xff]
        %v645 = vld [vmem:[#allocation4 + $0x3d0] sm:$0xff]
        %v646 = vld [vmem:[#allocation4 + $0x3d8] sm:$0xff]
        %v647 = vld [vmem:[#allocation4 + $0x3e0] sm:$0xff]
        %v648 = vld [vmem:[#allocation4 + $0x3e8] sm:$0xff]
        %v649 = vld [vmem:[#allocation4 + $0x3f0] sm:$0xff]
        %v650 = vld [vmem:[#allocation4 + $0x3f8] sm:$0xff]
        %v651 = vld [vmem:[#allocation4 + $0x400] sm:$0xff]
        %v652 = vld [vmem:[#allocation4 + $0x408] sm:$0xff]
        %v653 = vld [vmem:[#allocation4 + $0x410] sm:$0xff]
        %v654 = vld [vmem:[#allocation4 + $0x418] sm:$0xff]
        %v655 = vld [vmem:[#allocation4 + $0x420] sm:$0xff]
        %v656 = vld [vmem:[#allocation4 + $0x428] sm:$0xff]
        %v657 = vld [vmem:[#allocation4 + $0x430] sm:$0xff]
        %v658 = vld [vmem:[#allocation4 + $0x438] sm:$0xff]
        %v659 = vld [vmem:[#allocation4 + $0x440] sm:$0xff]
        %v660 = vld [vmem:[#allocation4 + $0x448] sm:$0xff]
        %v661 = vld [vmem:[#allocation4 + $0x450] sm:$0xff]
        %v662 = vld [vmem:[#allocation4 + $0x458] sm:$0xff]
        %v663 = vld [vmem:[#allocation4 + $0x460] sm:$0xff]
        %v664 = vld [vmem:[#allocation4 + $0x468] sm:$0xff]
        %v665 = vld [vmem:[#allocation4 + $0x470] sm:$0xff]
        %v666 = vld [vmem:[#allocation4 + $0x478] sm:$0xff]
        %v667 = vld [vmem:[#allocation4 + $0x480] sm:$0xff]
        %v668 = vld [vmem:[#allocation4 + $0x488] sm:$0xff]
        %v669 = vld [vmem:[#allocation4 + $0x490] sm:$0xff]
        %v670 = vld [vmem:[#allocation4 + $0x498] sm:$0xff]
        %v671 = vld [vmem:[#allocation4 + $0x4a0] sm:$0xff]
        %v672 = vld [vmem:[#allocation4 + $0x4a8] sm:$0xff]
        %v673 = vld [vmem:[#allocation4 + $0x4b0] sm:$0xff]
        %v674 = vld [vmem:[#allocation4 + $0x4b8] sm:$0xff]
        %v675 = vld [vmem:[#allocation4 + $0x4c0] sm:$0xff]
        %v676 = vld [vmem:[#allocation4 + $0x4c8] sm:$0xff]
        %v677 = vld [vmem:[#allocation4 + $0x4d0] sm:$0xff]
        %v678 = vld [vmem:[#allocation4 + $0x4d8] sm:$0xff]
        %v679 = vld [vmem:[#allocation4 + $0x4e0] sm:$0xff]
        %v680 = vld [vmem:[#allocation4 + $0x4e8] sm:$0xff]
        %v681 = vld [vmem:[#allocation4 + $0x4f0] sm:$0xff]
        %v682 = vld [vmem:[#allocation4 + $0x4f8] sm:$0xff]
        %v683 = vld [vmem:[#allocation4 + $0x500] sm:$0xff]
        %v684 = vld [vmem:[#allocation4 + $0x508] sm:$0xff]
        %v685 = vld [vmem:[#allocation4 + $0x510] sm:$0xff]
        %v686 = vld [vmem:[#allocation4 + $0x518] sm:$0xff]
        %v687 = vld [vmem:[#allocation4 + $0x520] sm:$0xff]
        %v688 = vld [vmem:[#allocation4 + $0x528] sm:$0xff]
        %v689 = vld [vmem:[#allocation4 + $0x530] sm:$0xff]
        %v690 = vld [vmem:[#allocation4 + $0x538] sm:$0xff]
        %v691 = vld [vmem:[#allocation4 + $0x540] sm:$0xff]
        %v692 = vld [vmem:[#allocation4 + $0x548] sm:$0xff]
        %v693 = vld [vmem:[#allocation4 + $0x550] sm:$0xff]
        %v694 = vld [vmem:[#allocation4 + $0x558] sm:$0xff]
        %v695 = vld [vmem:[#allocation4 + $0x560] sm:$0xff]
        %v696 = vld [vmem:[#allocation4 + $0x568] sm:$0xff]
        %v697 = vld [vmem:[#allocation4 + $0x570] sm:$0xff]
        %v698 = vld [vmem:[#allocation4 + $0x578] sm:$0xff]
        %v699 = vld [vmem:[#allocation4 + $0x580] sm:$0xff]
        %v700 = vld [vmem:[#allocation4 + $0x588] sm:$0xff]
        %v701 = vld [vmem:[#allocation4 + $0x590] sm:$0xff]
        %v702 = vld [vmem:[#allocation4 + $0x598] sm:$0xff]
        %v703 = vld [vmem:[#allocation4 + $0x5a0] sm:$0xff]
        %v704 = vld [vmem:[#allocation4 + $0x5a8] sm:$0xff]
        %v705 = vld [vmem:[#allocation4 + $0x5b0] sm:$0xff]
        %v706 = vld [vmem:[#allocation4 + $0x5b8] sm:$0xff]
        %v707 = vld [vmem:[#allocation4 + $0x5c0] sm:$0xff]
        %v708 = vld [vmem:[#allocation4 + $0x5c8] sm:$0xff]
        %v709 = vld [vmem:[#allocation4 + $0x5d0] sm:$0xff]
        %v710 = vld [vmem:[#allocation4 + $0x5d8] sm:$0xff]
        %v711 = vld [vmem:[#allocation4 + $0x5e0] sm:$0xff]
        %v712 = vld [vmem:[#allocation4 + $0x5e8] sm:$0xff]
        %v713 = vld [vmem:[#allocation4 + $0x5f0] sm:$0xff]
        %v714 = vld [vmem:[#allocation4 + $0x5f8] sm:$0xff]
        %v715 = vld [vmem:[#allocation4 + $0x600] sm:$0xff]
        %v716 = vld [vmem:[#allocation4 + $0x608] sm:$0xff]
        %v717 = vld [vmem:[#allocation4 + $0x610] sm:$0xff]
        %v718 = vld [vmem:[#allocation4 + $0x618] sm:$0xff]
        %v719 = vld [vmem:[#allocation4 + $0x620] sm:$0xff]
        %v720 = vld [vmem:[#allocation4 + $0x628] sm:$0xff]
        %v721 = vld [vmem:[#allocation4 + $0x630] sm:$0xff]
        %v722 = vld [vmem:[#allocation4 + $0x638] sm:$0xff]
        %v723 = vld [vmem:[#allocation4 + $0x640] sm:$0xff]
        %v724 = vld [vmem:[#allocation4 + $0x648] sm:$0xff]
        %v725 = vld [vmem:[#allocation4 + $0x650] sm:$0xff]
        %v726 = vld [vmem:[#allocation4 + $0x658] sm:$0xff]
        %v727 = vld [vmem:[#allocation4 + $0x660] sm:$0xff]
        %v728 = vld [vmem:[#allocation4 + $0x668] sm:$0xff]
        %v729 = vld [vmem:[#allocation4 + $0x670] sm:$0xff]
        %v730 = vld [vmem:[#allocation4 + $0x678] sm:$0xff]
        %v731 = vld [vmem:[#allocation4 + $0x680] sm:$0xff]
        %v732 = vld [vmem:[#allocation4 + $0x688] sm:$0xff]
        %v733 = vld [vmem:[#allocation4 + $0x690] sm:$0xff]
        %v734 = vld [vmem:[#allocation4 + $0x698] sm:$0xff]
        %v735 = vld [vmem:[#allocation4 + $0x6a0] sm:$0xff]
        %v736 = vld [vmem:[#allocation4 + $0x6a8] sm:$0xff]
        %v737 = vld [vmem:[#allocation4 + $0x6b0] sm:$0xff]
        %v738 = vld [vmem:[#allocation4 + $0x6b8] sm:$0xff]
        %v739 = vld [vmem:[#allocation4 + $0x6c0] sm:$0xff]
        %v740 = vld [vmem:[#allocation4 + $0x6c8] sm:$0xff]
        %v741 = vld [vmem:[#allocation4 + $0x6d0] sm:$0xff]
        %v742 = vld [vmem:[#allocation4 + $0x6d8] sm:$0xff]
        %v743 = vld [vmem:[#allocation4 + $0x6e0] sm:$0xff]
        %v744 = vld [vmem:[#allocation4 + $0x6e8] sm:$0xff]
        %v745 = vld [vmem:[#allocation4 + $0x6f0] sm:$0xff]
        %v746 = vld [vmem:[#allocation4 + $0x6f8] sm:$0xff]
        %v747 = vld [vmem:[#allocation4 + $0x700] sm:$0xff]
        %v748 = vld [vmem:[#allocation4 + $0x708] sm:$0xff]
        %v749 = vld [vmem:[#allocation4 + $0x710] sm:$0xff]
        %v750 = vld [vmem:[#allocation4 + $0x718] sm:$0xff]
        %v751 = vld [vmem:[#allocation4 + $0x720] sm:$0xff]
        %v752 = vld [vmem:[#allocation4 + $0x728] sm:$0xff]
        %v753 = vld [vmem:[#allocation4 + $0x730] sm:$0xff]
        %v754 = vld [vmem:[#allocation4 + $0x738] sm:$0xff]
        %v755 = vld [vmem:[#allocation4 + $0x740] sm:$0xff]
        %v756 = vld [vmem:[#allocation4 + $0x748] sm:$0xff]
        %v757 = vld [vmem:[#allocation4 + $0x750] sm:$0xff]
        %v758 = vld [vmem:[#allocation4 + $0x758] sm:$0xff]
        %v759 = vld [vmem:[#allocation4 + $0x760] sm:$0xff]
        %v760 = vld [vmem:[#allocation4 + $0x768] sm:$0xff]
        %v761 = vld [vmem:[#allocation4 + $0x770] sm:$0xff]
        %v762 = vld [vmem:[#allocation4 + $0x778] sm:$0xff]
        %v763 = vld [vmem:[#allocation4 + $0x780] sm:$0xff]
        %v764 = vld [vmem:[#allocation4 + $0x788] sm:$0xff]
        %v765 = vld [vmem:[#allocation4 + $0x790] sm:$0xff]
        %v766 = vld [vmem:[#allocation4 + $0x798] sm:$0xff]
        %v767 = vld [vmem:[#allocation4 + $0x7a0] sm:$0xff]
        %v768 = vld [vmem:[#allocation4 + $0x7a8] sm:$0xff]
        %v769 = vld [vmem:[#allocation4 + $0x7b0] sm:$0xff]
        %v770 = vld [vmem:[#allocation4 + $0x7b8] sm:$0xff]
        %v771 = vld [vmem:[#allocation4 + $0x7c0] sm:$0xff]
        %v772 = vld [vmem:[#allocation4 + $0x7c8] sm:$0xff]
        %v773 = vld [vmem:[#allocation4 + $0x7d0] sm:$0xff]
        %v774 = vld [vmem:[#allocation4 + $0x7d8] sm:$0xff]
        %v776 = vperm.slane %v361, 0
        %v777 = vperm.slane %v361, 1
        %v778 = vperm.slane %v361, 2
        %v779 = vperm.slane %v361, 3
        %v780 = vperm.slane %v361, 4
        %v781 = vperm.slane %v361, 5
        %v782 = vperm.slane %v361, 6
        %vm790 = vcmask 261120
        %v792 = vsel %vm790, %v522, 0
        %794 = vmatpush.msra.mxu0 %v628
        %795 = vmatpush.msra.mxu0 %v621
        %796 = vmatpush.msra.mxu0 %v614
        %797 = vmatpush.msra.mxu0 %v607
        %798 = vmatpush.msra.mxu0 %v600
        %799 = vmatpush.msra.mxu0 %v593
        %800 = vmatpush.msra.mxu0 %v586
        %801 = vmatpush.msra.mxu0 %v579
        %802 = vmatpush.msra.mxu0 %v572
        %803 = vmatpush.msra.mxu0 %v565
        %804 = vmatpush.msra.mxu0 %v558
        %805 = vmatpush.msra.mxu0 %v551
        %806 = vmatpush.msra.mxu0 %v544
        %807 = vmatpush.msra.mxu0 %v537
        %808 = vmatpush.msra.mxu0 %v530
        %809 = vmatpush.msra.mxu0 %v523
        %810 = vmatmul.f32.gmra.mxu0 %v520
        %v811 = vpop.f32.mrf.mxu0
        %v812 = vadd.f32 %v776, %v811
        %813 = vdwg.mxu0
        %814 = vmatpush.msra.mxu0 %v740
        %815 = vmatpush.msra.mxu0 %v733
        %816 = vmatpush.msra.mxu0 %v726
        %817 = vmatpush.msra.mxu0 %v719
        %818 = vmatpush.msra.mxu0 %v712
        %819 = vmatpush.msra.mxu0 %v705
        %820 = vmatpush.msra.mxu0 %v698
        %821 = vmatpush.msra.mxu0 %v691
        %822 = vmatpush.msra.mxu0 %v684
        %823 = vmatpush.msra.mxu0 %v677
        %824 = vmatpush.msra.mxu0 %v670
        %825 = vmatpush.msra.mxu0 %v663
        %826 = vmatpush.msra.mxu0 %v656
        %827 = vmatpush.msra.mxu0 %v649
        %828 = vmatpush.msra.mxu0 %v642
        %829 = vmatpush.msra.mxu0 %v635
        %830 = vmatmul.f32.gmra.mxu0 %v521
        %v831 = vpop.f32.mrf.mxu0
        %v832 = vadd.f32 %v812, %v831
        %833 = vdwg.mxu0
        %834 = vmatpush.msra.mxu0 0.0
        %835 = vmatpush.msra.mxu0 0.0
        %836 = vmatpush.msra.mxu0 0.0
        %837 = vmatpush.msra.mxu0 0.0
        %838 = vmatpush.msra.mxu0 0.0
        %839 = vmatpush.msra.mxu0 0.0
        %840 = vmatpush.msra.mxu0 0.0
        %841 = vmatpush.msra.mxu0 0.0
        %842 = vmatpush.msra.mxu0 0.0
        %843 = vmatpush.msra.mxu0 0.0
        %844 = vmatpush.msra.mxu0 0.0
        %845 = vmatpush.msra.mxu0 0.0
        %846 = vmatpush.msra.mxu0 %v768
        %847 = vmatpush.msra.mxu0 %v761
        %848 = vmatpush.msra.mxu0 %v754
        %849 = vmatpush.msra.mxu0 %v747
        %850 = vmatmul.f32.gmra.mxu0 %v792
        %v851 = vpop.f32.mrf.mxu0
        %v852 = vadd.f32 %v832, %v851
        %853 = vdwg.mxu0
        %854 = vmatpush.msra.mxu0 %v629
        %855 = vmatpush.msra.mxu0 %v622
        %856 = vmatpush.msra.mxu0 %v615
        %857 = vmatpush.msra.mxu0 %v608
        %858 = vmatpush.msra.mxu0 %v601
        %859 = vmatpush.msra.mxu0 %v594
        %860 = vmatpush.msra.mxu0 %v587
        %861 = vmatpush.msra.mxu0 %v580
        %862 = vmatpush.msra.mxu0 %v573
        %863 = vmatpush.msra.mxu0 %v566
        %864 = vmatpush.msra.mxu0 %v559
        %865 = vmatpush.msra.mxu0 %v552
        %866 = vmatpush.msra.mxu0 %v545
        %867 = vmatpush.msra.mxu0 %v538
        %868 = vmatpush.msra.mxu0 %v531
        %869 = vmatpush.msra.mxu0 %v524
        %870 = vmatmul.f32.gmra.mxu0 %v520
        %v871 = vpop.f32.mrf.mxu0
        %v872 = vadd.f32 %v777, %v871
        %873 = vdwg.mxu0
        %874 = vmatpush.msra.mxu0 %v741
        %875 = vmatpush.msra.mxu0 %v734
        %876 = vmatpush.msra.mxu0 %v727
        %877 = vmatpush.msra.mxu0 %v720
        %878 = vmatpush.msra.mxu0 %v713
        %879 = vmatpush.msra.mxu0 %v706
        %880 = vmatpush.msra.mxu0 %v699
        %881 = vmatpush.msra.mxu0 %v692
        %882 = vmatpush.msra.mxu0 %v685
        %883 = vmatpush.msra.mxu0 %v678
        %884 = vmatpush.msra.mxu0 %v671
        %885 = vmatpush.msra.mxu0 %v664
        %886 = vmatpush.msra.mxu0 %v657
        %887 = vmatpush.msra.mxu0 %v650
        %888 = vmatpush.msra.mxu0 %v643
        %889 = vmatpush.msra.mxu0 %v636
        %890 = vmatmul.f32.gmra.mxu0 %v521
        %v891 = vpop.f32.mrf.mxu0
        %v892 = vadd.f32 %v872, %v891
        %893 = vdwg.mxu0
        %894 = vmatpush.msra.mxu0 0.0
        %895 = vmatpush.msra.mxu0 0.0
        %896 = vmatpush.msra.mxu0 0.0
        %897 = vmatpush.msra.mxu0 0.0
        %898 = vmatpush.msra.mxu0 0.0
        %899 = vmatpush.msra.mxu0 0.0
        %900 = vmatpush.msra.mxu0 0.0
        %901 = vmatpush.msra.mxu0 0.0
        %902 = vmatpush.msra.mxu0 0.0
        %903 = vmatpush.msra.mxu0 0.0
        %904 = vmatpush.msra.mxu0 0.0
        %905 = vmatpush.msra.mxu0 0.0
        %906 = vmatpush.msra.mxu0 %v769
        %907 = vmatpush.msra.mxu0 %v762
        %908 = vmatpush.msra.mxu0 %v755
        %909 = vmatpush.msra.mxu0 %v748
        %910 = vmatmul.f32.gmra.mxu0 %v792
        %v911 = vpop.f32.mrf.mxu0
        %v912 = vadd.f32 %v892, %v911
        %913 = vdwg.mxu0
        %914 = vmatpush.msra.mxu0 %v630
        %915 = vmatpush.msra.mxu0 %v623
        %916 = vmatpush.msra.mxu0 %v616
        %917 = vmatpush.msra.mxu0 %v609
        %918 = vmatpush.msra.mxu0 %v602
        %919 = vmatpush.msra.mxu0 %v595
        %920 = vmatpush.msra.mxu0 %v588
        %921 = vmatpush.msra.mxu0 %v581
        %922 = vmatpush.msra.mxu0 %v574
        %923 = vmatpush.msra.mxu0 %v567
        %924 = vmatpush.msra.mxu0 %v560
        %925 = vmatpush.msra.mxu0 %v553
        %926 = vmatpush.msra.mxu0 %v546
        %927 = vmatpush.msra.mxu0 %v539
        %928 = vmatpush.msra.mxu0 %v532
        %929 = vmatpush.msra.mxu0 %v525
        %930 = vmatmul.f32.gmra.mxu0 %v520
        %v931 = vpop.f32.mrf.mxu0
        %v932 = vadd.f32 %v778, %v931
        %933 = vdwg.mxu0
        %934 = vmatpush.msra.mxu0 %v742
        %935 = vmatpush.msra.mxu0 %v735
        %936 = vmatpush.msra.mxu0 %v728
        %937 = vmatpush.msra.mxu0 %v721
        %938 = vmatpush.msra.mxu0 %v714
        %939 = vmatpush.msra.mxu0 %v707
        %940 = vmatpush.msra.mxu0 %v700
        %941 = vmatpush.msra.mxu0 %v693
        %942 = vmatpush.msra.mxu0 %v686
        %943 = vmatpush.msra.mxu0 %v679
        %944 = vmatpush.msra.mxu0 %v672
        %945 = vmatpush.msra.mxu0 %v665
        %946 = vmatpush.msra.mxu0 %v658
        %947 = vmatpush.msra.mxu0 %v651
        %948 = vmatpush.msra.mxu0 %v644
        %949 = vmatpush.msra.mxu0 %v637
        %950 = vmatmul.f32.gmra.mxu0 %v521
        %v951 = vpop.f32.mrf.mxu0
        %v952 = vadd.f32 %v932, %v951
        %953 = vdwg.mxu0
        %954 = vmatpush.msra.mxu0 0.0
        %955 = vmatpush.msra.mxu0 0.0
        %956 = vmatpush.msra.mxu0 0.0
        %957 = vmatpush.msra.mxu0 0.0
        %958 = vmatpush.msra.mxu0 0.0
        %959 = vmatpush.msra.mxu0 0.0
        %960 = vmatpush.msra.mxu0 0.0
        %961 = vmatpush.msra.mxu0 0.0
        %962 = vmatpush.msra.mxu0 0.0
        %963 = vmatpush.msra.mxu0 0.0
        %964 = vmatpush.msra.mxu0 0.0
        %965 = vmatpush.msra.mxu0 0.0
        %966 = vmatpush.msra.mxu0 %v770
        %967 = vmatpush.msra.mxu0 %v763
        %968 = vmatpush.msra.mxu0 %v756
        %969 = vmatpush.msra.mxu0 %v749
        %970 = vmatmul.f32.gmra.mxu0 %v792
        %v971 = vpop.f32.mrf.mxu0
        %v972 = vadd.f32 %v952, %v971
        %973 = vdwg.mxu0
        %974 = vmatpush.msra.mxu0 %v631
        %975 = vmatpush.msra.mxu0 %v624
        %976 = vmatpush.msra.mxu0 %v617
        %977 = vmatpush.msra.mxu0 %v610
        %978 = vmatpush.msra.mxu0 %v603
        %979 = vmatpush.msra.mxu0 %v596
        %980 = vmatpush.msra.mxu0 %v589
        %981 = vmatpush.msra.mxu0 %v582
        %982 = vmatpush.msra.mxu0 %v575
        %983 = vmatpush.msra.mxu0 %v568
        %984 = vmatpush.msra.mxu0 %v561
        %985 = vmatpush.msra.mxu0 %v554
        %986 = vmatpush.msra.mxu0 %v547
        %987 = vmatpush.msra.mxu0 %v540
        %988 = vmatpush.msra.mxu0 %v533
        %989 = vmatpush.msra.mxu0 %v526
        %990 = vmatmul.f32.gmra.mxu0 %v520
        %v991 = vpop.f32.mrf.mxu0
        %v992 = vadd.f32 %v779, %v991
        %993 = vdwg.mxu0
        %994 = vmatpush.msra.mxu0 %v743
        %995 = vmatpush.msra.mxu0 %v736
        %996 = vmatpush.msra.mxu0 %v729
        %997 = vmatpush.msra.mxu0 %v722
        %998 = vmatpush.msra.mxu0 %v715
        %999 = vmatpush.msra.mxu0 %v708
        %1000 = vmatpush.msra.mxu0 %v701
        %1001 = vmatpush.msra.mxu0 %v694
        %1002 = vmatpush.msra.mxu0 %v687
        %1003 = vmatpush.msra.mxu0 %v680
        %1004 = vmatpush.msra.mxu0 %v673
        %1005 = vmatpush.msra.mxu0 %v666
        %1006 = vmatpush.msra.mxu0 %v659
        %1007 = vmatpush.msra.mxu0 %v652
        %1008 = vmatpush.msra.mxu0 %v645
        %1009 = vmatpush.msra.mxu0 %v638
        %1010 = vmatmul.f32.gmra.mxu0 %v521
        %v1011 = vpop.f32.mrf.mxu0
        %v1012 = vadd.f32 %v992, %v1011
        %1013 = vdwg.mxu0
        %1014 = vmatpush.msra.mxu0 0.0
        %1015 = vmatpush.msra.mxu0 0.0
        %1016 = vmatpush.msra.mxu0 0.0
        %1017 = vmatpush.msra.mxu0 0.0
        %1018 = vmatpush.msra.mxu0 0.0
        %1019 = vmatpush.msra.mxu0 0.0
        %1020 = vmatpush.msra.mxu0 0.0
        %1021 = vmatpush.msra.mxu0 0.0
        %1022 = vmatpush.msra.mxu0 0.0
        %1023 = vmatpush.msra.mxu0 0.0
        %1024 = vmatpush.msra.mxu0 0.0
        %1025 = vmatpush.msra.mxu0 0.0
        %1026 = vmatpush.msra.mxu0 %v771
        %1027 = vmatpush.msra.mxu0 %v764
        %1028 = vmatpush.msra.mxu0 %v757
        %1029 = vmatpush.msra.mxu0 %v750
        %1030 = vmatmul.f32.gmra.mxu0 %v792
        %v1031 = vpop.f32.mrf.mxu0
        %v1032 = vadd.f32 %v1012, %v1031
        %1033 = vdwg.mxu0
        %1034 = vmatpush.msra.mxu0 %v632
        %1035 = vmatpush.msra.mxu0 %v625
        %1036 = vmatpush.msra.mxu0 %v618
        %1037 = vmatpush.msra.mxu0 %v611
        %1038 = vmatpush.msra.mxu0 %v604
        %1039 = vmatpush.msra.mxu0 %v597
        %1040 = vmatpush.msra.mxu0 %v590
        %1041 = vmatpush.msra.mxu0 %v583
        %1042 = vmatpush.msra.mxu0 %v576
        %1043 = vmatpush.msra.mxu0 %v569
        %1044 = vmatpush.msra.mxu0 %v562
        %1045 = vmatpush.msra.mxu0 %v555
        %1046 = vmatpush.msra.mxu0 %v548
        %1047 = vmatpush.msra.mxu0 %v541
        %1048 = vmatpush.msra.mxu0 %v534
        %1049 = vmatpush.msra.mxu0 %v527
        %1050 = vmatmul.f32.gmra.mxu0 %v520
        %v1051 = vpop.f32.mrf.mxu0
        %v1052 = vadd.f32 %v780, %v1051
        %1053 = vdwg.mxu0
        %1054 = vmatpush.msra.mxu0 %v744
        %1055 = vmatpush.msra.mxu0 %v737
        %1056 = vmatpush.msra.mxu0 %v730
        %1057 = vmatpush.msra.mxu0 %v723
        %1058 = vmatpush.msra.mxu0 %v716
        %1059 = vmatpush.msra.mxu0 %v709
        %1060 = vmatpush.msra.mxu0 %v702
        %1061 = vmatpush.msra.mxu0 %v695
        %1062 = vmatpush.msra.mxu0 %v688
        %1063 = vmatpush.msra.mxu0 %v681
        %1064 = vmatpush.msra.mxu0 %v674
        %1065 = vmatpush.msra.mxu0 %v667
        %1066 = vmatpush.msra.mxu0 %v660
        %1067 = vmatpush.msra.mxu0 %v653
        %1068 = vmatpush.msra.mxu0 %v646
        %1069 = vmatpush.msra.mxu0 %v639
        %1070 = vmatmul.f32.gmra.mxu0 %v521
        %v1071 = vpop.f32.mrf.mxu0
        %v1072 = vadd.f32 %v1052, %v1071
        %1073 = vdwg.mxu0
        %1074 = vmatpush.msra.mxu0 0.0
        %1075 = vmatpush.msra.mxu0 0.0
        %1076 = vmatpush.msra.mxu0 0.0
        %1077 = vmatpush.msra.mxu0 0.0
        %1078 = vmatpush.msra.mxu0 0.0
        %1079 = vmatpush.msra.mxu0 0.0
        %1080 = vmatpush.msra.mxu0 0.0
        %1081 = vmatpush.msra.mxu0 0.0
        %1082 = vmatpush.msra.mxu0 0.0
        %1083 = vmatpush.msra.mxu0 0.0
        %1084 = vmatpush.msra.mxu0 0.0
        %1085 = vmatpush.msra.mxu0 0.0
        %1086 = vmatpush.msra.mxu0 %v772
        %1087 = vmatpush.msra.mxu0 %v765
        %1088 = vmatpush.msra.mxu0 %v758
        %1089 = vmatpush.msra.mxu0 %v751
        %1090 = vmatmul.f32.gmra.mxu0 %v792
        %v1091 = vpop.f32.mrf.mxu0
        %v1092 = vadd.f32 %v1072, %v1091
        %1093 = vdwg.mxu0
        %1094 = vmatpush.msra.mxu0 %v633
        %1095 = vmatpush.msra.mxu0 %v626
        %1096 = vmatpush.msra.mxu0 %v619
        %1097 = vmatpush.msra.mxu0 %v612
        %1098 = vmatpush.msra.mxu0 %v605
        %1099 = vmatpush.msra.mxu0 %v598
        %1100 = vmatpush.msra.mxu0 %v591
        %1101 = vmatpush.msra.mxu0 %v584
        %1102 = vmatpush.msra.mxu0 %v577
        %1103 = vmatpush.msra.mxu0 %v570
        %1104 = vmatpush.msra.mxu0 %v563
        %1105 = vmatpush.msra.mxu0 %v556
        %1106 = vmatpush.msra.mxu0 %v549
        %1107 = vmatpush.msra.mxu0 %v542
        %1108 = vmatpush.msra.mxu0 %v535
        %1109 = vmatpush.msra.mxu0 %v528
        %1110 = vmatmul.f32.gmra.mxu0 %v520
        %v1111 = vpop.f32.mrf.mxu0
        %v1112 = vadd.f32 %v781, %v1111
        %1113 = vdwg.mxu0
        %1114 = vmatpush.msra.mxu0 %v745
        %1115 = vmatpush.msra.mxu0 %v738
        %1116 = vmatpush.msra.mxu0 %v731
        %1117 = vmatpush.msra.mxu0 %v724
        %1118 = vmatpush.msra.mxu0 %v717
        %1119 = vmatpush.msra.mxu0 %v710
        %1120 = vmatpush.msra.mxu0 %v703
        %1121 = vmatpush.msra.mxu0 %v696
        %1122 = vmatpush.msra.mxu0 %v689
        %1123 = vmatpush.msra.mxu0 %v682
        %1124 = vmatpush.msra.mxu0 %v675
        %1125 = vmatpush.msra.mxu0 %v668
        %1126 = vmatpush.msra.mxu0 %v661
        %1127 = vmatpush.msra.mxu0 %v654
        %1128 = vmatpush.msra.mxu0 %v647
        %1129 = vmatpush.msra.mxu0 %v640
        %1130 = vmatmul.f32.gmra.mxu0 %v521
        %v1131 = vpop.f32.mrf.mxu0
        %v1132 = vadd.f32 %v1112, %v1131
        %1133 = vdwg.mxu0
        %1134 = vmatpush.msra.mxu0 0.0
        %1135 = vmatpush.msra.mxu0 0.0
        %1136 = vmatpush.msra.mxu0 0.0
        %1137 = vmatpush.msra.mxu0 0.0
        %1138 = vmatpush.msra.mxu0 0.0
        %1139 = vmatpush.msra.mxu0 0.0
        %1140 = vmatpush.msra.mxu0 0.0
        %1141 = vmatpush.msra.mxu0 0.0
        %1142 = vmatpush.msra.mxu0 0.0
        %1143 = vmatpush.msra.mxu0 0.0
        %1144 = vmatpush.msra.mxu0 0.0
        %1145 = vmatpush.msra.mxu0 0.0
        %1146 = vmatpush.msra.mxu0 %v773
        %1147 = vmatpush.msra.mxu0 %v766
        %1148 = vmatpush.msra.mxu0 %v759
        %1149 = vmatpush.msra.mxu0 %v752
        %1150 = vmatmul.f32.gmra.mxu0 %v792
        %v1151 = vpop.f32.mrf.mxu0
        %v1152 = vadd.f32 %v1132, %v1151
        %1153 = vdwg.mxu0
        %1154 = vmatpush.msra.mxu0 %v634
        %1155 = vmatpush.msra.mxu0 %v627
        %1156 = vmatpush.msra.mxu0 %v620
        %1157 = vmatpush.msra.mxu0 %v613
        %1158 = vmatpush.msra.mxu0 %v606
        %1159 = vmatpush.msra.mxu0 %v599
        %1160 = vmatpush.msra.mxu0 %v592
        %1161 = vmatpush.msra.mxu0 %v585
        %1162 = vmatpush.msra.mxu0 %v578
        %1163 = vmatpush.msra.mxu0 %v571
        %1164 = vmatpush.msra.mxu0 %v564
        %1165 = vmatpush.msra.mxu0 %v557
        %1166 = vmatpush.msra.mxu0 %v550
        %1167 = vmatpush.msra.mxu0 %v543
        %1168 = vmatpush.msra.mxu0 %v536
        %1169 = vmatpush.msra.mxu0 %v529
        %1170 = vmatmul.f32.gmra.mxu0 %v520
        %v1171 = vpop.f32.mrf.mxu0
        %v1172 = vadd.f32 %v782, %v1171
        %1173 = vdwg.mxu0
        %1174 = vmatpush.msra.mxu0 %v746
        %1175 = vmatpush.msra.mxu0 %v739
        %1176 = vmatpush.msra.mxu0 %v732
        %1177 = vmatpush.msra.mxu0 %v725
        %1178 = vmatpush.msra.mxu0 %v718
        %1179 = vmatpush.msra.mxu0 %v711
        %1180 = vmatpush.msra.mxu0 %v704
        %1181 = vmatpush.msra.mxu0 %v697
        %1182 = vmatpush.msra.mxu0 %v690
        %1183 = vmatpush.msra.mxu0 %v683
        %1184 = vmatpush.msra.mxu0 %v676
        %1185 = vmatpush.msra.mxu0 %v669
        %1186 = vmatpush.msra.mxu0 %v662
        %1187 = vmatpush.msra.mxu0 %v655
        %1188 = vmatpush.msra.mxu0 %v648
        %1189 = vmatpush.msra.mxu0 %v641
        %1190 = vmatmul.f32.gmra.mxu0 %v521
        %v1191 = vpop.f32.mrf.mxu0
        %v1192 = vadd.f32 %v1172, %v1191
        %1193 = vdwg.mxu0
        %1194 = vmatpush.msra.mxu0 0.0
        %1195 = vmatpush.msra.mxu0 0.0
        %1196 = vmatpush.msra.mxu0 0.0
        %1197 = vmatpush.msra.mxu0 0.0
        %1198 = vmatpush.msra.mxu0 0.0
        %1199 = vmatpush.msra.mxu0 0.0
        %1200 = vmatpush.msra.mxu0 0.0
        %1201 = vmatpush.msra.mxu0 0.0
        %1202 = vmatpush.msra.mxu0 0.0
        %1203 = vmatpush.msra.mxu0 0.0
        %1204 = vmatpush.msra.mxu0 0.0
        %1205 = vmatpush.msra.mxu0 0.0
        %1206 = vmatpush.msra.mxu0 %v774
        %1207 = vmatpush.msra.mxu0 %v767
        %1208 = vmatpush.msra.mxu0 %v760
        %1209 = vmatpush.msra.mxu0 %v753
        %1210 = vmatmul.f32.gmra.mxu0 %v792
        %v1211 = vpop.f32.mrf.mxu0
        %v1212 = vadd.f32 %v1192, %v1211
        %1213 = vdwg.mxu0
        %v1214 = vmax.f32 %v852, 0.0
        %v1215 = vmax.f32 %v912, 0.0
        %v1216 = vmax.f32 %v972, 0.0
        %v1217 = vmax.f32 %v1032, 0.0
        %v1218 = vmax.f32 %v1092, 0.0
        %v1219 = vmax.f32 %v1152, 0.0
        %v1220 = vmax.f32 %v1212, 0.0
        %v1221 = vld [vmem:[#allocation6] sm:$0xff]
        %v1222 = vld [vmem:[#allocation6 + $0x8] sm:$0xff]
        %v1223 = vld [vmem:[#allocation6 + $0x10] sm:$0xff]
        %v1224 = vld [vmem:[#allocation6 + $0x18] sm:$0xff]
        %v1225 = vld [vmem:[#allocation6 + $0x20] sm:$0xff]
        %v1226 = vld [vmem:[#allocation6 + $0x28] sm:$0xff]
        %v1227 = vld [vmem:[#allocation6 + $0x30] sm:$0xff]
        %v1228 = vld [vmem:[#allocation6 + $0x38] sm:$0xff]
        %v1229 = vld [vmem:[#allocation6 + $0x40] sm:$0xff]
        %v1230 = vld [vmem:[#allocation6 + $0x48] sm:$0xff]
        %v1231 = vld [vmem:[#allocation6 + $0x50] sm:$0xff]
        %v1232 = vld [vmem:[#allocation6 + $0x58] sm:$0xff]
        %v1233 = vld [vmem:[#allocation6 + $0x60] sm:$0xff]
        %v1234 = vld [vmem:[#allocation6 + $0x68] sm:$0xff]
        %v1235 = vld [vmem:[#allocation6 + $0x70] sm:$0xff]
        %v1236 = vld [vmem:[#allocation6 + $0x78] sm:$0xff]
        %v1237 = vld [vmem:[#allocation6 + $0x80] sm:$0xff]
        %v1238 = vld [vmem:[#allocation6 + $0x88] sm:$0xff]
        %v1239 = vld [vmem:[#allocation6 + $0x90] sm:$0xff]
        %v1240 = vld [vmem:[#allocation6 + $0x98] sm:$0xff]
        %v1241 = vld [vmem:[#allocation6 + $0xa0] sm:$0xff]
        %v1242 = vld [vmem:[#allocation6 + $0xa8] sm:$0xff]
        %v1243 = vld [vmem:[#allocation6 + $0xb0] sm:$0xff]
        %v1244 = vld [vmem:[#allocation6 + $0xb8] sm:$0xff]
        %v1245 = vld [vmem:[#allocation6 + $0xc0] sm:$0xff]
        %v1246 = vld [vmem:[#allocation6 + $0xc8] sm:$0xff]
        %v1247 = vld [vmem:[#allocation6 + $0xd0] sm:$0xff]
        %v1248 = vld [vmem:[#allocation6 + $0xd8] sm:$0xff]
        %v1249 = vld [vmem:[#allocation6 + $0xe0] sm:$0xff]
        %v1250 = vld [vmem:[#allocation6 + $0xe8] sm:$0xff]
        %v1251 = vld [vmem:[#allocation6 + $0xf0] sm:$0xff]
        %v1252 = vld [vmem:[#allocation6 + $0xf8] sm:$0xff]
        %v1253 = vld [vmem:[#allocation6 + $0x100] sm:$0xff]
        %v1254 = vld [vmem:[#allocation6 + $0x108] sm:$0xff]
        %v1255 = vld [vmem:[#allocation6 + $0x110] sm:$0xff]
        %v1256 = vld [vmem:[#allocation6 + $0x118] sm:$0xff]
        %v1257 = vld [vmem:[#allocation6 + $0x120] sm:$0xff]
        %v1258 = vld [vmem:[#allocation6 + $0x128] sm:$0xff]
        %v1259 = vld [vmem:[#allocation6 + $0x130] sm:$0xff]
        %v1260 = vld [vmem:[#allocation6 + $0x138] sm:$0xff]
        %v1261 = vld [vmem:[#allocation6 + $0x140] sm:$0xff]
        %v1262 = vld [vmem:[#allocation6 + $0x148] sm:$0xff]
        %v1263 = vld [vmem:[#allocation6 + $0x150] sm:$0xff]
        %v1264 = vld [vmem:[#allocation6 + $0x158] sm:$0xff]
        %v1265 = vld [vmem:[#allocation6 + $0x160] sm:$0xff]
        %v1266 = vld [vmem:[#allocation6 + $0x168] sm:$0xff]
        %v1267 = vld [vmem:[#allocation6 + $0x170] sm:$0xff]
        %v1268 = vld [vmem:[#allocation6 + $0x178] sm:$0xff]
        %v1269 = vld [vmem:[#allocation6 + $0x180] sm:$0xff]
        %v1270 = vld [vmem:[#allocation6 + $0x188] sm:$0xff]
        %v1271 = vld [vmem:[#allocation6 + $0x190] sm:$0xff]
        %v1272 = vld [vmem:[#allocation6 + $0x198] sm:$0xff]
        %v1273 = vld [vmem:[#allocation6 + $0x1a0] sm:$0xff]
        %v1274 = vld [vmem:[#allocation6 + $0x1a8] sm:$0xff]
        %v1275 = vld [vmem:[#allocation6 + $0x1b0] sm:$0xff]
        %v1276 = vld [vmem:[#allocation6 + $0x1b8] sm:$0xff]
        %v1277 = vld [vmem:[#allocation6 + $0x1c0] sm:$0xff]
        %v1278 = vld [vmem:[#allocation6 + $0x1c8] sm:$0xff]
        %v1279 = vld [vmem:[#allocation6 + $0x1d0] sm:$0xff]
        %v1280 = vld [vmem:[#allocation6 + $0x1d8] sm:$0xff]
        %v1281 = vld [vmem:[#allocation6 + $0x1e0] sm:$0xff]
        %v1282 = vld [vmem:[#allocation6 + $0x1e8] sm:$0xff]
        %v1283 = vld [vmem:[#allocation6 + $0x1f0] sm:$0xff]
        %v1284 = vld [vmem:[#allocation6 + $0x1f8] sm:$0xff]
        %v1285 = vld [vmem:[#allocation6 + $0x200] sm:$0xff]
        %v1286 = vld [vmem:[#allocation6 + $0x208] sm:$0xff]
        %v1287 = vld [vmem:[#allocation6 + $0x210] sm:$0xff]
        %v1288 = vld [vmem:[#allocation6 + $0x218] sm:$0xff]
        %v1289 = vld [vmem:[#allocation6 + $0x220] sm:$0xff]
        %v1290 = vld [vmem:[#allocation6 + $0x228] sm:$0xff]
        %v1291 = vld [vmem:[#allocation6 + $0x230] sm:$0xff]
        %v1292 = vld [vmem:[#allocation6 + $0x238] sm:$0xff]
        %v1293 = vld [vmem:[#allocation6 + $0x240] sm:$0xff]
        %v1294 = vld [vmem:[#allocation6 + $0x248] sm:$0xff]
        %v1295 = vld [vmem:[#allocation6 + $0x250] sm:$0xff]
        %v1296 = vld [vmem:[#allocation6 + $0x258] sm:$0xff]
        %v1297 = vld [vmem:[#allocation6 + $0x260] sm:$0xff]
        %v1298 = vld [vmem:[#allocation6 + $0x268] sm:$0xff]
        %v1299 = vld [vmem:[#allocation6 + $0x270] sm:$0xff]
        %v1300 = vld [vmem:[#allocation6 + $0x278] sm:$0xff]
        %v1301 = vld [vmem:[#allocation6 + $0x280] sm:$0xff]
        %v1302 = vld [vmem:[#allocation6 + $0x288] sm:$0xff]
        %v1303 = vld [vmem:[#allocation6 + $0x290] sm:$0xff]
        %v1304 = vld [vmem:[#allocation6 + $0x298] sm:$0xff]
        %v1305 = vld [vmem:[#allocation6 + $0x2a0] sm:$0xff]
        %v1306 = vld [vmem:[#allocation6 + $0x2a8] sm:$0xff]
        %v1307 = vld [vmem:[#allocation6 + $0x2b0] sm:$0xff]
        %v1308 = vld [vmem:[#allocation6 + $0x2b8] sm:$0xff]
        %v1309 = vld [vmem:[#allocation6 + $0x2c0] sm:$0xff]
        %v1310 = vld [vmem:[#allocation6 + $0x2c8] sm:$0xff]
        %v1311 = vld [vmem:[#allocation6 + $0x2d0] sm:$0xff]
        %v1312 = vld [vmem:[#allocation6 + $0x2d8] sm:$0xff]
        %v1313 = vld [vmem:[#allocation6 + $0x2e0] sm:$0xff]
        %v1314 = vld [vmem:[#allocation6 + $0x2e8] sm:$0xff]
        %v1315 = vld [vmem:[#allocation6 + $0x2f0] sm:$0xff]
        %v1316 = vld [vmem:[#allocation6 + $0x2f8] sm:$0xff]
        %v1317 = vld [vmem:[#allocation6 + $0x300] sm:$0xff]
        %v1318 = vld [vmem:[#allocation6 + $0x308] sm:$0xff]
        %v1319 = vld [vmem:[#allocation6 + $0x310] sm:$0xff]
        %v1320 = vld [vmem:[#allocation6 + $0x318] sm:$0xff]
        %v1321 = vld [vmem:[#allocation6 + $0x320] sm:$0xff]
        %v1322 = vld [vmem:[#allocation6 + $0x328] sm:$0xff]
        %v1323 = vld [vmem:[#allocation6 + $0x330] sm:$0xff]
        %v1324 = vld [vmem:[#allocation6 + $0x338] sm:$0xff]
        %v1325 = vld [vmem:[#allocation6 + $0x340] sm:$0xff]
        %v1326 = vld [vmem:[#allocation6 + $0x348] sm:$0xff]
        %v1327 = vld [vmem:[#allocation6 + $0x350] sm:$0xff]
        %v1328 = vld [vmem:[#allocation6 + $0x358] sm:$0xff]
        %v1329 = vld [vmem:[#allocation6 + $0x360] sm:$0xff]
        %v1330 = vld [vmem:[#allocation6 + $0x368] sm:$0xff]
        %v1331 = vld [vmem:[#allocation6 + $0x370] sm:$0xff]
        %v1332 = vld [vmem:[#allocation6 + $0x378] sm:$0xff]
        %v1333 = vld [vmem:[#allocation6 + $0x380] sm:$0xff]
        %v1334 = vld [vmem:[#allocation6 + $0x388] sm:$0xff]
        %v1335 = vld [vmem:[#allocation6 + $0x390] sm:$0xff]
        %v1336 = vld [vmem:[#allocation6 + $0x398] sm:$0xff]
        %v1337 = vld [vmem:[#allocation6 + $0x3a0] sm:$0xff]
        %v1338 = vld [vmem:[#allocation6 + $0x3a8] sm:$0xff]
        %v1339 = vld [vmem:[#allocation6 + $0x3b0] sm:$0xff]
        %v1340 = vld [vmem:[#allocation6 + $0x3b8] sm:$0xff]
        %v1341 = vld [vmem:[#allocation6 + $0x3c0] sm:$0xff]
        %v1342 = vld [vmem:[#allocation6 + $0x3c8] sm:$0xff]
        %v1343 = vld [vmem:[#allocation6 + $0x3d0] sm:$0xff]
        %v1344 = vld [vmem:[#allocation6 + $0x3d8] sm:$0xff]
        %v1345 = vld [vmem:[#allocation6 + $0x3e0] sm:$0xff]
        %v1346 = vld [vmem:[#allocation6 + $0x3e8] sm:$0xff]
        %v1347 = vld [vmem:[#allocation6 + $0x3f0] sm:$0xff]
        %v1348 = vld [vmem:[#allocation6 + $0x3f8] sm:$0xff]
        %v1349 = vld [vmem:[#allocation6 + $0x400] sm:$0xff]
        %v1350 = vld [vmem:[#allocation6 + $0x408] sm:$0xff]
        %v1351 = vld [vmem:[#allocation6 + $0x410] sm:$0xff]
        %v1352 = vld [vmem:[#allocation6 + $0x418] sm:$0xff]
        %v1353 = vld [vmem:[#allocation6 + $0x420] sm:$0xff]
        %v1354 = vld [vmem:[#allocation6 + $0x428] sm:$0xff]
        %v1355 = vld [vmem:[#allocation6 + $0x430] sm:$0xff]
        %v1356 = vld [vmem:[#allocation6 + $0x438] sm:$0xff]
        %v1357 = vld [vmem:[#allocation6 + $0x440] sm:$0xff]
        %v1358 = vld [vmem:[#allocation6 + $0x448] sm:$0xff]
        %v1359 = vld [vmem:[#allocation6 + $0x450] sm:$0xff]
        %v1360 = vld [vmem:[#allocation6 + $0x458] sm:$0xff]
        %v1361 = vld [vmem:[#allocation6 + $0x460] sm:$0xff]
        %v1362 = vld [vmem:[#allocation6 + $0x468] sm:$0xff]
        %v1363 = vld [vmem:[#allocation6 + $0x470] sm:$0xff]
        %v1364 = vld [vmem:[#allocation6 + $0x478] sm:$0xff]
        %v1365 = vld [vmem:[#allocation6 + $0x480] sm:$0xff]
        %v1366 = vld [vmem:[#allocation6 + $0x488] sm:$0xff]
        %v1367 = vld [vmem:[#allocation6 + $0x490] sm:$0xff]
        %v1368 = vld [vmem:[#allocation6 + $0x498] sm:$0xff]
        %v1369 = vld [vmem:[#allocation6 + $0x4a0] sm:$0xff]
        %v1370 = vld [vmem:[#allocation6 + $0x4a8] sm:$0xff]
        %v1371 = vld [vmem:[#allocation6 + $0x4b0] sm:$0xff]
        %v1372 = vld [vmem:[#allocation6 + $0x4b8] sm:$0xff]
        %v1373 = vld [vmem:[#allocation6 + $0x4c0] sm:$0xff]
        %v1374 = vld [vmem:[#allocation6 + $0x4c8] sm:$0xff]
        %v1375 = vld [vmem:[#allocation6 + $0x4d0] sm:$0xff]
        %v1376 = vld [vmem:[#allocation6 + $0x4d8] sm:$0xff]
        %v1377 = vld [vmem:[#allocation6 + $0x4e0] sm:$0xff]
        %v1378 = vld [vmem:[#allocation6 + $0x4e8] sm:$0xff]
        %v1379 = vld [vmem:[#allocation6 + $0x4f0] sm:$0xff]
        %v1380 = vld [vmem:[#allocation6 + $0x4f8] sm:$0xff]
        %v1381 = vld [vmem:[#allocation6 + $0x500] sm:$0xff]
        %v1382 = vld [vmem:[#allocation6 + $0x508] sm:$0xff]
        %v1383 = vld [vmem:[#allocation6 + $0x510] sm:$0xff]
        %v1384 = vld [vmem:[#allocation6 + $0x518] sm:$0xff]
        %v1385 = vld [vmem:[#allocation6 + $0x520] sm:$0xff]
        %v1386 = vld [vmem:[#allocation6 + $0x528] sm:$0xff]
        %v1387 = vld [vmem:[#allocation6 + $0x530] sm:$0xff]
        %v1388 = vld [vmem:[#allocation6 + $0x538] sm:$0xff]
        %v1389 = vld [vmem:[#allocation6 + $0x540] sm:$0xff]
        %v1390 = vld [vmem:[#allocation6 + $0x548] sm:$0xff]
        %v1391 = vld [vmem:[#allocation6 + $0x550] sm:$0xff]
        %v1392 = vld [vmem:[#allocation6 + $0x558] sm:$0xff]
        %v1393 = vld [vmem:[#allocation6 + $0x560] sm:$0xff]
        %v1394 = vld [vmem:[#allocation6 + $0x568] sm:$0xff]
        %v1395 = vld [vmem:[#allocation6 + $0x570] sm:$0xff]
        %v1396 = vld [vmem:[#allocation6 + $0x578] sm:$0xff]
        %v1397 = vld [vmem:[#allocation6 + $0x580] sm:$0xff]
        %v1398 = vld [vmem:[#allocation6 + $0x588] sm:$0xff]
        %v1399 = vld [vmem:[#allocation6 + $0x590] sm:$0xff]
        %v1400 = vld [vmem:[#allocation6 + $0x598] sm:$0xff]
        %v1401 = vld [vmem:[#allocation6 + $0x5a0] sm:$0xff]
        %v1402 = vld [vmem:[#allocation6 + $0x5a8] sm:$0xff]
        %v1403 = vld [vmem:[#allocation6 + $0x5b0] sm:$0xff]
        %v1404 = vld [vmem:[#allocation6 + $0x5b8] sm:$0xff]
        %v1405 = vld [vmem:[#allocation6 + $0x5c0] sm:$0xff]
        %v1406 = vld [vmem:[#allocation6 + $0x5c8] sm:$0xff]
        %v1407 = vld [vmem:[#allocation6 + $0x5d0] sm:$0xff]
        %v1408 = vld [vmem:[#allocation6 + $0x5d8] sm:$0xff]
        %v1409 = vld [vmem:[#allocation6 + $0x5e0] sm:$0xff]
        %v1410 = vld [vmem:[#allocation6 + $0x5e8] sm:$0xff]
        %v1411 = vld [vmem:[#allocation6 + $0x5f0] sm:$0xff]
        %v1412 = vld [vmem:[#allocation6 + $0x5f8] sm:$0xff]
        %v1413 = vld [vmem:[#allocation6 + $0x600] sm:$0xff]
        %v1414 = vld [vmem:[#allocation6 + $0x608] sm:$0xff]
        %v1415 = vld [vmem:[#allocation6 + $0x610] sm:$0xff]
        %v1416 = vld [vmem:[#allocation6 + $0x618] sm:$0xff]
        %v1417 = vld [vmem:[#allocation6 + $0x620] sm:$0xff]
        %v1418 = vld [vmem:[#allocation6 + $0x628] sm:$0xff]
        %v1419 = vld [vmem:[#allocation6 + $0x630] sm:$0xff]
        %v1420 = vld [vmem:[#allocation6 + $0x638] sm:$0xff]
        %v1421 = vld [vmem:[#allocation6 + $0x640] sm:$0xff]
        %v1422 = vld [vmem:[#allocation6 + $0x648] sm:$0xff]
        %v1423 = vld [vmem:[#allocation6 + $0x650] sm:$0xff]
        %v1424 = vld [vmem:[#allocation6 + $0x658] sm:$0xff]
        %v1425 = vld [vmem:[#allocation6 + $0x660] sm:$0xff]
        %v1426 = vld [vmem:[#allocation6 + $0x668] sm:$0xff]
        %v1427 = vld [vmem:[#allocation6 + $0x670] sm:$0xff]
        %v1428 = vld [vmem:[#allocation6 + $0x678] sm:$0xff]
        %v1429 = vld [vmem:[#allocation6 + $0x680] sm:$0xff]
        %v1430 = vld [vmem:[#allocation6 + $0x688] sm:$0xff]
        %v1431 = vld [vmem:[#allocation6 + $0x690] sm:$0xff]
        %v1432 = vld [vmem:[#allocation6 + $0x698] sm:$0xff]
        %v1433 = vld [vmem:[#allocation6 + $0x6a0] sm:$0xff]
        %v1434 = vld [vmem:[#allocation6 + $0x6a8] sm:$0xff]
        %v1435 = vld [vmem:[#allocation6 + $0x6b0] sm:$0xff]
        %v1436 = vld [vmem:[#allocation6 + $0x6b8] sm:$0xff]
        %v1437 = vld [vmem:[#allocation6 + $0x6c0] sm:$0xff]
        %v1438 = vld [vmem:[#allocation6 + $0x6c8] sm:$0xff]
        %v1439 = vld [vmem:[#allocation6 + $0x6d0] sm:$0xff]
        %v1440 = vld [vmem:[#allocation6 + $0x6d8] sm:$0xff]
        %v1441 = vld [vmem:[#allocation6 + $0x6e0] sm:$0xff]
        %v1442 = vld [vmem:[#allocation6 + $0x6e8] sm:$0xff]
        %v1443 = vld [vmem:[#allocation6 + $0x6f0] sm:$0xff]
        %v1444 = vld [vmem:[#allocation6 + $0x6f8] sm:$0xff]
        %v1445 = vld [vmem:[#allocation6 + $0x700] sm:$0xff]
        %v1446 = vld [vmem:[#allocation6 + $0x708] sm:$0xff]
        %v1447 = vld [vmem:[#allocation6 + $0x710] sm:$0xff]
        %v1448 = vld [vmem:[#allocation6 + $0x718] sm:$0xff]
        %v1449 = vld [vmem:[#allocation6 + $0x720] sm:$0xff]
        %v1450 = vld [vmem:[#allocation6 + $0x728] sm:$0xff]
        %v1451 = vld [vmem:[#allocation6 + $0x730] sm:$0xff]
        %v1452 = vld [vmem:[#allocation6 + $0x738] sm:$0xff]
        %v1453 = vld [vmem:[#allocation6 + $0x740] sm:$0xff]
        %v1454 = vld [vmem:[#allocation6 + $0x748] sm:$0xff]
        %v1455 = vld [vmem:[#allocation6 + $0x750] sm:$0xff]
        %v1456 = vld [vmem:[#allocation6 + $0x758] sm:$0xff]
        %v1457 = vld [vmem:[#allocation6 + $0x760] sm:$0xff]
        %v1458 = vld [vmem:[#allocation6 + $0x768] sm:$0xff]
        %v1459 = vld [vmem:[#allocation6 + $0x770] sm:$0xff]
        %v1460 = vld [vmem:[#allocation6 + $0x778] sm:$0xff]
        %v1461 = vld [vmem:[#allocation6 + $0x780] sm:$0xff]
        %v1462 = vld [vmem:[#allocation6 + $0x788] sm:$0xff]
        %v1463 = vld [vmem:[#allocation6 + $0x790] sm:$0xff]
        %v1464 = vld [vmem:[#allocation6 + $0x798] sm:$0xff]
        %v1465 = vld [vmem:[#allocation6 + $0x7a0] sm:$0xff]
        %v1466 = vld [vmem:[#allocation6 + $0x7a8] sm:$0xff]
        %v1467 = vld [vmem:[#allocation6 + $0x7b0] sm:$0xff]
        %v1468 = vld [vmem:[#allocation6 + $0x7b8] sm:$0xff]
        %v1469 = vld [vmem:[#allocation6 + $0x7c0] sm:$0xff]
        %v1470 = vld [vmem:[#allocation6 + $0x7c8] sm:$0xff]
        %v1471 = vld [vmem:[#allocation6 + $0x7d0] sm:$0xff]
        %v1472 = vld [vmem:[#allocation6 + $0x7d8] sm:$0xff]
        %v1473 = vld [vmem:[#allocation6 + $0x7e0] sm:$0xff]
        %v1474 = vld [vmem:[#allocation6 + $0x7e8] sm:$0xff]
        %v1475 = vld [vmem:[#allocation6 + $0x7f0] sm:$0xff]
        %v1476 = vld [vmem:[#allocation6 + $0x7f8] sm:$0xff]
        %v1477 = vld [vmem:[#allocation6 + $0x800] sm:$0xff]
        %v1478 = vld [vmem:[#allocation6 + $0x808] sm:$0xff]
        %v1479 = vld [vmem:[#allocation6 + $0x810] sm:$0xff]
        %v1480 = vld [vmem:[#allocation6 + $0x818] sm:$0xff]
        %v1481 = vld [vmem:[#allocation6 + $0x820] sm:$0xff]
        %v1482 = vld [vmem:[#allocation6 + $0x828] sm:$0xff]
        %v1483 = vld [vmem:[#allocation6 + $0x830] sm:$0xff]
        %v1484 = vld [vmem:[#allocation6 + $0x838] sm:$0xff]
        %v1485 = vld [vmem:[#allocation6 + $0x840] sm:$0xff]
        %v1486 = vld [vmem:[#allocation6 + $0x848] sm:$0xff]
        %v1487 = vld [vmem:[#allocation6 + $0x850] sm:$0xff]
        %v1488 = vld [vmem:[#allocation6 + $0x858] sm:$0xff]
        %v1489 = vld [vmem:[#allocation6 + $0x860] sm:$0xff]
        %v1490 = vld [vmem:[#allocation6 + $0x868] sm:$0xff]
        %v1491 = vld [vmem:[#allocation6 + $0x870] sm:$0xff]
        %v1492 = vld [vmem:[#allocation6 + $0x878] sm:$0xff]
        %v1493 = vld [vmem:[#allocation6 + $0x880] sm:$0xff]
        %v1494 = vld [vmem:[#allocation6 + $0x888] sm:$0xff]
        %v1495 = vld [vmem:[#allocation6 + $0x890] sm:$0xff]
        %v1496 = vld [vmem:[#allocation6 + $0x898] sm:$0xff]
        %v1497 = vld [vmem:[#allocation6 + $0x8a0] sm:$0xff]
        %v1498 = vld [vmem:[#allocation6 + $0x8a8] sm:$0xff]
        %v1499 = vld [vmem:[#allocation6 + $0x8b0] sm:$0xff]
        %v1500 = vld [vmem:[#allocation6 + $0x8b8] sm:$0xff]
        %v1501 = vld [vmem:[#allocation6 + $0x8c0] sm:$0xff]
        %v1502 = vld [vmem:[#allocation6 + $0x8c8] sm:$0xff]
        %v1503 = vld [vmem:[#allocation6 + $0x8d0] sm:$0xff]
        %v1504 = vld [vmem:[#allocation6 + $0x8d8] sm:$0xff]
        %v1505 = vld [vmem:[#allocation6 + $0x8e0] sm:$0xff]
        %v1506 = vld [vmem:[#allocation6 + $0x8e8] sm:$0xff]
        %v1507 = vld [vmem:[#allocation6 + $0x8f0] sm:$0xff]
        %v1508 = vld [vmem:[#allocation6 + $0x8f8] sm:$0xff]
        %v1509 = vld [vmem:[#allocation6 + $0x900] sm:$0xff]
        %v1510 = vld [vmem:[#allocation6 + $0x908] sm:$0xff]
        %v1511 = vld [vmem:[#allocation6 + $0x910] sm:$0xff]
        %v1512 = vld [vmem:[#allocation6 + $0x918] sm:$0xff]
        %v1513 = vld [vmem:[#allocation6 + $0x920] sm:$0xff]
        %v1514 = vld [vmem:[#allocation6 + $0x928] sm:$0xff]
        %v1515 = vld [vmem:[#allocation6 + $0x930] sm:$0xff]
        %v1516 = vld [vmem:[#allocation6 + $0x938] sm:$0xff]
        %v1517 = vld [vmem:[#allocation6 + $0x940] sm:$0xff]
        %v1518 = vld [vmem:[#allocation6 + $0x948] sm:$0xff]
        %v1519 = vld [vmem:[#allocation6 + $0x950] sm:$0xff]
        %v1520 = vld [vmem:[#allocation6 + $0x958] sm:$0xff]
        %v1521 = vld [vmem:[#allocation6 + $0x960] sm:$0xff]
        %v1522 = vld [vmem:[#allocation6 + $0x968] sm:$0xff]
        %v1523 = vld [vmem:[#allocation6 + $0x970] sm:$0xff]
        %v1524 = vld [vmem:[#allocation6 + $0x978] sm:$0xff]
        %v1525 = vld [vmem:[#allocation6 + $0x980] sm:$0xff]
        %v1526 = vld [vmem:[#allocation6 + $0x988] sm:$0xff]
        %v1527 = vld [vmem:[#allocation6 + $0x990] sm:$0xff]
        %v1528 = vld [vmem:[#allocation6 + $0x998] sm:$0xff]
        %v1529 = vld [vmem:[#allocation6 + $0x9a0] sm:$0xff]
        %v1530 = vld [vmem:[#allocation6 + $0x9a8] sm:$0xff]
        %v1531 = vld [vmem:[#allocation6 + $0x9b0] sm:$0xff]
        %v1532 = vld [vmem:[#allocation6 + $0x9b8] sm:$0xff]
        %v1533 = vld [vmem:[#allocation6 + $0x9c0] sm:$0xff]
        %v1534 = vld [vmem:[#allocation6 + $0x9c8] sm:$0xff]
        %v1535 = vld [vmem:[#allocation6 + $0x9d0] sm:$0xff]
        %v1536 = vld [vmem:[#allocation6 + $0x9d8] sm:$0xff]
        %v1537 = vld [vmem:[#allocation6 + $0x9e0] sm:$0xff]
        %v1538 = vld [vmem:[#allocation6 + $0x9e8] sm:$0xff]
        %v1539 = vld [vmem:[#allocation6 + $0x9f0] sm:$0xff]
        %v1540 = vld [vmem:[#allocation6 + $0x9f8] sm:$0xff]
        %v1541 = vld [vmem:[#allocation6 + $0xa00] sm:$0xff]
        %v1542 = vld [vmem:[#allocation6 + $0xa08] sm:$0xff]
        %v1543 = vld [vmem:[#allocation6 + $0xa10] sm:$0xff]
        %v1544 = vld [vmem:[#allocation6 + $0xa18] sm:$0xff]
        %v1545 = vld [vmem:[#allocation6 + $0xa20] sm:$0xff]
        %v1546 = vld [vmem:[#allocation6 + $0xa28] sm:$0xff]
        %v1547 = vld [vmem:[#allocation6 + $0xa30] sm:$0xff]
        %v1548 = vld [vmem:[#allocation6 + $0xa38] sm:$0xff]
        %v1549 = vld [vmem:[#allocation6 + $0xa40] sm:$0xff]
        %v1550 = vld [vmem:[#allocation6 + $0xa48] sm:$0xff]
        %v1551 = vld [vmem:[#allocation6 + $0xa50] sm:$0xff]
        %v1552 = vld [vmem:[#allocation6 + $0xa58] sm:$0xff]
        %v1553 = vld [vmem:[#allocation6 + $0xa60] sm:$0xff]
        %v1554 = vld [vmem:[#allocation6 + $0xa68] sm:$0xff]
        %v1555 = vld [vmem:[#allocation6 + $0xa70] sm:$0xff]
        %v1556 = vld [vmem:[#allocation6 + $0xa78] sm:$0xff]
        %v1557 = vld [vmem:[#allocation6 + $0xa80] sm:$0xff]
        %v1558 = vld [vmem:[#allocation6 + $0xa88] sm:$0xff]
        %v1559 = vld [vmem:[#allocation6 + $0xa90] sm:$0xff]
        %v1560 = vld [vmem:[#allocation6 + $0xa98] sm:$0xff]
        %v1561 = vld [vmem:[#allocation6 + $0xaa0] sm:$0xff]
        %v1562 = vld [vmem:[#allocation6 + $0xaa8] sm:$0xff]
        %v1563 = vld [vmem:[#allocation6 + $0xab0] sm:$0xff]
        %v1564 = vld [vmem:[#allocation6 + $0xab8] sm:$0xff]
        %v1565 = vld [vmem:[#allocation6 + $0xac0] sm:$0xff]
        %v1566 = vld [vmem:[#allocation6 + $0xac8] sm:$0xff]
        %v1567 = vld [vmem:[#allocation6 + $0xad0] sm:$0xff]
        %v1568 = vld [vmem:[#allocation6 + $0xad8] sm:$0xff]
        %v1569 = vld [vmem:[#allocation6 + $0xae0] sm:$0xff]
        %v1570 = vld [vmem:[#allocation6 + $0xae8] sm:$0xff]
        %v1571 = vld [vmem:[#allocation6 + $0xaf0] sm:$0xff]
        %v1572 = vld [vmem:[#allocation6 + $0xaf8] sm:$0xff]
        %v1573 = vld [vmem:[#allocation6 + $0xb00] sm:$0xff]
        %v1574 = vld [vmem:[#allocation6 + $0xb08] sm:$0xff]
        %v1575 = vld [vmem:[#allocation6 + $0xb10] sm:$0xff]
        %v1576 = vld [vmem:[#allocation6 + $0xb18] sm:$0xff]
        %v1577 = vld [vmem:[#allocation6 + $0xb20] sm:$0xff]
        %v1578 = vld [vmem:[#allocation6 + $0xb28] sm:$0xff]
        %v1579 = vld [vmem:[#allocation6 + $0xb30] sm:$0xff]
        %v1580 = vld [vmem:[#allocation6 + $0xb38] sm:$0xff]
        %v1581 = vld [vmem:[#allocation6 + $0xb40] sm:$0xff]
        %v1582 = vld [vmem:[#allocation6 + $0xb48] sm:$0xff]
        %v1583 = vld [vmem:[#allocation6 + $0xb50] sm:$0xff]
        %v1584 = vld [vmem:[#allocation6 + $0xb58] sm:$0xff]
        %v1585 = vld [vmem:[#allocation6 + $0xb60] sm:$0xff]
        %v1586 = vld [vmem:[#allocation6 + $0xb68] sm:$0xff]
        %v1587 = vld [vmem:[#allocation6 + $0xb70] sm:$0xff]
        %v1588 = vld [vmem:[#allocation6 + $0xb78] sm:$0xff]
        %v1589 = vld [vmem:[#allocation6 + $0xb80] sm:$0xff]
        %v1590 = vld [vmem:[#allocation6 + $0xb88] sm:$0xff]
        %v1591 = vld [vmem:[#allocation6 + $0xb90] sm:$0xff]
        %v1592 = vld [vmem:[#allocation6 + $0xb98] sm:$0xff]
        %v1593 = vld [vmem:[#allocation6 + $0xba0] sm:$0xff]
        %v1594 = vld [vmem:[#allocation6 + $0xba8] sm:$0xff]
        %v1595 = vld [vmem:[#allocation6 + $0xbb0] sm:$0xff]
        %v1596 = vld [vmem:[#allocation6 + $0xbb8] sm:$0xff]
        %v1597 = vld [vmem:[#allocation6 + $0xbc0] sm:$0xff]
        %v1598 = vld [vmem:[#allocation6 + $0xbc8] sm:$0xff]
        %v1599 = vld [vmem:[#allocation6 + $0xbd0] sm:$0xff]
        %v1600 = vld [vmem:[#allocation6 + $0xbd8] sm:$0xff]
        %v1601 = vld [vmem:[#allocation6 + $0xbe0] sm:$0xff]
        %v1602 = vld [vmem:[#allocation6 + $0xbe8] sm:$0xff]
        %v1603 = vld [vmem:[#allocation6 + $0xbf0] sm:$0xff]
        %v1604 = vld [vmem:[#allocation6 + $0xbf8] sm:$0xff]
        %v1605 = vld [vmem:[#allocation6 + $0xc00] sm:$0xff]
        %v1606 = vld [vmem:[#allocation6 + $0xc08] sm:$0xff]
        %v1607 = vld [vmem:[#allocation6 + $0xc10] sm:$0xff]
        %v1608 = vld [vmem:[#allocation6 + $0xc18] sm:$0xff]
        %v1609 = vld [vmem:[#allocation6 + $0xc20] sm:$0xff]
        %v1610 = vld [vmem:[#allocation6 + $0xc28] sm:$0xff]
        %v1611 = vld [vmem:[#allocation6 + $0xc30] sm:$0xff]
        %v1612 = vld [vmem:[#allocation6 + $0xc38] sm:$0xff]
        %v1613 = vld [vmem:[#allocation6 + $0xc40] sm:$0xff]
        %v1614 = vld [vmem:[#allocation6 + $0xc48] sm:$0xff]
        %v1615 = vld [vmem:[#allocation6 + $0xc50] sm:$0xff]
        %v1616 = vld [vmem:[#allocation6 + $0xc58] sm:$0xff]
        %v1617 = vld [vmem:[#allocation6 + $0xc60] sm:$0xff]
        %v1618 = vld [vmem:[#allocation6 + $0xc68] sm:$0xff]
        %v1619 = vld [vmem:[#allocation6 + $0xc70] sm:$0xff]
        %v1620 = vld [vmem:[#allocation6 + $0xc78] sm:$0xff]
        %v1621 = vld [vmem:[#allocation6 + $0xc80] sm:$0xff]
        %v1622 = vld [vmem:[#allocation6 + $0xc88] sm:$0xff]
        %v1623 = vld [vmem:[#allocation6 + $0xc90] sm:$0xff]
        %v1624 = vld [vmem:[#allocation6 + $0xc98] sm:$0xff]
        %v1625 = vld [vmem:[#allocation6 + $0xca0] sm:$0xff]
        %v1626 = vld [vmem:[#allocation6 + $0xca8] sm:$0xff]
        %v1627 = vld [vmem:[#allocation6 + $0xcb0] sm:$0xff]
        %v1628 = vld [vmem:[#allocation6 + $0xcb8] sm:$0xff]
        %v1629 = vld [vmem:[#allocation6 + $0xcc0] sm:$0xff]
        %v1630 = vld [vmem:[#allocation6 + $0xcc8] sm:$0xff]
        %v1631 = vld [vmem:[#allocation6 + $0xcd0] sm:$0xff]
        %v1632 = vld [vmem:[#allocation6 + $0xcd8] sm:$0xff]
        %v1633 = vld [vmem:[#allocation6 + $0xce0] sm:$0xff]
        %v1634 = vld [vmem:[#allocation6 + $0xce8] sm:$0xff]
        %v1635 = vld [vmem:[#allocation6 + $0xcf0] sm:$0xff]
        %v1636 = vld [vmem:[#allocation6 + $0xcf8] sm:$0xff]
        %v1637 = vld [vmem:[#allocation6 + $0xd00] sm:$0xff]
        %v1638 = vld [vmem:[#allocation6 + $0xd08] sm:$0xff]
        %v1639 = vld [vmem:[#allocation6 + $0xd10] sm:$0xff]
        %v1640 = vld [vmem:[#allocation6 + $0xd18] sm:$0xff]
        %v1641 = vld [vmem:[#allocation6 + $0xd20] sm:$0xff]
        %v1642 = vld [vmem:[#allocation6 + $0xd28] sm:$0xff]
        %v1643 = vld [vmem:[#allocation6 + $0xd30] sm:$0xff]
        %v1644 = vld [vmem:[#allocation6 + $0xd38] sm:$0xff]
        %v1645 = vld [vmem:[#allocation6 + $0xd40] sm:$0xff]
        %v1646 = vld [vmem:[#allocation6 + $0xd48] sm:$0xff]
        %v1647 = vld [vmem:[#allocation6 + $0xd50] sm:$0xff]
        %v1648 = vld [vmem:[#allocation6 + $0xd58] sm:$0xff]
        %v1649 = vld [vmem:[#allocation6 + $0xd60] sm:$0xff]
        %v1650 = vld [vmem:[#allocation6 + $0xd68] sm:$0xff]
        %v1651 = vld [vmem:[#allocation6 + $0xd70] sm:$0xff]
        %v1652 = vld [vmem:[#allocation6 + $0xd78] sm:$0xff]
        %v1653 = vld [vmem:[#allocation6 + $0xd80] sm:$0xff]
        %v1654 = vld [vmem:[#allocation6 + $0xd88] sm:$0xff]
        %v1655 = vld [vmem:[#allocation6 + $0xd90] sm:$0xff]
        %v1656 = vld [vmem:[#allocation6 + $0xd98] sm:$0xff]
        %v1657 = vld [vmem:[#allocation6 + $0xda0] sm:$0xff]
        %v1658 = vld [vmem:[#allocation6 + $0xda8] sm:$0xff]
        %v1659 = vld [vmem:[#allocation6 + $0xdb0] sm:$0xff]
        %v1660 = vld [vmem:[#allocation6 + $0xdb8] sm:$0xff]
        %v1661 = vld [vmem:[#allocation6 + $0xdc0] sm:$0xff]
        %v1662 = vld [vmem:[#allocation6 + $0xdc8] sm:$0xff]
        %v1663 = vld [vmem:[#allocation6 + $0xdd0] sm:$0xff]
        %v1664 = vld [vmem:[#allocation6 + $0xdd8] sm:$0xff]
        %v1665 = vld [vmem:[#allocation6 + $0xde0] sm:$0xff]
        %v1666 = vld [vmem:[#allocation6 + $0xde8] sm:$0xff]
        %v1667 = vld [vmem:[#allocation6 + $0xdf0] sm:$0xff]
        %v1668 = vld [vmem:[#allocation6 + $0xdf8] sm:$0xff]
        %v1669 = vld [vmem:[#allocation6 + $0xe00] sm:$0xff]
        %v1670 = vld [vmem:[#allocation6 + $0xe08] sm:$0xff]
        %v1671 = vld [vmem:[#allocation6 + $0xe10] sm:$0xff]
        %v1672 = vld [vmem:[#allocation6 + $0xe18] sm:$0xff]
        %v1673 = vld [vmem:[#allocation6 + $0xe20] sm:$0xff]
        %v1674 = vld [vmem:[#allocation6 + $0xe28] sm:$0xff]
        %v1675 = vld [vmem:[#allocation6 + $0xe30] sm:$0xff]
        %v1676 = vld [vmem:[#allocation6 + $0xe38] sm:$0xff]
        %v1677 = vld [vmem:[#allocation6 + $0xe40] sm:$0xff]
        %v1678 = vld [vmem:[#allocation6 + $0xe48] sm:$0xff]
        %v1679 = vld [vmem:[#allocation6 + $0xe50] sm:$0xff]
        %v1680 = vld [vmem:[#allocation6 + $0xe58] sm:$0xff]
        %v1681 = vld [vmem:[#allocation6 + $0xe60] sm:$0xff]
        %v1682 = vld [vmem:[#allocation6 + $0xe68] sm:$0xff]
        %v1683 = vld [vmem:[#allocation6 + $0xe70] sm:$0xff]
        %v1684 = vld [vmem:[#allocation6 + $0xe78] sm:$0xff]
        %v1685 = vld [vmem:[#allocation6 + $0xe80] sm:$0xff]
        %v1686 = vld [vmem:[#allocation6 + $0xe88] sm:$0xff]
        %v1687 = vld [vmem:[#allocation6 + $0xe90] sm:$0xff]
        %v1688 = vld [vmem:[#allocation6 + $0xe98] sm:$0xff]
        %v1689 = vld [vmem:[#allocation6 + $0xea0] sm:$0xff]
        %v1690 = vld [vmem:[#allocation6 + $0xea8] sm:$0xff]
        %v1691 = vld [vmem:[#allocation6 + $0xeb0] sm:$0xff]
        %v1692 = vld [vmem:[#allocation6 + $0xeb8] sm:$0xff]
        %v1693 = vld [vmem:[#allocation6 + $0xec0] sm:$0xff]
        %v1694 = vld [vmem:[#allocation6 + $0xec8] sm:$0xff]
        %v1695 = vld [vmem:[#allocation6 + $0xed0] sm:$0xff]
        %v1696 = vld [vmem:[#allocation6 + $0xed8] sm:$0xff]
        %v1697 = vld [vmem:[#allocation6 + $0xee0] sm:$0xff]
        %v1698 = vld [vmem:[#allocation6 + $0xee8] sm:$0xff]
        %v1699 = vld [vmem:[#allocation6 + $0xef0] sm:$0xff]
        %v1700 = vld [vmem:[#allocation6 + $0xef8] sm:$0xff]
        %v1701 = vld [vmem:[#allocation6 + $0xf00] sm:$0xff]
        %v1702 = vld [vmem:[#allocation6 + $0xf08] sm:$0xff]
        %v1703 = vld [vmem:[#allocation6 + $0xf10] sm:$0xff]
        %v1704 = vld [vmem:[#allocation6 + $0xf18] sm:$0xff]
        %v1705 = vld [vmem:[#allocation6 + $0xf20] sm:$0xff]
        %v1706 = vld [vmem:[#allocation6 + $0xf28] sm:$0xff]
        %v1707 = vld [vmem:[#allocation6 + $0xf30] sm:$0xff]
        %v1708 = vld [vmem:[#allocation6 + $0xf38] sm:$0xff]
        %v1709 = vld [vmem:[#allocation6 + $0xf40] sm:$0xff]
        %v1710 = vld [vmem:[#allocation6 + $0xf48] sm:$0xff]
        %v1711 = vld [vmem:[#allocation6 + $0xf50] sm:$0xff]
        %v1712 = vld [vmem:[#allocation6 + $0xf58] sm:$0xff]
        %v1713 = vld [vmem:[#allocation6 + $0xf60] sm:$0xff]
        %v1714 = vld [vmem:[#allocation6 + $0xf68] sm:$0xff]
        %v1715 = vld [vmem:[#allocation6 + $0xf70] sm:$0xff]
        %v1716 = vld [vmem:[#allocation6 + $0xf78] sm:$0xff]
        %v1717 = vld [vmem:[#allocation6 + $0xf80] sm:$0xff]
        %v1718 = vld [vmem:[#allocation6 + $0xf88] sm:$0xff]
        %v1719 = vld [vmem:[#allocation6 + $0xf90] sm:$0xff]
        %v1720 = vld [vmem:[#allocation6 + $0xf98] sm:$0xff]
        %v1721 = vld [vmem:[#allocation6 + $0xfa0] sm:$0xff]
        %v1722 = vld [vmem:[#allocation6 + $0xfa8] sm:$0xff]
        %v1723 = vld [vmem:[#allocation6 + $0xfb0] sm:$0xff]
        %v1724 = vld [vmem:[#allocation6 + $0xfb8] sm:$0xff]
        %v1725 = vld [vmem:[#allocation6 + $0xfc0] sm:$0xff]
        %v1726 = vld [vmem:[#allocation6 + $0xfc8] sm:$0xff]
        %v1727 = vld [vmem:[#allocation6 + $0xfd0] sm:$0xff]
        %v1728 = vld [vmem:[#allocation6 + $0xfd8] sm:$0xff]
        %v1729 = vld [vmem:[#allocation6 + $0xfe0] sm:$0xff]
        %v1730 = vld [vmem:[#allocation6 + $0xfe8] sm:$0xff]
        %v1731 = vld [vmem:[#allocation6 + $0xff0] sm:$0xff]
        %v1732 = vld [vmem:[#allocation6 + $0xff8] sm:$0xff]
        %v1733 = vld [vmem:[#allocation6 + $0x1000] sm:$0xff]
        %v1734 = vld [vmem:[#allocation6 + $0x1008] sm:$0xff]
        %v1735 = vld [vmem:[#allocation6 + $0x1010] sm:$0xff]
        %v1736 = vld [vmem:[#allocation6 + $0x1018] sm:$0xff]
        %v1737 = vld [vmem:[#allocation6 + $0x1020] sm:$0xff]
        %v1738 = vld [vmem:[#allocation6 + $0x1028] sm:$0xff]
        %v1739 = vld [vmem:[#allocation6 + $0x1030] sm:$0xff]
        %v1740 = vld [vmem:[#allocation6 + $0x1038] sm:$0xff]
        %v1741 = vld [vmem:[#allocation6 + $0x1040] sm:$0xff]
        %v1742 = vld [vmem:[#allocation6 + $0x1048] sm:$0xff]
        %v1743 = vld [vmem:[#allocation6 + $0x1050] sm:$0xff]
        %v1744 = vld [vmem:[#allocation6 + $0x1058] sm:$0xff]
        %v1745 = vld [vmem:[#allocation6 + $0x1060] sm:$0xff]
        %v1746 = vld [vmem:[#allocation6 + $0x1068] sm:$0xff]
        %v1747 = vld [vmem:[#allocation6 + $0x1070] sm:$0xff]
        %v1748 = vld [vmem:[#allocation6 + $0x1078] sm:$0xff]
        %v1749 = vld [vmem:[#allocation6 + $0x1080] sm:$0xff]
        %v1750 = vld [vmem:[#allocation6 + $0x1088] sm:$0xff]
        %v1751 = vld [vmem:[#allocation6 + $0x1090] sm:$0xff]
        %v1752 = vld [vmem:[#allocation6 + $0x1098] sm:$0xff]
        %v1753 = vld [vmem:[#allocation6 + $0x10a0] sm:$0xff]
        %v1754 = vld [vmem:[#allocation6 + $0x10a8] sm:$0xff]
        %v1755 = vld [vmem:[#allocation6 + $0x10b0] sm:$0xff]
        %v1756 = vld [vmem:[#allocation6 + $0x10b8] sm:$0xff]
        %v1757 = vld [vmem:[#allocation6 + $0x10c0] sm:$0xff]
        %v1758 = vld [vmem:[#allocation6 + $0x10c8] sm:$0xff]
        %v1759 = vld [vmem:[#allocation6 + $0x10d0] sm:$0xff]
        %v1760 = vld [vmem:[#allocation6 + $0x10d8] sm:$0xff]
        %v1761 = vld [vmem:[#allocation6 + $0x10e0] sm:$0xff]
        %v1762 = vld [vmem:[#allocation6 + $0x10e8] sm:$0xff]
        %v1763 = vld [vmem:[#allocation6 + $0x10f0] sm:$0xff]
        %v1764 = vld [vmem:[#allocation6 + $0x10f8] sm:$0xff]
        %v1765 = vld [vmem:[#allocation6 + $0x1100] sm:$0xff]
        %v1766 = vld [vmem:[#allocation6 + $0x1108] sm:$0xff]
        %v1767 = vld [vmem:[#allocation6 + $0x1110] sm:$0xff]
        %v1768 = vld [vmem:[#allocation6 + $0x1118] sm:$0xff]
        %v1769 = vld [vmem:[#allocation6 + $0x1120] sm:$0xff]
        %v1770 = vld [vmem:[#allocation6 + $0x1128] sm:$0xff]
        %v1771 = vld [vmem:[#allocation6 + $0x1130] sm:$0xff]
        %v1772 = vld [vmem:[#allocation6 + $0x1138] sm:$0xff]
        %v1773 = vld [vmem:[#allocation6 + $0x1140] sm:$0xff]
        %v1774 = vld [vmem:[#allocation6 + $0x1148] sm:$0xff]
        %v1775 = vld [vmem:[#allocation6 + $0x1150] sm:$0xff]
        %v1776 = vld [vmem:[#allocation6 + $0x1158] sm:$0xff]
        %v1777 = vld [vmem:[#allocation6 + $0x1160] sm:$0xff]
        %v1778 = vld [vmem:[#allocation6 + $0x1168] sm:$0xff]
        %v1779 = vld [vmem:[#allocation6 + $0x1170] sm:$0xff]
        %v1780 = vld [vmem:[#allocation6 + $0x1178] sm:$0xff]
        %v1781 = vld [vmem:[#allocation6 + $0x1180] sm:$0xff]
        %v1782 = vld [vmem:[#allocation6 + $0x1188] sm:$0xff]
        %v1783 = vld [vmem:[#allocation6 + $0x1190] sm:$0xff]
        %v1784 = vld [vmem:[#allocation6 + $0x1198] sm:$0xff]
        %v1785 = vld [vmem:[#allocation6 + $0x11a0] sm:$0xff]
        %v1786 = vld [vmem:[#allocation6 + $0x11a8] sm:$0xff]
        %v1787 = vld [vmem:[#allocation6 + $0x11b0] sm:$0xff]
        %v1788 = vld [vmem:[#allocation6 + $0x11b8] sm:$0xff]
        %v1789 = vld [vmem:[#allocation6 + $0x11c0] sm:$0xff]
        %v1790 = vld [vmem:[#allocation6 + $0x11c8] sm:$0xff]
        %v1791 = vld [vmem:[#allocation6 + $0x11d0] sm:$0xff]
        %v1792 = vld [vmem:[#allocation6 + $0x11d8] sm:$0xff]
        %v1793 = vld [vmem:[#allocation6 + $0x11e0] sm:$0xff]
        %v1794 = vld [vmem:[#allocation6 + $0x11e8] sm:$0xff]
        %v1795 = vld [vmem:[#allocation6 + $0x11f0] sm:$0xff]
        %v1796 = vld [vmem:[#allocation6 + $0x11f8] sm:$0xff]
        %v1797 = vld [vmem:[#allocation6 + $0x1200] sm:$0xff]
        %v1798 = vld [vmem:[#allocation6 + $0x1208] sm:$0xff]
        %v1799 = vld [vmem:[#allocation6 + $0x1210] sm:$0xff]
        %v1800 = vld [vmem:[#allocation6 + $0x1218] sm:$0xff]
        %v1801 = vld [vmem:[#allocation6 + $0x1220] sm:$0xff]
        %v1802 = vld [vmem:[#allocation6 + $0x1228] sm:$0xff]
        %v1803 = vld [vmem:[#allocation6 + $0x1230] sm:$0xff]
        %v1804 = vld [vmem:[#allocation6 + $0x1238] sm:$0xff]
        %v1805 = vld [vmem:[#allocation6 + $0x1240] sm:$0xff]
        %v1806 = vld [vmem:[#allocation6 + $0x1248] sm:$0xff]
        %v1807 = vld [vmem:[#allocation6 + $0x1250] sm:$0xff]
        %v1808 = vld [vmem:[#allocation6 + $0x1258] sm:$0xff]
        %v1809 = vld [vmem:[#allocation6 + $0x1260] sm:$0xff]
        %v1810 = vld [vmem:[#allocation6 + $0x1268] sm:$0xff]
        %v1811 = vld [vmem:[#allocation6 + $0x1270] sm:$0xff]
        %v1812 = vld [vmem:[#allocation6 + $0x1278] sm:$0xff]
        %v1813 = vld [vmem:[#allocation6 + $0x1280] sm:$0xff]
        %v1814 = vld [vmem:[#allocation6 + $0x1288] sm:$0xff]
        %v1815 = vld [vmem:[#allocation6 + $0x1290] sm:$0xff]
        %v1816 = vld [vmem:[#allocation6 + $0x1298] sm:$0xff]
        %v1817 = vld [vmem:[#allocation6 + $0x12a0] sm:$0xff]
        %v1818 = vld [vmem:[#allocation6 + $0x12a8] sm:$0xff]
        %v1819 = vld [vmem:[#allocation6 + $0x12b0] sm:$0xff]
        %v1820 = vld [vmem:[#allocation6 + $0x12b8] sm:$0xff]
        %v1821 = vld [vmem:[#allocation6 + $0x12c0] sm:$0xff]
        %v1822 = vld [vmem:[#allocation6 + $0x12c8] sm:$0xff]
        %v1823 = vld [vmem:[#allocation6 + $0x12d0] sm:$0xff]
        %v1824 = vld [vmem:[#allocation6 + $0x12d8] sm:$0xff]
        %v1825 = vld [vmem:[#allocation6 + $0x12e0] sm:$0xff]
        %v1826 = vld [vmem:[#allocation6 + $0x12e8] sm:$0xff]
        %v1827 = vld [vmem:[#allocation6 + $0x12f0] sm:$0xff]
        %v1828 = vld [vmem:[#allocation6 + $0x12f8] sm:$0xff]
        %v1829 = vld [vmem:[#allocation6 + $0x1300] sm:$0xff]
        %v1830 = vld [vmem:[#allocation6 + $0x1308] sm:$0xff]
        %v1831 = vld [vmem:[#allocation6 + $0x1310] sm:$0xff]
        %v1832 = vld [vmem:[#allocation6 + $0x1318] sm:$0xff]
        %v1833 = vld [vmem:[#allocation6 + $0x1320] sm:$0xff]
        %v1834 = vld [vmem:[#allocation6 + $0x1328] sm:$0xff]
        %v1835 = vld [vmem:[#allocation6 + $0x1330] sm:$0xff]
        %v1836 = vld [vmem:[#allocation6 + $0x1338] sm:$0xff]
        %v1837 = vld [vmem:[#allocation6 + $0x1340] sm:$0xff]
        %v1838 = vld [vmem:[#allocation6 + $0x1348] sm:$0xff]
        %v1839 = vld [vmem:[#allocation6 + $0x1350] sm:$0xff]
        %v1840 = vld [vmem:[#allocation6 + $0x1358] sm:$0xff]
        %v1841 = vld [vmem:[#allocation6 + $0x1360] sm:$0xff]
        %v1842 = vld [vmem:[#allocation6 + $0x1368] sm:$0xff]
        %v1843 = vld [vmem:[#allocation6 + $0x1370] sm:$0xff]
        %v1844 = vld [vmem:[#allocation6 + $0x1378] sm:$0xff]
        %v1845 = vld [vmem:[#allocation6 + $0x1380] sm:$0xff]
        %v1846 = vld [vmem:[#allocation6 + $0x1388] sm:$0xff]
        %v1847 = vld [vmem:[#allocation6 + $0x1390] sm:$0xff]
        %v1848 = vld [vmem:[#allocation6 + $0x1398] sm:$0xff]
        %v1849 = vld [vmem:[#allocation6 + $0x13a0] sm:$0xff]
        %v1850 = vld [vmem:[#allocation6 + $0x13a8] sm:$0xff]
        %v1851 = vld [vmem:[#allocation6 + $0x13b0] sm:$0xff]
        %v1852 = vld [vmem:[#allocation6 + $0x13b8] sm:$0xff]
        %v1853 = vld [vmem:[#allocation6 + $0x13c0] sm:$0xff]
        %v1854 = vld [vmem:[#allocation6 + $0x13c8] sm:$0xff]
        %v1855 = vld [vmem:[#allocation6 + $0x13d0] sm:$0xff]
        %v1856 = vld [vmem:[#allocation6 + $0x13d8] sm:$0xff]
        %v1857 = vld [vmem:[#allocation6 + $0x13e0] sm:$0xff]
        %v1858 = vld [vmem:[#allocation6 + $0x13e8] sm:$0xff]
        %v1859 = vld [vmem:[#allocation6 + $0x13f0] sm:$0xff]
        %v1860 = vld [vmem:[#allocation6 + $0x13f8] sm:$0xff]
        %v1861 = vld [vmem:[#allocation6 + $0x1400] sm:$0xff]
        %v1862 = vld [vmem:[#allocation6 + $0x1408] sm:$0xff]
        %v1863 = vld [vmem:[#allocation6 + $0x1410] sm:$0xff]
        %v1864 = vld [vmem:[#allocation6 + $0x1418] sm:$0xff]
        %v1865 = vld [vmem:[#allocation6 + $0x1420] sm:$0xff]
        %v1866 = vld [vmem:[#allocation6 + $0x1428] sm:$0xff]
        %v1867 = vld [vmem:[#allocation6 + $0x1430] sm:$0xff]
        %v1868 = vld [vmem:[#allocation6 + $0x1438] sm:$0xff]
        %v1869 = vld [vmem:[#allocation6 + $0x1440] sm:$0xff]
        %v1870 = vld [vmem:[#allocation6 + $0x1448] sm:$0xff]
        %v1871 = vld [vmem:[#allocation6 + $0x1450] sm:$0xff]
        %v1872 = vld [vmem:[#allocation6 + $0x1458] sm:$0xff]
        %v1873 = vld [vmem:[#allocation6 + $0x1460] sm:$0xff]
        %v1874 = vld [vmem:[#allocation6 + $0x1468] sm:$0xff]
        %v1875 = vld [vmem:[#allocation6 + $0x1470] sm:$0xff]
        %v1876 = vld [vmem:[#allocation6 + $0x1478] sm:$0xff]
        %v1877 = vld [vmem:[#allocation6 + $0x1480] sm:$0xff]
        %v1878 = vld [vmem:[#allocation6 + $0x1488] sm:$0xff]
        %v1879 = vld [vmem:[#allocation6 + $0x1490] sm:$0xff]
        %v1880 = vld [vmem:[#allocation6 + $0x1498] sm:$0xff]
        %v1881 = vld [vmem:[#allocation6 + $0x14a0] sm:$0xff]
        %v1882 = vld [vmem:[#allocation6 + $0x14a8] sm:$0xff]
        %v1883 = vld [vmem:[#allocation6 + $0x14b0] sm:$0xff]
        %v1884 = vld [vmem:[#allocation6 + $0x14b8] sm:$0xff]
        %v1885 = vld [vmem:[#allocation6 + $0x14c0] sm:$0xff]
        %v1886 = vld [vmem:[#allocation6 + $0x14c8] sm:$0xff]
        %v1887 = vld [vmem:[#allocation6 + $0x14d0] sm:$0xff]
        %v1888 = vld [vmem:[#allocation6 + $0x14d8] sm:$0xff]
        %v1889 = vld [vmem:[#allocation6 + $0x14e0] sm:$0xff]
        %v1890 = vld [vmem:[#allocation6 + $0x14e8] sm:$0xff]
        %v1891 = vld [vmem:[#allocation6 + $0x14f0] sm:$0xff]
        %v1892 = vld [vmem:[#allocation6 + $0x14f8] sm:$0xff]
        %v1893 = vld [vmem:[#allocation6 + $0x1500] sm:$0xff]
        %v1894 = vld [vmem:[#allocation6 + $0x1508] sm:$0xff]
        %v1895 = vld [vmem:[#allocation6 + $0x1510] sm:$0xff]
        %v1896 = vld [vmem:[#allocation6 + $0x1518] sm:$0xff]
        %v1897 = vld [vmem:[#allocation6 + $0x1520] sm:$0xff]
        %v1898 = vld [vmem:[#allocation6 + $0x1528] sm:$0xff]
        %v1899 = vld [vmem:[#allocation6 + $0x1530] sm:$0xff]
        %v1900 = vld [vmem:[#allocation6 + $0x1538] sm:$0xff]
        %v1901 = vld [vmem:[#allocation6 + $0x1540] sm:$0xff]
        %v1902 = vld [vmem:[#allocation6 + $0x1548] sm:$0xff]
        %v1903 = vld [vmem:[#allocation6 + $0x1550] sm:$0xff]
        %v1904 = vld [vmem:[#allocation6 + $0x1558] sm:$0xff]
        %v1905 = vld [vmem:[#allocation6 + $0x1560] sm:$0xff]
        %v1906 = vld [vmem:[#allocation6 + $0x1568] sm:$0xff]
        %v1907 = vld [vmem:[#allocation6 + $0x1570] sm:$0xff]
        %v1908 = vld [vmem:[#allocation6 + $0x1578] sm:$0xff]
        %v1909 = vld [vmem:[#allocation6 + $0x1580] sm:$0xff]
        %v1910 = vld [vmem:[#allocation6 + $0x1588] sm:$0xff]
        %v1911 = vld [vmem:[#allocation6 + $0x1590] sm:$0xff]
        %v1912 = vld [vmem:[#allocation6 + $0x1598] sm:$0xff]
        %v1913 = vld [vmem:[#allocation6 + $0x15a0] sm:$0xff]
        %v1914 = vld [vmem:[#allocation6 + $0x15a8] sm:$0xff]
        %v1915 = vld [vmem:[#allocation6 + $0x15b0] sm:$0xff]
        %v1916 = vld [vmem:[#allocation6 + $0x15b8] sm:$0xff]
        %v1917 = vld [vmem:[#allocation6 + $0x15c0] sm:$0xff]
        %v1918 = vld [vmem:[#allocation6 + $0x15c8] sm:$0xff]
        %v1919 = vld [vmem:[#allocation6 + $0x15d0] sm:$0xff]
        %v1920 = vld [vmem:[#allocation6 + $0x15d8] sm:$0xff]
        %v1921 = vld [vmem:[#allocation6 + $0x15e0] sm:$0xff]
        %v1922 = vld [vmem:[#allocation6 + $0x15e8] sm:$0xff]
        %v1923 = vld [vmem:[#allocation6 + $0x15f0] sm:$0xff]
        %v1924 = vld [vmem:[#allocation6 + $0x15f8] sm:$0xff]
        %v1925 = vld [vmem:[#allocation6 + $0x1600] sm:$0xff]
        %v1926 = vld [vmem:[#allocation6 + $0x1608] sm:$0xff]
        %v1927 = vld [vmem:[#allocation6 + $0x1610] sm:$0xff]
        %v1928 = vld [vmem:[#allocation6 + $0x1618] sm:$0xff]
        %v1929 = vld [vmem:[#allocation6 + $0x1620] sm:$0xff]
        %v1930 = vld [vmem:[#allocation6 + $0x1628] sm:$0xff]
        %v1931 = vld [vmem:[#allocation6 + $0x1630] sm:$0xff]
        %v1932 = vld [vmem:[#allocation6 + $0x1638] sm:$0xff]
        %v1933 = vld [vmem:[#allocation6 + $0x1640] sm:$0xff]
        %v1934 = vld [vmem:[#allocation6 + $0x1648] sm:$0xff]
        %v1935 = vld [vmem:[#allocation6 + $0x1650] sm:$0xff]
        %v1936 = vld [vmem:[#allocation6 + $0x1658] sm:$0xff]
        %v1937 = vld [vmem:[#allocation6 + $0x1660] sm:$0xff]
        %v1938 = vld [vmem:[#allocation6 + $0x1668] sm:$0xff]
        %v1939 = vld [vmem:[#allocation6 + $0x1670] sm:$0xff]
        %v1940 = vld [vmem:[#allocation6 + $0x1678] sm:$0xff]
        %v1941 = vld [vmem:[#allocation6 + $0x1680] sm:$0xff]
        %v1942 = vld [vmem:[#allocation6 + $0x1688] sm:$0xff]
        %v1943 = vld [vmem:[#allocation6 + $0x1690] sm:$0xff]
        %v1944 = vld [vmem:[#allocation6 + $0x1698] sm:$0xff]
        %v1945 = vld [vmem:[#allocation6 + $0x16a0] sm:$0xff]
        %v1946 = vld [vmem:[#allocation6 + $0x16a8] sm:$0xff]
        %v1947 = vld [vmem:[#allocation6 + $0x16b0] sm:$0xff]
        %v1948 = vld [vmem:[#allocation6 + $0x16b8] sm:$0xff]
        %v1949 = vld [vmem:[#allocation6 + $0x16c0] sm:$0xff]
        %v1950 = vld [vmem:[#allocation6 + $0x16c8] sm:$0xff]
        %v1951 = vld [vmem:[#allocation6 + $0x16d0] sm:$0xff]
        %v1952 = vld [vmem:[#allocation6 + $0x16d8] sm:$0xff]
        %v1953 = vld [vmem:[#allocation6 + $0x16e0] sm:$0xff]
        %v1954 = vld [vmem:[#allocation6 + $0x16e8] sm:$0xff]
        %v1955 = vld [vmem:[#allocation6 + $0x16f0] sm:$0xff]
        %v1956 = vld [vmem:[#allocation6 + $0x16f8] sm:$0xff]
        %v1957 = vld [vmem:[#allocation6 + $0x1700] sm:$0xff]
        %v1958 = vld [vmem:[#allocation6 + $0x1708] sm:$0xff]
        %v1959 = vld [vmem:[#allocation6 + $0x1710] sm:$0xff]
        %v1960 = vld [vmem:[#allocation6 + $0x1718] sm:$0xff]
        %v1961 = vld [vmem:[#allocation6 + $0x1720] sm:$0xff]
        %v1962 = vld [vmem:[#allocation6 + $0x1728] sm:$0xff]
        %v1963 = vld [vmem:[#allocation6 + $0x1730] sm:$0xff]
        %v1964 = vld [vmem:[#allocation6 + $0x1738] sm:$0xff]
        %v1965 = vld [vmem:[#allocation6 + $0x1740] sm:$0xff]
        %v1966 = vld [vmem:[#allocation6 + $0x1748] sm:$0xff]
        %v1967 = vld [vmem:[#allocation6 + $0x1750] sm:$0xff]
        %v1968 = vld [vmem:[#allocation6 + $0x1758] sm:$0xff]
        %v1969 = vld [vmem:[#allocation6 + $0x1760] sm:$0xff]
        %v1970 = vld [vmem:[#allocation6 + $0x1768] sm:$0xff]
        %v1971 = vld [vmem:[#allocation6 + $0x1770] sm:$0xff]
        %v1972 = vld [vmem:[#allocation6 + $0x1778] sm:$0xff]
        %v1973 = vld [vmem:[#allocation6 + $0x1780] sm:$0xff]
        %v1974 = vld [vmem:[#allocation6 + $0x1788] sm:$0xff]
        %v1975 = vld [vmem:[#allocation6 + $0x1790] sm:$0xff]
        %v1976 = vld [vmem:[#allocation6 + $0x1798] sm:$0xff]
        %v1977 = vld [vmem:[#allocation6 + $0x17a0] sm:$0xff]
        %v1978 = vld [vmem:[#allocation6 + $0x17a8] sm:$0xff]
        %v1979 = vld [vmem:[#allocation6 + $0x17b0] sm:$0xff]
        %v1980 = vld [vmem:[#allocation6 + $0x17b8] sm:$0xff]
        %v1981 = vld [vmem:[#allocation6 + $0x17c0] sm:$0xff]
        %v1982 = vld [vmem:[#allocation6 + $0x17c8] sm:$0xff]
        %v1983 = vld [vmem:[#allocation6 + $0x17d0] sm:$0xff]
        %v1984 = vld [vmem:[#allocation6 + $0x17d8] sm:$0xff]
        %v1985 = vld [vmem:[#allocation6 + $0x17e0] sm:$0xff]
        %v1986 = vld [vmem:[#allocation6 + $0x17e8] sm:$0xff]
        %v1987 = vld [vmem:[#allocation6 + $0x17f0] sm:$0xff]
        %v1988 = vld [vmem:[#allocation6 + $0x17f8] sm:$0xff]
        %v1989 = vld [vmem:[#allocation6 + $0x1800] sm:$0xff]
        %v1990 = vld [vmem:[#allocation6 + $0x1808] sm:$0xff]
        %v1991 = vld [vmem:[#allocation6 + $0x1810] sm:$0xff]
        %v1992 = vld [vmem:[#allocation6 + $0x1818] sm:$0xff]
        %v1993 = vld [vmem:[#allocation6 + $0x1820] sm:$0xff]
        %v1994 = vld [vmem:[#allocation6 + $0x1828] sm:$0xff]
        %v1995 = vld [vmem:[#allocation6 + $0x1830] sm:$0xff]
        %v1996 = vld [vmem:[#allocation6 + $0x1838] sm:$0xff]
        %v1997 = vld [vmem:[#allocation6 + $0x1840] sm:$0xff]
        %v1998 = vld [vmem:[#allocation6 + $0x1848] sm:$0xff]
        %v1999 = vld [vmem:[#allocation6 + $0x1850] sm:$0xff]
        %v2000 = vld [vmem:[#allocation6 + $0x1858] sm:$0xff]
        %v2001 = vld [vmem:[#allocation6 + $0x1860] sm:$0xff]
        %v2002 = vld [vmem:[#allocation6 + $0x1868] sm:$0xff]
        %v2003 = vld [vmem:[#allocation6 + $0x1870] sm:$0xff]
        %v2004 = vld [vmem:[#allocation6 + $0x1878] sm:$0xff]
        %v2005 = vld [vmem:[#allocation6 + $0x1880] sm:$0xff]
        %v2006 = vld [vmem:[#allocation6 + $0x1888] sm:$0xff]
        %v2007 = vld [vmem:[#allocation6 + $0x1890] sm:$0xff]
        %v2008 = vld [vmem:[#allocation6 + $0x1898] sm:$0xff]
        %v2009 = vld [vmem:[#allocation6 + $0x18a0] sm:$0xff]
        %v2010 = vld [vmem:[#allocation6 + $0x18a8] sm:$0xff]
        %v2011 = vld [vmem:[#allocation6 + $0x18b0] sm:$0xff]
        %v2012 = vld [vmem:[#allocation6 + $0x18b8] sm:$0xff]
        %v2013 = vld [vmem:[#allocation6 + $0x18c0] sm:$0xff]
        %v2014 = vld [vmem:[#allocation6 + $0x18c8] sm:$0xff]
        %v2015 = vld [vmem:[#allocation6 + $0x18d0] sm:$0xff]
        %v2016 = vld [vmem:[#allocation6 + $0x18d8] sm:$0xff]
        %v2017 = vld [vmem:[#allocation6 + $0x18e0] sm:$0xff]
        %v2018 = vld [vmem:[#allocation6 + $0x18e8] sm:$0xff]
        %v2019 = vld [vmem:[#allocation6 + $0x18f0] sm:$0xff]
        %v2020 = vld [vmem:[#allocation6 + $0x18f8] sm:$0xff]
        %v2021 = vld [vmem:[#allocation6 + $0x1900] sm:$0xff]
        %v2022 = vld [vmem:[#allocation6 + $0x1908] sm:$0xff]
        %v2023 = vld [vmem:[#allocation6 + $0x1910] sm:$0xff]
        %v2024 = vld [vmem:[#allocation6 + $0x1918] sm:$0xff]
        %v2025 = vld [vmem:[#allocation6 + $0x1920] sm:$0xff]
        %v2026 = vld [vmem:[#allocation6 + $0x1928] sm:$0xff]
        %v2027 = vld [vmem:[#allocation6 + $0x1930] sm:$0xff]
        %v2028 = vld [vmem:[#allocation6 + $0x1938] sm:$0xff]
        %v2029 = vld [vmem:[#allocation6 + $0x1940] sm:$0xff]
        %v2030 = vld [vmem:[#allocation6 + $0x1948] sm:$0xff]
        %v2031 = vld [vmem:[#allocation6 + $0x1950] sm:$0xff]
        %v2032 = vld [vmem:[#allocation6 + $0x1958] sm:$0xff]
        %v2033 = vld [vmem:[#allocation6 + $0x1960] sm:$0xff]
        %v2034 = vld [vmem:[#allocation6 + $0x1968] sm:$0xff]
        %v2035 = vld [vmem:[#allocation6 + $0x1970] sm:$0xff]
        %v2036 = vld [vmem:[#allocation6 + $0x1978] sm:$0xff]
        %v2037 = vld [vmem:[#allocation6 + $0x1980] sm:$0xff]
        %v2038 = vld [vmem:[#allocation6 + $0x1988] sm:$0xff]
        %v2039 = vld [vmem:[#allocation6 + $0x1990] sm:$0xff]
        %v2040 = vld [vmem:[#allocation6 + $0x1998] sm:$0xff]
        %v2041 = vld [vmem:[#allocation6 + $0x19a0] sm:$0xff]
        %v2042 = vld [vmem:[#allocation6 + $0x19a8] sm:$0xff]
        %v2043 = vld [vmem:[#allocation6 + $0x19b0] sm:$0xff]
        %v2044 = vld [vmem:[#allocation6 + $0x19b8] sm:$0xff]
        %v2045 = vld [vmem:[#allocation6 + $0x19c0] sm:$0xff]
        %v2046 = vld [vmem:[#allocation6 + $0x19c8] sm:$0xff]
        %v2047 = vld [vmem:[#allocation6 + $0x19d0] sm:$0xff]
        %v2048 = vld [vmem:[#allocation6 + $0x19d8] sm:$0xff]
        %v2049 = vld [vmem:[#allocation6 + $0x19e0] sm:$0xff]
        %v2050 = vld [vmem:[#allocation6 + $0x19e8] sm:$0xff]
        %v2051 = vld [vmem:[#allocation6 + $0x19f0] sm:$0xff]
        %v2052 = vld [vmem:[#allocation6 + $0x19f8] sm:$0xff]
        %v2053 = vld [vmem:[#allocation6 + $0x1a00] sm:$0xff]
        %v2054 = vld [vmem:[#allocation6 + $0x1a08] sm:$0xff]
        %v2055 = vld [vmem:[#allocation6 + $0x1a10] sm:$0xff]
        %v2056 = vld [vmem:[#allocation6 + $0x1a18] sm:$0xff]
        %v2057 = vld [vmem:[#allocation6 + $0x1a20] sm:$0xff]
        %v2058 = vld [vmem:[#allocation6 + $0x1a28] sm:$0xff]
        %v2059 = vld [vmem:[#allocation6 + $0x1a30] sm:$0xff]
        %v2060 = vld [vmem:[#allocation6 + $0x1a38] sm:$0xff]
        %v2061 = vld [vmem:[#allocation6 + $0x1a40] sm:$0xff]
        %v2062 = vld [vmem:[#allocation6 + $0x1a48] sm:$0xff]
        %v2063 = vld [vmem:[#allocation6 + $0x1a50] sm:$0xff]
        %v2064 = vld [vmem:[#allocation6 + $0x1a58] sm:$0xff]
        %v2065 = vld [vmem:[#allocation6 + $0x1a60] sm:$0xff]
        %v2066 = vld [vmem:[#allocation6 + $0x1a68] sm:$0xff]
        %v2067 = vld [vmem:[#allocation6 + $0x1a70] sm:$0xff]
        %v2068 = vld [vmem:[#allocation6 + $0x1a78] sm:$0xff]
        %v2069 = vld [vmem:[#allocation6 + $0x1a80] sm:$0xff]
        %v2070 = vld [vmem:[#allocation6 + $0x1a88] sm:$0xff]
        %v2071 = vld [vmem:[#allocation6 + $0x1a90] sm:$0xff]
        %v2072 = vld [vmem:[#allocation6 + $0x1a98] sm:$0xff]
        %v2073 = vld [vmem:[#allocation6 + $0x1aa0] sm:$0xff]
        %v2074 = vld [vmem:[#allocation6 + $0x1aa8] sm:$0xff]
        %v2075 = vld [vmem:[#allocation6 + $0x1ab0] sm:$0xff]
        %v2076 = vld [vmem:[#allocation6 + $0x1ab8] sm:$0xff]
        %v2077 = vld [vmem:[#allocation6 + $0x1ac0] sm:$0xff]
        %v2078 = vld [vmem:[#allocation6 + $0x1ac8] sm:$0xff]
        %v2079 = vld [vmem:[#allocation6 + $0x1ad0] sm:$0xff]
        %v2080 = vld [vmem:[#allocation6 + $0x1ad8] sm:$0xff]
        %v2081 = vld [vmem:[#allocation6 + $0x1ae0] sm:$0xff]
        %v2082 = vld [vmem:[#allocation6 + $0x1ae8] sm:$0xff]
        %v2083 = vld [vmem:[#allocation6 + $0x1af0] sm:$0xff]
        %v2084 = vld [vmem:[#allocation6 + $0x1af8] sm:$0xff]
        %v2085 = vld [vmem:[#allocation6 + $0x1b00] sm:$0xff]
        %v2086 = vld [vmem:[#allocation6 + $0x1b08] sm:$0xff]
        %v2087 = vld [vmem:[#allocation6 + $0x1b10] sm:$0xff]
        %v2088 = vld [vmem:[#allocation6 + $0x1b18] sm:$0xff]
        %v2089 = vld [vmem:[#allocation6 + $0x1b20] sm:$0xff]
        %v2090 = vld [vmem:[#allocation6 + $0x1b28] sm:$0xff]
        %v2091 = vld [vmem:[#allocation6 + $0x1b30] sm:$0xff]
        %v2092 = vld [vmem:[#allocation6 + $0x1b38] sm:$0xff]
        %v2093 = vld [vmem:[#allocation6 + $0x1b40] sm:$0xff]
        %v2094 = vld [vmem:[#allocation6 + $0x1b48] sm:$0xff]
        %v2095 = vld [vmem:[#allocation6 + $0x1b50] sm:$0xff]
        %v2096 = vld [vmem:[#allocation6 + $0x1b58] sm:$0xff]
        %v2097 = vld [vmem:[#allocation6 + $0x1b60] sm:$0xff]
        %v2098 = vld [vmem:[#allocation6 + $0x1b68] sm:$0xff]
        %v2099 = vld [vmem:[#allocation6 + $0x1b70] sm:$0xff]
        %v2100 = vld [vmem:[#allocation6 + $0x1b78] sm:$0xff]
        %v2101 = vld [vmem:[#allocation6 + $0x1b80] sm:$0xff]
        %v2102 = vld [vmem:[#allocation6 + $0x1b88] sm:$0xff]
        %v2103 = vld [vmem:[#allocation6 + $0x1b90] sm:$0xff]
        %v2104 = vld [vmem:[#allocation6 + $0x1b98] sm:$0xff]
        %v2105 = vld [vmem:[#allocation6 + $0x1ba0] sm:$0xff]
        %v2106 = vld [vmem:[#allocation6 + $0x1ba8] sm:$0xff]
        %v2107 = vld [vmem:[#allocation6 + $0x1bb0] sm:$0xff]
        %v2108 = vld [vmem:[#allocation6 + $0x1bb8] sm:$0xff]
        %v2109 = vld [vmem:[#allocation6 + $0x1bc0] sm:$0xff]
        %v2110 = vld [vmem:[#allocation6 + $0x1bc8] sm:$0xff]
        %v2111 = vld [vmem:[#allocation6 + $0x1bd0] sm:$0xff]
        %v2112 = vld [vmem:[#allocation6 + $0x1bd8] sm:$0xff]
        %v2113 = vld [vmem:[#allocation6 + $0x1be0] sm:$0xff]
        %v2114 = vld [vmem:[#allocation6 + $0x1be8] sm:$0xff]
        %v2115 = vld [vmem:[#allocation6 + $0x1bf0] sm:$0xff]
        %v2116 = vld [vmem:[#allocation6 + $0x1bf8] sm:$0xff]
        %v2117 = vld [vmem:[#allocation6 + $0x1c00] sm:$0xff]
        %v2118 = vld [vmem:[#allocation6 + $0x1c08] sm:$0xff]
        %v2119 = vld [vmem:[#allocation6 + $0x1c10] sm:$0xff]
        %v2120 = vld [vmem:[#allocation6 + $0x1c18] sm:$0xff]
        %v2121 = vld [vmem:[#allocation6 + $0x1c20] sm:$0xff]
        %v2122 = vld [vmem:[#allocation6 + $0x1c28] sm:$0xff]
        %v2123 = vld [vmem:[#allocation6 + $0x1c30] sm:$0xff]
        %v2124 = vld [vmem:[#allocation6 + $0x1c38] sm:$0xff]
        %v2125 = vld [vmem:[#allocation6 + $0x1c40] sm:$0xff]
        %v2126 = vld [vmem:[#allocation6 + $0x1c48] sm:$0xff]
        %v2127 = vld [vmem:[#allocation6 + $0x1c50] sm:$0xff]
        %v2128 = vld [vmem:[#allocation6 + $0x1c58] sm:$0xff]
        %v2129 = vld [vmem:[#allocation6 + $0x1c60] sm:$0xff]
        %v2130 = vld [vmem:[#allocation6 + $0x1c68] sm:$0xff]
        %v2131 = vld [vmem:[#allocation6 + $0x1c70] sm:$0xff]
        %v2132 = vld [vmem:[#allocation6 + $0x1c78] sm:$0xff]
        %v2133 = vld [vmem:[#allocation6 + $0x1c80] sm:$0xff]
        %v2134 = vld [vmem:[#allocation6 + $0x1c88] sm:$0xff]
        %v2135 = vld [vmem:[#allocation6 + $0x1c90] sm:$0xff]
        %v2136 = vld [vmem:[#allocation6 + $0x1c98] sm:$0xff]
        %v2137 = vld [vmem:[#allocation6 + $0x1ca0] sm:$0xff]
        %v2138 = vld [vmem:[#allocation6 + $0x1ca8] sm:$0xff]
        %v2139 = vld [vmem:[#allocation6 + $0x1cb0] sm:$0xff]
        %v2140 = vld [vmem:[#allocation6 + $0x1cb8] sm:$0xff]
        %v2141 = vld [vmem:[#allocation6 + $0x1cc0] sm:$0xff]
        %v2142 = vld [vmem:[#allocation6 + $0x1cc8] sm:$0xff]
        %v2143 = vld [vmem:[#allocation6 + $0x1cd0] sm:$0xff]
        %v2144 = vld [vmem:[#allocation6 + $0x1cd8] sm:$0xff]
        %v2145 = vld [vmem:[#allocation6 + $0x1ce0] sm:$0xff]
        %v2146 = vld [vmem:[#allocation6 + $0x1ce8] sm:$0xff]
        %v2147 = vld [vmem:[#allocation6 + $0x1cf0] sm:$0xff]
        %v2148 = vld [vmem:[#allocation6 + $0x1cf8] sm:$0xff]
        %v2149 = vld [vmem:[#allocation6 + $0x1d00] sm:$0xff]
        %v2150 = vld [vmem:[#allocation6 + $0x1d08] sm:$0xff]
        %v2151 = vld [vmem:[#allocation6 + $0x1d10] sm:$0xff]
        %v2152 = vld [vmem:[#allocation6 + $0x1d18] sm:$0xff]
        %v2153 = vld [vmem:[#allocation6 + $0x1d20] sm:$0xff]
        %v2154 = vld [vmem:[#allocation6 + $0x1d28] sm:$0xff]
        %v2155 = vld [vmem:[#allocation6 + $0x1d30] sm:$0xff]
        %v2156 = vld [vmem:[#allocation6 + $0x1d38] sm:$0xff]
        %v2157 = vld [vmem:[#allocation6 + $0x1d40] sm:$0xff]
        %v2158 = vld [vmem:[#allocation6 + $0x1d48] sm:$0xff]
        %v2159 = vld [vmem:[#allocation6 + $0x1d50] sm:$0xff]
        %v2160 = vld [vmem:[#allocation6 + $0x1d58] sm:$0xff]
        %v2161 = vld [vmem:[#allocation6 + $0x1d60] sm:$0xff]
        %v2162 = vld [vmem:[#allocation6 + $0x1d68] sm:$0xff]
        %v2163 = vld [vmem:[#allocation6 + $0x1d70] sm:$0xff]
        %v2164 = vld [vmem:[#allocation6 + $0x1d78] sm:$0xff]
        %v2165 = vld [vmem:[#allocation6 + $0x1d80] sm:$0xff]
        %v2166 = vld [vmem:[#allocation6 + $0x1d88] sm:$0xff]
        %v2167 = vld [vmem:[#allocation6 + $0x1d90] sm:$0xff]
        %v2168 = vld [vmem:[#allocation6 + $0x1d98] sm:$0xff]
        %v2169 = vld [vmem:[#allocation6 + $0x1da0] sm:$0xff]
        %v2170 = vld [vmem:[#allocation6 + $0x1da8] sm:$0xff]
        %v2171 = vld [vmem:[#allocation6 + $0x1db0] sm:$0xff]
        %v2172 = vld [vmem:[#allocation6 + $0x1db8] sm:$0xff]
        %v2173 = vld [vmem:[#allocation6 + $0x1dc0] sm:$0xff]
        %v2174 = vld [vmem:[#allocation6 + $0x1dc8] sm:$0xff]
        %v2175 = vld [vmem:[#allocation6 + $0x1dd0] sm:$0xff]
        %v2176 = vld [vmem:[#allocation6 + $0x1dd8] sm:$0xff]
        %v2177 = vld [vmem:[#allocation6 + $0x1de0] sm:$0xff]
        %v2178 = vld [vmem:[#allocation6 + $0x1de8] sm:$0xff]
        %v2179 = vld [vmem:[#allocation6 + $0x1df0] sm:$0xff]
        %v2180 = vld [vmem:[#allocation6 + $0x1df8] sm:$0xff]
        %v2181 = vld [vmem:[#allocation6 + $0x1e00] sm:$0xff]
        %v2182 = vld [vmem:[#allocation6 + $0x1e08] sm:$0xff]
        %v2183 = vld [vmem:[#allocation6 + $0x1e10] sm:$0xff]
        %v2184 = vld [vmem:[#allocation6 + $0x1e18] sm:$0xff]
        %v2185 = vld [vmem:[#allocation6 + $0x1e20] sm:$0xff]
        %v2186 = vld [vmem:[#allocation6 + $0x1e28] sm:$0xff]
        %v2187 = vld [vmem:[#allocation6 + $0x1e30] sm:$0xff]
        %v2188 = vld [vmem:[#allocation6 + $0x1e38] sm:$0xff]
        %v2189 = vld [vmem:[#allocation6 + $0x1e40] sm:$0xff]
        %v2190 = vld [vmem:[#allocation6 + $0x1e48] sm:$0xff]
        %v2191 = vld [vmem:[#allocation6 + $0x1e50] sm:$0xff]
        %v2192 = vld [vmem:[#allocation6 + $0x1e58] sm:$0xff]
        %v2193 = vld [vmem:[#allocation6 + $0x1e60] sm:$0xff]
        %v2194 = vld [vmem:[#allocation6 + $0x1e68] sm:$0xff]
        %v2195 = vld [vmem:[#allocation6 + $0x1e70] sm:$0xff]
        %v2196 = vld [vmem:[#allocation6 + $0x1e78] sm:$0xff]
        %v2197 = vld [vmem:[#allocation6 + $0x1e80] sm:$0xff]
        %v2198 = vld [vmem:[#allocation6 + $0x1e88] sm:$0xff]
        %v2199 = vld [vmem:[#allocation6 + $0x1e90] sm:$0xff]
        %v2200 = vld [vmem:[#allocation6 + $0x1e98] sm:$0xff]
        %v2201 = vld [vmem:[#allocation6 + $0x1ea0] sm:$0xff]
        %v2202 = vld [vmem:[#allocation6 + $0x1ea8] sm:$0xff]
        %v2203 = vld [vmem:[#allocation6 + $0x1eb0] sm:$0xff]
        %v2204 = vld [vmem:[#allocation6 + $0x1eb8] sm:$0xff]
        %v2205 = vld [vmem:[#allocation6 + $0x1ec0] sm:$0xff]
        %v2206 = vld [vmem:[#allocation6 + $0x1ec8] sm:$0xff]
        %v2207 = vld [vmem:[#allocation6 + $0x1ed0] sm:$0xff]
        %v2208 = vld [vmem:[#allocation6 + $0x1ed8] sm:$0xff]
        %v2209 = vld [vmem:[#allocation6 + $0x1ee0] sm:$0xff]
        %v2210 = vld [vmem:[#allocation6 + $0x1ee8] sm:$0xff]
        %v2211 = vld [vmem:[#allocation6 + $0x1ef0] sm:$0xff]
        %v2212 = vld [vmem:[#allocation6 + $0x1ef8] sm:$0xff]
        %v2213 = vld [vmem:[#allocation6 + $0x1f00] sm:$0xff]
        %v2214 = vld [vmem:[#allocation6 + $0x1f08] sm:$0xff]
        %v2215 = vld [vmem:[#allocation6 + $0x1f10] sm:$0xff]
        %v2216 = vld [vmem:[#allocation6 + $0x1f18] sm:$0xff]
        %v2217 = vld [vmem:[#allocation6 + $0x1f20] sm:$0xff]
        %v2218 = vld [vmem:[#allocation6 + $0x1f28] sm:$0xff]
        %v2219 = vld [vmem:[#allocation6 + $0x1f30] sm:$0xff]
        %v2220 = vld [vmem:[#allocation6 + $0x1f38] sm:$0xff]
        %v2221 = vld [vmem:[#allocation6 + $0x1f40] sm:$0xff]
        %v2222 = vld [vmem:[#allocation6 + $0x1f48] sm:$0xff]
        %v2223 = vld [vmem:[#allocation6 + $0x1f50] sm:$0xff]
        %v2224 = vld [vmem:[#allocation6 + $0x1f58] sm:$0xff]
        %v2225 = vld [vmem:[#allocation6 + $0x1f60] sm:$0xff]
        %v2226 = vld [vmem:[#allocation6 + $0x1f68] sm:$0xff]
        %v2227 = vld [vmem:[#allocation6 + $0x1f70] sm:$0xff]
        %v2228 = vld [vmem:[#allocation6 + $0x1f78] sm:$0xff]
        %v2229 = vld [vmem:[#allocation6 + $0x1f80] sm:$0xff]
        %v2230 = vld [vmem:[#allocation6 + $0x1f88] sm:$0xff]
        %v2231 = vld [vmem:[#allocation6 + $0x1f90] sm:$0xff]
        %v2232 = vld [vmem:[#allocation6 + $0x1f98] sm:$0xff]
        %v2233 = vld [vmem:[#allocation6 + $0x1fa0] sm:$0xff]
        %v2234 = vld [vmem:[#allocation6 + $0x1fa8] sm:$0xff]
        %v2235 = vld [vmem:[#allocation6 + $0x1fb0] sm:$0xff]
        %v2236 = vld [vmem:[#allocation6 + $0x1fb8] sm:$0xff]
        %v2237 = vld [vmem:[#allocation6 + $0x1fc0] sm:$0xff]
        %v2238 = vld [vmem:[#allocation6 + $0x1fc8] sm:$0xff]
        %v2239 = vld [vmem:[#allocation6 + $0x1fd0] sm:$0xff]
        %v2240 = vld [vmem:[#allocation6 + $0x1fd8] sm:$0xff]
        %v2241 = vld [vmem:[#allocation6 + $0x1fe0] sm:$0xff]
        %v2242 = vld [vmem:[#allocation6 + $0x1fe8] sm:$0xff]
        %v2243 = vld [vmem:[#allocation6 + $0x1ff0] sm:$0xff]
        %v2244 = vld [vmem:[#allocation6 + $0x1ff8] sm:$0xff]
        %v2245 = vld [vmem:[#allocation6 + $0x2000] sm:$0xff]
        %v2246 = vld [vmem:[#allocation6 + $0x2008] sm:$0xff]
        %v2247 = vld [vmem:[#allocation6 + $0x2010] sm:$0xff]
        %v2248 = vld [vmem:[#allocation6 + $0x2018] sm:$0xff]
        %v2249 = vld [vmem:[#allocation6 + $0x2020] sm:$0xff]
        %v2250 = vld [vmem:[#allocation6 + $0x2028] sm:$0xff]
        %v2251 = vld [vmem:[#allocation6 + $0x2030] sm:$0xff]
        %v2252 = vld [vmem:[#allocation6 + $0x2038] sm:$0xff]
        %v2253 = vld [vmem:[#allocation6 + $0x2040] sm:$0xff]
        %v2254 = vld [vmem:[#allocation6 + $0x2048] sm:$0xff]
        %v2255 = vld [vmem:[#allocation6 + $0x2050] sm:$0xff]
        %v2256 = vld [vmem:[#allocation6 + $0x2058] sm:$0xff]
        %v2257 = vld [vmem:[#allocation6 + $0x2060] sm:$0xff]
        %v2258 = vld [vmem:[#allocation6 + $0x2068] sm:$0xff]
        %v2259 = vld [vmem:[#allocation6 + $0x2070] sm:$0xff]
        %v2260 = vld [vmem:[#allocation6 + $0x2078] sm:$0xff]
        %v2261 = vld [vmem:[#allocation6 + $0x2080] sm:$0xff]
        %v2262 = vld [vmem:[#allocation6 + $0x2088] sm:$0xff]
        %v2263 = vld [vmem:[#allocation6 + $0x2090] sm:$0xff]
        %v2264 = vld [vmem:[#allocation6 + $0x2098] sm:$0xff]
        %v2265 = vld [vmem:[#allocation6 + $0x20a0] sm:$0xff]
        %v2266 = vld [vmem:[#allocation6 + $0x20a8] sm:$0xff]
        %v2267 = vld [vmem:[#allocation6 + $0x20b0] sm:$0xff]
        %v2268 = vld [vmem:[#allocation6 + $0x20b8] sm:$0xff]
        %v2269 = vld [vmem:[#allocation6 + $0x20c0] sm:$0xff]
        %v2270 = vld [vmem:[#allocation6 + $0x20c8] sm:$0xff]
        %v2271 = vld [vmem:[#allocation6 + $0x20d0] sm:$0xff]
        %v2272 = vld [vmem:[#allocation6 + $0x20d8] sm:$0xff]
        %v2273 = vld [vmem:[#allocation6 + $0x20e0] sm:$0xff]
        %v2274 = vld [vmem:[#allocation6 + $0x20e8] sm:$0xff]
        %v2275 = vld [vmem:[#allocation6 + $0x20f0] sm:$0xff]
        %v2276 = vld [vmem:[#allocation6 + $0x20f8] sm:$0xff]
        %v2277 = vld [vmem:[#allocation6 + $0x2100] sm:$0xff]
        %v2278 = vld [vmem:[#allocation6 + $0x2108] sm:$0xff]
        %v2279 = vld [vmem:[#allocation6 + $0x2110] sm:$0xff]
        %v2280 = vld [vmem:[#allocation6 + $0x2118] sm:$0xff]
        %v2281 = vld [vmem:[#allocation6 + $0x2120] sm:$0xff]
        %v2282 = vld [vmem:[#allocation6 + $0x2128] sm:$0xff]
        %v2283 = vld [vmem:[#allocation6 + $0x2130] sm:$0xff]
        %v2284 = vld [vmem:[#allocation6 + $0x2138] sm:$0xff]
        %v2285 = vld [vmem:[#allocation6 + $0x2140] sm:$0xff]
        %v2286 = vld [vmem:[#allocation6 + $0x2148] sm:$0xff]
        %v2287 = vld [vmem:[#allocation6 + $0x2150] sm:$0xff]
        %v2288 = vld [vmem:[#allocation6 + $0x2158] sm:$0xff]
        %v2289 = vld [vmem:[#allocation6 + $0x2160] sm:$0xff]
        %v2290 = vld [vmem:[#allocation6 + $0x2168] sm:$0xff]
        %v2291 = vld [vmem:[#allocation6 + $0x2170] sm:$0xff]
        %v2292 = vld [vmem:[#allocation6 + $0x2178] sm:$0xff]
        %v2293 = vld [vmem:[#allocation6 + $0x2180] sm:$0xff]
        %v2294 = vld [vmem:[#allocation6 + $0x2188] sm:$0xff]
        %v2295 = vld [vmem:[#allocation6 + $0x2190] sm:$0xff]
        %v2296 = vld [vmem:[#allocation6 + $0x2198] sm:$0xff]
        %v2297 = vld [vmem:[#allocation6 + $0x21a0] sm:$0xff]
        %v2298 = vld [vmem:[#allocation6 + $0x21a8] sm:$0xff]
        %v2299 = vld [vmem:[#allocation6 + $0x21b0] sm:$0xff]
        %v2300 = vld [vmem:[#allocation6 + $0x21b8] sm:$0xff]
        %v2301 = vld [vmem:[#allocation6 + $0x21c0] sm:$0xff]
        %v2302 = vld [vmem:[#allocation6 + $0x21c8] sm:$0xff]
        %v2303 = vld [vmem:[#allocation6 + $0x21d0] sm:$0xff]
        %v2304 = vld [vmem:[#allocation6 + $0x21d8] sm:$0xff]
        %v2305 = vld [vmem:[#allocation6 + $0x21e0] sm:$0xff]
        %v2306 = vld [vmem:[#allocation6 + $0x21e8] sm:$0xff]
        %v2307 = vld [vmem:[#allocation6 + $0x21f0] sm:$0xff]
        %v2308 = vld [vmem:[#allocation6 + $0x21f8] sm:$0xff]
        %v2309 = vld [vmem:[#allocation6 + $0x2200] sm:$0xff]
        %v2310 = vld [vmem:[#allocation6 + $0x2208] sm:$0xff]
        %v2311 = vld [vmem:[#allocation6 + $0x2210] sm:$0xff]
        %v2312 = vld [vmem:[#allocation6 + $0x2218] sm:$0xff]
        %v2313 = vld [vmem:[#allocation6 + $0x2220] sm:$0xff]
        %v2314 = vld [vmem:[#allocation6 + $0x2228] sm:$0xff]
        %v2315 = vld [vmem:[#allocation6 + $0x2230] sm:$0xff]
        %v2316 = vld [vmem:[#allocation6 + $0x2238] sm:$0xff]
        %v2317 = vld [vmem:[#allocation6 + $0x2240] sm:$0xff]
        %v2318 = vld [vmem:[#allocation6 + $0x2248] sm:$0xff]
        %v2319 = vld [vmem:[#allocation6 + $0x2250] sm:$0xff]
        %v2320 = vld [vmem:[#allocation6 + $0x2258] sm:$0xff]
        %v2321 = vld [vmem:[#allocation6 + $0x2260] sm:$0xff]
        %v2322 = vld [vmem:[#allocation6 + $0x2268] sm:$0xff]
        %v2323 = vld [vmem:[#allocation6 + $0x2270] sm:$0xff]
        %v2324 = vld [vmem:[#allocation6 + $0x2278] sm:$0xff]
        %v2325 = vld [vmem:[#allocation6 + $0x2280] sm:$0xff]
        %v2326 = vld [vmem:[#allocation6 + $0x2288] sm:$0xff]
        %v2327 = vld [vmem:[#allocation6 + $0x2290] sm:$0xff]
        %v2328 = vld [vmem:[#allocation6 + $0x2298] sm:$0xff]
        %v2329 = vld [vmem:[#allocation6 + $0x22a0] sm:$0xff]
        %v2330 = vld [vmem:[#allocation6 + $0x22a8] sm:$0xff]
        %v2331 = vld [vmem:[#allocation6 + $0x22b0] sm:$0xff]
        %v2332 = vld [vmem:[#allocation6 + $0x22b8] sm:$0xff]
        %v2333 = vld [vmem:[#allocation6 + $0x22c0] sm:$0xff]
        %v2334 = vld [vmem:[#allocation6 + $0x22c8] sm:$0xff]
        %v2335 = vld [vmem:[#allocation6 + $0x22d0] sm:$0xff]
        %v2336 = vld [vmem:[#allocation6 + $0x22d8] sm:$0xff]
        %v2337 = vld [vmem:[#allocation6 + $0x22e0] sm:$0xff]
        %v2338 = vld [vmem:[#allocation6 + $0x22e8] sm:$0xff]
        %v2339 = vld [vmem:[#allocation6 + $0x22f0] sm:$0xff]
        %v2340 = vld [vmem:[#allocation6 + $0x22f8] sm:$0xff]
        %v2341 = vld [vmem:[#allocation6 + $0x2300] sm:$0xff]
        %v2342 = vld [vmem:[#allocation6 + $0x2308] sm:$0xff]
        %v2343 = vld [vmem:[#allocation6 + $0x2310] sm:$0xff]
        %v2344 = vld [vmem:[#allocation6 + $0x2318] sm:$0xff]
        %v2345 = vld [vmem:[#allocation6 + $0x2320] sm:$0xff]
        %v2346 = vld [vmem:[#allocation6 + $0x2328] sm:$0xff]
        %v2347 = vld [vmem:[#allocation6 + $0x2330] sm:$0xff]
        %v2348 = vld [vmem:[#allocation6 + $0x2338] sm:$0xff]
        %v2349 = vld [vmem:[#allocation6 + $0x2340] sm:$0xff]
        %v2350 = vld [vmem:[#allocation6 + $0x2348] sm:$0xff]
        %v2351 = vld [vmem:[#allocation6 + $0x2350] sm:$0xff]
        %v2352 = vld [vmem:[#allocation6 + $0x2358] sm:$0xff]
        %v2353 = vld [vmem:[#allocation6 + $0x2360] sm:$0xff]
        %v2354 = vld [vmem:[#allocation6 + $0x2368] sm:$0xff]
        %v2355 = vld [vmem:[#allocation6 + $0x2370] sm:$0xff]
        %v2356 = vld [vmem:[#allocation6 + $0x2378] sm:$0xff]
        %v2357 = vld [vmem:[#allocation6 + $0x2380] sm:$0xff]
        %v2358 = vld [vmem:[#allocation6 + $0x2388] sm:$0xff]
        %v2359 = vld [vmem:[#allocation6 + $0x2390] sm:$0xff]
        %v2360 = vld [vmem:[#allocation6 + $0x2398] sm:$0xff]
        %v2361 = vld [vmem:[#allocation6 + $0x23a0] sm:$0xff]
        %v2362 = vld [vmem:[#allocation6 + $0x23a8] sm:$0xff]
        %v2363 = vld [vmem:[#allocation6 + $0x23b0] sm:$0xff]
        %v2364 = vld [vmem:[#allocation6 + $0x23b8] sm:$0xff]
        %v2365 = vld [vmem:[#allocation6 + $0x23c0] sm:$0xff]
        %v2366 = vld [vmem:[#allocation6 + $0x23c8] sm:$0xff]
        %v2367 = vld [vmem:[#allocation6 + $0x23d0] sm:$0xff]
        %v2368 = vld [vmem:[#allocation6 + $0x23d8] sm:$0xff]
        %v2369 = vld [vmem:[#allocation6 + $0x23e0] sm:$0xff]
        %v2370 = vld [vmem:[#allocation6 + $0x23e8] sm:$0xff]
        %v2371 = vld [vmem:[#allocation6 + $0x23f0] sm:$0xff]
        %v2372 = vld [vmem:[#allocation6 + $0x23f8] sm:$0xff]
        %v2373 = vld [vmem:[#allocation6 + $0x2400] sm:$0xff]
        %v2374 = vld [vmem:[#allocation6 + $0x2408] sm:$0xff]
        %v2375 = vld [vmem:[#allocation6 + $0x2410] sm:$0xff]
        %v2376 = vld [vmem:[#allocation6 + $0x2418] sm:$0xff]
        %v2377 = vld [vmem:[#allocation6 + $0x2420] sm:$0xff]
        %v2378 = vld [vmem:[#allocation6 + $0x2428] sm:$0xff]
        %v2379 = vld [vmem:[#allocation6 + $0x2430] sm:$0xff]
        %v2380 = vld [vmem:[#allocation6 + $0x2438] sm:$0xff]
        %v2381 = vld [vmem:[#allocation6 + $0x2440] sm:$0xff]
        %v2382 = vld [vmem:[#allocation6 + $0x2448] sm:$0xff]
        %v2383 = vld [vmem:[#allocation6 + $0x2450] sm:$0xff]
        %v2384 = vld [vmem:[#allocation6 + $0x2458] sm:$0xff]
        %v2385 = vld [vmem:[#allocation6 + $0x2460] sm:$0xff]
        %v2386 = vld [vmem:[#allocation6 + $0x2468] sm:$0xff]
        %v2387 = vld [vmem:[#allocation6 + $0x2470] sm:$0xff]
        %v2388 = vld [vmem:[#allocation6 + $0x2478] sm:$0xff]
        %v2389 = vld [vmem:[#allocation6 + $0x2480] sm:$0xff]
        %v2390 = vld [vmem:[#allocation6 + $0x2488] sm:$0xff]
        %v2391 = vld [vmem:[#allocation6 + $0x2490] sm:$0xff]
        %v2392 = vld [vmem:[#allocation6 + $0x2498] sm:$0xff]
        %v2393 = vld [vmem:[#allocation6 + $0x24a0] sm:$0xff]
        %v2394 = vld [vmem:[#allocation6 + $0x24a8] sm:$0xff]
        %v2395 = vld [vmem:[#allocation6 + $0x24b0] sm:$0xff]
        %v2396 = vld [vmem:[#allocation6 + $0x24b8] sm:$0xff]
        %v2397 = vld [vmem:[#allocation6 + $0x24c0] sm:$0xff]
        %v2398 = vld [vmem:[#allocation6 + $0x24c8] sm:$0xff]
        %v2399 = vld [vmem:[#allocation6 + $0x24d0] sm:$0xff]
        %v2400 = vld [vmem:[#allocation6 + $0x24d8] sm:$0xff]
        %v2401 = vld [vmem:[#allocation6 + $0x24e0] sm:$0xff]
        %v2402 = vld [vmem:[#allocation6 + $0x24e8] sm:$0xff]
        %v2403 = vld [vmem:[#allocation6 + $0x24f0] sm:$0xff]
        %v2404 = vld [vmem:[#allocation6 + $0x24f8] sm:$0xff]
        %v2405 = vld [vmem:[#allocation6 + $0x2500] sm:$0xff]
        %v2406 = vld [vmem:[#allocation6 + $0x2508] sm:$0xff]
        %v2407 = vld [vmem:[#allocation6 + $0x2510] sm:$0xff]
        %v2408 = vld [vmem:[#allocation6 + $0x2518] sm:$0xff]
        %v2409 = vld [vmem:[#allocation6 + $0x2520] sm:$0xff]
        %v2410 = vld [vmem:[#allocation6 + $0x2528] sm:$0xff]
        %v2411 = vld [vmem:[#allocation6 + $0x2530] sm:$0xff]
        %v2412 = vld [vmem:[#allocation6 + $0x2538] sm:$0xff]
        %v2413 = vld [vmem:[#allocation6 + $0x2540] sm:$0xff]
        %v2414 = vld [vmem:[#allocation6 + $0x2548] sm:$0xff]
        %v2415 = vld [vmem:[#allocation6 + $0x2550] sm:$0xff]
        %v2416 = vld [vmem:[#allocation6 + $0x2558] sm:$0xff]
        %v2417 = vld [vmem:[#allocation6 + $0x2560] sm:$0xff]
        %v2418 = vld [vmem:[#allocation6 + $0x2568] sm:$0xff]
        %v2419 = vld [vmem:[#allocation6 + $0x2570] sm:$0xff]
        %v2420 = vld [vmem:[#allocation6 + $0x2578] sm:$0xff]
        %v2421 = vld [vmem:[#allocation6 + $0x2580] sm:$0xff]
        %v2422 = vld [vmem:[#allocation6 + $0x2588] sm:$0xff]
        %v2423 = vld [vmem:[#allocation6 + $0x2590] sm:$0xff]
        %v2424 = vld [vmem:[#allocation6 + $0x2598] sm:$0xff]
        %v2425 = vld [vmem:[#allocation6 + $0x25a0] sm:$0xff]
        %v2426 = vld [vmem:[#allocation6 + $0x25a8] sm:$0xff]
        %v2427 = vld [vmem:[#allocation6 + $0x25b0] sm:$0xff]
        %v2428 = vld [vmem:[#allocation6 + $0x25b8] sm:$0xff]
        %v2429 = vld [vmem:[#allocation6 + $0x25c0] sm:$0xff]
        %v2430 = vld [vmem:[#allocation6 + $0x25c8] sm:$0xff]
        %v2431 = vld [vmem:[#allocation6 + $0x25d0] sm:$0xff]
        %v2432 = vld [vmem:[#allocation6 + $0x25d8] sm:$0xff]
        %v2433 = vld [vmem:[#allocation6 + $0x25e0] sm:$0xff]
        %v2434 = vld [vmem:[#allocation6 + $0x25e8] sm:$0xff]
        %v2435 = vld [vmem:[#allocation6 + $0x25f0] sm:$0xff]
        %v2436 = vld [vmem:[#allocation6 + $0x25f8] sm:$0xff]
        %v2437 = vld [vmem:[#allocation6 + $0x2600] sm:$0xff]
        %v2438 = vld [vmem:[#allocation6 + $0x2608] sm:$0xff]
        %v2439 = vld [vmem:[#allocation6 + $0x2610] sm:$0xff]
        %v2440 = vld [vmem:[#allocation6 + $0x2618] sm:$0xff]
        %v2441 = vld [vmem:[#allocation6 + $0x2620] sm:$0xff]
        %v2442 = vld [vmem:[#allocation6 + $0x2628] sm:$0xff]
        %v2443 = vld [vmem:[#allocation6 + $0x2630] sm:$0xff]
        %v2444 = vld [vmem:[#allocation6 + $0x2638] sm:$0xff]
        %v2445 = vld [vmem:[#allocation6 + $0x2640] sm:$0xff]
        %v2446 = vld [vmem:[#allocation6 + $0x2648] sm:$0xff]
        %v2447 = vld [vmem:[#allocation6 + $0x2650] sm:$0xff]
        %v2448 = vld [vmem:[#allocation6 + $0x2658] sm:$0xff]
        %v2449 = vld [vmem:[#allocation6 + $0x2660] sm:$0xff]
        %v2450 = vld [vmem:[#allocation6 + $0x2668] sm:$0xff]
        %v2451 = vld [vmem:[#allocation6 + $0x2670] sm:$0xff]
        %v2452 = vld [vmem:[#allocation6 + $0x2678] sm:$0xff]
        %v2453 = vld [vmem:[#allocation6 + $0x2680] sm:$0xff]
        %v2454 = vld [vmem:[#allocation6 + $0x2688] sm:$0xff]
        %v2455 = vld [vmem:[#allocation6 + $0x2690] sm:$0xff]
        %v2456 = vld [vmem:[#allocation6 + $0x2698] sm:$0xff]
        %v2457 = vld [vmem:[#allocation6 + $0x26a0] sm:$0xff]
        %v2458 = vld [vmem:[#allocation6 + $0x26a8] sm:$0xff]
        %v2459 = vld [vmem:[#allocation6 + $0x26b0] sm:$0xff]
        %v2460 = vld [vmem:[#allocation6 + $0x26b8] sm:$0xff]
        %v2461 = vld [vmem:[#allocation6 + $0x26c0] sm:$0xff]
        %v2462 = vld [vmem:[#allocation6 + $0x26c8] sm:$0xff]
        %v2463 = vld [vmem:[#allocation6 + $0x26d0] sm:$0xff]
        %v2464 = vld [vmem:[#allocation6 + $0x26d8] sm:$0xff]
        %v2465 = vld [vmem:[#allocation6 + $0x26e0] sm:$0xff]
        %v2466 = vld [vmem:[#allocation6 + $0x26e8] sm:$0xff]
        %v2467 = vld [vmem:[#allocation6 + $0x26f0] sm:$0xff]
        %v2468 = vld [vmem:[#allocation6 + $0x26f8] sm:$0xff]
        %v2469 = vld [vmem:[#allocation6 + $0x2700] sm:$0xff]
        %v2470 = vld [vmem:[#allocation6 + $0x2708] sm:$0xff]
        %v2471 = vld [vmem:[#allocation6 + $0x2710] sm:$0xff]
        %v2472 = vld [vmem:[#allocation6 + $0x2718] sm:$0xff]
        %v2473 = vld [vmem:[#allocation6 + $0x2720] sm:$0xff]
        %v2474 = vld [vmem:[#allocation6 + $0x2728] sm:$0xff]
        %v2475 = vld [vmem:[#allocation6 + $0x2730] sm:$0xff]
        %v2476 = vld [vmem:[#allocation6 + $0x2738] sm:$0xff]
        %v2477 = vld [vmem:[#allocation6 + $0x2740] sm:$0xff]
        %v2478 = vld [vmem:[#allocation6 + $0x2748] sm:$0xff]
        %v2479 = vld [vmem:[#allocation6 + $0x2750] sm:$0xff]
        %v2480 = vld [vmem:[#allocation6 + $0x2758] sm:$0xff]
        %v2481 = vld [vmem:[#allocation6 + $0x2760] sm:$0xff]
        %v2482 = vld [vmem:[#allocation6 + $0x2768] sm:$0xff]
        %v2483 = vld [vmem:[#allocation6 + $0x2770] sm:$0xff]
        %v2484 = vld [vmem:[#allocation6 + $0x2778] sm:$0xff]
        %v2485 = vld [vmem:[#allocation6 + $0x2780] sm:$0xff]
        %v2486 = vld [vmem:[#allocation6 + $0x2788] sm:$0xff]
        %v2487 = vld [vmem:[#allocation6 + $0x2790] sm:$0xff]
        %v2488 = vld [vmem:[#allocation6 + $0x2798] sm:$0xff]
        %v2489 = vld [vmem:[#allocation6 + $0x27a0] sm:$0xff]
        %v2490 = vld [vmem:[#allocation6 + $0x27a8] sm:$0xff]
        %v2491 = vld [vmem:[#allocation6 + $0x27b0] sm:$0xff]
        %v2492 = vld [vmem:[#allocation6 + $0x27b8] sm:$0xff]
        %v2493 = vld [vmem:[#allocation6 + $0x27c0] sm:$0xff]
        %v2494 = vld [vmem:[#allocation6 + $0x27c8] sm:$0xff]
        %v2497 = vperm.slane %v365, 0
        %v2498 = vperm.slane %v365, 1
        %v2499 = vperm.slane %v365, 2
        %v2500 = vperm.slane %v365, 3
        %v2501 = vperm.slane %v365, 4
        %v2502 = vperm.slane %v365, 5
        %v2503 = vperm.slane %v365, 6
        %v2504 = vperm.slane %v365, 7
        %v2505 = vperm.slane %v369, 0
        %v2506 = vperm.slane %v369, 1
        %v2507 = vperm.slane %v369, 2
        %v2508 = vperm.slane %v369, 3
        %v2509 = vperm.slane %v369, 4
        %vm2523 = vcmask 130048
        %v2525 = vsel %vm2523, %v1220, 0
        %2527 = vmatpush.msra.mxu0 %v1416
        %2528 = vmatpush.msra.mxu0 %v1403
        %2529 = vmatpush.msra.mxu0 %v1390
        %2530 = vmatpush.msra.mxu0 %v1377
        %2531 = vmatpush.msra.mxu0 %v1364
        %2532 = vmatpush.msra.mxu0 %v1351
        %2533 = vmatpush.msra.mxu0 %v1338
        %2534 = vmatpush.msra.mxu0 %v1325
        %2535 = vmatpush.msra.mxu0 %v1312
        %2536 = vmatpush.msra.mxu0 %v1299
        %2537 = vmatpush.msra.mxu0 %v1286
        %2538 = vmatpush.msra.mxu0 %v1273
        %2539 = vmatpush.msra.mxu0 %v1260
        %2540 = vmatpush.msra.mxu0 %v1247
        %2541 = vmatpush.msra.mxu0 %v1234
        %2542 = vmatpush.msra.mxu0 %v1221
        %2543 = vmatmul.f32.gmra.mxu0 %v1214
        %v2544 = vpop.f32.mrf.mxu0
        %v2545 = vadd.f32 %v2497, %v2544
        %2546 = vdwg.mxu0
        %2547 = vmatpush.msra.mxu0 %v1624
        %2548 = vmatpush.msra.mxu0 %v1611
        %2549 = vmatpush.msra.mxu0 %v1598
        %2550 = vmatpush.msra.mxu0 %v1585
        %2551 = vmatpush.msra.mxu0 %v1572
        %2552 = vmatpush.msra.mxu0 %v1559
        %2553 = vmatpush.msra.mxu0 %v1546
        %2554 = vmatpush.msra.mxu0 %v1533
        %2555 = vmatpush.msra.mxu0 %v1520
        %2556 = vmatpush.msra.mxu0 %v1507
        %2557 = vmatpush.msra.mxu0 %v1494
        %2558 = vmatpush.msra.mxu0 %v1481
        %2559 = vmatpush.msra.mxu0 %v1468
        %2560 = vmatpush.msra.mxu0 %v1455
        %2561 = vmatpush.msra.mxu0 %v1442
        %2562 = vmatpush.msra.mxu0 %v1429
        %2563 = vmatmul.f32.gmra.mxu0 %v1215
        %v2564 = vpop.f32.mrf.mxu0
        %v2565 = vadd.f32 %v2545, %v2564
        %2566 = vdwg.mxu0
        %2567 = vmatpush.msra.mxu0 %v1832
        %2568 = vmatpush.msra.mxu0 %v1819
        %2569 = vmatpush.msra.mxu0 %v1806
        %2570 = vmatpush.msra.mxu0 %v1793
        %2571 = vmatpush.msra.mxu0 %v1780
        %2572 = vmatpush.msra.mxu0 %v1767
        %2573 = vmatpush.msra.mxu0 %v1754
        %2574 = vmatpush.msra.mxu0 %v1741
        %2575 = vmatpush.msra.mxu0 %v1728
        %2576 = vmatpush.msra.mxu0 %v1715
        %2577 = vmatpush.msra.mxu0 %v1702
        %2578 = vmatpush.msra.mxu0 %v1689
        %2579 = vmatpush.msra.mxu0 %v1676
        %2580 = vmatpush.msra.mxu0 %v1663
        %2581 = vmatpush.msra.mxu0 %v1650
        %2582 = vmatpush.msra.mxu0 %v1637
        %2583 = vmatmul.f32.gmra.mxu0 %v1216
        %v2584 = vpop.f32.mrf.mxu0
        %v2585 = vadd.f32 %v2565, %v2584
        %2586 = vdwg.mxu0
        %2587 = vmatpush.msra.mxu0 %v2040
        %2588 = vmatpush.msra.mxu0 %v2027
        %2589 = vmatpush.msra.mxu0 %v2014
        %2590 = vmatpush.msra.mxu0 %v2001
        %2591 = vmatpush.msra.mxu0 %v1988
        %2592 = vmatpush.msra.mxu0 %v1975
        %2593 = vmatpush.msra.mxu0 %v1962
        %2594 = vmatpush.msra.mxu0 %v1949
        %2595 = vmatpush.msra.mxu0 %v1936
        %2596 = vmatpush.msra.mxu0 %v1923
        %2597 = vmatpush.msra.mxu0 %v1910
        %2598 = vmatpush.msra.mxu0 %v1897
        %2599 = vmatpush.msra.mxu0 %v1884
        %2600 = vmatpush.msra.mxu0 %v1871
        %2601 = vmatpush.msra.mxu0 %v1858
        %2602 = vmatpush.msra.mxu0 %v1845
        %2603 = vmatmul.f32.gmra.mxu0 %v1217
        %v2604 = vpop.f32.mrf.mxu0
        %v2605 = vadd.f32 %v2585, %v2604
        %2606 = vdwg.mxu0
        %2607 = vmatpush.msra.mxu0 %v2248
        %2608 = vmatpush.msra.mxu0 %v2235
        %2609 = vmatpush.msra.mxu0 %v2222
        %2610 = vmatpush.msra.mxu0 %v2209
        %2611 = vmatpush.msra.mxu0 %v2196
        %2612 = vmatpush.msra.mxu0 %v2183
        %2613 = vmatpush.msra.mxu0 %v2170
        %2614 = vmatpush.msra.mxu0 %v2157
        %2615 = vmatpush.msra.mxu0 %v2144
        %2616 = vmatpush.msra.mxu0 %v2131
        %2617 = vmatpush.msra.mxu0 %v2118
        %2618 = vmatpush.msra.mxu0 %v2105
        %2619 = vmatpush.msra.mxu0 %v2092
        %2620 = vmatpush.msra.mxu0 %v2079
        %2621 = vmatpush.msra.mxu0 %v2066
        %2622 = vmatpush.msra.mxu0 %v2053
        %2623 = vmatmul.f32.gmra.mxu0 %v1218
        %v2624 = vpop.f32.mrf.mxu0
        %v2625 = vadd.f32 %v2605, %v2624
        %2626 = vdwg.mxu0
        %2627 = vmatpush.msra.mxu0 %v2456
        %2628 = vmatpush.msra.mxu0 %v2443
        %2629 = vmatpush.msra.mxu0 %v2430
        %2630 = vmatpush.msra.mxu0 %v2417
        %2631 = vmatpush.msra.mxu0 %v2404
        %2632 = vmatpush.msra.mxu0 %v2391
        %2633 = vmatpush.msra.mxu0 %v2378
        %2634 = vmatpush.msra.mxu0 %v2365
        %2635 = vmatpush.msra.mxu0 %v2352
        %2636 = vmatpush.msra.mxu0 %v2339
        %2637 = vmatpush.msra.mxu0 %v2326
        %2638 = vmatpush.msra.mxu0 %v2313
        %2639 = vmatpush.msra.mxu0 %v2300
        %2640 = vmatpush.msra.mxu0 %v2287
        %2641 = vmatpush.msra.mxu0 %v2274
        %2642 = vmatpush.msra.mxu0 %v2261
        %2643 = vmatmul.f32.gmra.mxu0 %v1219
        %v2644 = vpop.f32.mrf.mxu0
        %v2645 = vadd.f32 %v2625, %v2644
        %2646 = vdwg.mxu0
        %2647 = vmatpush.msra.mxu0 0.0
        %2648 = vmatpush.msra.mxu0 0.0
        %2649 = vmatpush.msra.mxu0 0.0
        %2650 = vmatpush.msra.mxu0 0.0
        %2651 = vmatpush.msra.mxu0 0.0
        %2652 = vmatpush.msra.mxu0 0.0
        %2653 = vmatpush.msra.mxu0 0.0
        %2654 = vmatpush.msra.mxu0 0.0
        %2655 = vmatpush.msra.mxu0 0.0
        %2656 = vmatpush.msra.mxu0 0.0
        %2657 = vmatpush.msra.mxu0 0.0
        %2658 = vmatpush.msra.mxu0 0.0
        %2659 = vmatpush.msra.mxu0 0.0
        %2660 = vmatpush.msra.mxu0 0.0
        %2661 = vmatpush.msra.mxu0 %v2482
        %2662 = vmatpush.msra.mxu0 %v2469
        %2663 = vmatmul.f32.gmra.mxu0 %v2525
        %v2664 = vpop.f32.mrf.mxu0
        %v2665 = vadd.f32 %v2645, %v2664
        %2666 = vdwg.mxu0
        %2667 = vmatpush.msra.mxu0 %v1417
        %2668 = vmatpush.msra.mxu0 %v1404
        %2669 = vmatpush.msra.mxu0 %v1391
        %2670 = vmatpush.msra.mxu0 %v1378
        %2671 = vmatpush.msra.mxu0 %v1365
        %2672 = vmatpush.msra.mxu0 %v1352
        %2673 = vmatpush.msra.mxu0 %v1339
        %2674 = vmatpush.msra.mxu0 %v1326
        %2675 = vmatpush.msra.mxu0 %v1313
        %2676 = vmatpush.msra.mxu0 %v1300
        %2677 = vmatpush.msra.mxu0 %v1287
        %2678 = vmatpush.msra.mxu0 %v1274
        %2679 = vmatpush.msra.mxu0 %v1261
        %2680 = vmatpush.msra.mxu0 %v1248
        %2681 = vmatpush.msra.mxu0 %v1235
        %2682 = vmatpush.msra.mxu0 %v1222
        %2683 = vmatmul.f32.gmra.mxu0 %v1214
        %v2684 = vpop.f32.mrf.mxu0
        %v2685 = vadd.f32 %v2498, %v2684
        %2686 = vdwg.mxu0
        %2687 = vmatpush.msra.mxu0 %v1625
        %2688 = vmatpush.msra.mxu0 %v1612
        %2689 = vmatpush.msra.mxu0 %v1599
        %2690 = vmatpush.msra.mxu0 %v1586
        %2691 = vmatpush.msra.mxu0 %v1573
        %2692 = vmatpush.msra.mxu0 %v1560
        %2693 = vmatpush.msra.mxu0 %v1547
        %2694 = vmatpush.msra.mxu0 %v1534
        %2695 = vmatpush.msra.mxu0 %v1521
        %2696 = vmatpush.msra.mxu0 %v1508
        %2697 = vmatpush.msra.mxu0 %v1495
        %2698 = vmatpush.msra.mxu0 %v1482
        %2699 = vmatpush.msra.mxu0 %v1469
        %2700 = vmatpush.msra.mxu0 %v1456
        %2701 = vmatpush.msra.mxu0 %v1443
        %2702 = vmatpush.msra.mxu0 %v1430
        %2703 = vmatmul.f32.gmra.mxu0 %v1215
        %v2704 = vpop.f32.mrf.mxu0
        %v2705 = vadd.f32 %v2685, %v2704
        %2706 = vdwg.mxu0
        %2707 = vmatpush.msra.mxu0 %v1833
        %2708 = vmatpush.msra.mxu0 %v1820
        %2709 = vmatpush.msra.mxu0 %v1807
        %2710 = vmatpush.msra.mxu0 %v1794
        %2711 = vmatpush.msra.mxu0 %v1781
        %2712 = vmatpush.msra.mxu0 %v1768
        %2713 = vmatpush.msra.mxu0 %v1755
        %2714 = vmatpush.msra.mxu0 %v1742
        %2715 = vmatpush.msra.mxu0 %v1729
        %2716 = vmatpush.msra.mxu0 %v1716
        %2717 = vmatpush.msra.mxu0 %v1703
        %2718 = vmatpush.msra.mxu0 %v1690
        %2719 = vmatpush.msra.mxu0 %v1677
        %2720 = vmatpush.msra.mxu0 %v1664
        %2721 = vmatpush.msra.mxu0 %v1651
        %2722 = vmatpush.msra.mxu0 %v1638
        %2723 = vmatmul.f32.gmra.mxu0 %v1216
        %v2724 = vpop.f32.mrf.mxu0
        %v2725 = vadd.f32 %v2705, %v2724
        %2726 = vdwg.mxu0
        %2727 = vmatpush.msra.mxu0 %v2041
        %2728 = vmatpush.msra.mxu0 %v2028
        %2729 = vmatpush.msra.mxu0 %v2015
        %2730 = vmatpush.msra.mxu0 %v2002
        %2731 = vmatpush.msra.mxu0 %v1989
        %2732 = vmatpush.msra.mxu0 %v1976
        %2733 = vmatpush.msra.mxu0 %v1963
        %2734 = vmatpush.msra.mxu0 %v1950
        %2735 = vmatpush.msra.mxu0 %v1937
        %2736 = vmatpush.msra.mxu0 %v1924
        %2737 = vmatpush.msra.mxu0 %v1911
        %2738 = vmatpush.msra.mxu0 %v1898
        %2739 = vmatpush.msra.mxu0 %v1885
        %2740 = vmatpush.msra.mxu0 %v1872
        %2741 = vmatpush.msra.mxu0 %v1859
        %2742 = vmatpush.msra.mxu0 %v1846
        %2743 = vmatmul.f32.gmra.mxu0 %v1217
        %v2744 = vpop.f32.mrf.mxu0
        %v2745 = vadd.f32 %v2725, %v2744
        %2746 = vdwg.mxu0
        %2747 = vmatpush.msra.mxu0 %v2249
        %2748 = vmatpush.msra.mxu0 %v2236
        %2749 = vmatpush.msra.mxu0 %v2223
        %2750 = vmatpush.msra.mxu0 %v2210
        %2751 = vmatpush.msra.mxu0 %v2197
        %2752 = vmatpush.msra.mxu0 %v2184
        %2753 = vmatpush.msra.mxu0 %v2171
        %2754 = vmatpush.msra.mxu0 %v2158
        %2755 = vmatpush.msra.mxu0 %v2145
        %2756 = vmatpush.msra.mxu0 %v2132
        %2757 = vmatpush.msra.mxu0 %v2119
        %2758 = vmatpush.msra.mxu0 %v2106
        %2759 = vmatpush.msra.mxu0 %v2093
        %2760 = vmatpush.msra.mxu0 %v2080
        %2761 = vmatpush.msra.mxu0 %v2067
        %2762 = vmatpush.msra.mxu0 %v2054
        %2763 = vmatmul.f32.gmra.mxu0 %v1218
        %v2764 = vpop.f32.mrf.mxu0
        %v2765 = vadd.f32 %v2745, %v2764
        %2766 = vdwg.mxu0
        %2767 = vmatpush.msra.mxu0 %v2457
        %2768 = vmatpush.msra.mxu0 %v2444
        %2769 = vmatpush.msra.mxu0 %v2431
        %2770 = vmatpush.msra.mxu0 %v2418
        %2771 = vmatpush.msra.mxu0 %v2405
        %2772 = vmatpush.msra.mxu0 %v2392
        %2773 = vmatpush.msra.mxu0 %v2379
        %2774 = vmatpush.msra.mxu0 %v2366
        %2775 = vmatpush.msra.mxu0 %v2353
        %2776 = vmatpush.msra.mxu0 %v2340
        %2777 = vmatpush.msra.mxu0 %v2327
        %2778 = vmatpush.msra.mxu0 %v2314
        %2779 = vmatpush.msra.mxu0 %v2301
        %2780 = vmatpush.msra.mxu0 %v2288
        %2781 = vmatpush.msra.mxu0 %v2275
        %2782 = vmatpush.msra.mxu0 %v2262
        %2783 = vmatmul.f32.gmra.mxu0 %v1219
        %v2784 = vpop.f32.mrf.mxu0
        %v2785 = vadd.f32 %v2765, %v2784
        %2786 = vdwg.mxu0
        %2787 = vmatpush.msra.mxu0 0.0
        %2788 = vmatpush.msra.mxu0 0.0
        %2789 = vmatpush.msra.mxu0 0.0
        %2790 = vmatpush.msra.mxu0 0.0
        %2791 = vmatpush.msra.mxu0 0.0
        %2792 = vmatpush.msra.mxu0 0.0
        %2793 = vmatpush.msra.mxu0 0.0
        %2794 = vmatpush.msra.mxu0 0.0
        %2795 = vmatpush.msra.mxu0 0.0
        %2796 = vmatpush.msra.mxu0 0.0
        %2797 = vmatpush.msra.mxu0 0.0
        %2798 = vmatpush.msra.mxu0 0.0
        %2799 = vmatpush.msra.mxu0 0.0
        %2800 = vmatpush.msra.mxu0 0.0
        %2801 = vmatpush.msra.mxu0 %v2483
        %2802 = vmatpush.msra.mxu0 %v2470
        %2803 = vmatmul.f32.gmra.mxu0 %v2525
        %v2804 = vpop.f32.mrf.mxu0
        %v2805 = vadd.f32 %v2785, %v2804
        %2806 = vdwg.mxu0
        %2807 = vmatpush.msra.mxu0 %v1418
        %2808 = vmatpush.msra.mxu0 %v1405
        %2809 = vmatpush.msra.mxu0 %v1392
        %2810 = vmatpush.msra.mxu0 %v1379
        %2811 = vmatpush.msra.mxu0 %v1366
        %2812 = vmatpush.msra.mxu0 %v1353
        %2813 = vmatpush.msra.mxu0 %v1340
        %2814 = vmatpush.msra.mxu0 %v1327
        %2815 = vmatpush.msra.mxu0 %v1314
        %2816 = vmatpush.msra.mxu0 %v1301
        %2817 = vmatpush.msra.mxu0 %v1288
        %2818 = vmatpush.msra.mxu0 %v1275
        %2819 = vmatpush.msra.mxu0 %v1262
        %2820 = vmatpush.msra.mxu0 %v1249
        %2821 = vmatpush.msra.mxu0 %v1236
        %2822 = vmatpush.msra.mxu0 %v1223
        %2823 = vmatmul.f32.gmra.mxu0 %v1214
        %v2824 = vpop.f32.mrf.mxu0
        %v2825 = vadd.f32 %v2499, %v2824
        %2826 = vdwg.mxu0
        %2827 = vmatpush.msra.mxu0 %v1626
        %2828 = vmatpush.msra.mxu0 %v1613
        %2829 = vmatpush.msra.mxu0 %v1600
        %2830 = vmatpush.msra.mxu0 %v1587
        %2831 = vmatpush.msra.mxu0 %v1574
        %2832 = vmatpush.msra.mxu0 %v1561
        %2833 = vmatpush.msra.mxu0 %v1548
        %2834 = vmatpush.msra.mxu0 %v1535
        %2835 = vmatpush.msra.mxu0 %v1522
        %2836 = vmatpush.msra.mxu0 %v1509
        %2837 = vmatpush.msra.mxu0 %v1496
        %2838 = vmatpush.msra.mxu0 %v1483
        %2839 = vmatpush.msra.mxu0 %v1470
        %2840 = vmatpush.msra.mxu0 %v1457
        %2841 = vmatpush.msra.mxu0 %v1444
        %2842 = vmatpush.msra.mxu0 %v1431
        %2843 = vmatmul.f32.gmra.mxu0 %v1215
        %v2844 = vpop.f32.mrf.mxu0
        %v2845 = vadd.f32 %v2825, %v2844
        %2846 = vdwg.mxu0
        %2847 = vmatpush.msra.mxu0 %v1834
        %2848 = vmatpush.msra.mxu0 %v1821
        %2849 = vmatpush.msra.mxu0 %v1808
        %2850 = vmatpush.msra.mxu0 %v1795
        %2851 = vmatpush.msra.mxu0 %v1782
        %2852 = vmatpush.msra.mxu0 %v1769
        %2853 = vmatpush.msra.mxu0 %v1756
        %2854 = vmatpush.msra.mxu0 %v1743
        %2855 = vmatpush.msra.mxu0 %v1730
        %2856 = vmatpush.msra.mxu0 %v1717
        %2857 = vmatpush.msra.mxu0 %v1704
        %2858 = vmatpush.msra.mxu0 %v1691
        %2859 = vmatpush.msra.mxu0 %v1678
        %2860 = vmatpush.msra.mxu0 %v1665
        %2861 = vmatpush.msra.mxu0 %v1652
        %2862 = vmatpush.msra.mxu0 %v1639
        %2863 = vmatmul.f32.gmra.mxu0 %v1216
        %v2864 = vpop.f32.mrf.mxu0
        %v2865 = vadd.f32 %v2845, %v2864
        %2866 = vdwg.mxu0
        %2867 = vmatpush.msra.mxu0 %v2042
        %2868 = vmatpush.msra.mxu0 %v2029
        %2869 = vmatpush.msra.mxu0 %v2016
        %2870 = vmatpush.msra.mxu0 %v2003
        %2871 = vmatpush.msra.mxu0 %v1990
        %2872 = vmatpush.msra.mxu0 %v1977
        %2873 = vmatpush.msra.mxu0 %v1964
        %2874 = vmatpush.msra.mxu0 %v1951
        %2875 = vmatpush.msra.mxu0 %v1938
        %2876 = vmatpush.msra.mxu0 %v1925
        %2877 = vmatpush.msra.mxu0 %v1912
        %2878 = vmatpush.msra.mxu0 %v1899
        %2879 = vmatpush.msra.mxu0 %v1886
        %2880 = vmatpush.msra.mxu0 %v1873
        %2881 = vmatpush.msra.mxu0 %v1860
        %2882 = vmatpush.msra.mxu0 %v1847
        %2883 = vmatmul.f32.gmra.mxu0 %v1217
        %v2884 = vpop.f32.mrf.mxu0
        %v2885 = vadd.f32 %v2865, %v2884
        %2886 = vdwg.mxu0
        %2887 = vmatpush.msra.mxu0 %v2250
        %2888 = vmatpush.msra.mxu0 %v2237
        %2889 = vmatpush.msra.mxu0 %v2224
        %2890 = vmatpush.msra.mxu0 %v2211
        %2891 = vmatpush.msra.mxu0 %v2198
        %2892 = vmatpush.msra.mxu0 %v2185
        %2893 = vmatpush.msra.mxu0 %v2172
        %2894 = vmatpush.msra.mxu0 %v2159
        %2895 = vmatpush.msra.mxu0 %v2146
        %2896 = vmatpush.msra.mxu0 %v2133
        %2897 = vmatpush.msra.mxu0 %v2120
        %2898 = vmatpush.msra.mxu0 %v2107
        %2899 = vmatpush.msra.mxu0 %v2094
        %2900 = vmatpush.msra.mxu0 %v2081
        %2901 = vmatpush.msra.mxu0 %v2068
        %2902 = vmatpush.msra.mxu0 %v2055
        %2903 = vmatmul.f32.gmra.mxu0 %v1218
        %v2904 = vpop.f32.mrf.mxu0
        %v2905 = vadd.f32 %v2885, %v2904
        %2906 = vdwg.mxu0
        %2907 = vmatpush.msra.mxu0 %v2458
        %2908 = vmatpush.msra.mxu0 %v2445
        %2909 = vmatpush.msra.mxu0 %v2432
        %2910 = vmatpush.msra.mxu0 %v2419
        %2911 = vmatpush.msra.mxu0 %v2406
        %2912 = vmatpush.msra.mxu0 %v2393
        %2913 = vmatpush.msra.mxu0 %v2380
        %2914 = vmatpush.msra.mxu0 %v2367
        %2915 = vmatpush.msra.mxu0 %v2354
        %2916 = vmatpush.msra.mxu0 %v2341
        %2917 = vmatpush.msra.mxu0 %v2328
        %2918 = vmatpush.msra.mxu0 %v2315
        %2919 = vmatpush.msra.mxu0 %v2302
        %2920 = vmatpush.msra.mxu0 %v2289
        %2921 = vmatpush.msra.mxu0 %v2276
        %2922 = vmatpush.msra.mxu0 %v2263
        %2923 = vmatmul.f32.gmra.mxu0 %v1219
        %v2924 = vpop.f32.mrf.mxu0
        %v2925 = vadd.f32 %v2905, %v2924
        %2926 = vdwg.mxu0
        %2927 = vmatpush.msra.mxu0 0.0
        %2928 = vmatpush.msra.mxu0 0.0
        %2929 = vmatpush.msra.mxu0 0.0
        %2930 = vmatpush.msra.mxu0 0.0
        %2931 = vmatpush.msra.mxu0 0.0
        %2932 = vmatpush.msra.mxu0 0.0
        %2933 = vmatpush.msra.mxu0 0.0
        %2934 = vmatpush.msra.mxu0 0.0
        %2935 = vmatpush.msra.mxu0 0.0
        %2936 = vmatpush.msra.mxu0 0.0
        %2937 = vmatpush.msra.mxu0 0.0
        %2938 = vmatpush.msra.mxu0 0.0
        %2939 = vmatpush.msra.mxu0 0.0
        %2940 = vmatpush.msra.mxu0 0.0
        %2941 = vmatpush.msra.mxu0 %v2484
        %2942 = vmatpush.msra.mxu0 %v2471
        %2943 = vmatmul.f32.gmra.mxu0 %v2525
        %v2944 = vpop.f32.mrf.mxu0
        %v2945 = vadd.f32 %v2925, %v2944
        %2946 = vdwg.mxu0
        %2947 = vmatpush.msra.mxu0 %v1419
        %2948 = vmatpush.msra.mxu0 %v1406
        %2949 = vmatpush.msra.mxu0 %v1393
        %2950 = vmatpush.msra.mxu0 %v1380
        %2951 = vmatpush.msra.mxu0 %v1367
        %2952 = vmatpush.msra.mxu0 %v1354
        %2953 = vmatpush.msra.mxu0 %v1341
        %2954 = vmatpush.msra.mxu0 %v1328
        %2955 = vmatpush.msra.mxu0 %v1315
        %2956 = vmatpush.msra.mxu0 %v1302
        %2957 = vmatpush.msra.mxu0 %v1289
        %2958 = vmatpush.msra.mxu0 %v1276
        %2959 = vmatpush.msra.mxu0 %v1263
        %2960 = vmatpush.msra.mxu0 %v1250
        %2961 = vmatpush.msra.mxu0 %v1237
        %2962 = vmatpush.msra.mxu0 %v1224
        %2963 = vmatmul.f32.gmra.mxu0 %v1214
        %v2964 = vpop.f32.mrf.mxu0
        %v2965 = vadd.f32 %v2500, %v2964
        %2966 = vdwg.mxu0
        %2967 = vmatpush.msra.mxu0 %v1627
        %2968 = vmatpush.msra.mxu0 %v1614
        %2969 = vmatpush.msra.mxu0 %v1601
        %2970 = vmatpush.msra.mxu0 %v1588
        %2971 = vmatpush.msra.mxu0 %v1575
        %2972 = vmatpush.msra.mxu0 %v1562
        %2973 = vmatpush.msra.mxu0 %v1549
        %2974 = vmatpush.msra.mxu0 %v1536
        %2975 = vmatpush.msra.mxu0 %v1523
        %2976 = vmatpush.msra.mxu0 %v1510
        %2977 = vmatpush.msra.mxu0 %v1497
        %2978 = vmatpush.msra.mxu0 %v1484
        %2979 = vmatpush.msra.mxu0 %v1471
        %2980 = vmatpush.msra.mxu0 %v1458
        %2981 = vmatpush.msra.mxu0 %v1445
        %2982 = vmatpush.msra.mxu0 %v1432
        %2983 = vmatmul.f32.gmra.mxu0 %v1215
        %v2984 = vpop.f32.mrf.mxu0
        %v2985 = vadd.f32 %v2965, %v2984
        %2986 = vdwg.mxu0
        %2987 = vmatpush.msra.mxu0 %v1835
        %2988 = vmatpush.msra.mxu0 %v1822
        %2989 = vmatpush.msra.mxu0 %v1809
        %2990 = vmatpush.msra.mxu0 %v1796
        %2991 = vmatpush.msra.mxu0 %v1783
        %2992 = vmatpush.msra.mxu0 %v1770
        %2993 = vmatpush.msra.mxu0 %v1757
        %2994 = vmatpush.msra.mxu0 %v1744
        %2995 = vmatpush.msra.mxu0 %v1731
        %2996 = vmatpush.msra.mxu0 %v1718
        %2997 = vmatpush.msra.mxu0 %v1705
        %2998 = vmatpush.msra.mxu0 %v1692
        %2999 = vmatpush.msra.mxu0 %v1679
        %3000 = vmatpush.msra.mxu0 %v1666
        %3001 = vmatpush.msra.mxu0 %v1653
        %3002 = vmatpush.msra.mxu0 %v1640
        %3003 = vmatmul.f32.gmra.mxu0 %v1216
        %v3004 = vpop.f32.mrf.mxu0
        %v3005 = vadd.f32 %v2985, %v3004
        %3006 = vdwg.mxu0
        %3007 = vmatpush.msra.mxu0 %v2043
        %3008 = vmatpush.msra.mxu0 %v2030
        %3009 = vmatpush.msra.mxu0 %v2017
        %3010 = vmatpush.msra.mxu0 %v2004
        %3011 = vmatpush.msra.mxu0 %v1991
        %3012 = vmatpush.msra.mxu0 %v1978
        %3013 = vmatpush.msra.mxu0 %v1965
        %3014 = vmatpush.msra.mxu0 %v1952
        %3015 = vmatpush.msra.mxu0 %v1939
        %3016 = vmatpush.msra.mxu0 %v1926
        %3017 = vmatpush.msra.mxu0 %v1913
        %3018 = vmatpush.msra.mxu0 %v1900
        %3019 = vmatpush.msra.mxu0 %v1887
        %3020 = vmatpush.msra.mxu0 %v1874
        %3021 = vmatpush.msra.mxu0 %v1861
        %3022 = vmatpush.msra.mxu0 %v1848
        %3023 = vmatmul.f32.gmra.mxu0 %v1217
        %v3024 = vpop.f32.mrf.mxu0
        %v3025 = vadd.f32 %v3005, %v3024
        %3026 = vdwg.mxu0
        %3027 = vmatpush.msra.mxu0 %v2251
        %3028 = vmatpush.msra.mxu0 %v2238
        %3029 = vmatpush.msra.mxu0 %v2225
        %3030 = vmatpush.msra.mxu0 %v2212
        %3031 = vmatpush.msra.mxu0 %v2199
        %3032 = vmatpush.msra.mxu0 %v2186
        %3033 = vmatpush.msra.mxu0 %v2173
        %3034 = vmatpush.msra.mxu0 %v2160
        %3035 = vmatpush.msra.mxu0 %v2147
        %3036 = vmatpush.msra.mxu0 %v2134
        %3037 = vmatpush.msra.mxu0 %v2121
        %3038 = vmatpush.msra.mxu0 %v2108
        %3039 = vmatpush.msra.mxu0 %v2095
        %3040 = vmatpush.msra.mxu0 %v2082
        %3041 = vmatpush.msra.mxu0 %v2069
        %3042 = vmatpush.msra.mxu0 %v2056
        %3043 = vmatmul.f32.gmra.mxu0 %v1218
        %v3044 = vpop.f32.mrf.mxu0
        %v3045 = vadd.f32 %v3025, %v3044
        %3046 = vdwg.mxu0
        %3047 = vmatpush.msra.mxu0 %v2459
        %3048 = vmatpush.msra.mxu0 %v2446
        %3049 = vmatpush.msra.mxu0 %v2433
        %3050 = vmatpush.msra.mxu0 %v2420
        %3051 = vmatpush.msra.mxu0 %v2407
        %3052 = vmatpush.msra.mxu0 %v2394
        %3053 = vmatpush.msra.mxu0 %v2381
        %3054 = vmatpush.msra.mxu0 %v2368
        %3055 = vmatpush.msra.mxu0 %v2355
        %3056 = vmatpush.msra.mxu0 %v2342
        %3057 = vmatpush.msra.mxu0 %v2329
        %3058 = vmatpush.msra.mxu0 %v2316
        %3059 = vmatpush.msra.mxu0 %v2303
        %3060 = vmatpush.msra.mxu0 %v2290
        %3061 = vmatpush.msra.mxu0 %v2277
        %3062 = vmatpush.msra.mxu0 %v2264
        %3063 = vmatmul.f32.gmra.mxu0 %v1219
        %v3064 = vpop.f32.mrf.mxu0
        %v3065 = vadd.f32 %v3045, %v3064
        %3066 = vdwg.mxu0
        %3067 = vmatpush.msra.mxu0 0.0
        %3068 = vmatpush.msra.mxu0 0.0
        %3069 = vmatpush.msra.mxu0 0.0
        %3070 = vmatpush.msra.mxu0 0.0
        %3071 = vmatpush.msra.mxu0 0.0
        %3072 = vmatpush.msra.mxu0 0.0
        %3073 = vmatpush.msra.mxu0 0.0
        %3074 = vmatpush.msra.mxu0 0.0
        %3075 = vmatpush.msra.mxu0 0.0
        %3076 = vmatpush.msra.mxu0 0.0
        %3077 = vmatpush.msra.mxu0 0.0
        %3078 = vmatpush.msra.mxu0 0.0
        %3079 = vmatpush.msra.mxu0 0.0
        %3080 = vmatpush.msra.mxu0 0.0
        %3081 = vmatpush.msra.mxu0 %v2485
        %3082 = vmatpush.msra.mxu0 %v2472
        %3083 = vmatmul.f32.gmra.mxu0 %v2525
        %v3084 = vpop.f32.mrf.mxu0
        %v3085 = vadd.f32 %v3065, %v3084
        %3086 = vdwg.mxu0
        %3087 = vmatpush.msra.mxu0 %v1420
        %3088 = vmatpush.msra.mxu0 %v1407
        %3089 = vmatpush.msra.mxu0 %v1394
        %3090 = vmatpush.msra.mxu0 %v1381
        %3091 = vmatpush.msra.mxu0 %v1368
        %3092 = vmatpush.msra.mxu0 %v1355
        %3093 = vmatpush.msra.mxu0 %v1342
        %3094 = vmatpush.msra.mxu0 %v1329
        %3095 = vmatpush.msra.mxu0 %v1316
        %3096 = vmatpush.msra.mxu0 %v1303
        %3097 = vmatpush.msra.mxu0 %v1290
        %3098 = vmatpush.msra.mxu0 %v1277
        %3099 = vmatpush.msra.mxu0 %v1264
        %3100 = vmatpush.msra.mxu0 %v1251
        %3101 = vmatpush.msra.mxu0 %v1238
        %3102 = vmatpush.msra.mxu0 %v1225
        %3103 = vmatmul.f32.gmra.mxu0 %v1214
        %v3104 = vpop.f32.mrf.mxu0
        %v3105 = vadd.f32 %v2501, %v3104
        %3106 = vdwg.mxu0
        %3107 = vmatpush.msra.mxu0 %v1628
        %3108 = vmatpush.msra.mxu0 %v1615
        %3109 = vmatpush.msra.mxu0 %v1602
        %3110 = vmatpush.msra.mxu0 %v1589
        %3111 = vmatpush.msra.mxu0 %v1576
        %3112 = vmatpush.msra.mxu0 %v1563
        %3113 = vmatpush.msra.mxu0 %v1550
        %3114 = vmatpush.msra.mxu0 %v1537
        %3115 = vmatpush.msra.mxu0 %v1524
        %3116 = vmatpush.msra.mxu0 %v1511
        %3117 = vmatpush.msra.mxu0 %v1498
        %3118 = vmatpush.msra.mxu0 %v1485
        %3119 = vmatpush.msra.mxu0 %v1472
        %3120 = vmatpush.msra.mxu0 %v1459
        %3121 = vmatpush.msra.mxu0 %v1446
        %3122 = vmatpush.msra.mxu0 %v1433
        %3123 = vmatmul.f32.gmra.mxu0 %v1215
        %v3124 = vpop.f32.mrf.mxu0
        %v3125 = vadd.f32 %v3105, %v3124
        %3126 = vdwg.mxu0
        %3127 = vmatpush.msra.mxu0 %v1836
        %3128 = vmatpush.msra.mxu0 %v1823
        %3129 = vmatpush.msra.mxu0 %v1810
        %3130 = vmatpush.msra.mxu0 %v1797
        %3131 = vmatpush.msra.mxu0 %v1784
        %3132 = vmatpush.msra.mxu0 %v1771
        %3133 = vmatpush.msra.mxu0 %v1758
        %3134 = vmatpush.msra.mxu0 %v1745
        %3135 = vmatpush.msra.mxu0 %v1732
        %3136 = vmatpush.msra.mxu0 %v1719
        %3137 = vmatpush.msra.mxu0 %v1706
        %3138 = vmatpush.msra.mxu0 %v1693
        %3139 = vmatpush.msra.mxu0 %v1680
        %3140 = vmatpush.msra.mxu0 %v1667
        %3141 = vmatpush.msra.mxu0 %v1654
        %3142 = vmatpush.msra.mxu0 %v1641
        %3143 = vmatmul.f32.gmra.mxu0 %v1216
        %v3144 = vpop.f32.mrf.mxu0
        %v3145 = vadd.f32 %v3125, %v3144
        %3146 = vdwg.mxu0
        %3147 = vmatpush.msra.mxu0 %v2044
        %3148 = vmatpush.msra.mxu0 %v2031
        %3149 = vmatpush.msra.mxu0 %v2018
        %3150 = vmatpush.msra.mxu0 %v2005
        %3151 = vmatpush.msra.mxu0 %v1992
        %3152 = vmatpush.msra.mxu0 %v1979
        %3153 = vmatpush.msra.mxu0 %v1966
        %3154 = vmatpush.msra.mxu0 %v1953
        %3155 = vmatpush.msra.mxu0 %v1940
        %3156 = vmatpush.msra.mxu0 %v1927
        %3157 = vmatpush.msra.mxu0 %v1914
        %3158 = vmatpush.msra.mxu0 %v1901
        %3159 = vmatpush.msra.mxu0 %v1888
        %3160 = vmatpush.msra.mxu0 %v1875
        %3161 = vmatpush.msra.mxu0 %v1862
        %3162 = vmatpush.msra.mxu0 %v1849
        %3163 = vmatmul.f32.gmra.mxu0 %v1217
        %v3164 = vpop.f32.mrf.mxu0
        %v3165 = vadd.f32 %v3145, %v3164
        %3166 = vdwg.mxu0
        %3167 = vmatpush.msra.mxu0 %v2252
        %3168 = vmatpush.msra.mxu0 %v2239
        %3169 = vmatpush.msra.mxu0 %v2226
        %3170 = vmatpush.msra.mxu0 %v2213
        %3171 = vmatpush.msra.mxu0 %v2200
        %3172 = vmatpush.msra.mxu0 %v2187
        %3173 = vmatpush.msra.mxu0 %v2174
        %3174 = vmatpush.msra.mxu0 %v2161
        %3175 = vmatpush.msra.mxu0 %v2148
        %3176 = vmatpush.msra.mxu0 %v2135
        %3177 = vmatpush.msra.mxu0 %v2122
        %3178 = vmatpush.msra.mxu0 %v2109
        %3179 = vmatpush.msra.mxu0 %v2096
        %3180 = vmatpush.msra.mxu0 %v2083
        %3181 = vmatpush.msra.mxu0 %v2070
        %3182 = vmatpush.msra.mxu0 %v2057
        %3183 = vmatmul.f32.gmra.mxu0 %v1218
        %v3184 = vpop.f32.mrf.mxu0
        %v3185 = vadd.f32 %v3165, %v3184
        %3186 = vdwg.mxu0
        %3187 = vmatpush.msra.mxu0 %v2460
        %3188 = vmatpush.msra.mxu0 %v2447
        %3189 = vmatpush.msra.mxu0 %v2434
        %3190 = vmatpush.msra.mxu0 %v2421
        %3191 = vmatpush.msra.mxu0 %v2408
        %3192 = vmatpush.msra.mxu0 %v2395
        %3193 = vmatpush.msra.mxu0 %v2382
        %3194 = vmatpush.msra.mxu0 %v2369
        %3195 = vmatpush.msra.mxu0 %v2356
        %3196 = vmatpush.msra.mxu0 %v2343
        %3197 = vmatpush.msra.mxu0 %v2330
        %3198 = vmatpush.msra.mxu0 %v2317
        %3199 = vmatpush.msra.mxu0 %v2304
        %3200 = vmatpush.msra.mxu0 %v2291
        %3201 = vmatpush.msra.mxu0 %v2278
        %3202 = vmatpush.msra.mxu0 %v2265
        %3203 = vmatmul.f32.gmra.mxu0 %v1219
        %v3204 = vpop.f32.mrf.mxu0
        %v3205 = vadd.f32 %v3185, %v3204
        %3206 = vdwg.mxu0
        %3207 = vmatpush.msra.mxu0 0.0
        %3208 = vmatpush.msra.mxu0 0.0
        %3209 = vmatpush.msra.mxu0 0.0
        %3210 = vmatpush.msra.mxu0 0.0
        %3211 = vmatpush.msra.mxu0 0.0
        %3212 = vmatpush.msra.mxu0 0.0
        %3213 = vmatpush.msra.mxu0 0.0
        %3214 = vmatpush.msra.mxu0 0.0
        %3215 = vmatpush.msra.mxu0 0.0
        %3216 = vmatpush.msra.mxu0 0.0
        %3217 = vmatpush.msra.mxu0 0.0
        %3218 = vmatpush.msra.mxu0 0.0
        %3219 = vmatpush.msra.mxu0 0.0
        %3220 = vmatpush.msra.mxu0 0.0
        %3221 = vmatpush.msra.mxu0 %v2486
        %3222 = vmatpush.msra.mxu0 %v2473
        %3223 = vmatmul.f32.gmra.mxu0 %v2525
        %v3224 = vpop.f32.mrf.mxu0
        %v3225 = vadd.f32 %v3205, %v3224
        %3226 = vdwg.mxu0
        %3227 = vmatpush.msra.mxu0 %v1421
        %3228 = vmatpush.msra.mxu0 %v1408
        %3229 = vmatpush.msra.mxu0 %v1395
        %3230 = vmatpush.msra.mxu0 %v1382
        %3231 = vmatpush.msra.mxu0 %v1369
        %3232 = vmatpush.msra.mxu0 %v1356
        %3233 = vmatpush.msra.mxu0 %v1343
        %3234 = vmatpush.msra.mxu0 %v1330
        %3235 = vmatpush.msra.mxu0 %v1317
        %3236 = vmatpush.msra.mxu0 %v1304
        %3237 = vmatpush.msra.mxu0 %v1291
        %3238 = vmatpush.msra.mxu0 %v1278
        %3239 = vmatpush.msra.mxu0 %v1265
        %3240 = vmatpush.msra.mxu0 %v1252
        %3241 = vmatpush.msra.mxu0 %v1239
        %3242 = vmatpush.msra.mxu0 %v1226
        %3243 = vmatmul.f32.gmra.mxu0 %v1214
        %v3244 = vpop.f32.mrf.mxu0
        %v3245 = vadd.f32 %v2502, %v3244
        %3246 = vdwg.mxu0
        %3247 = vmatpush.msra.mxu0 %v1629
        %3248 = vmatpush.msra.mxu0 %v1616
        %3249 = vmatpush.msra.mxu0 %v1603
        %3250 = vmatpush.msra.mxu0 %v1590
        %3251 = vmatpush.msra.mxu0 %v1577
        %3252 = vmatpush.msra.mxu0 %v1564
        %3253 = vmatpush.msra.mxu0 %v1551
        %3254 = vmatpush.msra.mxu0 %v1538
        %3255 = vmatpush.msra.mxu0 %v1525
        %3256 = vmatpush.msra.mxu0 %v1512
        %3257 = vmatpush.msra.mxu0 %v1499
        %3258 = vmatpush.msra.mxu0 %v1486
        %3259 = vmatpush.msra.mxu0 %v1473
        %3260 = vmatpush.msra.mxu0 %v1460
        %3261 = vmatpush.msra.mxu0 %v1447
        %3262 = vmatpush.msra.mxu0 %v1434
        %3263 = vmatmul.f32.gmra.mxu0 %v1215
        %v3264 = vpop.f32.mrf.mxu0
        %v3265 = vadd.f32 %v3245, %v3264
        %3266 = vdwg.mxu0
        %3267 = vmatpush.msra.mxu0 %v1837
        %3268 = vmatpush.msra.mxu0 %v1824
        %3269 = vmatpush.msra.mxu0 %v1811
        %3270 = vmatpush.msra.mxu0 %v1798
        %3271 = vmatpush.msra.mxu0 %v1785
        %3272 = vmatpush.msra.mxu0 %v1772
        %3273 = vmatpush.msra.mxu0 %v1759
        %3274 = vmatpush.msra.mxu0 %v1746
        %3275 = vmatpush.msra.mxu0 %v1733
        %3276 = vmatpush.msra.mxu0 %v1720
        %3277 = vmatpush.msra.mxu0 %v1707
        %3278 = vmatpush.msra.mxu0 %v1694
        %3279 = vmatpush.msra.mxu0 %v1681
        %3280 = vmatpush.msra.mxu0 %v1668
        %3281 = vmatpush.msra.mxu0 %v1655
        %3282 = vmatpush.msra.mxu0 %v1642
        %3283 = vmatmul.f32.gmra.mxu0 %v1216
        %v3284 = vpop.f32.mrf.mxu0
        %v3285 = vadd.f32 %v3265, %v3284
        %3286 = vdwg.mxu0
        %3287 = vmatpush.msra.mxu0 %v2045
        %3288 = vmatpush.msra.mxu0 %v2032
        %3289 = vmatpush.msra.mxu0 %v2019
        %3290 = vmatpush.msra.mxu0 %v2006
        %3291 = vmatpush.msra.mxu0 %v1993
        %3292 = vmatpush.msra.mxu0 %v1980
        %3293 = vmatpush.msra.mxu0 %v1967
        %3294 = vmatpush.msra.mxu0 %v1954
        %3295 = vmatpush.msra.mxu0 %v1941
        %3296 = vmatpush.msra.mxu0 %v1928
        %3297 = vmatpush.msra.mxu0 %v1915
        %3298 = vmatpush.msra.mxu0 %v1902
        %3299 = vmatpush.msra.mxu0 %v1889
        %3300 = vmatpush.msra.mxu0 %v1876
        %3301 = vmatpush.msra.mxu0 %v1863
        %3302 = vmatpush.msra.mxu0 %v1850
        %3303 = vmatmul.f32.gmra.mxu0 %v1217
        %v3304 = vpop.f32.mrf.mxu0
        %v3305 = vadd.f32 %v3285, %v3304
        %3306 = vdwg.mxu0
        %3307 = vmatpush.msra.mxu0 %v2253
        %3308 = vmatpush.msra.mxu0 %v2240
        %3309 = vmatpush.msra.mxu0 %v2227
        %3310 = vmatpush.msra.mxu0 %v2214
        %3311 = vmatpush.msra.mxu0 %v2201
        %3312 = vmatpush.msra.mxu0 %v2188
        %3313 = vmatpush.msra.mxu0 %v2175
        %3314 = vmatpush.msra.mxu0 %v2162
        %3315 = vmatpush.msra.mxu0 %v2149
        %3316 = vmatpush.msra.mxu0 %v2136
        %3317 = vmatpush.msra.mxu0 %v2123
        %3318 = vmatpush.msra.mxu0 %v2110
        %3319 = vmatpush.msra.mxu0 %v2097
        %3320 = vmatpush.msra.mxu0 %v2084
        %3321 = vmatpush.msra.mxu0 %v2071
        %3322 = vmatpush.msra.mxu0 %v2058
        %3323 = vmatmul.f32.gmra.mxu0 %v1218
        %v3324 = vpop.f32.mrf.mxu0
        %v3325 = vadd.f32 %v3305, %v3324
        %3326 = vdwg.mxu0
        %3327 = vmatpush.msra.mxu0 %v2461
        %3328 = vmatpush.msra.mxu0 %v2448
        %3329 = vmatpush.msra.mxu0 %v2435
        %3330 = vmatpush.msra.mxu0 %v2422
        %3331 = vmatpush.msra.mxu0 %v2409
        %3332 = vmatpush.msra.mxu0 %v2396
        %3333 = vmatpush.msra.mxu0 %v2383
        %3334 = vmatpush.msra.mxu0 %v2370
        %3335 = vmatpush.msra.mxu0 %v2357
        %3336 = vmatpush.msra.mxu0 %v2344
        %3337 = vmatpush.msra.mxu0 %v2331
        %3338 = vmatpush.msra.mxu0 %v2318
        %3339 = vmatpush.msra.mxu0 %v2305
        %3340 = vmatpush.msra.mxu0 %v2292
        %3341 = vmatpush.msra.mxu0 %v2279
        %3342 = vmatpush.msra.mxu0 %v2266
        %3343 = vmatmul.f32.gmra.mxu0 %v1219
        %v3344 = vpop.f32.mrf.mxu0
        %v3345 = vadd.f32 %v3325, %v3344
        %3346 = vdwg.mxu0
        %3347 = vmatpush.msra.mxu0 0.0
        %3348 = vmatpush.msra.mxu0 0.0
        %3349 = vmatpush.msra.mxu0 0.0
        %3350 = vmatpush.msra.mxu0 0.0
        %3351 = vmatpush.msra.mxu0 0.0
        %3352 = vmatpush.msra.mxu0 0.0
        %3353 = vmatpush.msra.mxu0 0.0
        %3354 = vmatpush.msra.mxu0 0.0
        %3355 = vmatpush.msra.mxu0 0.0
        %3356 = vmatpush.msra.mxu0 0.0
        %3357 = vmatpush.msra.mxu0 0.0
        %3358 = vmatpush.msra.mxu0 0.0
        %3359 = vmatpush.msra.mxu0 0.0
        %3360 = vmatpush.msra.mxu0 0.0
        %3361 = vmatpush.msra.mxu0 %v2487
        %3362 = vmatpush.msra.mxu0 %v2474
        %3363 = vmatmul.f32.gmra.mxu0 %v2525
        %v3364 = vpop.f32.mrf.mxu0
        %v3365 = vadd.f32 %v3345, %v3364
        %3366 = vdwg.mxu0
        %3367 = vmatpush.msra.mxu0 %v1422
        %3368 = vmatpush.msra.mxu0 %v1409
        %3369 = vmatpush.msra.mxu0 %v1396
        %3370 = vmatpush.msra.mxu0 %v1383
        %3371 = vmatpush.msra.mxu0 %v1370
        %3372 = vmatpush.msra.mxu0 %v1357
        %3373 = vmatpush.msra.mxu0 %v1344
        %3374 = vmatpush.msra.mxu0 %v1331
        %3375 = vmatpush.msra.mxu0 %v1318
        %3376 = vmatpush.msra.mxu0 %v1305
        %3377 = vmatpush.msra.mxu0 %v1292
        %3378 = vmatpush.msra.mxu0 %v1279
        %3379 = vmatpush.msra.mxu0 %v1266
        %3380 = vmatpush.msra.mxu0 %v1253
        %3381 = vmatpush.msra.mxu0 %v1240
        %3382 = vmatpush.msra.mxu0 %v1227
        %3383 = vmatmul.f32.gmra.mxu0 %v1214
        %v3384 = vpop.f32.mrf.mxu0
        %v3385 = vadd.f32 %v2503, %v3384
        %3386 = vdwg.mxu0
        %3387 = vmatpush.msra.mxu0 %v1630
        %3388 = vmatpush.msra.mxu0 %v1617
        %3389 = vmatpush.msra.mxu0 %v1604
        %3390 = vmatpush.msra.mxu0 %v1591
        %3391 = vmatpush.msra.mxu0 %v1578
        %3392 = vmatpush.msra.mxu0 %v1565
        %3393 = vmatpush.msra.mxu0 %v1552
        %3394 = vmatpush.msra.mxu0 %v1539
        %3395 = vmatpush.msra.mxu0 %v1526
        %3396 = vmatpush.msra.mxu0 %v1513
        %3397 = vmatpush.msra.mxu0 %v1500
        %3398 = vmatpush.msra.mxu0 %v1487
        %3399 = vmatpush.msra.mxu0 %v1474
        %3400 = vmatpush.msra.mxu0 %v1461
        %3401 = vmatpush.msra.mxu0 %v1448
        %3402 = vmatpush.msra.mxu0 %v1435
        %3403 = vmatmul.f32.gmra.mxu0 %v1215
        %v3404 = vpop.f32.mrf.mxu0
        %v3405 = vadd.f32 %v3385, %v3404
        %3406 = vdwg.mxu0
        %3407 = vmatpush.msra.mxu0 %v1838
        %3408 = vmatpush.msra.mxu0 %v1825
        %3409 = vmatpush.msra.mxu0 %v1812
        %3410 = vmatpush.msra.mxu0 %v1799
        %3411 = vmatpush.msra.mxu0 %v1786
        %3412 = vmatpush.msra.mxu0 %v1773
        %3413 = vmatpush.msra.mxu0 %v1760
        %3414 = vmatpush.msra.mxu0 %v1747
        %3415 = vmatpush.msra.mxu0 %v1734
        %3416 = vmatpush.msra.mxu0 %v1721
        %3417 = vmatpush.msra.mxu0 %v1708
        %3418 = vmatpush.msra.mxu0 %v1695
        %3419 = vmatpush.msra.mxu0 %v1682
        %3420 = vmatpush.msra.mxu0 %v1669
        %3421 = vmatpush.msra.mxu0 %v1656
        %3422 = vmatpush.msra.mxu0 %v1643
        %3423 = vmatmul.f32.gmra.mxu0 %v1216
        %v3424 = vpop.f32.mrf.mxu0
        %v3425 = vadd.f32 %v3405, %v3424
        %3426 = vdwg.mxu0
        %3427 = vmatpush.msra.mxu0 %v2046
        %3428 = vmatpush.msra.mxu0 %v2033
        %3429 = vmatpush.msra.mxu0 %v2020
        %3430 = vmatpush.msra.mxu0 %v2007
        %3431 = vmatpush.msra.mxu0 %v1994
        %3432 = vmatpush.msra.mxu0 %v1981
        %3433 = vmatpush.msra.mxu0 %v1968
        %3434 = vmatpush.msra.mxu0 %v1955
        %3435 = vmatpush.msra.mxu0 %v1942
        %3436 = vmatpush.msra.mxu0 %v1929
        %3437 = vmatpush.msra.mxu0 %v1916
        %3438 = vmatpush.msra.mxu0 %v1903
        %3439 = vmatpush.msra.mxu0 %v1890
        %3440 = vmatpush.msra.mxu0 %v1877
        %3441 = vmatpush.msra.mxu0 %v1864
        %3442 = vmatpush.msra.mxu0 %v1851
        %3443 = vmatmul.f32.gmra.mxu0 %v1217
        %v3444 = vpop.f32.mrf.mxu0
        %v3445 = vadd.f32 %v3425, %v3444
        %3446 = vdwg.mxu0
        %3447 = vmatpush.msra.mxu0 %v2254
        %3448 = vmatpush.msra.mxu0 %v2241
        %3449 = vmatpush.msra.mxu0 %v2228
        %3450 = vmatpush.msra.mxu0 %v2215
        %3451 = vmatpush.msra.mxu0 %v2202
        %3452 = vmatpush.msra.mxu0 %v2189
        %3453 = vmatpush.msra.mxu0 %v2176
        %3454 = vmatpush.msra.mxu0 %v2163
        %3455 = vmatpush.msra.mxu0 %v2150
        %3456 = vmatpush.msra.mxu0 %v2137
        %3457 = vmatpush.msra.mxu0 %v2124
        %3458 = vmatpush.msra.mxu0 %v2111
        %3459 = vmatpush.msra.mxu0 %v2098
        %3460 = vmatpush.msra.mxu0 %v2085
        %3461 = vmatpush.msra.mxu0 %v2072
        %3462 = vmatpush.msra.mxu0 %v2059
        %3463 = vmatmul.f32.gmra.mxu0 %v1218
        %v3464 = vpop.f32.mrf.mxu0
        %v3465 = vadd.f32 %v3445, %v3464
        %3466 = vdwg.mxu0
        %3467 = vmatpush.msra.mxu0 %v2462
        %3468 = vmatpush.msra.mxu0 %v2449
        %3469 = vmatpush.msra.mxu0 %v2436
        %3470 = vmatpush.msra.mxu0 %v2423
        %3471 = vmatpush.msra.mxu0 %v2410
        %3472 = vmatpush.msra.mxu0 %v2397
        %3473 = vmatpush.msra.mxu0 %v2384
        %3474 = vmatpush.msra.mxu0 %v2371
        %3475 = vmatpush.msra.mxu0 %v2358
        %3476 = vmatpush.msra.mxu0 %v2345
        %3477 = vmatpush.msra.mxu0 %v2332
        %3478 = vmatpush.msra.mxu0 %v2319
        %3479 = vmatpush.msra.mxu0 %v2306
        %3480 = vmatpush.msra.mxu0 %v2293
        %3481 = vmatpush.msra.mxu0 %v2280
        %3482 = vmatpush.msra.mxu0 %v2267
        %3483 = vmatmul.f32.gmra.mxu0 %v1219
        %v3484 = vpop.f32.mrf.mxu0
        %v3485 = vadd.f32 %v3465, %v3484
        %3486 = vdwg.mxu0
        %3487 = vmatpush.msra.mxu0 0.0
        %3488 = vmatpush.msra.mxu0 0.0
        %3489 = vmatpush.msra.mxu0 0.0
        %3490 = vmatpush.msra.mxu0 0.0
        %3491 = vmatpush.msra.mxu0 0.0
        %3492 = vmatpush.msra.mxu0 0.0
        %3493 = vmatpush.msra.mxu0 0.0
        %3494 = vmatpush.msra.mxu0 0.0
        %3495 = vmatpush.msra.mxu0 0.0
        %3496 = vmatpush.msra.mxu0 0.0
        %3497 = vmatpush.msra.mxu0 0.0
        %3498 = vmatpush.msra.mxu0 0.0
        %3499 = vmatpush.msra.mxu0 0.0
        %3500 = vmatpush.msra.mxu0 0.0
        %3501 = vmatpush.msra.mxu0 %v2488
        %3502 = vmatpush.msra.mxu0 %v2475
        %3503 = vmatmul.f32.gmra.mxu0 %v2525
        %v3504 = vpop.f32.mrf.mxu0
        %v3505 = vadd.f32 %v3485, %v3504
        %3506 = vdwg.mxu0
        %3507 = vmatpush.msra.mxu0 %v1423
        %3508 = vmatpush.msra.mxu0 %v1410
        %3509 = vmatpush.msra.mxu0 %v1397
        %3510 = vmatpush.msra.mxu0 %v1384
        %3511 = vmatpush.msra.mxu0 %v1371
        %3512 = vmatpush.msra.mxu0 %v1358
        %3513 = vmatpush.msra.mxu0 %v1345
        %3514 = vmatpush.msra.mxu0 %v1332
        %3515 = vmatpush.msra.mxu0 %v1319
        %3516 = vmatpush.msra.mxu0 %v1306
        %3517 = vmatpush.msra.mxu0 %v1293
        %3518 = vmatpush.msra.mxu0 %v1280
        %3519 = vmatpush.msra.mxu0 %v1267
        %3520 = vmatpush.msra.mxu0 %v1254
        %3521 = vmatpush.msra.mxu0 %v1241
        %3522 = vmatpush.msra.mxu0 %v1228
        %3523 = vmatmul.f32.gmra.mxu0 %v1214
        %v3524 = vpop.f32.mrf.mxu0
        %v3525 = vadd.f32 %v2504, %v3524
        %3526 = vdwg.mxu0
        %3527 = vmatpush.msra.mxu0 %v1631
        %3528 = vmatpush.msra.mxu0 %v1618
        %3529 = vmatpush.msra.mxu0 %v1605
        %3530 = vmatpush.msra.mxu0 %v1592
        %3531 = vmatpush.msra.mxu0 %v1579
        %3532 = vmatpush.msra.mxu0 %v1566
        %3533 = vmatpush.msra.mxu0 %v1553
        %3534 = vmatpush.msra.mxu0 %v1540
        %3535 = vmatpush.msra.mxu0 %v1527
        %3536 = vmatpush.msra.mxu0 %v1514
        %3537 = vmatpush.msra.mxu0 %v1501
        %3538 = vmatpush.msra.mxu0 %v1488
        %3539 = vmatpush.msra.mxu0 %v1475
        %3540 = vmatpush.msra.mxu0 %v1462
        %3541 = vmatpush.msra.mxu0 %v1449
        %3542 = vmatpush.msra.mxu0 %v1436
        %3543 = vmatmul.f32.gmra.mxu0 %v1215
        %v3544 = vpop.f32.mrf.mxu0
        %v3545 = vadd.f32 %v3525, %v3544
        %3546 = vdwg.mxu0
        %3547 = vmatpush.msra.mxu0 %v1839
        %3548 = vmatpush.msra.mxu0 %v1826
        %3549 = vmatpush.msra.mxu0 %v1813
        %3550 = vmatpush.msra.mxu0 %v1800
        %3551 = vmatpush.msra.mxu0 %v1787
        %3552 = vmatpush.msra.mxu0 %v1774
        %3553 = vmatpush.msra.mxu0 %v1761
        %3554 = vmatpush.msra.mxu0 %v1748
        %3555 = vmatpush.msra.mxu0 %v1735
        %3556 = vmatpush.msra.mxu0 %v1722
        %3557 = vmatpush.msra.mxu0 %v1709
        %3558 = vmatpush.msra.mxu0 %v1696
        %3559 = vmatpush.msra.mxu0 %v1683
        %3560 = vmatpush.msra.mxu0 %v1670
        %3561 = vmatpush.msra.mxu0 %v1657
        %3562 = vmatpush.msra.mxu0 %v1644
        %3563 = vmatmul.f32.gmra.mxu0 %v1216
        %v3564 = vpop.f32.mrf.mxu0
        %v3565 = vadd.f32 %v3545, %v3564
        %3566 = vdwg.mxu0
        %3567 = vmatpush.msra.mxu0 %v2047
        %3568 = vmatpush.msra.mxu0 %v2034
        %3569 = vmatpush.msra.mxu0 %v2021
        %3570 = vmatpush.msra.mxu0 %v2008
        %3571 = vmatpush.msra.mxu0 %v1995
        %3572 = vmatpush.msra.mxu0 %v1982
        %3573 = vmatpush.msra.mxu0 %v1969
        %3574 = vmatpush.msra.mxu0 %v1956
        %3575 = vmatpush.msra.mxu0 %v1943
        %3576 = vmatpush.msra.mxu0 %v1930
        %3577 = vmatpush.msra.mxu0 %v1917
        %3578 = vmatpush.msra.mxu0 %v1904
        %3579 = vmatpush.msra.mxu0 %v1891
        %3580 = vmatpush.msra.mxu0 %v1878
        %3581 = vmatpush.msra.mxu0 %v1865
        %3582 = vmatpush.msra.mxu0 %v1852
        %3583 = vmatmul.f32.gmra.mxu0 %v1217
        %v3584 = vpop.f32.mrf.mxu0
        %v3585 = vadd.f32 %v3565, %v3584
        %3586 = vdwg.mxu0
        %3587 = vmatpush.msra.mxu0 %v2255
        %3588 = vmatpush.msra.mxu0 %v2242
        %3589 = vmatpush.msra.mxu0 %v2229
        %3590 = vmatpush.msra.mxu0 %v2216
        %3591 = vmatpush.msra.mxu0 %v2203
        %3592 = vmatpush.msra.mxu0 %v2190
        %3593 = vmatpush.msra.mxu0 %v2177
        %3594 = vmatpush.msra.mxu0 %v2164
        %3595 = vmatpush.msra.mxu0 %v2151
        %3596 = vmatpush.msra.mxu0 %v2138
        %3597 = vmatpush.msra.mxu0 %v2125
        %3598 = vmatpush.msra.mxu0 %v2112
        %3599 = vmatpush.msra.mxu0 %v2099
        %3600 = vmatpush.msra.mxu0 %v2086
        %3601 = vmatpush.msra.mxu0 %v2073
        %3602 = vmatpush.msra.mxu0 %v2060
        %3603 = vmatmul.f32.gmra.mxu0 %v1218
        %v3604 = vpop.f32.mrf.mxu0
        %v3605 = vadd.f32 %v3585, %v3604
        %3606 = vdwg.mxu0
        %3607 = vmatpush.msra.mxu0 %v2463
        %3608 = vmatpush.msra.mxu0 %v2450
        %3609 = vmatpush.msra.mxu0 %v2437
        %3610 = vmatpush.msra.mxu0 %v2424
        %3611 = vmatpush.msra.mxu0 %v2411
        %3612 = vmatpush.msra.mxu0 %v2398
        %3613 = vmatpush.msra.mxu0 %v2385
        %3614 = vmatpush.msra.mxu0 %v2372
        %3615 = vmatpush.msra.mxu0 %v2359
        %3616 = vmatpush.msra.mxu0 %v2346
        %3617 = vmatpush.msra.mxu0 %v2333
        %3618 = vmatpush.msra.mxu0 %v2320
        %3619 = vmatpush.msra.mxu0 %v2307
        %3620 = vmatpush.msra.mxu0 %v2294
        %3621 = vmatpush.msra.mxu0 %v2281
        %3622 = vmatpush.msra.mxu0 %v2268
        %3623 = vmatmul.f32.gmra.mxu0 %v1219
        %v3624 = vpop.f32.mrf.mxu0
        %v3625 = vadd.f32 %v3605, %v3624
        %3626 = vdwg.mxu0
        %3627 = vmatpush.msra.mxu0 0.0
        %3628 = vmatpush.msra.mxu0 0.0
        %3629 = vmatpush.msra.mxu0 0.0
        %3630 = vmatpush.msra.mxu0 0.0
        %3631 = vmatpush.msra.mxu0 0.0
        %3632 = vmatpush.msra.mxu0 0.0
        %3633 = vmatpush.msra.mxu0 0.0
        %3634 = vmatpush.msra.mxu0 0.0
        %3635 = vmatpush.msra.mxu0 0.0
        %3636 = vmatpush.msra.mxu0 0.0
        %3637 = vmatpush.msra.mxu0 0.0
        %3638 = vmatpush.msra.mxu0 0.0
        %3639 = vmatpush.msra.mxu0 0.0
        %3640 = vmatpush.msra.mxu0 0.0
        %3641 = vmatpush.msra.mxu0 %v2489
        %3642 = vmatpush.msra.mxu0 %v2476
        %3643 = vmatmul.f32.gmra.mxu0 %v2525
        %v3644 = vpop.f32.mrf.mxu0
        %v3645 = vadd.f32 %v3625, %v3644
        %3646 = vdwg.mxu0
        %3647 = vmatpush.msra.mxu0 %v1424
        %3648 = vmatpush.msra.mxu0 %v1411
        %3649 = vmatpush.msra.mxu0 %v1398
        %3650 = vmatpush.msra.mxu0 %v1385
        %3651 = vmatpush.msra.mxu0 %v1372
        %3652 = vmatpush.msra.mxu0 %v1359
        %3653 = vmatpush.msra.mxu0 %v1346
        %3654 = vmatpush.msra.mxu0 %v1333
        %3655 = vmatpush.msra.mxu0 %v1320
        %3656 = vmatpush.msra.mxu0 %v1307
        %3657 = vmatpush.msra.mxu0 %v1294
        %3658 = vmatpush.msra.mxu0 %v1281
        %3659 = vmatpush.msra.mxu0 %v1268
        %3660 = vmatpush.msra.mxu0 %v1255
        %3661 = vmatpush.msra.mxu0 %v1242
        %3662 = vmatpush.msra.mxu0 %v1229
        %3663 = vmatmul.f32.gmra.mxu0 %v1214
        %v3664 = vpop.f32.mrf.mxu0
        %v3665 = vadd.f32 %v2505, %v3664
        %3666 = vdwg.mxu0
        %3667 = vmatpush.msra.mxu0 %v1632
        %3668 = vmatpush.msra.mxu0 %v1619
        %3669 = vmatpush.msra.mxu0 %v1606
        %3670 = vmatpush.msra.mxu0 %v1593
        %3671 = vmatpush.msra.mxu0 %v1580
        %3672 = vmatpush.msra.mxu0 %v1567
        %3673 = vmatpush.msra.mxu0 %v1554
        %3674 = vmatpush.msra.mxu0 %v1541
        %3675 = vmatpush.msra.mxu0 %v1528
        %3676 = vmatpush.msra.mxu0 %v1515
        %3677 = vmatpush.msra.mxu0 %v1502
        %3678 = vmatpush.msra.mxu0 %v1489
        %3679 = vmatpush.msra.mxu0 %v1476
        %3680 = vmatpush.msra.mxu0 %v1463
        %3681 = vmatpush.msra.mxu0 %v1450
        %3682 = vmatpush.msra.mxu0 %v1437
        %3683 = vmatmul.f32.gmra.mxu0 %v1215
        %v3684 = vpop.f32.mrf.mxu0
        %v3685 = vadd.f32 %v3665, %v3684
        %3686 = vdwg.mxu0
        %3687 = vmatpush.msra.mxu0 %v1840
        %3688 = vmatpush.msra.mxu0 %v1827
        %3689 = vmatpush.msra.mxu0 %v1814
        %3690 = vmatpush.msra.mxu0 %v1801
        %3691 = vmatpush.msra.mxu0 %v1788
        %3692 = vmatpush.msra.mxu0 %v1775
        %3693 = vmatpush.msra.mxu0 %v1762
        %3694 = vmatpush.msra.mxu0 %v1749
        %3695 = vmatpush.msra.mxu0 %v1736
        %3696 = vmatpush.msra.mxu0 %v1723
        %3697 = vmatpush.msra.mxu0 %v1710
        %3698 = vmatpush.msra.mxu0 %v1697
        %3699 = vmatpush.msra.mxu0 %v1684
        %3700 = vmatpush.msra.mxu0 %v1671
        %3701 = vmatpush.msra.mxu0 %v1658
        %3702 = vmatpush.msra.mxu0 %v1645
        %3703 = vmatmul.f32.gmra.mxu0 %v1216
        %v3704 = vpop.f32.mrf.mxu0
        %v3705 = vadd.f32 %v3685, %v3704
        %3706 = vdwg.mxu0
        %3707 = vmatpush.msra.mxu0 %v2048
        %3708 = vmatpush.msra.mxu0 %v2035
        %3709 = vmatpush.msra.mxu0 %v2022
        %3710 = vmatpush.msra.mxu0 %v2009
        %3711 = vmatpush.msra.mxu0 %v1996
        %3712 = vmatpush.msra.mxu0 %v1983
        %3713 = vmatpush.msra.mxu0 %v1970
        %3714 = vmatpush.msra.mxu0 %v1957
        %3715 = vmatpush.msra.mxu0 %v1944
        %3716 = vmatpush.msra.mxu0 %v1931
        %3717 = vmatpush.msra.mxu0 %v1918
        %3718 = vmatpush.msra.mxu0 %v1905
        %3719 = vmatpush.msra.mxu0 %v1892
        %3720 = vmatpush.msra.mxu0 %v1879
        %3721 = vmatpush.msra.mxu0 %v1866
        %3722 = vmatpush.msra.mxu0 %v1853
        %3723 = vmatmul.f32.gmra.mxu0 %v1217
        %v3724 = vpop.f32.mrf.mxu0
        %v3725 = vadd.f32 %v3705, %v3724
        %3726 = vdwg.mxu0
        %3727 = vmatpush.msra.mxu0 %v2256
        %3728 = vmatpush.msra.mxu0 %v2243
        %3729 = vmatpush.msra.mxu0 %v2230
        %3730 = vmatpush.msra.mxu0 %v2217
        %3731 = vmatpush.msra.mxu0 %v2204
        %3732 = vmatpush.msra.mxu0 %v2191
        %3733 = vmatpush.msra.mxu0 %v2178
        %3734 = vmatpush.msra.mxu0 %v2165
        %3735 = vmatpush.msra.mxu0 %v2152
        %3736 = vmatpush.msra.mxu0 %v2139
        %3737 = vmatpush.msra.mxu0 %v2126
        %3738 = vmatpush.msra.mxu0 %v2113
        %3739 = vmatpush.msra.mxu0 %v2100
        %3740 = vmatpush.msra.mxu0 %v2087
        %3741 = vmatpush.msra.mxu0 %v2074
        %3742 = vmatpush.msra.mxu0 %v2061
        %3743 = vmatmul.f32.gmra.mxu0 %v1218
        %v3744 = vpop.f32.mrf.mxu0
        %v3745 = vadd.f32 %v3725, %v3744
        %3746 = vdwg.mxu0
        %3747 = vmatpush.msra.mxu0 %v2464
        %3748 = vmatpush.msra.mxu0 %v2451
        %3749 = vmatpush.msra.mxu0 %v2438
        %3750 = vmatpush.msra.mxu0 %v2425
        %3751 = vmatpush.msra.mxu0 %v2412
        %3752 = vmatpush.msra.mxu0 %v2399
        %3753 = vmatpush.msra.mxu0 %v2386
        %3754 = vmatpush.msra.mxu0 %v2373
        %3755 = vmatpush.msra.mxu0 %v2360
        %3756 = vmatpush.msra.mxu0 %v2347
        %3757 = vmatpush.msra.mxu0 %v2334
        %3758 = vmatpush.msra.mxu0 %v2321
        %3759 = vmatpush.msra.mxu0 %v2308
        %3760 = vmatpush.msra.mxu0 %v2295
        %3761 = vmatpush.msra.mxu0 %v2282
        %3762 = vmatpush.msra.mxu0 %v2269
        %3763 = vmatmul.f32.gmra.mxu0 %v1219
        %v3764 = vpop.f32.mrf.mxu0
        %v3765 = vadd.f32 %v3745, %v3764
        %3766 = vdwg.mxu0
        %3767 = vmatpush.msra.mxu0 0.0
        %3768 = vmatpush.msra.mxu0 0.0
        %3769 = vmatpush.msra.mxu0 0.0
        %3770 = vmatpush.msra.mxu0 0.0
        %3771 = vmatpush.msra.mxu0 0.0
        %3772 = vmatpush.msra.mxu0 0.0
        %3773 = vmatpush.msra.mxu0 0.0
        %3774 = vmatpush.msra.mxu0 0.0
        %3775 = vmatpush.msra.mxu0 0.0
        %3776 = vmatpush.msra.mxu0 0.0
        %3777 = vmatpush.msra.mxu0 0.0
        %3778 = vmatpush.msra.mxu0 0.0
        %3779 = vmatpush.msra.mxu0 0.0
        %3780 = vmatpush.msra.mxu0 0.0
        %3781 = vmatpush.msra.mxu0 %v2490
        %3782 = vmatpush.msra.mxu0 %v2477
        %3783 = vmatmul.f32.gmra.mxu0 %v2525
        %v3784 = vpop.f32.mrf.mxu0
        %v3785 = vadd.f32 %v3765, %v3784
        %3786 = vdwg.mxu0
        %3787 = vmatpush.msra.mxu0 %v1425
        %3788 = vmatpush.msra.mxu0 %v1412
        %3789 = vmatpush.msra.mxu0 %v1399
        %3790 = vmatpush.msra.mxu0 %v1386
        %3791 = vmatpush.msra.mxu0 %v1373
        %3792 = vmatpush.msra.mxu0 %v1360
        %3793 = vmatpush.msra.mxu0 %v1347
        %3794 = vmatpush.msra.mxu0 %v1334
        %3795 = vmatpush.msra.mxu0 %v1321
        %3796 = vmatpush.msra.mxu0 %v1308
        %3797 = vmatpush.msra.mxu0 %v1295
        %3798 = vmatpush.msra.mxu0 %v1282
        %3799 = vmatpush.msra.mxu0 %v1269
        %3800 = vmatpush.msra.mxu0 %v1256
        %3801 = vmatpush.msra.mxu0 %v1243
        %3802 = vmatpush.msra.mxu0 %v1230
        %3803 = vmatmul.f32.gmra.mxu0 %v1214
        %v3804 = vpop.f32.mrf.mxu0
        %v3805 = vadd.f32 %v2506, %v3804
        %3806 = vdwg.mxu0
        %3807 = vmatpush.msra.mxu0 %v1633
        %3808 = vmatpush.msra.mxu0 %v1620
        %3809 = vmatpush.msra.mxu0 %v1607
        %3810 = vmatpush.msra.mxu0 %v1594
        %3811 = vmatpush.msra.mxu0 %v1581
        %3812 = vmatpush.msra.mxu0 %v1568
        %3813 = vmatpush.msra.mxu0 %v1555
        %3814 = vmatpush.msra.mxu0 %v1542
        %3815 = vmatpush.msra.mxu0 %v1529
        %3816 = vmatpush.msra.mxu0 %v1516
        %3817 = vmatpush.msra.mxu0 %v1503
        %3818 = vmatpush.msra.mxu0 %v1490
        %3819 = vmatpush.msra.mxu0 %v1477
        %3820 = vmatpush.msra.mxu0 %v1464
        %3821 = vmatpush.msra.mxu0 %v1451
        %3822 = vmatpush.msra.mxu0 %v1438
        %3823 = vmatmul.f32.gmra.mxu0 %v1215
        %v3824 = vpop.f32.mrf.mxu0
        %v3825 = vadd.f32 %v3805, %v3824
        %3826 = vdwg.mxu0
        %3827 = vmatpush.msra.mxu0 %v1841
        %3828 = vmatpush.msra.mxu0 %v1828
        %3829 = vmatpush.msra.mxu0 %v1815
        %3830 = vmatpush.msra.mxu0 %v1802
        %3831 = vmatpush.msra.mxu0 %v1789
        %3832 = vmatpush.msra.mxu0 %v1776
        %3833 = vmatpush.msra.mxu0 %v1763
        %3834 = vmatpush.msra.mxu0 %v1750
        %3835 = vmatpush.msra.mxu0 %v1737
        %3836 = vmatpush.msra.mxu0 %v1724
        %3837 = vmatpush.msra.mxu0 %v1711
        %3838 = vmatpush.msra.mxu0 %v1698
        %3839 = vmatpush.msra.mxu0 %v1685
        %3840 = vmatpush.msra.mxu0 %v1672
        %3841 = vmatpush.msra.mxu0 %v1659
        %3842 = vmatpush.msra.mxu0 %v1646
        %3843 = vmatmul.f32.gmra.mxu0 %v1216
        %v3844 = vpop.f32.mrf.mxu0
        %v3845 = vadd.f32 %v3825, %v3844
        %3846 = vdwg.mxu0
        %3847 = vmatpush.msra.mxu0 %v2049
        %3848 = vmatpush.msra.mxu0 %v2036
        %3849 = vmatpush.msra.mxu0 %v2023
        %3850 = vmatpush.msra.mxu0 %v2010
        %3851 = vmatpush.msra.mxu0 %v1997
        %3852 = vmatpush.msra.mxu0 %v1984
        %3853 = vmatpush.msra.mxu0 %v1971
        %3854 = vmatpush.msra.mxu0 %v1958
        %3855 = vmatpush.msra.mxu0 %v1945
        %3856 = vmatpush.msra.mxu0 %v1932
        %3857 = vmatpush.msra.mxu0 %v1919
        %3858 = vmatpush.msra.mxu0 %v1906
        %3859 = vmatpush.msra.mxu0 %v1893
        %3860 = vmatpush.msra.mxu0 %v1880
        %3861 = vmatpush.msra.mxu0 %v1867
        %3862 = vmatpush.msra.mxu0 %v1854
        %3863 = vmatmul.f32.gmra.mxu0 %v1217
        %v3864 = vpop.f32.mrf.mxu0
        %v3865 = vadd.f32 %v3845, %v3864
        %3866 = vdwg.mxu0
        %3867 = vmatpush.msra.mxu0 %v2257
        %3868 = vmatpush.msra.mxu0 %v2244
        %3869 = vmatpush.msra.mxu0 %v2231
        %3870 = vmatpush.msra.mxu0 %v2218
        %3871 = vmatpush.msra.mxu0 %v2205
        %3872 = vmatpush.msra.mxu0 %v2192
        %3873 = vmatpush.msra.mxu0 %v2179
        %3874 = vmatpush.msra.mxu0 %v2166
        %3875 = vmatpush.msra.mxu0 %v2153
        %3876 = vmatpush.msra.mxu0 %v2140
        %3877 = vmatpush.msra.mxu0 %v2127
        %3878 = vmatpush.msra.mxu0 %v2114
        %3879 = vmatpush.msra.mxu0 %v2101
        %3880 = vmatpush.msra.mxu0 %v2088
        %3881 = vmatpush.msra.mxu0 %v2075
        %3882 = vmatpush.msra.mxu0 %v2062
        %3883 = vmatmul.f32.gmra.mxu0 %v1218
        %v3884 = vpop.f32.mrf.mxu0
        %v3885 = vadd.f32 %v3865, %v3884
        %3886 = vdwg.mxu0
        %3887 = vmatpush.msra.mxu0 %v2465
        %3888 = vmatpush.msra.mxu0 %v2452
        %3889 = vmatpush.msra.mxu0 %v2439
        %3890 = vmatpush.msra.mxu0 %v2426
        %3891 = vmatpush.msra.mxu0 %v2413
        %3892 = vmatpush.msra.mxu0 %v2400
        %3893 = vmatpush.msra.mxu0 %v2387
        %3894 = vmatpush.msra.mxu0 %v2374
        %3895 = vmatpush.msra.mxu0 %v2361
        %3896 = vmatpush.msra.mxu0 %v2348
        %3897 = vmatpush.msra.mxu0 %v2335
        %3898 = vmatpush.msra.mxu0 %v2322
        %3899 = vmatpush.msra.mxu0 %v2309
        %3900 = vmatpush.msra.mxu0 %v2296
        %3901 = vmatpush.msra.mxu0 %v2283
        %3902 = vmatpush.msra.mxu0 %v2270
        %3903 = vmatmul.f32.gmra.mxu0 %v1219
        %v3904 = vpop.f32.mrf.mxu0
        %v3905 = vadd.f32 %v3885, %v3904
        %3906 = vdwg.mxu0
        %3907 = vmatpush.msra.mxu0 0.0
        %3908 = vmatpush.msra.mxu0 0.0
        %3909 = vmatpush.msra.mxu0 0.0
        %3910 = vmatpush.msra.mxu0 0.0
        %3911 = vmatpush.msra.mxu0 0.0
        %3912 = vmatpush.msra.mxu0 0.0
        %3913 = vmatpush.msra.mxu0 0.0
        %3914 = vmatpush.msra.mxu0 0.0
        %3915 = vmatpush.msra.mxu0 0.0
        %3916 = vmatpush.msra.mxu0 0.0
        %3917 = vmatpush.msra.mxu0 0.0
        %3918 = vmatpush.msra.mxu0 0.0
        %3919 = vmatpush.msra.mxu0 0.0
        %3920 = vmatpush.msra.mxu0 0.0
        %3921 = vmatpush.msra.mxu0 %v2491
        %3922 = vmatpush.msra.mxu0 %v2478
        %3923 = vmatmul.f32.gmra.mxu0 %v2525
        %v3924 = vpop.f32.mrf.mxu0
        %v3925 = vadd.f32 %v3905, %v3924
        %3926 = vdwg.mxu0
        %3927 = vmatpush.msra.mxu0 %v1426
        %3928 = vmatpush.msra.mxu0 %v1413
        %3929 = vmatpush.msra.mxu0 %v1400
        %3930 = vmatpush.msra.mxu0 %v1387
        %3931 = vmatpush.msra.mxu0 %v1374
        %3932 = vmatpush.msra.mxu0 %v1361
        %3933 = vmatpush.msra.mxu0 %v1348
        %3934 = vmatpush.msra.mxu0 %v1335
        %3935 = vmatpush.msra.mxu0 %v1322
        %3936 = vmatpush.msra.mxu0 %v1309
        %3937 = vmatpush.msra.mxu0 %v1296
        %3938 = vmatpush.msra.mxu0 %v1283
        %3939 = vmatpush.msra.mxu0 %v1270
        %3940 = vmatpush.msra.mxu0 %v1257
        %3941 = vmatpush.msra.mxu0 %v1244
        %3942 = vmatpush.msra.mxu0 %v1231
        %3943 = vmatmul.f32.gmra.mxu0 %v1214
        %v3944 = vpop.f32.mrf.mxu0
        %v3945 = vadd.f32 %v2507, %v3944
        %3946 = vdwg.mxu0
        %3947 = vmatpush.msra.mxu0 %v1634
        %3948 = vmatpush.msra.mxu0 %v1621
        %3949 = vmatpush.msra.mxu0 %v1608
        %3950 = vmatpush.msra.mxu0 %v1595
        %3951 = vmatpush.msra.mxu0 %v1582
        %3952 = vmatpush.msra.mxu0 %v1569
        %3953 = vmatpush.msra.mxu0 %v1556
        %3954 = vmatpush.msra.mxu0 %v1543
        %3955 = vmatpush.msra.mxu0 %v1530
        %3956 = vmatpush.msra.mxu0 %v1517
        %3957 = vmatpush.msra.mxu0 %v1504
        %3958 = vmatpush.msra.mxu0 %v1491
        %3959 = vmatpush.msra.mxu0 %v1478
        %3960 = vmatpush.msra.mxu0 %v1465
        %3961 = vmatpush.msra.mxu0 %v1452
        %3962 = vmatpush.msra.mxu0 %v1439
        %3963 = vmatmul.f32.gmra.mxu0 %v1215
        %v3964 = vpop.f32.mrf.mxu0
        %v3965 = vadd.f32 %v3945, %v3964
        %3966 = vdwg.mxu0
        %3967 = vmatpush.msra.mxu0 %v1842
        %3968 = vmatpush.msra.mxu0 %v1829
        %3969 = vmatpush.msra.mxu0 %v1816
        %3970 = vmatpush.msra.mxu0 %v1803
        %3971 = vmatpush.msra.mxu0 %v1790
        %3972 = vmatpush.msra.mxu0 %v1777
        %3973 = vmatpush.msra.mxu0 %v1764
        %3974 = vmatpush.msra.mxu0 %v1751
        %3975 = vmatpush.msra.mxu0 %v1738
        %3976 = vmatpush.msra.mxu0 %v1725
        %3977 = vmatpush.msra.mxu0 %v1712
        %3978 = vmatpush.msra.mxu0 %v1699
        %3979 = vmatpush.msra.mxu0 %v1686
        %3980 = vmatpush.msra.mxu0 %v1673
        %3981 = vmatpush.msra.mxu0 %v1660
        %3982 = vmatpush.msra.mxu0 %v1647
        %3983 = vmatmul.f32.gmra.mxu0 %v1216
        %v3984 = vpop.f32.mrf.mxu0
        %v3985 = vadd.f32 %v3965, %v3984
        %3986 = vdwg.mxu0
        %3987 = vmatpush.msra.mxu0 %v2050
        %3988 = vmatpush.msra.mxu0 %v2037
        %3989 = vmatpush.msra.mxu0 %v2024
        %3990 = vmatpush.msra.mxu0 %v2011
        %3991 = vmatpush.msra.mxu0 %v1998
        %3992 = vmatpush.msra.mxu0 %v1985
        %3993 = vmatpush.msra.mxu0 %v1972
        %3994 = vmatpush.msra.mxu0 %v1959
        %3995 = vmatpush.msra.mxu0 %v1946
        %3996 = vmatpush.msra.mxu0 %v1933
        %3997 = vmatpush.msra.mxu0 %v1920
        %3998 = vmatpush.msra.mxu0 %v1907
        %3999 = vmatpush.msra.mxu0 %v1894
        %4000 = vmatpush.msra.mxu0 %v1881
        %4001 = vmatpush.msra.mxu0 %v1868
        %4002 = vmatpush.msra.mxu0 %v1855
        %4003 = vmatmul.f32.gmra.mxu0 %v1217
        %v4004 = vpop.f32.mrf.mxu0
        %v4005 = vadd.f32 %v3985, %v4004
        %4006 = vdwg.mxu0
        %4007 = vmatpush.msra.mxu0 %v2258
        %4008 = vmatpush.msra.mxu0 %v2245
        %4009 = vmatpush.msra.mxu0 %v2232
        %4010 = vmatpush.msra.mxu0 %v2219
        %4011 = vmatpush.msra.mxu0 %v2206
        %4012 = vmatpush.msra.mxu0 %v2193
        %4013 = vmatpush.msra.mxu0 %v2180
        %4014 = vmatpush.msra.mxu0 %v2167
        %4015 = vmatpush.msra.mxu0 %v2154
        %4016 = vmatpush.msra.mxu0 %v2141
        %4017 = vmatpush.msra.mxu0 %v2128
        %4018 = vmatpush.msra.mxu0 %v2115
        %4019 = vmatpush.msra.mxu0 %v2102
        %4020 = vmatpush.msra.mxu0 %v2089
        %4021 = vmatpush.msra.mxu0 %v2076
        %4022 = vmatpush.msra.mxu0 %v2063
        %4023 = vmatmul.f32.gmra.mxu0 %v1218
        %v4024 = vpop.f32.mrf.mxu0
        %v4025 = vadd.f32 %v4005, %v4024
        %4026 = vdwg.mxu0
        %4027 = vmatpush.msra.mxu0 %v2466
        %4028 = vmatpush.msra.mxu0 %v2453
        %4029 = vmatpush.msra.mxu0 %v2440
        %4030 = vmatpush.msra.mxu0 %v2427
        %4031 = vmatpush.msra.mxu0 %v2414
        %4032 = vmatpush.msra.mxu0 %v2401
        %4033 = vmatpush.msra.mxu0 %v2388
        %4034 = vmatpush.msra.mxu0 %v2375
        %4035 = vmatpush.msra.mxu0 %v2362
        %4036 = vmatpush.msra.mxu0 %v2349
        %4037 = vmatpush.msra.mxu0 %v2336
        %4038 = vmatpush.msra.mxu0 %v2323
        %4039 = vmatpush.msra.mxu0 %v2310
        %4040 = vmatpush.msra.mxu0 %v2297
        %4041 = vmatpush.msra.mxu0 %v2284
        %4042 = vmatpush.msra.mxu0 %v2271
        %4043 = vmatmul.f32.gmra.mxu0 %v1219
        %v4044 = vpop.f32.mrf.mxu0
        %v4045 = vadd.f32 %v4025, %v4044
        %4046 = vdwg.mxu0
        %4047 = vmatpush.msra.mxu0 0.0
        %4048 = vmatpush.msra.mxu0 0.0
        %4049 = vmatpush.msra.mxu0 0.0
        %4050 = vmatpush.msra.mxu0 0.0
        %4051 = vmatpush.msra.mxu0 0.0
        %4052 = vmatpush.msra.mxu0 0.0
        %4053 = vmatpush.msra.mxu0 0.0
        %4054 = vmatpush.msra.mxu0 0.0
        %4055 = vmatpush.msra.mxu0 0.0
        %4056 = vmatpush.msra.mxu0 0.0
        %4057 = vmatpush.msra.mxu0 0.0
        %4058 = vmatpush.msra.mxu0 0.0
        %4059 = vmatpush.msra.mxu0 0.0
        %4060 = vmatpush.msra.mxu0 0.0
        %4061 = vmatpush.msra.mxu0 %v2492
        %4062 = vmatpush.msra.mxu0 %v2479
        %4063 = vmatmul.f32.gmra.mxu0 %v2525
        %v4064 = vpop.f32.mrf.mxu0
        %v4065 = vadd.f32 %v4045, %v4064
        %4066 = vdwg.mxu0
        %4067 = vmatpush.msra.mxu0 %v1427
        %4068 = vmatpush.msra.mxu0 %v1414
        %4069 = vmatpush.msra.mxu0 %v1401
        %4070 = vmatpush.msra.mxu0 %v1388
        %4071 = vmatpush.msra.mxu0 %v1375
        %4072 = vmatpush.msra.mxu0 %v1362
        %4073 = vmatpush.msra.mxu0 %v1349
        %4074 = vmatpush.msra.mxu0 %v1336
        %4075 = vmatpush.msra.mxu0 %v1323
        %4076 = vmatpush.msra.mxu0 %v1310
        %4077 = vmatpush.msra.mxu0 %v1297
        %4078 = vmatpush.msra.mxu0 %v1284
        %4079 = vmatpush.msra.mxu0 %v1271
        %4080 = vmatpush.msra.mxu0 %v1258
        %4081 = vmatpush.msra.mxu0 %v1245
        %4082 = vmatpush.msra.mxu0 %v1232
        %4083 = vmatmul.f32.gmra.mxu0 %v1214
        %v4084 = vpop.f32.mrf.mxu0
        %v4085 = vadd.f32 %v2508, %v4084
        %4086 = vdwg.mxu0
        %4087 = vmatpush.msra.mxu0 %v1635
        %4088 = vmatpush.msra.mxu0 %v1622
        %4089 = vmatpush.msra.mxu0 %v1609
        %4090 = vmatpush.msra.mxu0 %v1596
        %4091 = vmatpush.msra.mxu0 %v1583
        %4092 = vmatpush.msra.mxu0 %v1570
        %4093 = vmatpush.msra.mxu0 %v1557
        %4094 = vmatpush.msra.mxu0 %v1544
        %4095 = vmatpush.msra.mxu0 %v1531
        %4096 = vmatpush.msra.mxu0 %v1518
        %4097 = vmatpush.msra.mxu0 %v1505
        %4098 = vmatpush.msra.mxu0 %v1492
        %4099 = vmatpush.msra.mxu0 %v1479
        %4100 = vmatpush.msra.mxu0 %v1466
        %4101 = vmatpush.msra.mxu0 %v1453
        %4102 = vmatpush.msra.mxu0 %v1440
        %4103 = vmatmul.f32.gmra.mxu0 %v1215
        %v4104 = vpop.f32.mrf.mxu0
        %v4105 = vadd.f32 %v4085, %v4104
        %4106 = vdwg.mxu0
        %4107 = vmatpush.msra.mxu0 %v1843
        %4108 = vmatpush.msra.mxu0 %v1830
        %4109 = vmatpush.msra.mxu0 %v1817
        %4110 = vmatpush.msra.mxu0 %v1804
        %4111 = vmatpush.msra.mxu0 %v1791
        %4112 = vmatpush.msra.mxu0 %v1778
        %4113 = vmatpush.msra.mxu0 %v1765
        %4114 = vmatpush.msra.mxu0 %v1752
        %4115 = vmatpush.msra.mxu0 %v1739
        %4116 = vmatpush.msra.mxu0 %v1726
        %4117 = vmatpush.msra.mxu0 %v1713
        %4118 = vmatpush.msra.mxu0 %v1700
        %4119 = vmatpush.msra.mxu0 %v1687
        %4120 = vmatpush.msra.mxu0 %v1674
        %4121 = vmatpush.msra.mxu0 %v1661
        %4122 = vmatpush.msra.mxu0 %v1648
        %4123 = vmatmul.f32.gmra.mxu0 %v1216
        %v4124 = vpop.f32.mrf.mxu0
        %v4125 = vadd.f32 %v4105, %v4124
        %4126 = vdwg.mxu0
        %4127 = vmatpush.msra.mxu0 %v2051
        %4128 = vmatpush.msra.mxu0 %v2038
        %4129 = vmatpush.msra.mxu0 %v2025
        %4130 = vmatpush.msra.mxu0 %v2012
        %4131 = vmatpush.msra.mxu0 %v1999
        %4132 = vmatpush.msra.mxu0 %v1986
        %4133 = vmatpush.msra.mxu0 %v1973
        %4134 = vmatpush.msra.mxu0 %v1960
        %4135 = vmatpush.msra.mxu0 %v1947
        %4136 = vmatpush.msra.mxu0 %v1934
        %4137 = vmatpush.msra.mxu0 %v1921
        %4138 = vmatpush.msra.mxu0 %v1908
        %4139 = vmatpush.msra.mxu0 %v1895
        %4140 = vmatpush.msra.mxu0 %v1882
        %4141 = vmatpush.msra.mxu0 %v1869
        %4142 = vmatpush.msra.mxu0 %v1856
        %4143 = vmatmul.f32.gmra.mxu0 %v1217
        %v4144 = vpop.f32.mrf.mxu0
        %v4145 = vadd.f32 %v4125, %v4144
        %4146 = vdwg.mxu0
        %4147 = vmatpush.msra.mxu0 %v2259
        %4148 = vmatpush.msra.mxu0 %v2246
        %4149 = vmatpush.msra.mxu0 %v2233
        %4150 = vmatpush.msra.mxu0 %v2220
        %4151 = vmatpush.msra.mxu0 %v2207
        %4152 = vmatpush.msra.mxu0 %v2194
        %4153 = vmatpush.msra.mxu0 %v2181
        %4154 = vmatpush.msra.mxu0 %v2168
        %4155 = vmatpush.msra.mxu0 %v2155
        %4156 = vmatpush.msra.mxu0 %v2142
        %4157 = vmatpush.msra.mxu0 %v2129
        %4158 = vmatpush.msra.mxu0 %v2116
        %4159 = vmatpush.msra.mxu0 %v2103
        %4160 = vmatpush.msra.mxu0 %v2090
        %4161 = vmatpush.msra.mxu0 %v2077
        %4162 = vmatpush.msra.mxu0 %v2064
        %4163 = vmatmul.f32.gmra.mxu0 %v1218
        %v4164 = vpop.f32.mrf.mxu0
        %v4165 = vadd.f32 %v4145, %v4164
        %4166 = vdwg.mxu0
        %4167 = vmatpush.msra.mxu0 %v2467
        %4168 = vmatpush.msra.mxu0 %v2454
        %4169 = vmatpush.msra.mxu0 %v2441
        %4170 = vmatpush.msra.mxu0 %v2428
        %4171 = vmatpush.msra.mxu0 %v2415
        %4172 = vmatpush.msra.mxu0 %v2402
        %4173 = vmatpush.msra.mxu0 %v2389
        %4174 = vmatpush.msra.mxu0 %v2376
        %4175 = vmatpush.msra.mxu0 %v2363
        %4176 = vmatpush.msra.mxu0 %v2350
        %4177 = vmatpush.msra.mxu0 %v2337
        %4178 = vmatpush.msra.mxu0 %v2324
        %4179 = vmatpush.msra.mxu0 %v2311
        %4180 = vmatpush.msra.mxu0 %v2298
        %4181 = vmatpush.msra.mxu0 %v2285
        %4182 = vmatpush.msra.mxu0 %v2272
        %4183 = vmatmul.f32.gmra.mxu0 %v1219
        %v4184 = vpop.f32.mrf.mxu0
        %v4185 = vadd.f32 %v4165, %v4184
        %4186 = vdwg.mxu0
        %4187 = vmatpush.msra.mxu0 0.0
        %4188 = vmatpush.msra.mxu0 0.0
        %4189 = vmatpush.msra.mxu0 0.0
        %4190 = vmatpush.msra.mxu0 0.0
        %4191 = vmatpush.msra.mxu0 0.0
        %4192 = vmatpush.msra.mxu0 0.0
        %4193 = vmatpush.msra.mxu0 0.0
        %4194 = vmatpush.msra.mxu0 0.0
        %4195 = vmatpush.msra.mxu0 0.0
        %4196 = vmatpush.msra.mxu0 0.0
        %4197 = vmatpush.msra.mxu0 0.0
        %4198 = vmatpush.msra.mxu0 0.0
        %4199 = vmatpush.msra.mxu0 0.0
        %4200 = vmatpush.msra.mxu0 0.0
        %4201 = vmatpush.msra.mxu0 %v2493
        %4202 = vmatpush.msra.mxu0 %v2480
        %4203 = vmatmul.f32.gmra.mxu0 %v2525
        %v4204 = vpop.f32.mrf.mxu0
        %v4205 = vadd.f32 %v4185, %v4204
        %4206 = vdwg.mxu0
        %4207 = vmatpush.msra.mxu0 %v1428
        %4208 = vmatpush.msra.mxu0 %v1415
        %4209 = vmatpush.msra.mxu0 %v1402
        %4210 = vmatpush.msra.mxu0 %v1389
        %4211 = vmatpush.msra.mxu0 %v1376
        %4212 = vmatpush.msra.mxu0 %v1363
        %4213 = vmatpush.msra.mxu0 %v1350
        %4214 = vmatpush.msra.mxu0 %v1337
        %4215 = vmatpush.msra.mxu0 %v1324
        %4216 = vmatpush.msra.mxu0 %v1311
        %4217 = vmatpush.msra.mxu0 %v1298
        %4218 = vmatpush.msra.mxu0 %v1285
        %4219 = vmatpush.msra.mxu0 %v1272
        %4220 = vmatpush.msra.mxu0 %v1259
        %4221 = vmatpush.msra.mxu0 %v1246
        %4222 = vmatpush.msra.mxu0 %v1233
        %4223 = vmatmul.f32.gmra.mxu0 %v1214
        %v4224 = vpop.f32.mrf.mxu0
        %v4225 = vadd.f32 %v2509, %v4224
        %4226 = vdwg.mxu0
        %4227 = vmatpush.msra.mxu0 %v1636
        %4228 = vmatpush.msra.mxu0 %v1623
        %4229 = vmatpush.msra.mxu0 %v1610
        %4230 = vmatpush.msra.mxu0 %v1597
        %4231 = vmatpush.msra.mxu0 %v1584
        %4232 = vmatpush.msra.mxu0 %v1571
        %4233 = vmatpush.msra.mxu0 %v1558
        %4234 = vmatpush.msra.mxu0 %v1545
        %4235 = vmatpush.msra.mxu0 %v1532
        %4236 = vmatpush.msra.mxu0 %v1519
        %4237 = vmatpush.msra.mxu0 %v1506
        %4238 = vmatpush.msra.mxu0 %v1493
        %4239 = vmatpush.msra.mxu0 %v1480
        %4240 = vmatpush.msra.mxu0 %v1467
        %4241 = vmatpush.msra.mxu0 %v1454
        %4242 = vmatpush.msra.mxu0 %v1441
        %4243 = vmatmul.f32.gmra.mxu0 %v1215
        %v4244 = vpop.f32.mrf.mxu0
        %v4245 = vadd.f32 %v4225, %v4244
        %4246 = vdwg.mxu0
        %4247 = vmatpush.msra.mxu0 %v1844
        %4248 = vmatpush.msra.mxu0 %v1831
        %4249 = vmatpush.msra.mxu0 %v1818
        %4250 = vmatpush.msra.mxu0 %v1805
        %4251 = vmatpush.msra.mxu0 %v1792
        %4252 = vmatpush.msra.mxu0 %v1779
        %4253 = vmatpush.msra.mxu0 %v1766
        %4254 = vmatpush.msra.mxu0 %v1753
        %4255 = vmatpush.msra.mxu0 %v1740
        %4256 = vmatpush.msra.mxu0 %v1727
        %4257 = vmatpush.msra.mxu0 %v1714
        %4258 = vmatpush.msra.mxu0 %v1701
        %4259 = vmatpush.msra.mxu0 %v1688
        %4260 = vmatpush.msra.mxu0 %v1675
        %4261 = vmatpush.msra.mxu0 %v1662
        %4262 = vmatpush.msra.mxu0 %v1649
        %4263 = vmatmul.f32.gmra.mxu0 %v1216
        %v4264 = vpop.f32.mrf.mxu0
        %v4265 = vadd.f32 %v4245, %v4264
        %4266 = vdwg.mxu0
        %4267 = vmatpush.msra.mxu0 %v2052
        %4268 = vmatpush.msra.mxu0 %v2039
        %4269 = vmatpush.msra.mxu0 %v2026
        %4270 = vmatpush.msra.mxu0 %v2013
        %4271 = vmatpush.msra.mxu0 %v2000
        %4272 = vmatpush.msra.mxu0 %v1987
        %4273 = vmatpush.msra.mxu0 %v1974
        %4274 = vmatpush.msra.mxu0 %v1961
        %4275 = vmatpush.msra.mxu0 %v1948
        %4276 = vmatpush.msra.mxu0 %v1935
        %4277 = vmatpush.msra.mxu0 %v1922
        %4278 = vmatpush.msra.mxu0 %v1909
        %4279 = vmatpush.msra.mxu0 %v1896
        %4280 = vmatpush.msra.mxu0 %v1883
        %4281 = vmatpush.msra.mxu0 %v1870
        %4282 = vmatpush.msra.mxu0 %v1857
        %4283 = vmatmul.f32.gmra.mxu0 %v1217
        %v4284 = vpop.f32.mrf.mxu0
        %v4285 = vadd.f32 %v4265, %v4284
        %4286 = vdwg.mxu0
        %4287 = vmatpush.msra.mxu0 %v2260
        %4288 = vmatpush.msra.mxu0 %v2247
        %4289 = vmatpush.msra.mxu0 %v2234
        %4290 = vmatpush.msra.mxu0 %v2221
        %4291 = vmatpush.msra.mxu0 %v2208
        %4292 = vmatpush.msra.mxu0 %v2195
        %4293 = vmatpush.msra.mxu0 %v2182
        %4294 = vmatpush.msra.mxu0 %v2169
        %4295 = vmatpush.msra.mxu0 %v2156
        %4296 = vmatpush.msra.mxu0 %v2143
        %4297 = vmatpush.msra.mxu0 %v2130
        %4298 = vmatpush.msra.mxu0 %v2117
        %4299 = vmatpush.msra.mxu0 %v2104
        %4300 = vmatpush.msra.mxu0 %v2091
        %4301 = vmatpush.msra.mxu0 %v2078
        %4302 = vmatpush.msra.mxu0 %v2065
        %4303 = vmatmul.f32.gmra.mxu0 %v1218
        %v4304 = vpop.f32.mrf.mxu0
        %v4305 = vadd.f32 %v4285, %v4304
        %4306 = vdwg.mxu0
        %4307 = vmatpush.msra.mxu0 %v2468
        %4308 = vmatpush.msra.mxu0 %v2455
        %4309 = vmatpush.msra.mxu0 %v2442
        %4310 = vmatpush.msra.mxu0 %v2429
        %4311 = vmatpush.msra.mxu0 %v2416
        %4312 = vmatpush.msra.mxu0 %v2403
        %4313 = vmatpush.msra.mxu0 %v2390
        %4314 = vmatpush.msra.mxu0 %v2377
        %4315 = vmatpush.msra.mxu0 %v2364
        %4316 = vmatpush.msra.mxu0 %v2351
        %4317 = vmatpush.msra.mxu0 %v2338
        %4318 = vmatpush.msra.mxu0 %v2325
        %4319 = vmatpush.msra.mxu0 %v2312
        %4320 = vmatpush.msra.mxu0 %v2299
        %4321 = vmatpush.msra.mxu0 %v2286
        %4322 = vmatpush.msra.mxu0 %v2273
        %4323 = vmatmul.f32.gmra.mxu0 %v1219
        %v4324 = vpop.f32.mrf.mxu0
        %v4325 = vadd.f32 %v4305, %v4324
        %4326 = vdwg.mxu0
        %4327 = vmatpush.msra.mxu0 0.0
        %4328 = vmatpush.msra.mxu0 0.0
        %4329 = vmatpush.msra.mxu0 0.0
        %4330 = vmatpush.msra.mxu0 0.0
        %4331 = vmatpush.msra.mxu0 0.0
        %4332 = vmatpush.msra.mxu0 0.0
        %4333 = vmatpush.msra.mxu0 0.0
        %4334 = vmatpush.msra.mxu0 0.0
        %4335 = vmatpush.msra.mxu0 0.0
        %4336 = vmatpush.msra.mxu0 0.0
        %4337 = vmatpush.msra.mxu0 0.0
        %4338 = vmatpush.msra.mxu0 0.0
        %4339 = vmatpush.msra.mxu0 0.0
        %4340 = vmatpush.msra.mxu0 0.0
        %4341 = vmatpush.msra.mxu0 %v2494
        %4342 = vmatpush.msra.mxu0 %v2481
        %4343 = vmatmul.f32.gmra.mxu0 %v2525
        %v4344 = vpop.f32.mrf.mxu0
        %v4345 = vadd.f32 %v4325, %v4344
        %4346 = vdwg.mxu0
        %v4347 = vmax.f32 %v2665, 0.0
        %v4348 = vmax.f32 %v2805, 0.0
        %v4349 = vmax.f32 %v2945, 0.0
        %v4350 = vmax.f32 %v3085, 0.0
        %v4351 = vmax.f32 %v3225, 0.0
        %v4352 = vmax.f32 %v3365, 0.0
        %v4353 = vmax.f32 %v3505, 0.0
        %v4354 = vmax.f32 %v3645, 0.0
        %v4355 = vmax.f32 %v3785, 0.0
        %v4356 = vmax.f32 %v3925, 0.0
        %v4357 = vmax.f32 %v4065, 0.0
        %v4358 = vmax.f32 %v4205, 0.0
        %v4359 = vmax.f32 %v4345, 0.0
        %v4360 = vld [vmem:[#allocation7] sm:$0xff]
        %v4361 = vld [vmem:[#allocation7 + $0x8] sm:$0xff]
        %v4362 = vld [vmem:[#allocation7 + $0x10] sm:$0xff]
        %v4363 = vld [vmem:[#allocation7 + $0x18] sm:$0xff]
        %v4364 = vld [vmem:[#allocation7 + $0x20] sm:$0xff]
        %v4365 = vld [vmem:[#allocation7 + $0x28] sm:$0xff]
        %v4366 = vld [vmem:[#allocation7 + $0x30] sm:$0xff]
        %v4367 = vld [vmem:[#allocation7 + $0x38] sm:$0xff]
        %v4368 = vld [vmem:[#allocation7 + $0x40] sm:$0xff]
        %v4369 = vld [vmem:[#allocation7 + $0x48] sm:$0xff]
        %v4370 = vld [vmem:[#allocation7 + $0x50] sm:$0xff]
        %v4371 = vld [vmem:[#allocation7 + $0x58] sm:$0xff]
        %v4372 = vld [vmem:[#allocation7 + $0x60] sm:$0xff]
        %v4373 = vld [vmem:[#allocation7 + $0x68] sm:$0xff]
        %v4374 = vld [vmem:[#allocation7 + $0x70] sm:$0xff]
        %v4375 = vld [vmem:[#allocation7 + $0x78] sm:$0xff]
        %v4376 = vld [vmem:[#allocation7 + $0x80] sm:$0xff]
        %v4377 = vld [vmem:[#allocation7 + $0x88] sm:$0xff]
        %v4378 = vld [vmem:[#allocation7 + $0x90] sm:$0xff]
        %v4379 = vld [vmem:[#allocation7 + $0x98] sm:$0xff]
        %v4380 = vld [vmem:[#allocation7 + $0xa0] sm:$0xff]
        %v4381 = vld [vmem:[#allocation7 + $0xa8] sm:$0xff]
        %v4382 = vld [vmem:[#allocation7 + $0xb0] sm:$0xff]
        %v4383 = vld [vmem:[#allocation7 + $0xb8] sm:$0xff]
        %v4384 = vld [vmem:[#allocation7 + $0xc0] sm:$0xff]
        %v4385 = vld [vmem:[#allocation7 + $0xc8] sm:$0xff]
        %v4386 = vld [vmem:[#allocation7 + $0xd0] sm:$0xff]
        %v4387 = vld [vmem:[#allocation7 + $0xd8] sm:$0xff]
        %v4388 = vld [vmem:[#allocation7 + $0xe0] sm:$0xff]
        %v4389 = vld [vmem:[#allocation7 + $0xe8] sm:$0xff]
        %v4390 = vld [vmem:[#allocation7 + $0xf0] sm:$0xff]
        %v4391 = vld [vmem:[#allocation7 + $0xf8] sm:$0xff]
        %v4392 = vld [vmem:[#allocation7 + $0x100] sm:$0xff]
        %v4393 = vld [vmem:[#allocation7 + $0x108] sm:$0xff]
        %v4394 = vld [vmem:[#allocation7 + $0x110] sm:$0xff]
        %v4395 = vld [vmem:[#allocation7 + $0x118] sm:$0xff]
        %v4396 = vld [vmem:[#allocation7 + $0x120] sm:$0xff]
        %v4397 = vld [vmem:[#allocation7 + $0x128] sm:$0xff]
        %v4398 = vld [vmem:[#allocation7 + $0x130] sm:$0xff]
        %v4399 = vld [vmem:[#allocation7 + $0x138] sm:$0xff]
        %v4400 = vld [vmem:[#allocation7 + $0x140] sm:$0xff]
        %v4401 = vld [vmem:[#allocation7 + $0x148] sm:$0xff]
        %v4402 = vld [vmem:[#allocation7 + $0x150] sm:$0xff]
        %v4403 = vld [vmem:[#allocation7 + $0x158] sm:$0xff]
        %v4404 = vld [vmem:[#allocation7 + $0x160] sm:$0xff]
        %v4405 = vld [vmem:[#allocation7 + $0x168] sm:$0xff]
        %v4406 = vld [vmem:[#allocation7 + $0x170] sm:$0xff]
        %v4407 = vld [vmem:[#allocation7 + $0x178] sm:$0xff]
        %v4408 = vld [vmem:[#allocation7 + $0x180] sm:$0xff]
        %v4409 = vld [vmem:[#allocation7 + $0x188] sm:$0xff]
        %v4410 = vld [vmem:[#allocation7 + $0x190] sm:$0xff]
        %v4411 = vld [vmem:[#allocation7 + $0x198] sm:$0xff]
        %v4412 = vld [vmem:[#allocation7 + $0x1a0] sm:$0xff]
        %v4413 = vld [vmem:[#allocation7 + $0x1a8] sm:$0xff]
        %v4414 = vld [vmem:[#allocation7 + $0x1b0] sm:$0xff]
        %v4415 = vld [vmem:[#allocation7 + $0x1b8] sm:$0xff]
        %v4416 = vld [vmem:[#allocation7 + $0x1c0] sm:$0xff]
        %v4417 = vld [vmem:[#allocation7 + $0x1c8] sm:$0xff]
        %v4418 = vld [vmem:[#allocation7 + $0x1d0] sm:$0xff]
        %v4419 = vld [vmem:[#allocation7 + $0x1d8] sm:$0xff]
        %v4420 = vld [vmem:[#allocation7 + $0x1e0] sm:$0xff]
        %v4421 = vld [vmem:[#allocation7 + $0x1e8] sm:$0xff]
        %v4422 = vld [vmem:[#allocation7 + $0x1f0] sm:$0xff]
        %v4423 = vld [vmem:[#allocation7 + $0x1f8] sm:$0xff]
        %v4424 = vld [vmem:[#allocation7 + $0x200] sm:$0xff]
        %v4425 = vld [vmem:[#allocation7 + $0x208] sm:$0xff]
        %v4426 = vld [vmem:[#allocation7 + $0x210] sm:$0xff]
        %v4427 = vld [vmem:[#allocation7 + $0x218] sm:$0xff]
        %v4428 = vld [vmem:[#allocation7 + $0x220] sm:$0xff]
        %v4429 = vld [vmem:[#allocation7 + $0x228] sm:$0xff]
        %v4430 = vld [vmem:[#allocation7 + $0x230] sm:$0xff]
        %v4431 = vld [vmem:[#allocation7 + $0x238] sm:$0xff]
        %v4432 = vld [vmem:[#allocation7 + $0x240] sm:$0xff]
        %v4433 = vld [vmem:[#allocation7 + $0x248] sm:$0xff]
        %v4434 = vld [vmem:[#allocation7 + $0x250] sm:$0xff]
        %v4435 = vld [vmem:[#allocation7 + $0x258] sm:$0xff]
        %v4436 = vld [vmem:[#allocation7 + $0x260] sm:$0xff]
        %v4437 = vld [vmem:[#allocation7 + $0x268] sm:$0xff]
        %v4438 = vld [vmem:[#allocation7 + $0x270] sm:$0xff]
        %v4439 = vld [vmem:[#allocation7 + $0x278] sm:$0xff]
        %v4440 = vld [vmem:[#allocation7 + $0x280] sm:$0xff]
        %v4441 = vld [vmem:[#allocation7 + $0x288] sm:$0xff]
        %v4442 = vld [vmem:[#allocation7 + $0x290] sm:$0xff]
        %v4443 = vld [vmem:[#allocation7 + $0x298] sm:$0xff]
        %v4444 = vld [vmem:[#allocation7 + $0x2a0] sm:$0xff]
        %v4445 = vld [vmem:[#allocation7 + $0x2a8] sm:$0xff]
        %v4446 = vld [vmem:[#allocation7 + $0x2b0] sm:$0xff]
        %v4447 = vld [vmem:[#allocation7 + $0x2b8] sm:$0xff]
        %v4448 = vld [vmem:[#allocation7 + $0x2c0] sm:$0xff]
        %v4449 = vld [vmem:[#allocation7 + $0x2c8] sm:$0xff]
        %v4450 = vld [vmem:[#allocation7 + $0x2d0] sm:$0xff]
        %v4451 = vld [vmem:[#allocation7 + $0x2d8] sm:$0xff]
        %v4452 = vld [vmem:[#allocation7 + $0x2e0] sm:$0xff]
        %v4453 = vld [vmem:[#allocation7 + $0x2e8] sm:$0xff]
        %v4454 = vld [vmem:[#allocation7 + $0x2f0] sm:$0xff]
        %v4455 = vld [vmem:[#allocation7 + $0x2f8] sm:$0xff]
        %v4456 = vld [vmem:[#allocation7 + $0x300] sm:$0xff]
        %v4457 = vld [vmem:[#allocation7 + $0x308] sm:$0xff]
        %v4458 = vld [vmem:[#allocation7 + $0x310] sm:$0xff]
        %v4459 = vld [vmem:[#allocation7 + $0x318] sm:$0xff]
        %v4460 = vld [vmem:[#allocation7 + $0x320] sm:$0xff]
        %v4461 = vld [vmem:[#allocation7 + $0x328] sm:$0xff]
        %v4462 = vld [vmem:[#allocation7 + $0x330] sm:$0xff]
        %v4463 = vld [vmem:[#allocation7 + $0x338] sm:$0xff]
        %v4464 = vld [vmem:[#allocation7 + $0x340] sm:$0xff]
        %v4465 = vld [vmem:[#allocation7 + $0x348] sm:$0xff]
        %v4466 = vld [vmem:[#allocation7 + $0x350] sm:$0xff]
        %v4467 = vld [vmem:[#allocation7 + $0x358] sm:$0xff]
        %v4468 = vld [vmem:[#allocation7 + $0x360] sm:$0xff]
        %v4469 = vld [vmem:[#allocation7 + $0x368] sm:$0xff]
        %v4470 = vld [vmem:[#allocation7 + $0x370] sm:$0xff]
        %v4471 = vld [vmem:[#allocation7 + $0x378] sm:$0xff]
        %v4472 = vld [vmem:[#allocation7 + $0x380] sm:$0xff]
        %v4473 = vld [vmem:[#allocation7 + $0x388] sm:$0xff]
        %v4474 = vld [vmem:[#allocation7 + $0x390] sm:$0xff]
        %v4475 = vld [vmem:[#allocation7 + $0x398] sm:$0xff]
        %v4476 = vld [vmem:[#allocation7 + $0x3a0] sm:$0xff]
        %v4477 = vld [vmem:[#allocation7 + $0x3a8] sm:$0xff]
        %v4478 = vld [vmem:[#allocation7 + $0x3b0] sm:$0xff]
        %v4479 = vld [vmem:[#allocation7 + $0x3b8] sm:$0xff]
        %v4480 = vld [vmem:[#allocation7 + $0x3c0] sm:$0xff]
        %v4481 = vld [vmem:[#allocation7 + $0x3c8] sm:$0xff]
        %v4482 = vld [vmem:[#allocation7 + $0x3d0] sm:$0xff]
        %v4483 = vld [vmem:[#allocation7 + $0x3d8] sm:$0xff]
        %v4484 = vld [vmem:[#allocation7 + $0x3e0] sm:$0xff]
        %v4485 = vld [vmem:[#allocation7 + $0x3e8] sm:$0xff]
        %v4486 = vld [vmem:[#allocation7 + $0x3f0] sm:$0xff]
        %v4487 = vld [vmem:[#allocation7 + $0x3f8] sm:$0xff]
        %v4488 = vld [vmem:[#allocation7 + $0x400] sm:$0xff]
        %v4489 = vld [vmem:[#allocation7 + $0x408] sm:$0xff]
        %v4490 = vld [vmem:[#allocation7 + $0x410] sm:$0xff]
        %v4491 = vld [vmem:[#allocation7 + $0x418] sm:$0xff]
        %v4492 = vld [vmem:[#allocation7 + $0x420] sm:$0xff]
        %v4493 = vld [vmem:[#allocation7 + $0x428] sm:$0xff]
        %v4494 = vld [vmem:[#allocation7 + $0x430] sm:$0xff]
        %v4495 = vld [vmem:[#allocation7 + $0x438] sm:$0xff]
        %v4496 = vld [vmem:[#allocation7 + $0x440] sm:$0xff]
        %v4497 = vld [vmem:[#allocation7 + $0x448] sm:$0xff]
        %v4498 = vld [vmem:[#allocation7 + $0x450] sm:$0xff]
        %v4499 = vld [vmem:[#allocation7 + $0x458] sm:$0xff]
        %v4500 = vld [vmem:[#allocation7 + $0x460] sm:$0xff]
        %v4501 = vld [vmem:[#allocation7 + $0x468] sm:$0xff]
        %v4502 = vld [vmem:[#allocation7 + $0x470] sm:$0xff]
        %v4503 = vld [vmem:[#allocation7 + $0x478] sm:$0xff]
        %v4504 = vld [vmem:[#allocation7 + $0x480] sm:$0xff]
        %v4505 = vld [vmem:[#allocation7 + $0x488] sm:$0xff]
        %v4506 = vld [vmem:[#allocation7 + $0x490] sm:$0xff]
        %v4507 = vld [vmem:[#allocation7 + $0x498] sm:$0xff]
        %v4508 = vld [vmem:[#allocation7 + $0x4a0] sm:$0xff]
        %v4509 = vld [vmem:[#allocation7 + $0x4a8] sm:$0xff]
        %v4510 = vld [vmem:[#allocation7 + $0x4b0] sm:$0xff]
        %v4511 = vld [vmem:[#allocation7 + $0x4b8] sm:$0xff]
        %v4512 = vld [vmem:[#allocation7 + $0x4c0] sm:$0xff]
        %v4513 = vld [vmem:[#allocation7 + $0x4c8] sm:$0xff]
        %v4514 = vld [vmem:[#allocation7 + $0x4d0] sm:$0xff]
        %v4515 = vld [vmem:[#allocation7 + $0x4d8] sm:$0xff]
        %v4516 = vld [vmem:[#allocation7 + $0x4e0] sm:$0xff]
        %v4517 = vld [vmem:[#allocation7 + $0x4e8] sm:$0xff]
        %v4518 = vld [vmem:[#allocation7 + $0x4f0] sm:$0xff]
        %v4519 = vld [vmem:[#allocation7 + $0x4f8] sm:$0xff]
        %v4520 = vld [vmem:[#allocation7 + $0x500] sm:$0xff]
        %v4521 = vld [vmem:[#allocation7 + $0x508] sm:$0xff]
        %v4522 = vld [vmem:[#allocation7 + $0x510] sm:$0xff]
        %v4523 = vld [vmem:[#allocation7 + $0x518] sm:$0xff]
        %v4524 = vld [vmem:[#allocation7 + $0x520] sm:$0xff]
        %v4525 = vld [vmem:[#allocation7 + $0x528] sm:$0xff]
        %v4526 = vld [vmem:[#allocation7 + $0x530] sm:$0xff]
        %v4527 = vld [vmem:[#allocation7 + $0x538] sm:$0xff]
        %v4528 = vld [vmem:[#allocation7 + $0x540] sm:$0xff]
        %v4529 = vld [vmem:[#allocation7 + $0x548] sm:$0xff]
        %v4530 = vld [vmem:[#allocation7 + $0x550] sm:$0xff]
        %v4531 = vld [vmem:[#allocation7 + $0x558] sm:$0xff]
        %v4532 = vld [vmem:[#allocation7 + $0x560] sm:$0xff]
        %v4533 = vld [vmem:[#allocation7 + $0x568] sm:$0xff]
        %v4534 = vld [vmem:[#allocation7 + $0x570] sm:$0xff]
        %v4535 = vld [vmem:[#allocation7 + $0x578] sm:$0xff]
        %v4536 = vld [vmem:[#allocation7 + $0x580] sm:$0xff]
        %v4537 = vld [vmem:[#allocation7 + $0x588] sm:$0xff]
        %v4538 = vld [vmem:[#allocation7 + $0x590] sm:$0xff]
        %v4539 = vld [vmem:[#allocation7 + $0x598] sm:$0xff]
        %v4540 = vld [vmem:[#allocation7 + $0x5a0] sm:$0xff]
        %v4541 = vld [vmem:[#allocation7 + $0x5a8] sm:$0xff]
        %v4542 = vld [vmem:[#allocation7 + $0x5b0] sm:$0xff]
        %v4543 = vld [vmem:[#allocation7 + $0x5b8] sm:$0xff]
        %v4544 = vld [vmem:[#allocation7 + $0x5c0] sm:$0xff]
        %v4545 = vld [vmem:[#allocation7 + $0x5c8] sm:$0xff]
        %v4546 = vld [vmem:[#allocation7 + $0x5d0] sm:$0xff]
        %v4547 = vld [vmem:[#allocation7 + $0x5d8] sm:$0xff]
        %v4548 = vld [vmem:[#allocation7 + $0x5e0] sm:$0xff]
        %v4549 = vld [vmem:[#allocation7 + $0x5e8] sm:$0xff]
        %v4550 = vld [vmem:[#allocation7 + $0x5f0] sm:$0xff]
        %v4551 = vld [vmem:[#allocation7 + $0x5f8] sm:$0xff]
        %v4552 = vld [vmem:[#allocation7 + $0x600] sm:$0xff]
        %v4553 = vld [vmem:[#allocation7 + $0x608] sm:$0xff]
        %v4554 = vld [vmem:[#allocation7 + $0x610] sm:$0xff]
        %v4555 = vld [vmem:[#allocation7 + $0x618] sm:$0xff]
        %v4556 = vld [vmem:[#allocation7 + $0x620] sm:$0xff]
        %v4557 = vld [vmem:[#allocation7 + $0x628] sm:$0xff]
        %v4558 = vld [vmem:[#allocation7 + $0x630] sm:$0xff]
        %v4559 = vld [vmem:[#allocation7 + $0x638] sm:$0xff]
        %v4560 = vld [vmem:[#allocation7 + $0x640] sm:$0xff]
        %v4561 = vld [vmem:[#allocation7 + $0x648] sm:$0xff]
        %v4562 = vld [vmem:[#allocation7 + $0x650] sm:$0xff]
        %v4563 = vld [vmem:[#allocation7 + $0x658] sm:$0xff]
        %v4564 = vld [vmem:[#allocation7 + $0x660] sm:$0xff]
        %v4565 = vld [vmem:[#allocation7 + $0x668] sm:$0xff]
        %v4566 = vld [vmem:[#allocation7 + $0x670] sm:$0xff]
        %v4567 = vld [vmem:[#allocation7 + $0x678] sm:$0xff]
        %v4568 = vld [vmem:[#allocation7 + $0x680] sm:$0xff]
        %v4569 = vld [vmem:[#allocation7 + $0x688] sm:$0xff]
        %v4570 = vld [vmem:[#allocation7 + $0x690] sm:$0xff]
        %v4571 = vld [vmem:[#allocation7 + $0x698] sm:$0xff]
        %v4572 = vld [vmem:[#allocation7 + $0x6a0] sm:$0xff]
        %v4573 = vld [vmem:[#allocation7 + $0x6a8] sm:$0xff]
        %v4574 = vld [vmem:[#allocation7 + $0x6b0] sm:$0xff]
        %v4575 = vld [vmem:[#allocation7 + $0x6b8] sm:$0xff]
        %v4576 = vld [vmem:[#allocation7 + $0x6c0] sm:$0xff]
        %v4577 = vld [vmem:[#allocation7 + $0x6c8] sm:$0xff]
        %v4578 = vld [vmem:[#allocation7 + $0x6d0] sm:$0xff]
        %v4579 = vld [vmem:[#allocation7 + $0x6d8] sm:$0xff]
        %v4580 = vld [vmem:[#allocation7 + $0x6e0] sm:$0xff]
        %v4581 = vld [vmem:[#allocation7 + $0x6e8] sm:$0xff]
        %v4582 = vld [vmem:[#allocation7 + $0x6f0] sm:$0xff]
        %v4583 = vld [vmem:[#allocation7 + $0x6f8] sm:$0xff]
        %v4584 = vld [vmem:[#allocation7 + $0x700] sm:$0xff]
        %v4585 = vld [vmem:[#allocation7 + $0x708] sm:$0xff]
        %v4586 = vld [vmem:[#allocation7 + $0x710] sm:$0xff]
        %v4587 = vld [vmem:[#allocation7 + $0x718] sm:$0xff]
        %v4588 = vld [vmem:[#allocation7 + $0x720] sm:$0xff]
        %v4589 = vld [vmem:[#allocation7 + $0x728] sm:$0xff]
        %v4590 = vld [vmem:[#allocation7 + $0x730] sm:$0xff]
        %v4591 = vld [vmem:[#allocation7 + $0x738] sm:$0xff]
        %v4592 = vld [vmem:[#allocation7 + $0x740] sm:$0xff]
        %v4593 = vld [vmem:[#allocation7 + $0x748] sm:$0xff]
        %v4594 = vld [vmem:[#allocation7 + $0x750] sm:$0xff]
        %v4595 = vld [vmem:[#allocation7 + $0x758] sm:$0xff]
        %v4596 = vld [vmem:[#allocation7 + $0x760] sm:$0xff]
        %v4597 = vld [vmem:[#allocation7 + $0x768] sm:$0xff]
        %v4598 = vld [vmem:[#allocation7 + $0x770] sm:$0xff]
        %v4599 = vld [vmem:[#allocation7 + $0x778] sm:$0xff]
        %v4600 = vld [vmem:[#allocation7 + $0x780] sm:$0xff]
        %v4601 = vld [vmem:[#allocation7 + $0x788] sm:$0xff]
        %v4602 = vld [vmem:[#allocation7 + $0x790] sm:$0xff]
        %v4603 = vld [vmem:[#allocation7 + $0x798] sm:$0xff]
        %v4604 = vld [vmem:[#allocation7 + $0x7a0] sm:$0xff]
        %v4605 = vld [vmem:[#allocation7 + $0x7a8] sm:$0xff]
        %v4606 = vld [vmem:[#allocation7 + $0x7b0] sm:$0xff]
        %v4607 = vld [vmem:[#allocation7 + $0x7b8] sm:$0xff]
        %v4608 = vld [vmem:[#allocation7 + $0x7c0] sm:$0xff]
        %v4609 = vld [vmem:[#allocation7 + $0x7c8] sm:$0xff]
        %v4610 = vld [vmem:[#allocation7 + $0x7d0] sm:$0xff]
        %v4611 = vld [vmem:[#allocation7 + $0x7d8] sm:$0xff]
        %v4612 = vld [vmem:[#allocation7 + $0x7e0] sm:$0xff]
        %v4613 = vld [vmem:[#allocation7 + $0x7e8] sm:$0xff]
        %v4614 = vld [vmem:[#allocation7 + $0x7f0] sm:$0xff]
        %v4615 = vld [vmem:[#allocation7 + $0x7f8] sm:$0xff]
        %v4616 = vld [vmem:[#allocation7 + $0x800] sm:$0xff]
        %v4617 = vld [vmem:[#allocation7 + $0x808] sm:$0xff]
        %v4618 = vld [vmem:[#allocation7 + $0x810] sm:$0xff]
        %v4619 = vld [vmem:[#allocation7 + $0x818] sm:$0xff]
        %v4620 = vld [vmem:[#allocation7 + $0x820] sm:$0xff]
        %v4621 = vld [vmem:[#allocation7 + $0x828] sm:$0xff]
        %v4622 = vld [vmem:[#allocation7 + $0x830] sm:$0xff]
        %v4623 = vld [vmem:[#allocation7 + $0x838] sm:$0xff]
        %v4624 = vld [vmem:[#allocation7 + $0x840] sm:$0xff]
        %v4625 = vld [vmem:[#allocation7 + $0x848] sm:$0xff]
        %v4626 = vld [vmem:[#allocation7 + $0x850] sm:$0xff]
        %v4627 = vld [vmem:[#allocation7 + $0x858] sm:$0xff]
        %v4628 = vld [vmem:[#allocation7 + $0x860] sm:$0xff]
        %v4629 = vld [vmem:[#allocation7 + $0x868] sm:$0xff]
        %v4630 = vld [vmem:[#allocation7 + $0x870] sm:$0xff]
        %v4631 = vld [vmem:[#allocation7 + $0x878] sm:$0xff]
        %v4632 = vld [vmem:[#allocation7 + $0x880] sm:$0xff]
        %v4633 = vld [vmem:[#allocation7 + $0x888] sm:$0xff]
        %v4634 = vld [vmem:[#allocation7 + $0x890] sm:$0xff]
        %v4635 = vld [vmem:[#allocation7 + $0x898] sm:$0xff]
        %v4636 = vld [vmem:[#allocation7 + $0x8a0] sm:$0xff]
        %v4637 = vld [vmem:[#allocation7 + $0x8a8] sm:$0xff]
        %v4638 = vld [vmem:[#allocation7 + $0x8b0] sm:$0xff]
        %v4639 = vld [vmem:[#allocation7 + $0x8b8] sm:$0xff]
        %v4640 = vld [vmem:[#allocation7 + $0x8c0] sm:$0xff]
        %v4641 = vld [vmem:[#allocation7 + $0x8c8] sm:$0xff]
        %v4642 = vld [vmem:[#allocation7 + $0x8d0] sm:$0xff]
        %v4643 = vld [vmem:[#allocation7 + $0x8d8] sm:$0xff]
        %v4644 = vld [vmem:[#allocation7 + $0x8e0] sm:$0xff]
        %v4645 = vld [vmem:[#allocation7 + $0x8e8] sm:$0xff]
        %v4646 = vld [vmem:[#allocation7 + $0x8f0] sm:$0xff]
        %v4647 = vld [vmem:[#allocation7 + $0x8f8] sm:$0xff]
        %v4648 = vld [vmem:[#allocation7 + $0x900] sm:$0xff]
        %v4649 = vld [vmem:[#allocation7 + $0x908] sm:$0xff]
        %v4650 = vld [vmem:[#allocation7 + $0x910] sm:$0xff]
        %v4651 = vld [vmem:[#allocation7 + $0x918] sm:$0xff]
        %v4652 = vld [vmem:[#allocation7 + $0x920] sm:$0xff]
        %v4653 = vld [vmem:[#allocation7 + $0x928] sm:$0xff]
        %v4654 = vld [vmem:[#allocation7 + $0x930] sm:$0xff]
        %v4655 = vld [vmem:[#allocation7 + $0x938] sm:$0xff]
        %v4656 = vld [vmem:[#allocation7 + $0x940] sm:$0xff]
        %v4657 = vld [vmem:[#allocation7 + $0x948] sm:$0xff]
        %v4658 = vld [vmem:[#allocation7 + $0x950] sm:$0xff]
        %v4659 = vld [vmem:[#allocation7 + $0x958] sm:$0xff]
        %v4660 = vld [vmem:[#allocation7 + $0x960] sm:$0xff]
        %v4661 = vld [vmem:[#allocation7 + $0x968] sm:$0xff]
        %v4662 = vld [vmem:[#allocation7 + $0x970] sm:$0xff]
        %v4663 = vld [vmem:[#allocation7 + $0x978] sm:$0xff]
        %v4664 = vld [vmem:[#allocation7 + $0x980] sm:$0xff]
        %v4665 = vld [vmem:[#allocation7 + $0x988] sm:$0xff]
        %v4666 = vld [vmem:[#allocation7 + $0x990] sm:$0xff]
        %v4667 = vld [vmem:[#allocation7 + $0x998] sm:$0xff]
        %v4668 = vld [vmem:[#allocation7 + $0x9a0] sm:$0xff]
        %v4669 = vld [vmem:[#allocation7 + $0x9a8] sm:$0xff]
        %v4670 = vld [vmem:[#allocation7 + $0x9b0] sm:$0xff]
        %v4671 = vld [vmem:[#allocation7 + $0x9b8] sm:$0xff]
        %v4672 = vld [vmem:[#allocation7 + $0x9c0] sm:$0xff]
        %v4673 = vld [vmem:[#allocation7 + $0x9c8] sm:$0xff]
        %v4674 = vld [vmem:[#allocation7 + $0x9d0] sm:$0xff]
        %v4675 = vld [vmem:[#allocation7 + $0x9d8] sm:$0xff]
        %v4676 = vld [vmem:[#allocation7 + $0x9e0] sm:$0xff]
        %v4677 = vld [vmem:[#allocation7 + $0x9e8] sm:$0xff]
        %v4678 = vld [vmem:[#allocation7 + $0x9f0] sm:$0xff]
        %v4679 = vld [vmem:[#allocation7 + $0x9f8] sm:$0xff]
        %v4680 = vld [vmem:[#allocation7 + $0xa00] sm:$0xff]
        %v4681 = vld [vmem:[#allocation7 + $0xa08] sm:$0xff]
        %v4682 = vld [vmem:[#allocation7 + $0xa10] sm:$0xff]
        %v4683 = vld [vmem:[#allocation7 + $0xa18] sm:$0xff]
        %v4684 = vld [vmem:[#allocation7 + $0xa20] sm:$0xff]
        %v4685 = vld [vmem:[#allocation7 + $0xa28] sm:$0xff]
        %v4686 = vld [vmem:[#allocation7 + $0xa30] sm:$0xff]
        %v4687 = vld [vmem:[#allocation7 + $0xa38] sm:$0xff]
        %v4688 = vld [vmem:[#allocation7 + $0xa40] sm:$0xff]
        %v4689 = vld [vmem:[#allocation7 + $0xa48] sm:$0xff]
        %v4690 = vld [vmem:[#allocation7 + $0xa50] sm:$0xff]
        %v4691 = vld [vmem:[#allocation7 + $0xa58] sm:$0xff]
        %v4692 = vld [vmem:[#allocation7 + $0xa60] sm:$0xff]
        %v4693 = vld [vmem:[#allocation7 + $0xa68] sm:$0xff]
        %v4694 = vld [vmem:[#allocation7 + $0xa70] sm:$0xff]
        %v4695 = vld [vmem:[#allocation7 + $0xa78] sm:$0xff]
        %v4696 = vld [vmem:[#allocation7 + $0xa80] sm:$0xff]
        %v4697 = vld [vmem:[#allocation7 + $0xa88] sm:$0xff]
        %v4698 = vld [vmem:[#allocation7 + $0xa90] sm:$0xff]
        %v4699 = vld [vmem:[#allocation7 + $0xa98] sm:$0xff]
        %v4700 = vld [vmem:[#allocation7 + $0xaa0] sm:$0xff]
        %v4701 = vld [vmem:[#allocation7 + $0xaa8] sm:$0xff]
        %v4702 = vld [vmem:[#allocation7 + $0xab0] sm:$0xff]
        %v4703 = vld [vmem:[#allocation7 + $0xab8] sm:$0xff]
        %v4704 = vld [vmem:[#allocation7 + $0xac0] sm:$0xff]
        %v4705 = vld [vmem:[#allocation7 + $0xac8] sm:$0xff]
        %v4706 = vld [vmem:[#allocation7 + $0xad0] sm:$0xff]
        %v4707 = vld [vmem:[#allocation7 + $0xad8] sm:$0xff]
        %v4708 = vld [vmem:[#allocation7 + $0xae0] sm:$0xff]
        %v4709 = vld [vmem:[#allocation7 + $0xae8] sm:$0xff]
        %v4710 = vld [vmem:[#allocation7 + $0xaf0] sm:$0xff]
        %v4711 = vld [vmem:[#allocation7 + $0xaf8] sm:$0xff]
        %v4712 = vld [vmem:[#allocation7 + $0xb00] sm:$0xff]
        %v4713 = vld [vmem:[#allocation7 + $0xb08] sm:$0xff]
        %v4714 = vld [vmem:[#allocation7 + $0xb10] sm:$0xff]
        %v4715 = vld [vmem:[#allocation7 + $0xb18] sm:$0xff]
        %v4716 = vld [vmem:[#allocation7 + $0xb20] sm:$0xff]
        %v4717 = vld [vmem:[#allocation7 + $0xb28] sm:$0xff]
        %v4718 = vld [vmem:[#allocation7 + $0xb30] sm:$0xff]
        %v4719 = vld [vmem:[#allocation7 + $0xb38] sm:$0xff]
        %v4720 = vld [vmem:[#allocation7 + $0xb40] sm:$0xff]
        %v4721 = vld [vmem:[#allocation7 + $0xb48] sm:$0xff]
        %v4722 = vld [vmem:[#allocation7 + $0xb50] sm:$0xff]
        %v4723 = vld [vmem:[#allocation7 + $0xb58] sm:$0xff]
        %v4724 = vld [vmem:[#allocation7 + $0xb60] sm:$0xff]
        %v4725 = vld [vmem:[#allocation7 + $0xb68] sm:$0xff]
        %v4726 = vld [vmem:[#allocation7 + $0xb70] sm:$0xff]
        %v4727 = vld [vmem:[#allocation7 + $0xb78] sm:$0xff]
        %v4728 = vld [vmem:[#allocation7 + $0xb80] sm:$0xff]
        %v4729 = vld [vmem:[#allocation7 + $0xb88] sm:$0xff]
        %v4730 = vld [vmem:[#allocation7 + $0xb90] sm:$0xff]
        %v4731 = vld [vmem:[#allocation7 + $0xb98] sm:$0xff]
        %v4732 = vld [vmem:[#allocation7 + $0xba0] sm:$0xff]
        %v4733 = vld [vmem:[#allocation7 + $0xba8] sm:$0xff]
        %v4734 = vld [vmem:[#allocation7 + $0xbb0] sm:$0xff]
        %v4735 = vld [vmem:[#allocation7 + $0xbb8] sm:$0xff]
        %v4736 = vld [vmem:[#allocation7 + $0xbc0] sm:$0xff]
        %v4737 = vld [vmem:[#allocation7 + $0xbc8] sm:$0xff]
        %v4738 = vld [vmem:[#allocation7 + $0xbd0] sm:$0xff]
        %v4739 = vld [vmem:[#allocation7 + $0xbd8] sm:$0xff]
        %v4740 = vld [vmem:[#allocation7 + $0xbe0] sm:$0xff]
        %v4741 = vld [vmem:[#allocation7 + $0xbe8] sm:$0xff]
        %v4742 = vld [vmem:[#allocation7 + $0xbf0] sm:$0xff]
        %v4743 = vld [vmem:[#allocation7 + $0xbf8] sm:$0xff]
        %v4744 = vld [vmem:[#allocation7 + $0xc00] sm:$0xff]
        %v4745 = vld [vmem:[#allocation7 + $0xc08] sm:$0xff]
        %v4746 = vld [vmem:[#allocation7 + $0xc10] sm:$0xff]
        %v4747 = vld [vmem:[#allocation7 + $0xc18] sm:$0xff]
        %v4748 = vld [vmem:[#allocation7 + $0xc20] sm:$0xff]
        %v4749 = vld [vmem:[#allocation7 + $0xc28] sm:$0xff]
        %v4750 = vld [vmem:[#allocation7 + $0xc30] sm:$0xff]
        %v4751 = vld [vmem:[#allocation7 + $0xc38] sm:$0xff]
        %v4752 = vld [vmem:[#allocation7 + $0xc40] sm:$0xff]
        %v4753 = vld [vmem:[#allocation7 + $0xc48] sm:$0xff]
        %v4754 = vld [vmem:[#allocation7 + $0xc50] sm:$0xff]
        %v4755 = vld [vmem:[#allocation7 + $0xc58] sm:$0xff]
        %v4756 = vld [vmem:[#allocation7 + $0xc60] sm:$0xff]
        %v4757 = vld [vmem:[#allocation7 + $0xc68] sm:$0xff]
        %v4758 = vld [vmem:[#allocation7 + $0xc70] sm:$0xff]
        %v4759 = vld [vmem:[#allocation7 + $0xc78] sm:$0xff]
        %v4760 = vld [vmem:[#allocation7 + $0xc80] sm:$0xff]
        %v4761 = vld [vmem:[#allocation7 + $0xc88] sm:$0xff]
        %v4762 = vld [vmem:[#allocation7 + $0xc90] sm:$0xff]
        %v4763 = vld [vmem:[#allocation7 + $0xc98] sm:$0xff]
        %v4764 = vld [vmem:[#allocation7 + $0xca0] sm:$0xff]
        %v4765 = vld [vmem:[#allocation7 + $0xca8] sm:$0xff]
        %v4766 = vld [vmem:[#allocation7 + $0xcb0] sm:$0xff]
        %v4767 = vld [vmem:[#allocation7 + $0xcb8] sm:$0xff]
        %v4768 = vld [vmem:[#allocation7 + $0xcc0] sm:$0xff]
        %v4769 = vld [vmem:[#allocation7 + $0xcc8] sm:$0xff]
        %v4770 = vld [vmem:[#allocation7 + $0xcd0] sm:$0xff]
        %v4771 = vld [vmem:[#allocation7 + $0xcd8] sm:$0xff]
        %v4772 = vld [vmem:[#allocation7 + $0xce0] sm:$0xff]
        %v4773 = vld [vmem:[#allocation7 + $0xce8] sm:$0xff]
        %v4774 = vld [vmem:[#allocation7 + $0xcf0] sm:$0xff]
        %v4775 = vld [vmem:[#allocation7 + $0xcf8] sm:$0xff]
        %v4776 = vld [vmem:[#allocation7 + $0xd00] sm:$0xff]
        %v4777 = vld [vmem:[#allocation7 + $0xd08] sm:$0xff]
        %v4778 = vld [vmem:[#allocation7 + $0xd10] sm:$0xff]
        %v4779 = vld [vmem:[#allocation7 + $0xd18] sm:$0xff]
        %v4780 = vld [vmem:[#allocation7 + $0xd20] sm:$0xff]
        %v4781 = vld [vmem:[#allocation7 + $0xd28] sm:$0xff]
        %v4782 = vld [vmem:[#allocation7 + $0xd30] sm:$0xff]
        %v4783 = vld [vmem:[#allocation7 + $0xd38] sm:$0xff]
        %v4784 = vld [vmem:[#allocation7 + $0xd40] sm:$0xff]
        %v4785 = vld [vmem:[#allocation7 + $0xd48] sm:$0xff]
        %v4786 = vld [vmem:[#allocation7 + $0xd50] sm:$0xff]
        %v4787 = vld [vmem:[#allocation7 + $0xd58] sm:$0xff]
        %v4788 = vld [vmem:[#allocation7 + $0xd60] sm:$0xff]
        %v4789 = vld [vmem:[#allocation7 + $0xd68] sm:$0xff]
        %v4790 = vld [vmem:[#allocation7 + $0xd70] sm:$0xff]
        %v4791 = vld [vmem:[#allocation7 + $0xd78] sm:$0xff]
        %v4792 = vld [vmem:[#allocation7 + $0xd80] sm:$0xff]
        %v4793 = vld [vmem:[#allocation7 + $0xd88] sm:$0xff]
        %v4794 = vld [vmem:[#allocation7 + $0xd90] sm:$0xff]
        %v4795 = vld [vmem:[#allocation7 + $0xd98] sm:$0xff]
        %v4796 = vld [vmem:[#allocation7 + $0xda0] sm:$0xff]
        %v4797 = vld [vmem:[#allocation7 + $0xda8] sm:$0xff]
        %v4798 = vld [vmem:[#allocation7 + $0xdb0] sm:$0xff]
        %v4799 = vld [vmem:[#allocation7 + $0xdb8] sm:$0xff]
        %v4800 = vld [vmem:[#allocation7 + $0xdc0] sm:$0xff]
        %v4801 = vld [vmem:[#allocation7 + $0xdc8] sm:$0xff]
        %v4802 = vld [vmem:[#allocation7 + $0xdd0] sm:$0xff]
        %v4803 = vld [vmem:[#allocation7 + $0xdd8] sm:$0xff]
        %v4804 = vld [vmem:[#allocation7 + $0xde0] sm:$0xff]
        %v4805 = vld [vmem:[#allocation7 + $0xde8] sm:$0xff]
        %v4806 = vld [vmem:[#allocation7 + $0xdf0] sm:$0xff]
        %v4807 = vld [vmem:[#allocation7 + $0xdf8] sm:$0xff]
        %v4808 = vld [vmem:[#allocation7 + $0xe00] sm:$0xff]
        %v4809 = vld [vmem:[#allocation7 + $0xe08] sm:$0xff]
        %v4810 = vld [vmem:[#allocation7 + $0xe10] sm:$0xff]
        %v4811 = vld [vmem:[#allocation7 + $0xe18] sm:$0xff]
        %v4812 = vld [vmem:[#allocation7 + $0xe20] sm:$0xff]
        %v4813 = vld [vmem:[#allocation7 + $0xe28] sm:$0xff]
        %v4814 = vld [vmem:[#allocation7 + $0xe30] sm:$0xff]
        %v4815 = vld [vmem:[#allocation7 + $0xe38] sm:$0xff]
        %v4816 = vld [vmem:[#allocation7 + $0xe40] sm:$0xff]
        %v4817 = vld [vmem:[#allocation7 + $0xe48] sm:$0xff]
        %v4818 = vld [vmem:[#allocation7 + $0xe50] sm:$0xff]
        %v4819 = vld [vmem:[#allocation7 + $0xe58] sm:$0xff]
        %v4820 = vld [vmem:[#allocation7 + $0xe60] sm:$0xff]
        %v4821 = vld [vmem:[#allocation7 + $0xe68] sm:$0xff]
        %v4822 = vld [vmem:[#allocation7 + $0xe70] sm:$0xff]
        %v4823 = vld [vmem:[#allocation7 + $0xe78] sm:$0xff]
        %v4824 = vld [vmem:[#allocation7 + $0xe80] sm:$0xff]
        %v4825 = vld [vmem:[#allocation7 + $0xe88] sm:$0xff]
        %v4826 = vld [vmem:[#allocation7 + $0xe90] sm:$0xff]
        %v4827 = vld [vmem:[#allocation7 + $0xe98] sm:$0xff]
        %v4828 = vld [vmem:[#allocation7 + $0xea0] sm:$0xff]
        %v4829 = vld [vmem:[#allocation7 + $0xea8] sm:$0xff]
        %v4830 = vld [vmem:[#allocation7 + $0xeb0] sm:$0xff]
        %v4831 = vld [vmem:[#allocation7 + $0xeb8] sm:$0xff]
        %v4832 = vld [vmem:[#allocation7 + $0xec0] sm:$0xff]
        %v4833 = vld [vmem:[#allocation7 + $0xec8] sm:$0xff]
        %v4834 = vld [vmem:[#allocation7 + $0xed0] sm:$0xff]
        %v4835 = vld [vmem:[#allocation7 + $0xed8] sm:$0xff]
        %v4836 = vld [vmem:[#allocation7 + $0xee0] sm:$0xff]
        %v4837 = vld [vmem:[#allocation7 + $0xee8] sm:$0xff]
        %v4838 = vld [vmem:[#allocation7 + $0xef0] sm:$0xff]
        %v4839 = vld [vmem:[#allocation7 + $0xef8] sm:$0xff]
        %v4840 = vld [vmem:[#allocation7 + $0xf00] sm:$0xff]
        %v4841 = vld [vmem:[#allocation7 + $0xf08] sm:$0xff]
        %v4842 = vld [vmem:[#allocation7 + $0xf10] sm:$0xff]
        %v4843 = vld [vmem:[#allocation7 + $0xf18] sm:$0xff]
        %v4844 = vld [vmem:[#allocation7 + $0xf20] sm:$0xff]
        %v4845 = vld [vmem:[#allocation7 + $0xf28] sm:$0xff]
        %v4846 = vld [vmem:[#allocation7 + $0xf30] sm:$0xff]
        %v4847 = vld [vmem:[#allocation7 + $0xf38] sm:$0xff]
        %v4848 = vld [vmem:[#allocation7 + $0xf40] sm:$0xff]
        %v4849 = vld [vmem:[#allocation7 + $0xf48] sm:$0xff]
        %v4850 = vld [vmem:[#allocation7 + $0xf50] sm:$0xff]
        %v4851 = vld [vmem:[#allocation7 + $0xf58] sm:$0xff]
        %v4852 = vld [vmem:[#allocation7 + $0xf60] sm:$0xff]
        %v4853 = vld [vmem:[#allocation7 + $0xf68] sm:$0xff]
        %v4854 = vld [vmem:[#allocation7 + $0xf70] sm:$0xff]
        %v4855 = vld [vmem:[#allocation7 + $0xf78] sm:$0xff]
        %v4856 = vld [vmem:[#allocation7 + $0xf80] sm:$0xff]
        %v4857 = vld [vmem:[#allocation7 + $0xf88] sm:$0xff]
        %v4858 = vld [vmem:[#allocation7 + $0xf90] sm:$0xff]
        %v4859 = vld [vmem:[#allocation7 + $0xf98] sm:$0xff]
        %v4860 = vld [vmem:[#allocation7 + $0xfa0] sm:$0xff]
        %v4861 = vld [vmem:[#allocation7 + $0xfa8] sm:$0xff]
        %v4862 = vld [vmem:[#allocation7 + $0xfb0] sm:$0xff]
        %v4863 = vld [vmem:[#allocation7 + $0xfb8] sm:$0xff]
        %v4864 = vld [vmem:[#allocation7 + $0xfc0] sm:$0xff]
        %v4865 = vld [vmem:[#allocation7 + $0xfc8] sm:$0xff]
        %v4866 = vld [vmem:[#allocation7 + $0xfd0] sm:$0xff]
        %v4867 = vld [vmem:[#allocation7 + $0xfd8] sm:$0xff]
        %v4868 = vld [vmem:[#allocation7 + $0xfe0] sm:$0xff]
        %v4869 = vld [vmem:[#allocation7 + $0xfe8] sm:$0xff]
        %v4870 = vld [vmem:[#allocation7 + $0xff0] sm:$0xff]
        %v4871 = vld [vmem:[#allocation7 + $0xff8] sm:$0xff]
        %v4872 = vld [vmem:[#allocation7 + $0x1000] sm:$0xff]
        %v4873 = vld [vmem:[#allocation7 + $0x1008] sm:$0xff]
        %v4874 = vld [vmem:[#allocation7 + $0x1010] sm:$0xff]
        %v4875 = vld [vmem:[#allocation7 + $0x1018] sm:$0xff]
        %v4876 = vld [vmem:[#allocation7 + $0x1020] sm:$0xff]
        %v4877 = vld [vmem:[#allocation7 + $0x1028] sm:$0xff]
        %v4878 = vld [vmem:[#allocation7 + $0x1030] sm:$0xff]
        %v4879 = vld [vmem:[#allocation7 + $0x1038] sm:$0xff]
        %v4880 = vld [vmem:[#allocation7 + $0x1040] sm:$0xff]
        %v4881 = vld [vmem:[#allocation7 + $0x1048] sm:$0xff]
        %v4882 = vld [vmem:[#allocation7 + $0x1050] sm:$0xff]
        %v4883 = vld [vmem:[#allocation7 + $0x1058] sm:$0xff]
        %v4884 = vld [vmem:[#allocation7 + $0x1060] sm:$0xff]
        %v4885 = vld [vmem:[#allocation7 + $0x1068] sm:$0xff]
        %v4886 = vld [vmem:[#allocation7 + $0x1070] sm:$0xff]
        %v4887 = vld [vmem:[#allocation7 + $0x1078] sm:$0xff]
        %v4888 = vld [vmem:[#allocation7 + $0x1080] sm:$0xff]
        %v4889 = vld [vmem:[#allocation7 + $0x1088] sm:$0xff]
        %v4890 = vld [vmem:[#allocation7 + $0x1090] sm:$0xff]
        %v4891 = vld [vmem:[#allocation7 + $0x1098] sm:$0xff]
        %v4892 = vld [vmem:[#allocation7 + $0x10a0] sm:$0xff]
        %v4893 = vld [vmem:[#allocation7 + $0x10a8] sm:$0xff]
        %v4894 = vld [vmem:[#allocation7 + $0x10b0] sm:$0xff]
        %v4895 = vld [vmem:[#allocation7 + $0x10b8] sm:$0xff]
        %v4896 = vld [vmem:[#allocation7 + $0x10c0] sm:$0xff]
        %v4897 = vld [vmem:[#allocation7 + $0x10c8] sm:$0xff]
        %v4898 = vld [vmem:[#allocation7 + $0x10d0] sm:$0xff]
        %v4899 = vld [vmem:[#allocation7 + $0x10d8] sm:$0xff]
        %v4900 = vld [vmem:[#allocation7 + $0x10e0] sm:$0xff]
        %v4901 = vld [vmem:[#allocation7 + $0x10e8] sm:$0xff]
        %v4902 = vld [vmem:[#allocation7 + $0x10f0] sm:$0xff]
        %v4903 = vld [vmem:[#allocation7 + $0x10f8] sm:$0xff]
        %v4904 = vld [vmem:[#allocation7 + $0x1100] sm:$0xff]
        %v4905 = vld [vmem:[#allocation7 + $0x1108] sm:$0xff]
        %v4906 = vld [vmem:[#allocation7 + $0x1110] sm:$0xff]
        %v4907 = vld [vmem:[#allocation7 + $0x1118] sm:$0xff]
        %v4908 = vld [vmem:[#allocation7 + $0x1120] sm:$0xff]
        %v4909 = vld [vmem:[#allocation7 + $0x1128] sm:$0xff]
        %v4910 = vld [vmem:[#allocation7 + $0x1130] sm:$0xff]
        %v4911 = vld [vmem:[#allocation7 + $0x1138] sm:$0xff]
        %v4912 = vld [vmem:[#allocation7 + $0x1140] sm:$0xff]
        %v4913 = vld [vmem:[#allocation7 + $0x1148] sm:$0xff]
        %v4914 = vld [vmem:[#allocation7 + $0x1150] sm:$0xff]
        %v4915 = vld [vmem:[#allocation7 + $0x1158] sm:$0xff]
        %v4916 = vld [vmem:[#allocation7 + $0x1160] sm:$0xff]
        %v4917 = vld [vmem:[#allocation7 + $0x1168] sm:$0xff]
        %v4918 = vld [vmem:[#allocation7 + $0x1170] sm:$0xff]
        %v4919 = vld [vmem:[#allocation7 + $0x1178] sm:$0xff]
        %v4920 = vld [vmem:[#allocation7 + $0x1180] sm:$0xff]
        %v4921 = vld [vmem:[#allocation7 + $0x1188] sm:$0xff]
        %v4922 = vld [vmem:[#allocation7 + $0x1190] sm:$0xff]
        %v4923 = vld [vmem:[#allocation7 + $0x1198] sm:$0xff]
        %v4924 = vld [vmem:[#allocation7 + $0x11a0] sm:$0xff]
        %v4925 = vld [vmem:[#allocation7 + $0x11a8] sm:$0xff]
        %v4926 = vld [vmem:[#allocation7 + $0x11b0] sm:$0xff]
        %v4927 = vld [vmem:[#allocation7 + $0x11b8] sm:$0xff]
        %v4928 = vld [vmem:[#allocation7 + $0x11c0] sm:$0xff]
        %v4929 = vld [vmem:[#allocation7 + $0x11c8] sm:$0xff]
        %v4930 = vld [vmem:[#allocation7 + $0x11d0] sm:$0xff]
        %v4931 = vld [vmem:[#allocation7 + $0x11d8] sm:$0xff]
        %v4932 = vld [vmem:[#allocation7 + $0x11e0] sm:$0xff]
        %v4933 = vld [vmem:[#allocation7 + $0x11e8] sm:$0xff]
        %v4934 = vld [vmem:[#allocation7 + $0x11f0] sm:$0xff]
        %v4935 = vld [vmem:[#allocation7 + $0x11f8] sm:$0xff]
        %v4936 = vld [vmem:[#allocation7 + $0x1200] sm:$0xff]
        %v4937 = vld [vmem:[#allocation7 + $0x1208] sm:$0xff]
        %v4938 = vld [vmem:[#allocation7 + $0x1210] sm:$0xff]
        %v4939 = vld [vmem:[#allocation7 + $0x1218] sm:$0xff]
        %v4940 = vld [vmem:[#allocation7 + $0x1220] sm:$0xff]
        %v4941 = vld [vmem:[#allocation7 + $0x1228] sm:$0xff]
        %v4942 = vld [vmem:[#allocation7 + $0x1230] sm:$0xff]
        %v4943 = vld [vmem:[#allocation7 + $0x1238] sm:$0xff]
        %v4944 = vld [vmem:[#allocation7 + $0x1240] sm:$0xff]
        %v4945 = vld [vmem:[#allocation7 + $0x1248] sm:$0xff]
        %v4946 = vld [vmem:[#allocation7 + $0x1250] sm:$0xff]
        %v4947 = vld [vmem:[#allocation7 + $0x1258] sm:$0xff]
        %v4948 = vld [vmem:[#allocation7 + $0x1260] sm:$0xff]
        %v4949 = vld [vmem:[#allocation7 + $0x1268] sm:$0xff]
        %v4950 = vld [vmem:[#allocation7 + $0x1270] sm:$0xff]
        %v4951 = vld [vmem:[#allocation7 + $0x1278] sm:$0xff]
        %v4952 = vld [vmem:[#allocation7 + $0x1280] sm:$0xff]
        %v4953 = vld [vmem:[#allocation7 + $0x1288] sm:$0xff]
        %v4954 = vld [vmem:[#allocation7 + $0x1290] sm:$0xff]
        %v4955 = vld [vmem:[#allocation7 + $0x1298] sm:$0xff]
        %v4956 = vld [vmem:[#allocation7 + $0x12a0] sm:$0xff]
        %v4957 = vld [vmem:[#allocation7 + $0x12a8] sm:$0xff]
        %v4958 = vld [vmem:[#allocation7 + $0x12b0] sm:$0xff]
        %v4959 = vld [vmem:[#allocation7 + $0x12b8] sm:$0xff]
        %v4960 = vld [vmem:[#allocation7 + $0x12c0] sm:$0xff]
        %v4961 = vld [vmem:[#allocation7 + $0x12c8] sm:$0xff]
        %v4962 = vld [vmem:[#allocation7 + $0x12d0] sm:$0xff]
        %v4963 = vld [vmem:[#allocation7 + $0x12d8] sm:$0xff]
        %v4964 = vld [vmem:[#allocation7 + $0x12e0] sm:$0xff]
        %v4965 = vld [vmem:[#allocation7 + $0x12e8] sm:$0xff]
        %v4966 = vld [vmem:[#allocation7 + $0x12f0] sm:$0xff]
        %v4967 = vld [vmem:[#allocation7 + $0x12f8] sm:$0xff]
        %v4968 = vld [vmem:[#allocation7 + $0x1300] sm:$0xff]
        %v4969 = vld [vmem:[#allocation7 + $0x1308] sm:$0xff]
        %v4970 = vld [vmem:[#allocation7 + $0x1310] sm:$0xff]
        %v4971 = vld [vmem:[#allocation7 + $0x1318] sm:$0xff]
        %v4972 = vld [vmem:[#allocation7 + $0x1320] sm:$0xff]
        %v4973 = vld [vmem:[#allocation7 + $0x1328] sm:$0xff]
        %v4974 = vld [vmem:[#allocation7 + $0x1330] sm:$0xff]
        %v4975 = vld [vmem:[#allocation7 + $0x1338] sm:$0xff]
        %v4976 = vld [vmem:[#allocation7 + $0x1340] sm:$0xff]
        %v4977 = vld [vmem:[#allocation7 + $0x1348] sm:$0xff]
        %v4978 = vld [vmem:[#allocation7 + $0x1350] sm:$0xff]
        %v4979 = vld [vmem:[#allocation7 + $0x1358] sm:$0xff]
        %v4980 = vld [vmem:[#allocation7 + $0x1360] sm:$0xff]
        %v4981 = vld [vmem:[#allocation7 + $0x1368] sm:$0xff]
        %v4982 = vld [vmem:[#allocation7 + $0x1370] sm:$0xff]
        %v4983 = vld [vmem:[#allocation7 + $0x1378] sm:$0xff]
        %v4984 = vld [vmem:[#allocation7 + $0x1380] sm:$0xff]
        %v4985 = vld [vmem:[#allocation7 + $0x1388] sm:$0xff]
        %v4986 = vld [vmem:[#allocation7 + $0x1390] sm:$0xff]
        %v4987 = vld [vmem:[#allocation7 + $0x1398] sm:$0xff]
        %v4988 = vld [vmem:[#allocation7 + $0x13a0] sm:$0xff]
        %v4989 = vld [vmem:[#allocation7 + $0x13a8] sm:$0xff]
        %v4990 = vld [vmem:[#allocation7 + $0x13b0] sm:$0xff]
        %v4991 = vld [vmem:[#allocation7 + $0x13b8] sm:$0xff]
        %v4992 = vld [vmem:[#allocation7 + $0x13c0] sm:$0xff]
        %v4993 = vld [vmem:[#allocation7 + $0x13c8] sm:$0xff]
        %v4994 = vld [vmem:[#allocation7 + $0x13d0] sm:$0xff]
        %v4995 = vld [vmem:[#allocation7 + $0x13d8] sm:$0xff]
        %v4996 = vld [vmem:[#allocation7 + $0x13e0] sm:$0xff]
        %v4997 = vld [vmem:[#allocation7 + $0x13e8] sm:$0xff]
        %v4998 = vld [vmem:[#allocation7 + $0x13f0] sm:$0xff]
        %v4999 = vld [vmem:[#allocation7 + $0x13f8] sm:$0xff]
        %v5000 = vld [vmem:[#allocation7 + $0x1400] sm:$0xff]
        %v5001 = vld [vmem:[#allocation7 + $0x1408] sm:$0xff]
        %v5002 = vld [vmem:[#allocation7 + $0x1410] sm:$0xff]
        %v5003 = vld [vmem:[#allocation7 + $0x1418] sm:$0xff]
        %v5004 = vld [vmem:[#allocation7 + $0x1420] sm:$0xff]
        %v5005 = vld [vmem:[#allocation7 + $0x1428] sm:$0xff]
        %v5006 = vld [vmem:[#allocation7 + $0x1430] sm:$0xff]
        %v5007 = vld [vmem:[#allocation7 + $0x1438] sm:$0xff]
        %v5008 = vld [vmem:[#allocation7 + $0x1440] sm:$0xff]
        %v5009 = vld [vmem:[#allocation7 + $0x1448] sm:$0xff]
        %v5010 = vld [vmem:[#allocation7 + $0x1450] sm:$0xff]
        %v5011 = vld [vmem:[#allocation7 + $0x1458] sm:$0xff]
        %v5012 = vld [vmem:[#allocation7 + $0x1460] sm:$0xff]
        %v5013 = vld [vmem:[#allocation7 + $0x1468] sm:$0xff]
        %v5014 = vld [vmem:[#allocation7 + $0x1470] sm:$0xff]
        %v5015 = vld [vmem:[#allocation7 + $0x1478] sm:$0xff]
        %v5016 = vld [vmem:[#allocation7 + $0x1480] sm:$0xff]
        %v5017 = vld [vmem:[#allocation7 + $0x1488] sm:$0xff]
        %v5018 = vld [vmem:[#allocation7 + $0x1490] sm:$0xff]
        %v5019 = vld [vmem:[#allocation7 + $0x1498] sm:$0xff]
        %v5020 = vld [vmem:[#allocation7 + $0x14a0] sm:$0xff]
        %v5021 = vld [vmem:[#allocation7 + $0x14a8] sm:$0xff]
        %v5022 = vld [vmem:[#allocation7 + $0x14b0] sm:$0xff]
        %v5023 = vld [vmem:[#allocation7 + $0x14b8] sm:$0xff]
        %v5024 = vld [vmem:[#allocation7 + $0x14c0] sm:$0xff]
        %v5025 = vld [vmem:[#allocation7 + $0x14c8] sm:$0xff]
        %v5026 = vld [vmem:[#allocation7 + $0x14d0] sm:$0xff]
        %v5027 = vld [vmem:[#allocation7 + $0x14d8] sm:$0xff]
        %v5028 = vld [vmem:[#allocation7 + $0x14e0] sm:$0xff]
        %v5029 = vld [vmem:[#allocation7 + $0x14e8] sm:$0xff]
        %v5030 = vld [vmem:[#allocation7 + $0x14f0] sm:$0xff]
        %v5031 = vld [vmem:[#allocation7 + $0x14f8] sm:$0xff]
        %v5032 = vld [vmem:[#allocation7 + $0x1500] sm:$0xff]
        %v5033 = vld [vmem:[#allocation7 + $0x1508] sm:$0xff]
        %v5034 = vld [vmem:[#allocation7 + $0x1510] sm:$0xff]
        %v5035 = vld [vmem:[#allocation7 + $0x1518] sm:$0xff]
        %v5036 = vld [vmem:[#allocation7 + $0x1520] sm:$0xff]
        %v5037 = vld [vmem:[#allocation7 + $0x1528] sm:$0xff]
        %v5038 = vld [vmem:[#allocation7 + $0x1530] sm:$0xff]
        %v5039 = vld [vmem:[#allocation7 + $0x1538] sm:$0xff]
        %v5040 = vld [vmem:[#allocation7 + $0x1540] sm:$0xff]
        %v5041 = vld [vmem:[#allocation7 + $0x1548] sm:$0xff]
        %v5042 = vld [vmem:[#allocation7 + $0x1550] sm:$0xff]
        %v5043 = vld [vmem:[#allocation7 + $0x1558] sm:$0xff]
        %v5044 = vld [vmem:[#allocation7 + $0x1560] sm:$0xff]
        %v5045 = vld [vmem:[#allocation7 + $0x1568] sm:$0xff]
        %v5046 = vld [vmem:[#allocation7 + $0x1570] sm:$0xff]
        %v5047 = vld [vmem:[#allocation7 + $0x1578] sm:$0xff]
        %v5048 = vld [vmem:[#allocation7 + $0x1580] sm:$0xff]
        %v5049 = vld [vmem:[#allocation7 + $0x1588] sm:$0xff]
        %v5050 = vld [vmem:[#allocation7 + $0x1590] sm:$0xff]
        %v5051 = vld [vmem:[#allocation7 + $0x1598] sm:$0xff]
        %v5052 = vld [vmem:[#allocation7 + $0x15a0] sm:$0xff]
        %v5053 = vld [vmem:[#allocation7 + $0x15a8] sm:$0xff]
        %v5054 = vld [vmem:[#allocation7 + $0x15b0] sm:$0xff]
        %v5055 = vld [vmem:[#allocation7 + $0x15b8] sm:$0xff]
        %v5056 = vld [vmem:[#allocation7 + $0x15c0] sm:$0xff]
        %v5057 = vld [vmem:[#allocation7 + $0x15c8] sm:$0xff]
        %v5058 = vld [vmem:[#allocation7 + $0x15d0] sm:$0xff]
        %v5059 = vld [vmem:[#allocation7 + $0x15d8] sm:$0xff]
        %v5060 = vld [vmem:[#allocation7 + $0x15e0] sm:$0xff]
        %v5061 = vld [vmem:[#allocation7 + $0x15e8] sm:$0xff]
        %v5062 = vld [vmem:[#allocation7 + $0x15f0] sm:$0xff]
        %v5063 = vld [vmem:[#allocation7 + $0x15f8] sm:$0xff]
        %v5064 = vld [vmem:[#allocation7 + $0x1600] sm:$0xff]
        %v5065 = vld [vmem:[#allocation7 + $0x1608] sm:$0xff]
        %v5066 = vld [vmem:[#allocation7 + $0x1610] sm:$0xff]
        %v5067 = vld [vmem:[#allocation7 + $0x1618] sm:$0xff]
        %v5068 = vld [vmem:[#allocation7 + $0x1620] sm:$0xff]
        %v5069 = vld [vmem:[#allocation7 + $0x1628] sm:$0xff]
        %v5070 = vld [vmem:[#allocation7 + $0x1630] sm:$0xff]
        %v5071 = vld [vmem:[#allocation7 + $0x1638] sm:$0xff]
        %v5072 = vld [vmem:[#allocation7 + $0x1640] sm:$0xff]
        %v5073 = vld [vmem:[#allocation7 + $0x1648] sm:$0xff]
        %v5074 = vld [vmem:[#allocation7 + $0x1650] sm:$0xff]
        %v5075 = vld [vmem:[#allocation7 + $0x1658] sm:$0xff]
        %v5076 = vld [vmem:[#allocation7 + $0x1660] sm:$0xff]
        %v5077 = vld [vmem:[#allocation7 + $0x1668] sm:$0xff]
        %v5078 = vld [vmem:[#allocation7 + $0x1670] sm:$0xff]
        %v5079 = vld [vmem:[#allocation7 + $0x1678] sm:$0xff]
        %v5080 = vld [vmem:[#allocation7 + $0x1680] sm:$0xff]
        %v5081 = vld [vmem:[#allocation7 + $0x1688] sm:$0xff]
        %v5082 = vld [vmem:[#allocation7 + $0x1690] sm:$0xff]
        %v5083 = vld [vmem:[#allocation7 + $0x1698] sm:$0xff]
        %v5084 = vld [vmem:[#allocation7 + $0x16a0] sm:$0xff]
        %v5085 = vld [vmem:[#allocation7 + $0x16a8] sm:$0xff]
        %v5086 = vld [vmem:[#allocation7 + $0x16b0] sm:$0xff]
        %v5087 = vld [vmem:[#allocation7 + $0x16b8] sm:$0xff]
        %v5088 = vld [vmem:[#allocation7 + $0x16c0] sm:$0xff]
        %v5089 = vld [vmem:[#allocation7 + $0x16c8] sm:$0xff]
        %v5090 = vld [vmem:[#allocation7 + $0x16d0] sm:$0xff]
        %v5091 = vld [vmem:[#allocation7 + $0x16d8] sm:$0xff]
        %v5092 = vld [vmem:[#allocation7 + $0x16e0] sm:$0xff]
        %v5093 = vld [vmem:[#allocation7 + $0x16e8] sm:$0xff]
        %v5094 = vld [vmem:[#allocation7 + $0x16f0] sm:$0xff]
        %v5095 = vld [vmem:[#allocation7 + $0x16f8] sm:$0xff]
        %v5096 = vld [vmem:[#allocation7 + $0x1700] sm:$0xff]
        %v5097 = vld [vmem:[#allocation7 + $0x1708] sm:$0xff]
        %v5098 = vld [vmem:[#allocation7 + $0x1710] sm:$0xff]
        %v5099 = vld [vmem:[#allocation7 + $0x1718] sm:$0xff]
        %v5100 = vld [vmem:[#allocation7 + $0x1720] sm:$0xff]
        %v5101 = vld [vmem:[#allocation7 + $0x1728] sm:$0xff]
        %v5102 = vld [vmem:[#allocation7 + $0x1730] sm:$0xff]
        %v5103 = vld [vmem:[#allocation7 + $0x1738] sm:$0xff]
        %v5104 = vld [vmem:[#allocation7 + $0x1740] sm:$0xff]
        %v5105 = vld [vmem:[#allocation7 + $0x1748] sm:$0xff]
        %v5106 = vld [vmem:[#allocation7 + $0x1750] sm:$0xff]
        %v5107 = vld [vmem:[#allocation7 + $0x1758] sm:$0xff]
        %v5108 = vld [vmem:[#allocation7 + $0x1760] sm:$0xff]
        %v5109 = vld [vmem:[#allocation7 + $0x1768] sm:$0xff]
        %v5110 = vld [vmem:[#allocation7 + $0x1770] sm:$0xff]
        %v5111 = vld [vmem:[#allocation7 + $0x1778] sm:$0xff]
        %v5112 = vld [vmem:[#allocation7 + $0x1780] sm:$0xff]
        %v5113 = vld [vmem:[#allocation7 + $0x1788] sm:$0xff]
        %v5114 = vld [vmem:[#allocation7 + $0x1790] sm:$0xff]
        %v5115 = vld [vmem:[#allocation7 + $0x1798] sm:$0xff]
        %v5116 = vld [vmem:[#allocation7 + $0x17a0] sm:$0xff]
        %v5117 = vld [vmem:[#allocation7 + $0x17a8] sm:$0xff]
        %v5118 = vld [vmem:[#allocation7 + $0x17b0] sm:$0xff]
        %v5119 = vld [vmem:[#allocation7 + $0x17b8] sm:$0xff]
        %v5120 = vld [vmem:[#allocation7 + $0x17c0] sm:$0xff]
        %v5121 = vld [vmem:[#allocation7 + $0x17c8] sm:$0xff]
        %v5122 = vld [vmem:[#allocation7 + $0x17d0] sm:$0xff]
        %v5123 = vld [vmem:[#allocation7 + $0x17d8] sm:$0xff]
        %v5124 = vld [vmem:[#allocation7 + $0x17e0] sm:$0xff]
        %v5125 = vld [vmem:[#allocation7 + $0x17e8] sm:$0xff]
        %v5126 = vld [vmem:[#allocation7 + $0x17f0] sm:$0xff]
        %v5127 = vld [vmem:[#allocation7 + $0x17f8] sm:$0xff]
        %v5128 = vld [vmem:[#allocation7 + $0x1800] sm:$0xff]
        %v5129 = vld [vmem:[#allocation7 + $0x1808] sm:$0xff]
        %v5130 = vld [vmem:[#allocation7 + $0x1810] sm:$0xff]
        %v5131 = vld [vmem:[#allocation7 + $0x1818] sm:$0xff]
        %v5132 = vld [vmem:[#allocation7 + $0x1820] sm:$0xff]
        %v5133 = vld [vmem:[#allocation7 + $0x1828] sm:$0xff]
        %v5134 = vld [vmem:[#allocation7 + $0x1830] sm:$0xff]
        %v5135 = vld [vmem:[#allocation7 + $0x1838] sm:$0xff]
        %v5136 = vld [vmem:[#allocation7 + $0x1840] sm:$0xff]
        %v5137 = vld [vmem:[#allocation7 + $0x1848] sm:$0xff]
        %v5138 = vld [vmem:[#allocation7 + $0x1850] sm:$0xff]
        %v5139 = vld [vmem:[#allocation7 + $0x1858] sm:$0xff]
        %v5140 = vld [vmem:[#allocation7 + $0x1860] sm:$0xff]
        %v5141 = vld [vmem:[#allocation7 + $0x1868] sm:$0xff]
        %v5142 = vld [vmem:[#allocation7 + $0x1870] sm:$0xff]
        %v5143 = vld [vmem:[#allocation7 + $0x1878] sm:$0xff]
        %v5144 = vld [vmem:[#allocation7 + $0x1880] sm:$0xff]
        %v5145 = vld [vmem:[#allocation7 + $0x1888] sm:$0xff]
        %v5146 = vld [vmem:[#allocation7 + $0x1890] sm:$0xff]
        %v5147 = vld [vmem:[#allocation7 + $0x1898] sm:$0xff]
        %v5148 = vld [vmem:[#allocation7 + $0x18a0] sm:$0xff]
        %v5149 = vld [vmem:[#allocation7 + $0x18a8] sm:$0xff]
        %v5150 = vld [vmem:[#allocation7 + $0x18b0] sm:$0xff]
        %v5151 = vld [vmem:[#allocation7 + $0x18b8] sm:$0xff]
        %v5152 = vld [vmem:[#allocation7 + $0x18c0] sm:$0xff]
        %v5153 = vld [vmem:[#allocation7 + $0x18c8] sm:$0xff]
        %v5154 = vld [vmem:[#allocation7 + $0x18d0] sm:$0xff]
        %v5155 = vld [vmem:[#allocation7 + $0x18d8] sm:$0xff]
        %v5156 = vld [vmem:[#allocation7 + $0x18e0] sm:$0xff]
        %v5157 = vld [vmem:[#allocation7 + $0x18e8] sm:$0xff]
        %v5158 = vld [vmem:[#allocation7 + $0x18f0] sm:$0xff]
        %v5159 = vld [vmem:[#allocation7 + $0x18f8] sm:$0xff]
        %v5160 = vld [vmem:[#allocation7 + $0x1900] sm:$0xff]
        %v5161 = vld [vmem:[#allocation7 + $0x1908] sm:$0xff]
        %v5162 = vld [vmem:[#allocation7 + $0x1910] sm:$0xff]
        %v5163 = vld [vmem:[#allocation7 + $0x1918] sm:$0xff]
        %v5164 = vld [vmem:[#allocation7 + $0x1920] sm:$0xff]
        %v5165 = vld [vmem:[#allocation7 + $0x1928] sm:$0xff]
        %v5166 = vld [vmem:[#allocation7 + $0x1930] sm:$0xff]
        %v5167 = vld [vmem:[#allocation7 + $0x1938] sm:$0xff]
        %v5168 = vld [vmem:[#allocation7 + $0x1940] sm:$0xff]
        %v5169 = vld [vmem:[#allocation7 + $0x1948] sm:$0xff]
        %v5170 = vld [vmem:[#allocation7 + $0x1950] sm:$0xff]
        %v5171 = vld [vmem:[#allocation7 + $0x1958] sm:$0xff]
        %v5172 = vld [vmem:[#allocation7 + $0x1960] sm:$0xff]
        %v5173 = vld [vmem:[#allocation7 + $0x1968] sm:$0xff]
        %v5174 = vld [vmem:[#allocation7 + $0x1970] sm:$0xff]
        %v5175 = vld [vmem:[#allocation7 + $0x1978] sm:$0xff]
        %v5176 = vld [vmem:[#allocation7 + $0x1980] sm:$0xff]
        %v5177 = vld [vmem:[#allocation7 + $0x1988] sm:$0xff]
        %v5178 = vld [vmem:[#allocation7 + $0x1990] sm:$0xff]
        %v5179 = vld [vmem:[#allocation7 + $0x1998] sm:$0xff]
        %v5180 = vld [vmem:[#allocation7 + $0x19a0] sm:$0xff]
        %v5181 = vld [vmem:[#allocation7 + $0x19a8] sm:$0xff]
        %v5182 = vld [vmem:[#allocation7 + $0x19b0] sm:$0xff]
        %v5183 = vld [vmem:[#allocation7 + $0x19b8] sm:$0xff]
        %v5184 = vld [vmem:[#allocation7 + $0x19c0] sm:$0xff]
        %v5185 = vld [vmem:[#allocation7 + $0x19c8] sm:$0xff]
        %v5186 = vld [vmem:[#allocation7 + $0x19d0] sm:$0xff]
        %v5187 = vld [vmem:[#allocation7 + $0x19d8] sm:$0xff]
        %v5188 = vld [vmem:[#allocation7 + $0x19e0] sm:$0xff]
        %v5189 = vld [vmem:[#allocation7 + $0x19e8] sm:$0xff]
        %v5190 = vld [vmem:[#allocation7 + $0x19f0] sm:$0xff]
        %v5191 = vld [vmem:[#allocation7 + $0x19f8] sm:$0xff]
        %v5192 = vld [vmem:[#allocation7 + $0x1a00] sm:$0xff]
        %v5193 = vld [vmem:[#allocation7 + $0x1a08] sm:$0xff]
        %v5194 = vld [vmem:[#allocation7 + $0x1a10] sm:$0xff]
        %v5195 = vld [vmem:[#allocation7 + $0x1a18] sm:$0xff]
        %v5196 = vld [vmem:[#allocation7 + $0x1a20] sm:$0xff]
        %v5197 = vld [vmem:[#allocation7 + $0x1a28] sm:$0xff]
        %v5198 = vld [vmem:[#allocation7 + $0x1a30] sm:$0xff]
        %v5199 = vld [vmem:[#allocation7 + $0x1a38] sm:$0xff]
        %v5200 = vld [vmem:[#allocation7 + $0x1a40] sm:$0xff]
        %v5201 = vld [vmem:[#allocation7 + $0x1a48] sm:$0xff]
        %v5202 = vld [vmem:[#allocation7 + $0x1a50] sm:$0xff]
        %v5203 = vld [vmem:[#allocation7 + $0x1a58] sm:$0xff]
        %v5204 = vld [vmem:[#allocation7 + $0x1a60] sm:$0xff]
        %v5205 = vld [vmem:[#allocation7 + $0x1a68] sm:$0xff]
        %v5206 = vld [vmem:[#allocation7 + $0x1a70] sm:$0xff]
        %v5207 = vld [vmem:[#allocation7 + $0x1a78] sm:$0xff]
        %v5208 = vld [vmem:[#allocation7 + $0x1a80] sm:$0xff]
        %v5209 = vld [vmem:[#allocation7 + $0x1a88] sm:$0xff]
        %v5210 = vld [vmem:[#allocation7 + $0x1a90] sm:$0xff]
        %v5211 = vld [vmem:[#allocation7 + $0x1a98] sm:$0xff]
        %v5212 = vld [vmem:[#allocation7 + $0x1aa0] sm:$0xff]
        %v5213 = vld [vmem:[#allocation7 + $0x1aa8] sm:$0xff]
        %v5214 = vld [vmem:[#allocation7 + $0x1ab0] sm:$0xff]
        %v5215 = vld [vmem:[#allocation7 + $0x1ab8] sm:$0xff]
        %v5216 = vld [vmem:[#allocation7 + $0x1ac0] sm:$0xff]
        %v5217 = vld [vmem:[#allocation7 + $0x1ac8] sm:$0xff]
        %v5218 = vld [vmem:[#allocation7 + $0x1ad0] sm:$0xff]
        %v5219 = vld [vmem:[#allocation7 + $0x1ad8] sm:$0xff]
        %v5220 = vld [vmem:[#allocation7 + $0x1ae0] sm:$0xff]
        %v5221 = vld [vmem:[#allocation7 + $0x1ae8] sm:$0xff]
        %v5222 = vld [vmem:[#allocation7 + $0x1af0] sm:$0xff]
        %v5223 = vld [vmem:[#allocation7 + $0x1af8] sm:$0xff]
        %v5224 = vld [vmem:[#allocation7 + $0x1b00] sm:$0xff]
        %v5225 = vld [vmem:[#allocation7 + $0x1b08] sm:$0xff]
        %v5226 = vld [vmem:[#allocation7 + $0x1b10] sm:$0xff]
        %v5227 = vld [vmem:[#allocation7 + $0x1b18] sm:$0xff]
        %v5228 = vld [vmem:[#allocation7 + $0x1b20] sm:$0xff]
        %v5229 = vld [vmem:[#allocation7 + $0x1b28] sm:$0xff]
        %v5230 = vld [vmem:[#allocation7 + $0x1b30] sm:$0xff]
        %v5231 = vld [vmem:[#allocation7 + $0x1b38] sm:$0xff]
        %v5232 = vld [vmem:[#allocation7 + $0x1b40] sm:$0xff]
        %v5233 = vld [vmem:[#allocation7 + $0x1b48] sm:$0xff]
        %v5234 = vld [vmem:[#allocation7 + $0x1b50] sm:$0xff]
        %v5235 = vld [vmem:[#allocation7 + $0x1b58] sm:$0xff]
        %v5236 = vld [vmem:[#allocation7 + $0x1b60] sm:$0xff]
        %v5237 = vld [vmem:[#allocation7 + $0x1b68] sm:$0xff]
        %v5238 = vld [vmem:[#allocation7 + $0x1b70] sm:$0xff]
        %v5239 = vld [vmem:[#allocation7 + $0x1b78] sm:$0xff]
        %v5240 = vld [vmem:[#allocation7 + $0x1b80] sm:$0xff]
        %v5241 = vld [vmem:[#allocation7 + $0x1b88] sm:$0xff]
        %v5242 = vld [vmem:[#allocation7 + $0x1b90] sm:$0xff]
        %v5243 = vld [vmem:[#allocation7 + $0x1b98] sm:$0xff]
        %v5244 = vld [vmem:[#allocation7 + $0x1ba0] sm:$0xff]
        %v5245 = vld [vmem:[#allocation7 + $0x1ba8] sm:$0xff]
        %v5246 = vld [vmem:[#allocation7 + $0x1bb0] sm:$0xff]
        %v5247 = vld [vmem:[#allocation7 + $0x1bb8] sm:$0xff]
        %v5248 = vld [vmem:[#allocation7 + $0x1bc0] sm:$0xff]
        %v5249 = vld [vmem:[#allocation7 + $0x1bc8] sm:$0xff]
        %v5250 = vld [vmem:[#allocation7 + $0x1bd0] sm:$0xff]
        %v5251 = vld [vmem:[#allocation7 + $0x1bd8] sm:$0xff]
        %v5252 = vld [vmem:[#allocation7 + $0x1be0] sm:$0xff]
        %v5253 = vld [vmem:[#allocation7 + $0x1be8] sm:$0xff]
        %v5254 = vld [vmem:[#allocation7 + $0x1bf0] sm:$0xff]
        %v5255 = vld [vmem:[#allocation7 + $0x1bf8] sm:$0xff]
        %v5256 = vld [vmem:[#allocation7 + $0x1c00] sm:$0xff]
        %v5257 = vld [vmem:[#allocation7 + $0x1c08] sm:$0xff]
        %v5258 = vld [vmem:[#allocation7 + $0x1c10] sm:$0xff]
        %v5259 = vld [vmem:[#allocation7 + $0x1c18] sm:$0xff]
        %v5260 = vld [vmem:[#allocation7 + $0x1c20] sm:$0xff]
        %v5261 = vld [vmem:[#allocation7 + $0x1c28] sm:$0xff]
        %v5262 = vld [vmem:[#allocation7 + $0x1c30] sm:$0xff]
        %v5263 = vld [vmem:[#allocation7 + $0x1c38] sm:$0xff]
        %v5264 = vld [vmem:[#allocation7 + $0x1c40] sm:$0xff]
        %v5265 = vld [vmem:[#allocation7 + $0x1c48] sm:$0xff]
        %v5266 = vld [vmem:[#allocation7 + $0x1c50] sm:$0xff]
        %v5267 = vld [vmem:[#allocation7 + $0x1c58] sm:$0xff]
        %v5268 = vld [vmem:[#allocation7 + $0x1c60] sm:$0xff]
        %v5269 = vld [vmem:[#allocation7 + $0x1c68] sm:$0xff]
        %v5270 = vld [vmem:[#allocation7 + $0x1c70] sm:$0xff]
        %v5271 = vld [vmem:[#allocation7 + $0x1c78] sm:$0xff]
        %v5272 = vld [vmem:[#allocation7 + $0x1c80] sm:$0xff]
        %v5273 = vld [vmem:[#allocation7 + $0x1c88] sm:$0xff]
        %v5274 = vld [vmem:[#allocation7 + $0x1c90] sm:$0xff]
        %v5275 = vld [vmem:[#allocation7 + $0x1c98] sm:$0xff]
        %v5276 = vld [vmem:[#allocation7 + $0x1ca0] sm:$0xff]
        %v5277 = vld [vmem:[#allocation7 + $0x1ca8] sm:$0xff]
        %v5278 = vld [vmem:[#allocation7 + $0x1cb0] sm:$0xff]
        %v5279 = vld [vmem:[#allocation7 + $0x1cb8] sm:$0xff]
        %v5280 = vld [vmem:[#allocation7 + $0x1cc0] sm:$0xff]
        %v5281 = vld [vmem:[#allocation7 + $0x1cc8] sm:$0xff]
        %v5282 = vld [vmem:[#allocation7 + $0x1cd0] sm:$0xff]
        %v5283 = vld [vmem:[#allocation7 + $0x1cd8] sm:$0xff]
        %v5284 = vld [vmem:[#allocation7 + $0x1ce0] sm:$0xff]
        %v5285 = vld [vmem:[#allocation7 + $0x1ce8] sm:$0xff]
        %v5286 = vld [vmem:[#allocation7 + $0x1cf0] sm:$0xff]
        %v5287 = vld [vmem:[#allocation7 + $0x1cf8] sm:$0xff]
        %v5288 = vld [vmem:[#allocation7 + $0x1d00] sm:$0xff]
        %v5289 = vld [vmem:[#allocation7 + $0x1d08] sm:$0xff]
        %v5290 = vld [vmem:[#allocation7 + $0x1d10] sm:$0xff]
        %v5291 = vld [vmem:[#allocation7 + $0x1d18] sm:$0xff]
        %v5292 = vld [vmem:[#allocation7 + $0x1d20] sm:$0xff]
        %v5293 = vld [vmem:[#allocation7 + $0x1d28] sm:$0xff]
        %v5294 = vld [vmem:[#allocation7 + $0x1d30] sm:$0xff]
        %v5295 = vld [vmem:[#allocation7 + $0x1d38] sm:$0xff]
        %v5296 = vld [vmem:[#allocation7 + $0x1d40] sm:$0xff]
        %v5297 = vld [vmem:[#allocation7 + $0x1d48] sm:$0xff]
        %v5298 = vld [vmem:[#allocation7 + $0x1d50] sm:$0xff]
        %v5299 = vld [vmem:[#allocation7 + $0x1d58] sm:$0xff]
        %v5300 = vld [vmem:[#allocation7 + $0x1d60] sm:$0xff]
        %v5301 = vld [vmem:[#allocation7 + $0x1d68] sm:$0xff]
        %v5302 = vld [vmem:[#allocation7 + $0x1d70] sm:$0xff]
        %v5303 = vld [vmem:[#allocation7 + $0x1d78] sm:$0xff]
        %v5304 = vld [vmem:[#allocation7 + $0x1d80] sm:$0xff]
        %v5305 = vld [vmem:[#allocation7 + $0x1d88] sm:$0xff]
        %v5306 = vld [vmem:[#allocation7 + $0x1d90] sm:$0xff]
        %v5307 = vld [vmem:[#allocation7 + $0x1d98] sm:$0xff]
        %v5308 = vld [vmem:[#allocation7 + $0x1da0] sm:$0xff]
        %v5309 = vld [vmem:[#allocation7 + $0x1da8] sm:$0xff]
        %v5310 = vld [vmem:[#allocation7 + $0x1db0] sm:$0xff]
        %v5311 = vld [vmem:[#allocation7 + $0x1db8] sm:$0xff]
        %v5312 = vld [vmem:[#allocation7 + $0x1dc0] sm:$0xff]
        %v5313 = vld [vmem:[#allocation7 + $0x1dc8] sm:$0xff]
        %v5314 = vld [vmem:[#allocation7 + $0x1dd0] sm:$0xff]
        %v5315 = vld [vmem:[#allocation7 + $0x1dd8] sm:$0xff]
        %v5316 = vld [vmem:[#allocation7 + $0x1de0] sm:$0xff]
        %v5317 = vld [vmem:[#allocation7 + $0x1de8] sm:$0xff]
        %v5318 = vld [vmem:[#allocation7 + $0x1df0] sm:$0xff]
        %v5319 = vld [vmem:[#allocation7 + $0x1df8] sm:$0xff]
        %v5320 = vld [vmem:[#allocation7 + $0x1e00] sm:$0xff]
        %v5321 = vld [vmem:[#allocation7 + $0x1e08] sm:$0xff]
        %v5322 = vld [vmem:[#allocation7 + $0x1e10] sm:$0xff]
        %v5323 = vld [vmem:[#allocation7 + $0x1e18] sm:$0xff]
        %v5324 = vld [vmem:[#allocation7 + $0x1e20] sm:$0xff]
        %v5325 = vld [vmem:[#allocation7 + $0x1e28] sm:$0xff]
        %v5326 = vld [vmem:[#allocation7 + $0x1e30] sm:$0xff]
        %v5327 = vld [vmem:[#allocation7 + $0x1e38] sm:$0xff]
        %v5328 = vld [vmem:[#allocation7 + $0x1e40] sm:$0xff]
        %v5329 = vld [vmem:[#allocation7 + $0x1e48] sm:$0xff]
        %v5330 = vld [vmem:[#allocation7 + $0x1e50] sm:$0xff]
        %v5331 = vld [vmem:[#allocation7 + $0x1e58] sm:$0xff]
        %v5332 = vld [vmem:[#allocation7 + $0x1e60] sm:$0xff]
        %v5333 = vld [vmem:[#allocation7 + $0x1e68] sm:$0xff]
        %v5334 = vld [vmem:[#allocation7 + $0x1e70] sm:$0xff]
        %v5335 = vld [vmem:[#allocation7 + $0x1e78] sm:$0xff]
        %v5336 = vld [vmem:[#allocation7 + $0x1e80] sm:$0xff]
        %v5337 = vld [vmem:[#allocation7 + $0x1e88] sm:$0xff]
        %v5338 = vld [vmem:[#allocation7 + $0x1e90] sm:$0xff]
        %v5339 = vld [vmem:[#allocation7 + $0x1e98] sm:$0xff]
        %v5340 = vld [vmem:[#allocation7 + $0x1ea0] sm:$0xff]
        %v5341 = vld [vmem:[#allocation7 + $0x1ea8] sm:$0xff]
        %v5342 = vld [vmem:[#allocation7 + $0x1eb0] sm:$0xff]
        %v5343 = vld [vmem:[#allocation7 + $0x1eb8] sm:$0xff]
        %v5344 = vld [vmem:[#allocation7 + $0x1ec0] sm:$0xff]
        %v5345 = vld [vmem:[#allocation7 + $0x1ec8] sm:$0xff]
        %v5346 = vld [vmem:[#allocation7 + $0x1ed0] sm:$0xff]
        %v5347 = vld [vmem:[#allocation7 + $0x1ed8] sm:$0xff]
        %v5348 = vld [vmem:[#allocation7 + $0x1ee0] sm:$0xff]
        %v5349 = vld [vmem:[#allocation7 + $0x1ee8] sm:$0xff]
        %v5350 = vld [vmem:[#allocation7 + $0x1ef0] sm:$0xff]
        %v5351 = vld [vmem:[#allocation7 + $0x1ef8] sm:$0xff]
        %v5352 = vld [vmem:[#allocation7 + $0x1f00] sm:$0xff]
        %v5353 = vld [vmem:[#allocation7 + $0x1f08] sm:$0xff]
        %v5354 = vld [vmem:[#allocation7 + $0x1f10] sm:$0xff]
        %v5355 = vld [vmem:[#allocation7 + $0x1f18] sm:$0xff]
        %v5356 = vld [vmem:[#allocation7 + $0x1f20] sm:$0xff]
        %v5357 = vld [vmem:[#allocation7 + $0x1f28] sm:$0xff]
        %v5358 = vld [vmem:[#allocation7 + $0x1f30] sm:$0xff]
        %v5359 = vld [vmem:[#allocation7 + $0x1f38] sm:$0xff]
        %v5360 = vld [vmem:[#allocation7 + $0x1f40] sm:$0xff]
        %v5361 = vld [vmem:[#allocation7 + $0x1f48] sm:$0xff]
        %v5362 = vld [vmem:[#allocation7 + $0x1f50] sm:$0xff]
        %v5363 = vld [vmem:[#allocation7 + $0x1f58] sm:$0xff]
        %v5364 = vld [vmem:[#allocation7 + $0x1f60] sm:$0xff]
        %v5365 = vld [vmem:[#allocation7 + $0x1f68] sm:$0xff]
        %v5366 = vld [vmem:[#allocation7 + $0x1f70] sm:$0xff]
        %v5367 = vld [vmem:[#allocation7 + $0x1f78] sm:$0xff]
        %v5368 = vld [vmem:[#allocation7 + $0x1f80] sm:$0xff]
        %v5369 = vld [vmem:[#allocation7 + $0x1f88] sm:$0xff]
        %v5370 = vld [vmem:[#allocation7 + $0x1f90] sm:$0xff]
        %v5371 = vld [vmem:[#allocation7 + $0x1f98] sm:$0xff]
        %v5372 = vld [vmem:[#allocation7 + $0x1fa0] sm:$0xff]
        %v5373 = vld [vmem:[#allocation7 + $0x1fa8] sm:$0xff]
        %v5374 = vld [vmem:[#allocation7 + $0x1fb0] sm:$0xff]
        %v5375 = vld [vmem:[#allocation7 + $0x1fb8] sm:$0xff]
        %v5376 = vld [vmem:[#allocation7 + $0x1fc0] sm:$0xff]
        %v5377 = vld [vmem:[#allocation7 + $0x1fc8] sm:$0xff]
        %v5378 = vld [vmem:[#allocation7 + $0x1fd0] sm:$0xff]
        %v5379 = vld [vmem:[#allocation7 + $0x1fd8] sm:$0xff]
        %v5380 = vld [vmem:[#allocation7 + $0x1fe0] sm:$0xff]
        %v5381 = vld [vmem:[#allocation7 + $0x1fe8] sm:$0xff]
        %v5382 = vld [vmem:[#allocation7 + $0x1ff0] sm:$0xff]
        %v5383 = vld [vmem:[#allocation7 + $0x1ff8] sm:$0xff]
        %v5384 = vld [vmem:[#allocation7 + $0x2000] sm:$0xff]
        %v5385 = vld [vmem:[#allocation7 + $0x2008] sm:$0xff]
        %v5386 = vld [vmem:[#allocation7 + $0x2010] sm:$0xff]
        %v5387 = vld [vmem:[#allocation7 + $0x2018] sm:$0xff]
        %v5388 = vld [vmem:[#allocation7 + $0x2020] sm:$0xff]
        %v5389 = vld [vmem:[#allocation7 + $0x2028] sm:$0xff]
        %v5390 = vld [vmem:[#allocation7 + $0x2030] sm:$0xff]
        %v5391 = vld [vmem:[#allocation7 + $0x2038] sm:$0xff]
        %v5392 = vld [vmem:[#allocation7 + $0x2040] sm:$0xff]
        %v5393 = vld [vmem:[#allocation7 + $0x2048] sm:$0xff]
        %v5394 = vld [vmem:[#allocation7 + $0x2050] sm:$0xff]
        %v5395 = vld [vmem:[#allocation7 + $0x2058] sm:$0xff]
        %v5396 = vld [vmem:[#allocation7 + $0x2060] sm:$0xff]
        %v5397 = vld [vmem:[#allocation7 + $0x2068] sm:$0xff]
        %v5398 = vld [vmem:[#allocation7 + $0x2070] sm:$0xff]
        %v5399 = vld [vmem:[#allocation7 + $0x2078] sm:$0xff]
        %v5400 = vld [vmem:[#allocation7 + $0x2080] sm:$0xff]
        %v5401 = vld [vmem:[#allocation7 + $0x2088] sm:$0xff]
        %v5402 = vld [vmem:[#allocation7 + $0x2090] sm:$0xff]
        %v5403 = vld [vmem:[#allocation7 + $0x2098] sm:$0xff]
        %v5404 = vld [vmem:[#allocation7 + $0x20a0] sm:$0xff]
        %v5405 = vld [vmem:[#allocation7 + $0x20a8] sm:$0xff]
        %v5406 = vld [vmem:[#allocation7 + $0x20b0] sm:$0xff]
        %v5407 = vld [vmem:[#allocation7 + $0x20b8] sm:$0xff]
        %v5408 = vld [vmem:[#allocation7 + $0x20c0] sm:$0xff]
        %v5409 = vld [vmem:[#allocation7 + $0x20c8] sm:$0xff]
        %v5410 = vld [vmem:[#allocation7 + $0x20d0] sm:$0xff]
        %v5411 = vld [vmem:[#allocation7 + $0x20d8] sm:$0xff]
        %v5412 = vld [vmem:[#allocation7 + $0x20e0] sm:$0xff]
        %v5413 = vld [vmem:[#allocation7 + $0x20e8] sm:$0xff]
        %v5414 = vld [vmem:[#allocation7 + $0x20f0] sm:$0xff]
        %v5415 = vld [vmem:[#allocation7 + $0x20f8] sm:$0xff]
        %v5416 = vld [vmem:[#allocation7 + $0x2100] sm:$0xff]
        %v5417 = vld [vmem:[#allocation7 + $0x2108] sm:$0xff]
        %v5418 = vld [vmem:[#allocation7 + $0x2110] sm:$0xff]
        %v5419 = vld [vmem:[#allocation7 + $0x2118] sm:$0xff]
        %v5420 = vld [vmem:[#allocation7 + $0x2120] sm:$0xff]
        %v5421 = vld [vmem:[#allocation7 + $0x2128] sm:$0xff]
        %v5422 = vld [vmem:[#allocation7 + $0x2130] sm:$0xff]
        %v5423 = vld [vmem:[#allocation7 + $0x2138] sm:$0xff]
        %v5424 = vld [vmem:[#allocation7 + $0x2140] sm:$0xff]
        %v5425 = vld [vmem:[#allocation7 + $0x2148] sm:$0xff]
        %v5426 = vld [vmem:[#allocation7 + $0x2150] sm:$0xff]
        %v5427 = vld [vmem:[#allocation7 + $0x2158] sm:$0xff]
        %v5428 = vld [vmem:[#allocation7 + $0x2160] sm:$0xff]
        %v5429 = vld [vmem:[#allocation7 + $0x2168] sm:$0xff]
        %v5430 = vld [vmem:[#allocation7 + $0x2170] sm:$0xff]
        %v5431 = vld [vmem:[#allocation7 + $0x2178] sm:$0xff]
        %v5432 = vld [vmem:[#allocation7 + $0x2180] sm:$0xff]
        %v5433 = vld [vmem:[#allocation7 + $0x2188] sm:$0xff]
        %v5434 = vld [vmem:[#allocation7 + $0x2190] sm:$0xff]
        %v5435 = vld [vmem:[#allocation7 + $0x2198] sm:$0xff]
        %v5436 = vld [vmem:[#allocation7 + $0x21a0] sm:$0xff]
        %v5437 = vld [vmem:[#allocation7 + $0x21a8] sm:$0xff]
        %v5438 = vld [vmem:[#allocation7 + $0x21b0] sm:$0xff]
        %v5439 = vld [vmem:[#allocation7 + $0x21b8] sm:$0xff]
        %v5440 = vld [vmem:[#allocation7 + $0x21c0] sm:$0xff]
        %v5441 = vld [vmem:[#allocation7 + $0x21c8] sm:$0xff]
        %v5442 = vld [vmem:[#allocation7 + $0x21d0] sm:$0xff]
        %v5443 = vld [vmem:[#allocation7 + $0x21d8] sm:$0xff]
        %v5444 = vld [vmem:[#allocation7 + $0x21e0] sm:$0xff]
        %v5445 = vld [vmem:[#allocation7 + $0x21e8] sm:$0xff]
        %v5446 = vld [vmem:[#allocation7 + $0x21f0] sm:$0xff]
        %v5447 = vld [vmem:[#allocation7 + $0x21f8] sm:$0xff]
        %v5448 = vld [vmem:[#allocation7 + $0x2200] sm:$0xff]
        %v5449 = vld [vmem:[#allocation7 + $0x2208] sm:$0xff]
        %v5450 = vld [vmem:[#allocation7 + $0x2210] sm:$0xff]
        %v5451 = vld [vmem:[#allocation7 + $0x2218] sm:$0xff]
        %v5452 = vld [vmem:[#allocation7 + $0x2220] sm:$0xff]
        %v5453 = vld [vmem:[#allocation7 + $0x2228] sm:$0xff]
        %v5454 = vld [vmem:[#allocation7 + $0x2230] sm:$0xff]
        %v5455 = vld [vmem:[#allocation7 + $0x2238] sm:$0xff]
        %v5456 = vld [vmem:[#allocation7 + $0x2240] sm:$0xff]
        %v5457 = vld [vmem:[#allocation7 + $0x2248] sm:$0xff]
        %v5458 = vld [vmem:[#allocation7 + $0x2250] sm:$0xff]
        %v5459 = vld [vmem:[#allocation7 + $0x2258] sm:$0xff]
        %v5460 = vld [vmem:[#allocation7 + $0x2260] sm:$0xff]
        %v5461 = vld [vmem:[#allocation7 + $0x2268] sm:$0xff]
        %v5462 = vld [vmem:[#allocation7 + $0x2270] sm:$0xff]
        %v5463 = vld [vmem:[#allocation7 + $0x2278] sm:$0xff]
        %v5464 = vld [vmem:[#allocation7 + $0x2280] sm:$0xff]
        %v5465 = vld [vmem:[#allocation7 + $0x2288] sm:$0xff]
        %v5466 = vld [vmem:[#allocation7 + $0x2290] sm:$0xff]
        %v5467 = vld [vmem:[#allocation7 + $0x2298] sm:$0xff]
        %v5468 = vld [vmem:[#allocation7 + $0x22a0] sm:$0xff]
        %v5469 = vld [vmem:[#allocation7 + $0x22a8] sm:$0xff]
        %v5470 = vld [vmem:[#allocation7 + $0x22b0] sm:$0xff]
        %v5471 = vld [vmem:[#allocation7 + $0x22b8] sm:$0xff]
        %v5472 = vld [vmem:[#allocation7 + $0x22c0] sm:$0xff]
        %v5473 = vld [vmem:[#allocation7 + $0x22c8] sm:$0xff]
        %v5474 = vld [vmem:[#allocation7 + $0x22d0] sm:$0xff]
        %v5475 = vld [vmem:[#allocation7 + $0x22d8] sm:$0xff]
        %v5476 = vld [vmem:[#allocation7 + $0x22e0] sm:$0xff]
        %v5477 = vld [vmem:[#allocation7 + $0x22e8] sm:$0xff]
        %v5478 = vld [vmem:[#allocation7 + $0x22f0] sm:$0xff]
        %v5479 = vld [vmem:[#allocation7 + $0x22f8] sm:$0xff]
        %v5480 = vld [vmem:[#allocation7 + $0x2300] sm:$0xff]
        %v5481 = vld [vmem:[#allocation7 + $0x2308] sm:$0xff]
        %v5482 = vld [vmem:[#allocation7 + $0x2310] sm:$0xff]
        %v5483 = vld [vmem:[#allocation7 + $0x2318] sm:$0xff]
        %v5484 = vld [vmem:[#allocation7 + $0x2320] sm:$0xff]
        %v5485 = vld [vmem:[#allocation7 + $0x2328] sm:$0xff]
        %v5486 = vld [vmem:[#allocation7 + $0x2330] sm:$0xff]
        %v5487 = vld [vmem:[#allocation7 + $0x2338] sm:$0xff]
        %v5488 = vld [vmem:[#allocation7 + $0x2340] sm:$0xff]
        %v5489 = vld [vmem:[#allocation7 + $0x2348] sm:$0xff]
        %v5490 = vld [vmem:[#allocation7 + $0x2350] sm:$0xff]
        %v5491 = vld [vmem:[#allocation7 + $0x2358] sm:$0xff]
        %v5492 = vld [vmem:[#allocation7 + $0x2360] sm:$0xff]
        %v5493 = vld [vmem:[#allocation7 + $0x2368] sm:$0xff]
        %v5494 = vld [vmem:[#allocation7 + $0x2370] sm:$0xff]
        %v5495 = vld [vmem:[#allocation7 + $0x2378] sm:$0xff]
        %v5496 = vld [vmem:[#allocation7 + $0x2380] sm:$0xff]
        %v5497 = vld [vmem:[#allocation7 + $0x2388] sm:$0xff]
        %v5498 = vld [vmem:[#allocation7 + $0x2390] sm:$0xff]
        %v5499 = vld [vmem:[#allocation7 + $0x2398] sm:$0xff]
        %v5500 = vld [vmem:[#allocation7 + $0x23a0] sm:$0xff]
        %v5501 = vld [vmem:[#allocation7 + $0x23a8] sm:$0xff]
        %v5502 = vld [vmem:[#allocation7 + $0x23b0] sm:$0xff]
        %v5503 = vld [vmem:[#allocation7 + $0x23b8] sm:$0xff]
        %v5504 = vld [vmem:[#allocation7 + $0x23c0] sm:$0xff]
        %v5505 = vld [vmem:[#allocation7 + $0x23c8] sm:$0xff]
        %v5506 = vld [vmem:[#allocation7 + $0x23d0] sm:$0xff]
        %v5507 = vld [vmem:[#allocation7 + $0x23d8] sm:$0xff]
        %v5508 = vld [vmem:[#allocation7 + $0x23e0] sm:$0xff]
        %v5509 = vld [vmem:[#allocation7 + $0x23e8] sm:$0xff]
        %v5510 = vld [vmem:[#allocation7 + $0x23f0] sm:$0xff]
        %v5511 = vld [vmem:[#allocation7 + $0x23f8] sm:$0xff]
        %v5512 = vld [vmem:[#allocation7 + $0x2400] sm:$0xff]
        %v5513 = vld [vmem:[#allocation7 + $0x2408] sm:$0xff]
        %v5514 = vld [vmem:[#allocation7 + $0x2410] sm:$0xff]
        %v5515 = vld [vmem:[#allocation7 + $0x2418] sm:$0xff]
        %v5516 = vld [vmem:[#allocation7 + $0x2420] sm:$0xff]
        %v5517 = vld [vmem:[#allocation7 + $0x2428] sm:$0xff]
        %v5518 = vld [vmem:[#allocation7 + $0x2430] sm:$0xff]
        %v5519 = vld [vmem:[#allocation7 + $0x2438] sm:$0xff]
        %v5520 = vld [vmem:[#allocation7 + $0x2440] sm:$0xff]
        %v5521 = vld [vmem:[#allocation7 + $0x2448] sm:$0xff]
        %v5522 = vld [vmem:[#allocation7 + $0x2450] sm:$0xff]
        %v5523 = vld [vmem:[#allocation7 + $0x2458] sm:$0xff]
        %v5524 = vld [vmem:[#allocation7 + $0x2460] sm:$0xff]
        %v5525 = vld [vmem:[#allocation7 + $0x2468] sm:$0xff]
        %v5526 = vld [vmem:[#allocation7 + $0x2470] sm:$0xff]
        %v5527 = vld [vmem:[#allocation7 + $0x2478] sm:$0xff]
        %v5528 = vld [vmem:[#allocation7 + $0x2480] sm:$0xff]
        %v5529 = vld [vmem:[#allocation7 + $0x2488] sm:$0xff]
        %v5530 = vld [vmem:[#allocation7 + $0x2490] sm:$0xff]
        %v5531 = vld [vmem:[#allocation7 + $0x2498] sm:$0xff]
        %v5532 = vld [vmem:[#allocation7 + $0x24a0] sm:$0xff]
        %v5533 = vld [vmem:[#allocation7 + $0x24a8] sm:$0xff]
        %v5534 = vld [vmem:[#allocation7 + $0x24b0] sm:$0xff]
        %v5535 = vld [vmem:[#allocation7 + $0x24b8] sm:$0xff]
        %v5536 = vld [vmem:[#allocation7 + $0x24c0] sm:$0xff]
        %v5537 = vld [vmem:[#allocation7 + $0x24c8] sm:$0xff]
        %v5538 = vld [vmem:[#allocation7 + $0x24d0] sm:$0xff]
        %v5539 = vld [vmem:[#allocation7 + $0x24d8] sm:$0xff]
        %v5540 = vld [vmem:[#allocation7 + $0x24e0] sm:$0xff]
        %v5541 = vld [vmem:[#allocation7 + $0x24e8] sm:$0xff]
        %v5542 = vld [vmem:[#allocation7 + $0x24f0] sm:$0xff]
        %v5543 = vld [vmem:[#allocation7 + $0x24f8] sm:$0xff]
        %v5544 = vld [vmem:[#allocation7 + $0x2500] sm:$0xff]
        %v5545 = vld [vmem:[#allocation7 + $0x2508] sm:$0xff]
        %v5546 = vld [vmem:[#allocation7 + $0x2510] sm:$0xff]
        %v5547 = vld [vmem:[#allocation7 + $0x2518] sm:$0xff]
        %v5548 = vld [vmem:[#allocation7 + $0x2520] sm:$0xff]
        %v5549 = vld [vmem:[#allocation7 + $0x2528] sm:$0xff]
        %v5550 = vld [vmem:[#allocation7 + $0x2530] sm:$0xff]
        %v5551 = vld [vmem:[#allocation7 + $0x2538] sm:$0xff]
        %v5552 = vld [vmem:[#allocation7 + $0x2540] sm:$0xff]
        %v5553 = vld [vmem:[#allocation7 + $0x2548] sm:$0xff]
        %v5554 = vld [vmem:[#allocation7 + $0x2550] sm:$0xff]
        %v5555 = vld [vmem:[#allocation7 + $0x2558] sm:$0xff]
        %v5556 = vld [vmem:[#allocation7 + $0x2560] sm:$0xff]
        %v5557 = vld [vmem:[#allocation7 + $0x2568] sm:$0xff]
        %v5558 = vld [vmem:[#allocation7 + $0x2570] sm:$0xff]
        %v5559 = vld [vmem:[#allocation7 + $0x2578] sm:$0xff]
        %v5560 = vld [vmem:[#allocation7 + $0x2580] sm:$0xff]
        %v5561 = vld [vmem:[#allocation7 + $0x2588] sm:$0xff]
        %v5562 = vld [vmem:[#allocation7 + $0x2590] sm:$0xff]
        %v5563 = vld [vmem:[#allocation7 + $0x2598] sm:$0xff]
        %v5564 = vld [vmem:[#allocation7 + $0x25a0] sm:$0xff]
        %v5565 = vld [vmem:[#allocation7 + $0x25a8] sm:$0xff]
        %v5566 = vld [vmem:[#allocation7 + $0x25b0] sm:$0xff]
        %v5567 = vld [vmem:[#allocation7 + $0x25b8] sm:$0xff]
        %v5568 = vld [vmem:[#allocation7 + $0x25c0] sm:$0xff]
        %v5569 = vld [vmem:[#allocation7 + $0x25c8] sm:$0xff]
        %v5570 = vld [vmem:[#allocation7 + $0x25d0] sm:$0xff]
        %v5571 = vld [vmem:[#allocation7 + $0x25d8] sm:$0xff]
        %v5572 = vld [vmem:[#allocation7 + $0x25e0] sm:$0xff]
        %v5573 = vld [vmem:[#allocation7 + $0x25e8] sm:$0xff]
        %v5574 = vld [vmem:[#allocation7 + $0x25f0] sm:$0xff]
        %v5575 = vld [vmem:[#allocation7 + $0x25f8] sm:$0xff]
        %v5576 = vld [vmem:[#allocation7 + $0x2600] sm:$0xff]
        %v5577 = vld [vmem:[#allocation7 + $0x2608] sm:$0xff]
        %v5578 = vld [vmem:[#allocation7 + $0x2610] sm:$0xff]
        %v5579 = vld [vmem:[#allocation7 + $0x2618] sm:$0xff]
        %v5580 = vld [vmem:[#allocation7 + $0x2620] sm:$0xff]
        %v5581 = vld [vmem:[#allocation7 + $0x2628] sm:$0xff]
        %v5582 = vld [vmem:[#allocation7 + $0x2630] sm:$0xff]
        %v5583 = vld [vmem:[#allocation7 + $0x2638] sm:$0xff]
        %v5584 = vld [vmem:[#allocation7 + $0x2640] sm:$0xff]
        %v5585 = vld [vmem:[#allocation7 + $0x2648] sm:$0xff]
        %v5586 = vld [vmem:[#allocation7 + $0x2650] sm:$0xff]
        %v5587 = vld [vmem:[#allocation7 + $0x2658] sm:$0xff]
        %v5588 = vld [vmem:[#allocation7 + $0x2660] sm:$0xff]
        %v5589 = vld [vmem:[#allocation7 + $0x2668] sm:$0xff]
        %v5590 = vld [vmem:[#allocation7 + $0x2670] sm:$0xff]
        %v5591 = vld [vmem:[#allocation7 + $0x2678] sm:$0xff]
        %v5592 = vld [vmem:[#allocation7 + $0x2680] sm:$0xff]
        %v5593 = vld [vmem:[#allocation7 + $0x2688] sm:$0xff]
        %v5594 = vld [vmem:[#allocation7 + $0x2690] sm:$0xff]
        %v5595 = vld [vmem:[#allocation7 + $0x2698] sm:$0xff]
        %v5596 = vld [vmem:[#allocation7 + $0x26a0] sm:$0xff]
        %v5597 = vld [vmem:[#allocation7 + $0x26a8] sm:$0xff]
        %v5598 = vld [vmem:[#allocation7 + $0x26b0] sm:$0xff]
        %v5599 = vld [vmem:[#allocation7 + $0x26b8] sm:$0xff]
        %v5600 = vld [vmem:[#allocation7 + $0x26c0] sm:$0xff]
        %v5601 = vld [vmem:[#allocation7 + $0x26c8] sm:$0xff]
        %v5602 = vld [vmem:[#allocation7 + $0x26d0] sm:$0xff]
        %v5603 = vld [vmem:[#allocation7 + $0x26d8] sm:$0xff]
        %v5604 = vld [vmem:[#allocation7 + $0x26e0] sm:$0xff]
        %v5605 = vld [vmem:[#allocation7 + $0x26e8] sm:$0xff]
        %v5606 = vld [vmem:[#allocation7 + $0x26f0] sm:$0xff]
        %v5607 = vld [vmem:[#allocation7 + $0x26f8] sm:$0xff]
        %v5608 = vld [vmem:[#allocation7 + $0x2700] sm:$0xff]
        %v5609 = vld [vmem:[#allocation7 + $0x2708] sm:$0xff]
        %v5610 = vld [vmem:[#allocation7 + $0x2710] sm:$0xff]
        %v5611 = vld [vmem:[#allocation7 + $0x2718] sm:$0xff]
        %v5612 = vld [vmem:[#allocation7 + $0x2720] sm:$0xff]
        %v5613 = vld [vmem:[#allocation7 + $0x2728] sm:$0xff]
        %v5614 = vld [vmem:[#allocation7 + $0x2730] sm:$0xff]
        %v5615 = vld [vmem:[#allocation7 + $0x2738] sm:$0xff]
        %v5616 = vld [vmem:[#allocation7 + $0x2740] sm:$0xff]
        %v5617 = vld [vmem:[#allocation7 + $0x2748] sm:$0xff]
        %v5618 = vld [vmem:[#allocation7 + $0x2750] sm:$0xff]
        %v5619 = vld [vmem:[#allocation7 + $0x2758] sm:$0xff]
        %v5620 = vld [vmem:[#allocation7 + $0x2760] sm:$0xff]
        %v5621 = vld [vmem:[#allocation7 + $0x2768] sm:$0xff]
        %v5622 = vld [vmem:[#allocation7 + $0x2770] sm:$0xff]
        %v5623 = vld [vmem:[#allocation7 + $0x2778] sm:$0xff]
        %v5624 = vld [vmem:[#allocation7 + $0x2780] sm:$0xff]
        %v5625 = vld [vmem:[#allocation7 + $0x2788] sm:$0xff]
        %v5626 = vld [vmem:[#allocation7 + $0x2790] sm:$0xff]
        %v5627 = vld [vmem:[#allocation7 + $0x2798] sm:$0xff]
        %v5628 = vld [vmem:[#allocation7 + $0x27a0] sm:$0xff]
        %v5629 = vld [vmem:[#allocation7 + $0x27a8] sm:$0xff]
        %v5630 = vld [vmem:[#allocation7 + $0x27b0] sm:$0xff]
        %v5631 = vld [vmem:[#allocation7 + $0x27b8] sm:$0xff]
        %v5632 = vld [vmem:[#allocation7 + $0x27c0] sm:$0xff]
        %v5633 = vld [vmem:[#allocation7 + $0x27c8] sm:$0xff]
        %v5634 = vld [vmem:[#allocation7 + $0x27d0] sm:$0xff]
        %v5635 = vld [vmem:[#allocation7 + $0x27d8] sm:$0xff]
        %v5636 = vld [vmem:[#allocation7 + $0x27e0] sm:$0xff]
        %v5637 = vld [vmem:[#allocation7 + $0x27e8] sm:$0xff]
        %v5638 = vld [vmem:[#allocation7 + $0x27f0] sm:$0xff]
        %v5639 = vld [vmem:[#allocation7 + $0x27f8] sm:$0xff]
        %v5640 = vld [vmem:[#allocation7 + $0x2800] sm:$0xff]
        %v5641 = vld [vmem:[#allocation7 + $0x2808] sm:$0xff]
        %v5642 = vld [vmem:[#allocation7 + $0x2810] sm:$0xff]
        %v5643 = vld [vmem:[#allocation7 + $0x2818] sm:$0xff]
        %v5644 = vld [vmem:[#allocation7 + $0x2820] sm:$0xff]
        %v5645 = vld [vmem:[#allocation7 + $0x2828] sm:$0xff]
        %v5646 = vld [vmem:[#allocation7 + $0x2830] sm:$0xff]
        %v5647 = vld [vmem:[#allocation7 + $0x2838] sm:$0xff]
        %v5648 = vld [vmem:[#allocation7 + $0x2840] sm:$0xff]
        %v5649 = vld [vmem:[#allocation7 + $0x2848] sm:$0xff]
        %v5650 = vld [vmem:[#allocation7 + $0x2850] sm:$0xff]
        %v5651 = vld [vmem:[#allocation7 + $0x2858] sm:$0xff]
        %v5652 = vld [vmem:[#allocation7 + $0x2860] sm:$0xff]
        %v5653 = vld [vmem:[#allocation7 + $0x2868] sm:$0xff]
        %v5654 = vld [vmem:[#allocation7 + $0x2870] sm:$0xff]
        %v5655 = vld [vmem:[#allocation7 + $0x2878] sm:$0xff]
        %v5656 = vld [vmem:[#allocation7 + $0x2880] sm:$0xff]
        %v5657 = vld [vmem:[#allocation7 + $0x2888] sm:$0xff]
        %v5658 = vld [vmem:[#allocation7 + $0x2890] sm:$0xff]
        %v5659 = vld [vmem:[#allocation7 + $0x2898] sm:$0xff]
        %v5660 = vld [vmem:[#allocation7 + $0x28a0] sm:$0xff]
        %v5661 = vld [vmem:[#allocation7 + $0x28a8] sm:$0xff]
        %v5662 = vld [vmem:[#allocation7 + $0x28b0] sm:$0xff]
        %v5663 = vld [vmem:[#allocation7 + $0x28b8] sm:$0xff]
        %v5664 = vld [vmem:[#allocation7 + $0x28c0] sm:$0xff]
        %v5665 = vld [vmem:[#allocation7 + $0x28c8] sm:$0xff]
        %v5666 = vld [vmem:[#allocation7 + $0x28d0] sm:$0xff]
        %v5667 = vld [vmem:[#allocation7 + $0x28d8] sm:$0xff]
        %v5668 = vld [vmem:[#allocation7 + $0x28e0] sm:$0xff]
        %v5669 = vld [vmem:[#allocation7 + $0x28e8] sm:$0xff]
        %v5670 = vld [vmem:[#allocation7 + $0x28f0] sm:$0xff]
        %v5671 = vld [vmem:[#allocation7 + $0x28f8] sm:$0xff]
        %v5672 = vld [vmem:[#allocation7 + $0x2900] sm:$0xff]
        %v5673 = vld [vmem:[#allocation7 + $0x2908] sm:$0xff]
        %v5674 = vld [vmem:[#allocation7 + $0x2910] sm:$0xff]
        %v5675 = vld [vmem:[#allocation7 + $0x2918] sm:$0xff]
        %v5676 = vld [vmem:[#allocation7 + $0x2920] sm:$0xff]
        %v5677 = vld [vmem:[#allocation7 + $0x2928] sm:$0xff]
        %v5678 = vld [vmem:[#allocation7 + $0x2930] sm:$0xff]
        %v5679 = vld [vmem:[#allocation7 + $0x2938] sm:$0xff]
        %v5680 = vld [vmem:[#allocation7 + $0x2940] sm:$0xff]
        %v5681 = vld [vmem:[#allocation7 + $0x2948] sm:$0xff]
        %v5682 = vld [vmem:[#allocation7 + $0x2950] sm:$0xff]
        %v5683 = vld [vmem:[#allocation7 + $0x2958] sm:$0xff]
        %v5684 = vld [vmem:[#allocation7 + $0x2960] sm:$0xff]
        %v5685 = vld [vmem:[#allocation7 + $0x2968] sm:$0xff]
        %v5686 = vld [vmem:[#allocation7 + $0x2970] sm:$0xff]
        %v5687 = vld [vmem:[#allocation7 + $0x2978] sm:$0xff]
        %v5688 = vld [vmem:[#allocation7 + $0x2980] sm:$0xff]
        %v5689 = vld [vmem:[#allocation7 + $0x2988] sm:$0xff]
        %v5690 = vld [vmem:[#allocation7 + $0x2990] sm:$0xff]
        %v5691 = vld [vmem:[#allocation7 + $0x2998] sm:$0xff]
        %v5692 = vld [vmem:[#allocation7 + $0x29a0] sm:$0xff]
        %v5693 = vld [vmem:[#allocation7 + $0x29a8] sm:$0xff]
        %v5694 = vld [vmem:[#allocation7 + $0x29b0] sm:$0xff]
        %v5695 = vld [vmem:[#allocation7 + $0x29b8] sm:$0xff]
        %v5696 = vld [vmem:[#allocation7 + $0x29c0] sm:$0xff]
        %v5697 = vld [vmem:[#allocation7 + $0x29c8] sm:$0xff]
        %v5698 = vld [vmem:[#allocation7 + $0x29d0] sm:$0xff]
        %v5699 = vld [vmem:[#allocation7 + $0x29d8] sm:$0xff]
        %v5700 = vld [vmem:[#allocation7 + $0x29e0] sm:$0xff]
        %v5701 = vld [vmem:[#allocation7 + $0x29e8] sm:$0xff]
        %v5702 = vld [vmem:[#allocation7 + $0x29f0] sm:$0xff]
        %v5703 = vld [vmem:[#allocation7 + $0x29f8] sm:$0xff]
        %v5704 = vld [vmem:[#allocation7 + $0x2a00] sm:$0xff]
        %v5705 = vld [vmem:[#allocation7 + $0x2a08] sm:$0xff]
        %v5706 = vld [vmem:[#allocation7 + $0x2a10] sm:$0xff]
        %v5707 = vld [vmem:[#allocation7 + $0x2a18] sm:$0xff]
        %v5708 = vld [vmem:[#allocation7 + $0x2a20] sm:$0xff]
        %v5709 = vld [vmem:[#allocation7 + $0x2a28] sm:$0xff]
        %v5710 = vld [vmem:[#allocation7 + $0x2a30] sm:$0xff]
        %v5711 = vld [vmem:[#allocation7 + $0x2a38] sm:$0xff]
        %v5712 = vld [vmem:[#allocation7 + $0x2a40] sm:$0xff]
        %v5713 = vld [vmem:[#allocation7 + $0x2a48] sm:$0xff]
        %v5714 = vld [vmem:[#allocation7 + $0x2a50] sm:$0xff]
        %v5715 = vld [vmem:[#allocation7 + $0x2a58] sm:$0xff]
        %v5716 = vld [vmem:[#allocation7 + $0x2a60] sm:$0xff]
        %v5717 = vld [vmem:[#allocation7 + $0x2a68] sm:$0xff]
        %v5718 = vld [vmem:[#allocation7 + $0x2a70] sm:$0xff]
        %v5719 = vld [vmem:[#allocation7 + $0x2a78] sm:$0xff]
        %v5720 = vld [vmem:[#allocation7 + $0x2a80] sm:$0xff]
        %v5721 = vld [vmem:[#allocation7 + $0x2a88] sm:$0xff]
        %v5722 = vld [vmem:[#allocation7 + $0x2a90] sm:$0xff]
        %v5723 = vld [vmem:[#allocation7 + $0x2a98] sm:$0xff]
        %v5724 = vld [vmem:[#allocation7 + $0x2aa0] sm:$0xff]
        %v5725 = vld [vmem:[#allocation7 + $0x2aa8] sm:$0xff]
        %v5726 = vld [vmem:[#allocation7 + $0x2ab0] sm:$0xff]
        %v5727 = vld [vmem:[#allocation7 + $0x2ab8] sm:$0xff]
        %v5728 = vld [vmem:[#allocation7 + $0x2ac0] sm:$0xff]
        %v5729 = vld [vmem:[#allocation7 + $0x2ac8] sm:$0xff]
        %v5730 = vld [vmem:[#allocation7 + $0x2ad0] sm:$0xff]
        %v5731 = vld [vmem:[#allocation7 + $0x2ad8] sm:$0xff]
        %v5733 = vperm.slane %v373, 0
        %v5734 = vperm.slane %v373, 1
        %v5735 = vperm.slane %v373, 2
        %v5736 = vperm.slane %v373, 3
        %v5737 = vperm.slane %v373, 4
        %v5738 = vperm.slane %v373, 5
        %v5739 = vperm.slane %v373, 6
        %v5748 = vsel %vm790, %v4359, 0
        %5750 = vmatpush.msra.mxu0 %v4465
        %5751 = vmatpush.msra.mxu0 %v4458
        %5752 = vmatpush.msra.mxu0 %v4451
        %5753 = vmatpush.msra.mxu0 %v4444
        %5754 = vmatpush.msra.mxu0 %v4437
        %5755 = vmatpush.msra.mxu0 %v4430
        %5756 = vmatpush.msra.mxu0 %v4423
        %5757 = vmatpush.msra.mxu0 %v4416
        %5758 = vmatpush.msra.mxu0 %v4409
        %5759 = vmatpush.msra.mxu0 %v4402
        %5760 = vmatpush.msra.mxu0 %v4395
        %5761 = vmatpush.msra.mxu0 %v4388
        %5762 = vmatpush.msra.mxu0 %v4381
        %5763 = vmatpush.msra.mxu0 %v4374
        %5764 = vmatpush.msra.mxu0 %v4367
        %5765 = vmatpush.msra.mxu0 %v4360
        %5766 = vmatmul.f32.gmra.mxu0 %v4347
        %v5767 = vpop.f32.mrf.mxu0
        %v5768 = vadd.f32 %v5733, %v5767
        %5769 = vdwg.mxu0
        %5770 = vmatpush.msra.mxu0 %v4577
        %5771 = vmatpush.msra.mxu0 %v4570
        %5772 = vmatpush.msra.mxu0 %v4563
        %5773 = vmatpush.msra.mxu0 %v4556
        %5774 = vmatpush.msra.mxu0 %v4549
        %5775 = vmatpush.msra.mxu0 %v4542
        %5776 = vmatpush.msra.mxu0 %v4535
        %5777 = vmatpush.msra.mxu0 %v4528
        %5778 = vmatpush.msra.mxu0 %v4521
        %5779 = vmatpush.msra.mxu0 %v4514
        %5780 = vmatpush.msra.mxu0 %v4507
        %5781 = vmatpush.msra.mxu0 %v4500
        %5782 = vmatpush.msra.mxu0 %v4493
        %5783 = vmatpush.msra.mxu0 %v4486
        %5784 = vmatpush.msra.mxu0 %v4479
        %5785 = vmatpush.msra.mxu0 %v4472
        %5786 = vmatmul.f32.gmra.mxu0 %v4348
        %v5787 = vpop.f32.mrf.mxu0
        %v5788 = vadd.f32 %v5768, %v5787
        %5789 = vdwg.mxu0
        %5790 = vmatpush.msra.mxu0 %v4689
        %5791 = vmatpush.msra.mxu0 %v4682
        %5792 = vmatpush.msra.mxu0 %v4675
        %5793 = vmatpush.msra.mxu0 %v4668
        %5794 = vmatpush.msra.mxu0 %v4661
        %5795 = vmatpush.msra.mxu0 %v4654
        %5796 = vmatpush.msra.mxu0 %v4647
        %5797 = vmatpush.msra.mxu0 %v4640
        %5798 = vmatpush.msra.mxu0 %v4633
        %5799 = vmatpush.msra.mxu0 %v4626
        %5800 = vmatpush.msra.mxu0 %v4619
        %5801 = vmatpush.msra.mxu0 %v4612
        %5802 = vmatpush.msra.mxu0 %v4605
        %5803 = vmatpush.msra.mxu0 %v4598
        %5804 = vmatpush.msra.mxu0 %v4591
        %5805 = vmatpush.msra.mxu0 %v4584
        %5806 = vmatmul.f32.gmra.mxu0 %v4349
        %v5807 = vpop.f32.mrf.mxu0
        %v5808 = vadd.f32 %v5788, %v5807
        %5809 = vdwg.mxu0
        %5810 = vmatpush.msra.mxu0 %v4801
        %5811 = vmatpush.msra.mxu0 %v4794
        %5812 = vmatpush.msra.mxu0 %v4787
        %5813 = vmatpush.msra.mxu0 %v4780
        %5814 = vmatpush.msra.mxu0 %v4773
        %5815 = vmatpush.msra.mxu0 %v4766
        %5816 = vmatpush.msra.mxu0 %v4759
        %5817 = vmatpush.msra.mxu0 %v4752
        %5818 = vmatpush.msra.mxu0 %v4745
        %5819 = vmatpush.msra.mxu0 %v4738
        %5820 = vmatpush.msra.mxu0 %v4731
        %5821 = vmatpush.msra.mxu0 %v4724
        %5822 = vmatpush.msra.mxu0 %v4717
        %5823 = vmatpush.msra.mxu0 %v4710
        %5824 = vmatpush.msra.mxu0 %v4703
        %5825 = vmatpush.msra.mxu0 %v4696
        %5826 = vmatmul.f32.gmra.mxu0 %v4350
        %v5827 = vpop.f32.mrf.mxu0
        %v5828 = vadd.f32 %v5808, %v5827
        %5829 = vdwg.mxu0
        %5830 = vmatpush.msra.mxu0 %v4913
        %5831 = vmatpush.msra.mxu0 %v4906
        %5832 = vmatpush.msra.mxu0 %v4899
        %5833 = vmatpush.msra.mxu0 %v4892
        %5834 = vmatpush.msra.mxu0 %v4885
        %5835 = vmatpush.msra.mxu0 %v4878
        %5836 = vmatpush.msra.mxu0 %v4871
        %5837 = vmatpush.msra.mxu0 %v4864
        %5838 = vmatpush.msra.mxu0 %v4857
        %5839 = vmatpush.msra.mxu0 %v4850
        %5840 = vmatpush.msra.mxu0 %v4843
        %5841 = vmatpush.msra.mxu0 %v4836
        %5842 = vmatpush.msra.mxu0 %v4829
        %5843 = vmatpush.msra.mxu0 %v4822
        %5844 = vmatpush.msra.mxu0 %v4815
        %5845 = vmatpush.msra.mxu0 %v4808
        %5846 = vmatmul.f32.gmra.mxu0 %v4351
        %v5847 = vpop.f32.mrf.mxu0
        %v5848 = vadd.f32 %v5828, %v5847
        %5849 = vdwg.mxu0
        %5850 = vmatpush.msra.mxu0 %v5025
        %5851 = vmatpush.msra.mxu0 %v5018
        %5852 = vmatpush.msra.mxu0 %v5011
        %5853 = vmatpush.msra.mxu0 %v5004
        %5854 = vmatpush.msra.mxu0 %v4997
        %5855 = vmatpush.msra.mxu0 %v4990
        %5856 = vmatpush.msra.mxu0 %v4983
        %5857 = vmatpush.msra.mxu0 %v4976
        %5858 = vmatpush.msra.mxu0 %v4969
        %5859 = vmatpush.msra.mxu0 %v4962
        %5860 = vmatpush.msra.mxu0 %v4955
        %5861 = vmatpush.msra.mxu0 %v4948
        %5862 = vmatpush.msra.mxu0 %v4941
        %5863 = vmatpush.msra.mxu0 %v4934
        %5864 = vmatpush.msra.mxu0 %v4927
        %5865 = vmatpush.msra.mxu0 %v4920
        %5866 = vmatmul.f32.gmra.mxu0 %v4352
        %v5867 = vpop.f32.mrf.mxu0
        %v5868 = vadd.f32 %v5848, %v5867
        %5869 = vdwg.mxu0
        %5870 = vmatpush.msra.mxu0 %v5137
        %5871 = vmatpush.msra.mxu0 %v5130
        %5872 = vmatpush.msra.mxu0 %v5123
        %5873 = vmatpush.msra.mxu0 %v5116
        %5874 = vmatpush.msra.mxu0 %v5109
        %5875 = vmatpush.msra.mxu0 %v5102
        %5876 = vmatpush.msra.mxu0 %v5095
        %5877 = vmatpush.msra.mxu0 %v5088
        %5878 = vmatpush.msra.mxu0 %v5081
        %5879 = vmatpush.msra.mxu0 %v5074
        %5880 = vmatpush.msra.mxu0 %v5067
        %5881 = vmatpush.msra.mxu0 %v5060
        %5882 = vmatpush.msra.mxu0 %v5053
        %5883 = vmatpush.msra.mxu0 %v5046
        %5884 = vmatpush.msra.mxu0 %v5039
        %5885 = vmatpush.msra.mxu0 %v5032
        %5886 = vmatmul.f32.gmra.mxu0 %v4353
        %v5887 = vpop.f32.mrf.mxu0
        %v5888 = vadd.f32 %v5868, %v5887
        %5889 = vdwg.mxu0
        %5890 = vmatpush.msra.mxu0 %v5249
        %5891 = vmatpush.msra.mxu0 %v5242
        %5892 = vmatpush.msra.mxu0 %v5235
        %5893 = vmatpush.msra.mxu0 %v5228
        %5894 = vmatpush.msra.mxu0 %v5221
        %5895 = vmatpush.msra.mxu0 %v5214
        %5896 = vmatpush.msra.mxu0 %v5207
        %5897 = vmatpush.msra.mxu0 %v5200
        %5898 = vmatpush.msra.mxu0 %v5193
        %5899 = vmatpush.msra.mxu0 %v5186
        %5900 = vmatpush.msra.mxu0 %v5179
        %5901 = vmatpush.msra.mxu0 %v5172
        %5902 = vmatpush.msra.mxu0 %v5165
        %5903 = vmatpush.msra.mxu0 %v5158
        %5904 = vmatpush.msra.mxu0 %v5151
        %5905 = vmatpush.msra.mxu0 %v5144
        %5906 = vmatmul.f32.gmra.mxu0 %v4354
        %v5907 = vpop.f32.mrf.mxu0
        %v5908 = vadd.f32 %v5888, %v5907
        %5909 = vdwg.mxu0
        %5910 = vmatpush.msra.mxu0 %v5361
        %5911 = vmatpush.msra.mxu0 %v5354
        %5912 = vmatpush.msra.mxu0 %v5347
        %5913 = vmatpush.msra.mxu0 %v5340
        %5914 = vmatpush.msra.mxu0 %v5333
        %5915 = vmatpush.msra.mxu0 %v5326
        %5916 = vmatpush.msra.mxu0 %v5319
        %5917 = vmatpush.msra.mxu0 %v5312
        %5918 = vmatpush.msra.mxu0 %v5305
        %5919 = vmatpush.msra.mxu0 %v5298
        %5920 = vmatpush.msra.mxu0 %v5291
        %5921 = vmatpush.msra.mxu0 %v5284
        %5922 = vmatpush.msra.mxu0 %v5277
        %5923 = vmatpush.msra.mxu0 %v5270
        %5924 = vmatpush.msra.mxu0 %v5263
        %5925 = vmatpush.msra.mxu0 %v5256
        %5926 = vmatmul.f32.gmra.mxu0 %v4355
        %v5927 = vpop.f32.mrf.mxu0
        %v5928 = vadd.f32 %v5908, %v5927
        %5929 = vdwg.mxu0
        %5930 = vmatpush.msra.mxu0 %v5473
        %5931 = vmatpush.msra.mxu0 %v5466
        %5932 = vmatpush.msra.mxu0 %v5459
        %5933 = vmatpush.msra.mxu0 %v5452
        %5934 = vmatpush.msra.mxu0 %v5445
        %5935 = vmatpush.msra.mxu0 %v5438
        %5936 = vmatpush.msra.mxu0 %v5431
        %5937 = vmatpush.msra.mxu0 %v5424
        %5938 = vmatpush.msra.mxu0 %v5417
        %5939 = vmatpush.msra.mxu0 %v5410
        %5940 = vmatpush.msra.mxu0 %v5403
        %5941 = vmatpush.msra.mxu0 %v5396
        %5942 = vmatpush.msra.mxu0 %v5389
        %5943 = vmatpush.msra.mxu0 %v5382
        %5944 = vmatpush.msra.mxu0 %v5375
        %5945 = vmatpush.msra.mxu0 %v5368
        %5946 = vmatmul.f32.gmra.mxu0 %v4356
        %v5947 = vpop.f32.mrf.mxu0
        %v5948 = vadd.f32 %v5928, %v5947
        %5949 = vdwg.mxu0
        %5950 = vmatpush.msra.mxu0 %v5585
        %5951 = vmatpush.msra.mxu0 %v5578
        %5952 = vmatpush.msra.mxu0 %v5571
        %5953 = vmatpush.msra.mxu0 %v5564
        %5954 = vmatpush.msra.mxu0 %v5557
        %5955 = vmatpush.msra.mxu0 %v5550
        %5956 = vmatpush.msra.mxu0 %v5543
        %5957 = vmatpush.msra.mxu0 %v5536
        %5958 = vmatpush.msra.mxu0 %v5529
        %5959 = vmatpush.msra.mxu0 %v5522
        %5960 = vmatpush.msra.mxu0 %v5515
        %5961 = vmatpush.msra.mxu0 %v5508
        %5962 = vmatpush.msra.mxu0 %v5501
        %5963 = vmatpush.msra.mxu0 %v5494
        %5964 = vmatpush.msra.mxu0 %v5487
        %5965 = vmatpush.msra.mxu0 %v5480
        %5966 = vmatmul.f32.gmra.mxu0 %v4357
        %v5967 = vpop.f32.mrf.mxu0
        %v5968 = vadd.f32 %v5948, %v5967
        %5969 = vdwg.mxu0
        %5970 = vmatpush.msra.mxu0 %v5697
        %5971 = vmatpush.msra.mxu0 %v5690
        %5972 = vmatpush.msra.mxu0 %v5683
        %5973 = vmatpush.msra.mxu0 %v5676
        %5974 = vmatpush.msra.mxu0 %v5669
        %5975 = vmatpush.msra.mxu0 %v5662
        %5976 = vmatpush.msra.mxu0 %v5655
        %5977 = vmatpush.msra.mxu0 %v5648
        %5978 = vmatpush.msra.mxu0 %v5641
        %5979 = vmatpush.msra.mxu0 %v5634
        %5980 = vmatpush.msra.mxu0 %v5627
        %5981 = vmatpush.msra.mxu0 %v5620
        %5982 = vmatpush.msra.mxu0 %v5613
        %5983 = vmatpush.msra.mxu0 %v5606
        %5984 = vmatpush.msra.mxu0 %v5599
        %5985 = vmatpush.msra.mxu0 %v5592
        %5986 = vmatmul.f32.gmra.mxu0 %v4358
        %v5987 = vpop.f32.mrf.mxu0
        %v5988 = vadd.f32 %v5968, %v5987
        %5989 = vdwg.mxu0
        %5990 = vmatpush.msra.mxu0 0.0
        %5991 = vmatpush.msra.mxu0 0.0
        %5992 = vmatpush.msra.mxu0 0.0
        %5993 = vmatpush.msra.mxu0 0.0
        %5994 = vmatpush.msra.mxu0 0.0
        %5995 = vmatpush.msra.mxu0 0.0
        %5996 = vmatpush.msra.mxu0 0.0
        %5997 = vmatpush.msra.mxu0 0.0
        %5998 = vmatpush.msra.mxu0 0.0
        %5999 = vmatpush.msra.mxu0 0.0
        %6000 = vmatpush.msra.mxu0 0.0
        %6001 = vmatpush.msra.mxu0 0.0
        %6002 = vmatpush.msra.mxu0 %v5725
        %6003 = vmatpush.msra.mxu0 %v5718
        %6004 = vmatpush.msra.mxu0 %v5711
        %6005 = vmatpush.msra.mxu0 %v5704
        %6006 = vmatmul.f32.gmra.mxu0 %v5748
        %v6007 = vpop.f32.mrf.mxu0
        %v6008 = vadd.f32 %v5988, %v6007
        %6009 = vdwg.mxu0
        %6010 = vmatpush.msra.mxu0 %v4466
        %6011 = vmatpush.msra.mxu0 %v4459
        %6012 = vmatpush.msra.mxu0 %v4452
        %6013 = vmatpush.msra.mxu0 %v4445
        %6014 = vmatpush.msra.mxu0 %v4438
        %6015 = vmatpush.msra.mxu0 %v4431
        %6016 = vmatpush.msra.mxu0 %v4424
        %6017 = vmatpush.msra.mxu0 %v4417
        %6018 = vmatpush.msra.mxu0 %v4410
        %6019 = vmatpush.msra.mxu0 %v4403
        %6020 = vmatpush.msra.mxu0 %v4396
        %6021 = vmatpush.msra.mxu0 %v4389
        %6022 = vmatpush.msra.mxu0 %v4382
        %6023 = vmatpush.msra.mxu0 %v4375
        %6024 = vmatpush.msra.mxu0 %v4368
        %6025 = vmatpush.msra.mxu0 %v4361
        %6026 = vmatmul.f32.gmra.mxu0 %v4347
        %v6027 = vpop.f32.mrf.mxu0
        %v6028 = vadd.f32 %v5734, %v6027
        %6029 = vdwg.mxu0
        %6030 = vmatpush.msra.mxu0 %v4578
        %6031 = vmatpush.msra.mxu0 %v4571
        %6032 = vmatpush.msra.mxu0 %v4564
        %6033 = vmatpush.msra.mxu0 %v4557
        %6034 = vmatpush.msra.mxu0 %v4550
        %6035 = vmatpush.msra.mxu0 %v4543
        %6036 = vmatpush.msra.mxu0 %v4536
        %6037 = vmatpush.msra.mxu0 %v4529
        %6038 = vmatpush.msra.mxu0 %v4522
        %6039 = vmatpush.msra.mxu0 %v4515
        %6040 = vmatpush.msra.mxu0 %v4508
        %6041 = vmatpush.msra.mxu0 %v4501
        %6042 = vmatpush.msra.mxu0 %v4494
        %6043 = vmatpush.msra.mxu0 %v4487
        %6044 = vmatpush.msra.mxu0 %v4480
        %6045 = vmatpush.msra.mxu0 %v4473
        %6046 = vmatmul.f32.gmra.mxu0 %v4348
        %v6047 = vpop.f32.mrf.mxu0
        %v6048 = vadd.f32 %v6028, %v6047
        %6049 = vdwg.mxu0
        %6050 = vmatpush.msra.mxu0 %v4690
        %6051 = vmatpush.msra.mxu0 %v4683
        %6052 = vmatpush.msra.mxu0 %v4676
        %6053 = vmatpush.msra.mxu0 %v4669
        %6054 = vmatpush.msra.mxu0 %v4662
        %6055 = vmatpush.msra.mxu0 %v4655
        %6056 = vmatpush.msra.mxu0 %v4648
        %6057 = vmatpush.msra.mxu0 %v4641
        %6058 = vmatpush.msra.mxu0 %v4634
        %6059 = vmatpush.msra.mxu0 %v4627
        %6060 = vmatpush.msra.mxu0 %v4620
        %6061 = vmatpush.msra.mxu0 %v4613
        %6062 = vmatpush.msra.mxu0 %v4606
        %6063 = vmatpush.msra.mxu0 %v4599
        %6064 = vmatpush.msra.mxu0 %v4592
        %6065 = vmatpush.msra.mxu0 %v4585
        %6066 = vmatmul.f32.gmra.mxu0 %v4349
        %v6067 = vpop.f32.mrf.mxu0
        %v6068 = vadd.f32 %v6048, %v6067
        %6069 = vdwg.mxu0
        %6070 = vmatpush.msra.mxu0 %v4802
        %6071 = vmatpush.msra.mxu0 %v4795
        %6072 = vmatpush.msra.mxu0 %v4788
        %6073 = vmatpush.msra.mxu0 %v4781
        %6074 = vmatpush.msra.mxu0 %v4774
        %6075 = vmatpush.msra.mxu0 %v4767
        %6076 = vmatpush.msra.mxu0 %v4760
        %6077 = vmatpush.msra.mxu0 %v4753
        %6078 = vmatpush.msra.mxu0 %v4746
        %6079 = vmatpush.msra.mxu0 %v4739
        %6080 = vmatpush.msra.mxu0 %v4732
        %6081 = vmatpush.msra.mxu0 %v4725
        %6082 = vmatpush.msra.mxu0 %v4718
        %6083 = vmatpush.msra.mxu0 %v4711
        %6084 = vmatpush.msra.mxu0 %v4704
        %6085 = vmatpush.msra.mxu0 %v4697
        %6086 = vmatmul.f32.gmra.mxu0 %v4350
        %v6087 = vpop.f32.mrf.mxu0
        %v6088 = vadd.f32 %v6068, %v6087
        %6089 = vdwg.mxu0
        %6090 = vmatpush.msra.mxu0 %v4914
        %6091 = vmatpush.msra.mxu0 %v4907
        %6092 = vmatpush.msra.mxu0 %v4900
        %6093 = vmatpush.msra.mxu0 %v4893
        %6094 = vmatpush.msra.mxu0 %v4886
        %6095 = vmatpush.msra.mxu0 %v4879
        %6096 = vmatpush.msra.mxu0 %v4872
        %6097 = vmatpush.msra.mxu0 %v4865
        %6098 = vmatpush.msra.mxu0 %v4858
        %6099 = vmatpush.msra.mxu0 %v4851
        %6100 = vmatpush.msra.mxu0 %v4844
        %6101 = vmatpush.msra.mxu0 %v4837
        %6102 = vmatpush.msra.mxu0 %v4830
        %6103 = vmatpush.msra.mxu0 %v4823
        %6104 = vmatpush.msra.mxu0 %v4816
        %6105 = vmatpush.msra.mxu0 %v4809
        %6106 = vmatmul.f32.gmra.mxu0 %v4351
        %v6107 = vpop.f32.mrf.mxu0
        %v6108 = vadd.f32 %v6088, %v6107
        %6109 = vdwg.mxu0
        %6110 = vmatpush.msra.mxu0 %v5026
        %6111 = vmatpush.msra.mxu0 %v5019
        %6112 = vmatpush.msra.mxu0 %v5012
        %6113 = vmatpush.msra.mxu0 %v5005
        %6114 = vmatpush.msra.mxu0 %v4998
        %6115 = vmatpush.msra.mxu0 %v4991
        %6116 = vmatpush.msra.mxu0 %v4984
        %6117 = vmatpush.msra.mxu0 %v4977
        %6118 = vmatpush.msra.mxu0 %v4970
        %6119 = vmatpush.msra.mxu0 %v4963
        %6120 = vmatpush.msra.mxu0 %v4956
        %6121 = vmatpush.msra.mxu0 %v4949
        %6122 = vmatpush.msra.mxu0 %v4942
        %6123 = vmatpush.msra.mxu0 %v4935
        %6124 = vmatpush.msra.mxu0 %v4928
        %6125 = vmatpush.msra.mxu0 %v4921
        %6126 = vmatmul.f32.gmra.mxu0 %v4352
        %v6127 = vpop.f32.mrf.mxu0
        %v6128 = vadd.f32 %v6108, %v6127
        %6129 = vdwg.mxu0
        %6130 = vmatpush.msra.mxu0 %v5138
        %6131 = vmatpush.msra.mxu0 %v5131
        %6132 = vmatpush.msra.mxu0 %v5124
        %6133 = vmatpush.msra.mxu0 %v5117
        %6134 = vmatpush.msra.mxu0 %v5110
        %6135 = vmatpush.msra.mxu0 %v5103
        %6136 = vmatpush.msra.mxu0 %v5096
        %6137 = vmatpush.msra.mxu0 %v5089
        %6138 = vmatpush.msra.mxu0 %v5082
        %6139 = vmatpush.msra.mxu0 %v5075
        %6140 = vmatpush.msra.mxu0 %v5068
        %6141 = vmatpush.msra.mxu0 %v5061
        %6142 = vmatpush.msra.mxu0 %v5054
        %6143 = vmatpush.msra.mxu0 %v5047
        %6144 = vmatpush.msra.mxu0 %v5040
        %6145 = vmatpush.msra.mxu0 %v5033
        %6146 = vmatmul.f32.gmra.mxu0 %v4353
        %v6147 = vpop.f32.mrf.mxu0
        %v6148 = vadd.f32 %v6128, %v6147
        %6149 = vdwg.mxu0
        %6150 = vmatpush.msra.mxu0 %v5250
        %6151 = vmatpush.msra.mxu0 %v5243
        %6152 = vmatpush.msra.mxu0 %v5236
        %6153 = vmatpush.msra.mxu0 %v5229
        %6154 = vmatpush.msra.mxu0 %v5222
        %6155 = vmatpush.msra.mxu0 %v5215
        %6156 = vmatpush.msra.mxu0 %v5208
        %6157 = vmatpush.msra.mxu0 %v5201
        %6158 = vmatpush.msra.mxu0 %v5194
        %6159 = vmatpush.msra.mxu0 %v5187
        %6160 = vmatpush.msra.mxu0 %v5180
        %6161 = vmatpush.msra.mxu0 %v5173
        %6162 = vmatpush.msra.mxu0 %v5166
        %6163 = vmatpush.msra.mxu0 %v5159
        %6164 = vmatpush.msra.mxu0 %v5152
        %6165 = vmatpush.msra.mxu0 %v5145
        %6166 = vmatmul.f32.gmra.mxu0 %v4354
        %v6167 = vpop.f32.mrf.mxu0
        %v6168 = vadd.f32 %v6148, %v6167
        %6169 = vdwg.mxu0
        %6170 = vmatpush.msra.mxu0 %v5362
        %6171 = vmatpush.msra.mxu0 %v5355
        %6172 = vmatpush.msra.mxu0 %v5348
        %6173 = vmatpush.msra.mxu0 %v5341
        %6174 = vmatpush.msra.mxu0 %v5334
        %6175 = vmatpush.msra.mxu0 %v5327
        %6176 = vmatpush.msra.mxu0 %v5320
        %6177 = vmatpush.msra.mxu0 %v5313
        %6178 = vmatpush.msra.mxu0 %v5306
        %6179 = vmatpush.msra.mxu0 %v5299
        %6180 = vmatpush.msra.mxu0 %v5292
        %6181 = vmatpush.msra.mxu0 %v5285
        %6182 = vmatpush.msra.mxu0 %v5278
        %6183 = vmatpush.msra.mxu0 %v5271
        %6184 = vmatpush.msra.mxu0 %v5264
        %6185 = vmatpush.msra.mxu0 %v5257
        %6186 = vmatmul.f32.gmra.mxu0 %v4355
        %v6187 = vpop.f32.mrf.mxu0
        %v6188 = vadd.f32 %v6168, %v6187
        %6189 = vdwg.mxu0
        %6190 = vmatpush.msra.mxu0 %v5474
        %6191 = vmatpush.msra.mxu0 %v5467
        %6192 = vmatpush.msra.mxu0 %v5460
        %6193 = vmatpush.msra.mxu0 %v5453
        %6194 = vmatpush.msra.mxu0 %v5446
        %6195 = vmatpush.msra.mxu0 %v5439
        %6196 = vmatpush.msra.mxu0 %v5432
        %6197 = vmatpush.msra.mxu0 %v5425
        %6198 = vmatpush.msra.mxu0 %v5418
        %6199 = vmatpush.msra.mxu0 %v5411
        %6200 = vmatpush.msra.mxu0 %v5404
        %6201 = vmatpush.msra.mxu0 %v5397
        %6202 = vmatpush.msra.mxu0 %v5390
        %6203 = vmatpush.msra.mxu0 %v5383
        %6204 = vmatpush.msra.mxu0 %v5376
        %6205 = vmatpush.msra.mxu0 %v5369
        %6206 = vmatmul.f32.gmra.mxu0 %v4356
        %v6207 = vpop.f32.mrf.mxu0
        %v6208 = vadd.f32 %v6188, %v6207
        %6209 = vdwg.mxu0
        %6210 = vmatpush.msra.mxu0 %v5586
        %6211 = vmatpush.msra.mxu0 %v5579
        %6212 = vmatpush.msra.mxu0 %v5572
        %6213 = vmatpush.msra.mxu0 %v5565
        %6214 = vmatpush.msra.mxu0 %v5558
        %6215 = vmatpush.msra.mxu0 %v5551
        %6216 = vmatpush.msra.mxu0 %v5544
        %6217 = vmatpush.msra.mxu0 %v5537
        %6218 = vmatpush.msra.mxu0 %v5530
        %6219 = vmatpush.msra.mxu0 %v5523
        %6220 = vmatpush.msra.mxu0 %v5516
        %6221 = vmatpush.msra.mxu0 %v5509
        %6222 = vmatpush.msra.mxu0 %v5502
        %6223 = vmatpush.msra.mxu0 %v5495
        %6224 = vmatpush.msra.mxu0 %v5488
        %6225 = vmatpush.msra.mxu0 %v5481
        %6226 = vmatmul.f32.gmra.mxu0 %v4357
        %v6227 = vpop.f32.mrf.mxu0
        %v6228 = vadd.f32 %v6208, %v6227
        %6229 = vdwg.mxu0
        %6230 = vmatpush.msra.mxu0 %v5698
        %6231 = vmatpush.msra.mxu0 %v5691
        %6232 = vmatpush.msra.mxu0 %v5684
        %6233 = vmatpush.msra.mxu0 %v5677
        %6234 = vmatpush.msra.mxu0 %v5670
        %6235 = vmatpush.msra.mxu0 %v5663
        %6236 = vmatpush.msra.mxu0 %v5656
        %6237 = vmatpush.msra.mxu0 %v5649
        %6238 = vmatpush.msra.mxu0 %v5642
        %6239 = vmatpush.msra.mxu0 %v5635
        %6240 = vmatpush.msra.mxu0 %v5628
        %6241 = vmatpush.msra.mxu0 %v5621
        %6242 = vmatpush.msra.mxu0 %v5614
        %6243 = vmatpush.msra.mxu0 %v5607
        %6244 = vmatpush.msra.mxu0 %v5600
        %6245 = vmatpush.msra.mxu0 %v5593
        %6246 = vmatmul.f32.gmra.mxu0 %v4358
        %v6247 = vpop.f32.mrf.mxu0
        %v6248 = vadd.f32 %v6228, %v6247
        %6249 = vdwg.mxu0
        %6250 = vmatpush.msra.mxu0 0.0
        %6251 = vmatpush.msra.mxu0 0.0
        %6252 = vmatpush.msra.mxu0 0.0
        %6253 = vmatpush.msra.mxu0 0.0
        %6254 = vmatpush.msra.mxu0 0.0
        %6255 = vmatpush.msra.mxu0 0.0
        %6256 = vmatpush.msra.mxu0 0.0
        %6257 = vmatpush.msra.mxu0 0.0
        %6258 = vmatpush.msra.mxu0 0.0
        %6259 = vmatpush.msra.mxu0 0.0
        %6260 = vmatpush.msra.mxu0 0.0
        %6261 = vmatpush.msra.mxu0 0.0
        %6262 = vmatpush.msra.mxu0 %v5726
        %6263 = vmatpush.msra.mxu0 %v5719
        %6264 = vmatpush.msra.mxu0 %v5712
        %6265 = vmatpush.msra.mxu0 %v5705
        %6266 = vmatmul.f32.gmra.mxu0 %v5748
        %v6267 = vpop.f32.mrf.mxu0
        %v6268 = vadd.f32 %v6248, %v6267
        %6269 = vdwg.mxu0
        %6270 = vmatpush.msra.mxu0 %v4467
        %6271 = vmatpush.msra.mxu0 %v4460
        %6272 = vmatpush.msra.mxu0 %v4453
        %6273 = vmatpush.msra.mxu0 %v4446
        %6274 = vmatpush.msra.mxu0 %v4439
        %6275 = vmatpush.msra.mxu0 %v4432
        %6276 = vmatpush.msra.mxu0 %v4425
        %6277 = vmatpush.msra.mxu0 %v4418
        %6278 = vmatpush.msra.mxu0 %v4411
        %6279 = vmatpush.msra.mxu0 %v4404
        %6280 = vmatpush.msra.mxu0 %v4397
        %6281 = vmatpush.msra.mxu0 %v4390
        %6282 = vmatpush.msra.mxu0 %v4383
        %6283 = vmatpush.msra.mxu0 %v4376
        %6284 = vmatpush.msra.mxu0 %v4369
        %6285 = vmatpush.msra.mxu0 %v4362
        %6286 = vmatmul.f32.gmra.mxu0 %v4347
        %v6287 = vpop.f32.mrf.mxu0
        %v6288 = vadd.f32 %v5735, %v6287
        %6289 = vdwg.mxu0
        %6290 = vmatpush.msra.mxu0 %v4579
        %6291 = vmatpush.msra.mxu0 %v4572
        %6292 = vmatpush.msra.mxu0 %v4565
        %6293 = vmatpush.msra.mxu0 %v4558
        %6294 = vmatpush.msra.mxu0 %v4551
        %6295 = vmatpush.msra.mxu0 %v4544
        %6296 = vmatpush.msra.mxu0 %v4537
        %6297 = vmatpush.msra.mxu0 %v4530
        %6298 = vmatpush.msra.mxu0 %v4523
        %6299 = vmatpush.msra.mxu0 %v4516
        %6300 = vmatpush.msra.mxu0 %v4509
        %6301 = vmatpush.msra.mxu0 %v4502
        %6302 = vmatpush.msra.mxu0 %v4495
        %6303 = vmatpush.msra.mxu0 %v4488
        %6304 = vmatpush.msra.mxu0 %v4481
        %6305 = vmatpush.msra.mxu0 %v4474
        %6306 = vmatmul.f32.gmra.mxu0 %v4348
        %v6307 = vpop.f32.mrf.mxu0
        %v6308 = vadd.f32 %v6288, %v6307
        %6309 = vdwg.mxu0
        %6310 = vmatpush.msra.mxu0 %v4691
        %6311 = vmatpush.msra.mxu0 %v4684
        %6312 = vmatpush.msra.mxu0 %v4677
        %6313 = vmatpush.msra.mxu0 %v4670
        %6314 = vmatpush.msra.mxu0 %v4663
        %6315 = vmatpush.msra.mxu0 %v4656
        %6316 = vmatpush.msra.mxu0 %v4649
        %6317 = vmatpush.msra.mxu0 %v4642
        %6318 = vmatpush.msra.mxu0 %v4635
        %6319 = vmatpush.msra.mxu0 %v4628
        %6320 = vmatpush.msra.mxu0 %v4621
        %6321 = vmatpush.msra.mxu0 %v4614
        %6322 = vmatpush.msra.mxu0 %v4607
        %6323 = vmatpush.msra.mxu0 %v4600
        %6324 = vmatpush.msra.mxu0 %v4593
        %6325 = vmatpush.msra.mxu0 %v4586
        %6326 = vmatmul.f32.gmra.mxu0 %v4349
        %v6327 = vpop.f32.mrf.mxu0
        %v6328 = vadd.f32 %v6308, %v6327
        %6329 = vdwg.mxu0
        %6330 = vmatpush.msra.mxu0 %v4803
        %6331 = vmatpush.msra.mxu0 %v4796
        %6332 = vmatpush.msra.mxu0 %v4789
        %6333 = vmatpush.msra.mxu0 %v4782
        %6334 = vmatpush.msra.mxu0 %v4775
        %6335 = vmatpush.msra.mxu0 %v4768
        %6336 = vmatpush.msra.mxu0 %v4761
        %6337 = vmatpush.msra.mxu0 %v4754
        %6338 = vmatpush.msra.mxu0 %v4747
        %6339 = vmatpush.msra.mxu0 %v4740
        %6340 = vmatpush.msra.mxu0 %v4733
        %6341 = vmatpush.msra.mxu0 %v4726
        %6342 = vmatpush.msra.mxu0 %v4719
        %6343 = vmatpush.msra.mxu0 %v4712
        %6344 = vmatpush.msra.mxu0 %v4705
        %6345 = vmatpush.msra.mxu0 %v4698
        %6346 = vmatmul.f32.gmra.mxu0 %v4350
        %v6347 = vpop.f32.mrf.mxu0
        %v6348 = vadd.f32 %v6328, %v6347
        %6349 = vdwg.mxu0
        %6350 = vmatpush.msra.mxu0 %v4915
        %6351 = vmatpush.msra.mxu0 %v4908
        %6352 = vmatpush.msra.mxu0 %v4901
        %6353 = vmatpush.msra.mxu0 %v4894
        %6354 = vmatpush.msra.mxu0 %v4887
        %6355 = vmatpush.msra.mxu0 %v4880
        %6356 = vmatpush.msra.mxu0 %v4873
        %6357 = vmatpush.msra.mxu0 %v4866
        %6358 = vmatpush.msra.mxu0 %v4859
        %6359 = vmatpush.msra.mxu0 %v4852
        %6360 = vmatpush.msra.mxu0 %v4845
        %6361 = vmatpush.msra.mxu0 %v4838
        %6362 = vmatpush.msra.mxu0 %v4831
        %6363 = vmatpush.msra.mxu0 %v4824
        %6364 = vmatpush.msra.mxu0 %v4817
        %6365 = vmatpush.msra.mxu0 %v4810
        %6366 = vmatmul.f32.gmra.mxu0 %v4351
        %v6367 = vpop.f32.mrf.mxu0
        %v6368 = vadd.f32 %v6348, %v6367
        %6369 = vdwg.mxu0
        %6370 = vmatpush.msra.mxu0 %v5027
        %6371 = vmatpush.msra.mxu0 %v5020
        %6372 = vmatpush.msra.mxu0 %v5013
        %6373 = vmatpush.msra.mxu0 %v5006
        %6374 = vmatpush.msra.mxu0 %v4999
        %6375 = vmatpush.msra.mxu0 %v4992
        %6376 = vmatpush.msra.mxu0 %v4985
        %6377 = vmatpush.msra.mxu0 %v4978
        %6378 = vmatpush.msra.mxu0 %v4971
        %6379 = vmatpush.msra.mxu0 %v4964
        %6380 = vmatpush.msra.mxu0 %v4957
        %6381 = vmatpush.msra.mxu0 %v4950
        %6382 = vmatpush.msra.mxu0 %v4943
        %6383 = vmatpush.msra.mxu0 %v4936
        %6384 = vmatpush.msra.mxu0 %v4929
        %6385 = vmatpush.msra.mxu0 %v4922
        %6386 = vmatmul.f32.gmra.mxu0 %v4352
        %v6387 = vpop.f32.mrf.mxu0
        %v6388 = vadd.f32 %v6368, %v6387
        %6389 = vdwg.mxu0
        %6390 = vmatpush.msra.mxu0 %v5139
        %6391 = vmatpush.msra.mxu0 %v5132
        %6392 = vmatpush.msra.mxu0 %v5125
        %6393 = vmatpush.msra.mxu0 %v5118
        %6394 = vmatpush.msra.mxu0 %v5111
        %6395 = vmatpush.msra.mxu0 %v5104
        %6396 = vmatpush.msra.mxu0 %v5097
        %6397 = vmatpush.msra.mxu0 %v5090
        %6398 = vmatpush.msra.mxu0 %v5083
        %6399 = vmatpush.msra.mxu0 %v5076
        %6400 = vmatpush.msra.mxu0 %v5069
        %6401 = vmatpush.msra.mxu0 %v5062
        %6402 = vmatpush.msra.mxu0 %v5055
        %6403 = vmatpush.msra.mxu0 %v5048
        %6404 = vmatpush.msra.mxu0 %v5041
        %6405 = vmatpush.msra.mxu0 %v5034
        %6406 = vmatmul.f32.gmra.mxu0 %v4353
        %v6407 = vpop.f32.mrf.mxu0
        %v6408 = vadd.f32 %v6388, %v6407
        %6409 = vdwg.mxu0
        %6410 = vmatpush.msra.mxu0 %v5251
        %6411 = vmatpush.msra.mxu0 %v5244
        %6412 = vmatpush.msra.mxu0 %v5237
        %6413 = vmatpush.msra.mxu0 %v5230
        %6414 = vmatpush.msra.mxu0 %v5223
        %6415 = vmatpush.msra.mxu0 %v5216
        %6416 = vmatpush.msra.mxu0 %v5209
        %6417 = vmatpush.msra.mxu0 %v5202
        %6418 = vmatpush.msra.mxu0 %v5195
        %6419 = vmatpush.msra.mxu0 %v5188
        %6420 = vmatpush.msra.mxu0 %v5181
        %6421 = vmatpush.msra.mxu0 %v5174
        %6422 = vmatpush.msra.mxu0 %v5167
        %6423 = vmatpush.msra.mxu0 %v5160
        %6424 = vmatpush.msra.mxu0 %v5153
        %6425 = vmatpush.msra.mxu0 %v5146
        %6426 = vmatmul.f32.gmra.mxu0 %v4354
        %v6427 = vpop.f32.mrf.mxu0
        %v6428 = vadd.f32 %v6408, %v6427
        %6429 = vdwg.mxu0
        %6430 = vmatpush.msra.mxu0 %v5363
        %6431 = vmatpush.msra.mxu0 %v5356
        %6432 = vmatpush.msra.mxu0 %v5349
        %6433 = vmatpush.msra.mxu0 %v5342
        %6434 = vmatpush.msra.mxu0 %v5335
        %6435 = vmatpush.msra.mxu0 %v5328
        %6436 = vmatpush.msra.mxu0 %v5321
        %6437 = vmatpush.msra.mxu0 %v5314
        %6438 = vmatpush.msra.mxu0 %v5307
        %6439 = vmatpush.msra.mxu0 %v5300
        %6440 = vmatpush.msra.mxu0 %v5293
        %6441 = vmatpush.msra.mxu0 %v5286
        %6442 = vmatpush.msra.mxu0 %v5279
        %6443 = vmatpush.msra.mxu0 %v5272
        %6444 = vmatpush.msra.mxu0 %v5265
        %6445 = vmatpush.msra.mxu0 %v5258
        %6446 = vmatmul.f32.gmra.mxu0 %v4355
        %v6447 = vpop.f32.mrf.mxu0
        %v6448 = vadd.f32 %v6428, %v6447
        %6449 = vdwg.mxu0
        %6450 = vmatpush.msra.mxu0 %v5475
        %6451 = vmatpush.msra.mxu0 %v5468
        %6452 = vmatpush.msra.mxu0 %v5461
        %6453 = vmatpush.msra.mxu0 %v5454
        %6454 = vmatpush.msra.mxu0 %v5447
        %6455 = vmatpush.msra.mxu0 %v5440
        %6456 = vmatpush.msra.mxu0 %v5433
        %6457 = vmatpush.msra.mxu0 %v5426
        %6458 = vmatpush.msra.mxu0 %v5419
        %6459 = vmatpush.msra.mxu0 %v5412
        %6460 = vmatpush.msra.mxu0 %v5405
        %6461 = vmatpush.msra.mxu0 %v5398
        %6462 = vmatpush.msra.mxu0 %v5391
        %6463 = vmatpush.msra.mxu0 %v5384
        %6464 = vmatpush.msra.mxu0 %v5377
        %6465 = vmatpush.msra.mxu0 %v5370
        %6466 = vmatmul.f32.gmra.mxu0 %v4356
        %v6467 = vpop.f32.mrf.mxu0
        %v6468 = vadd.f32 %v6448, %v6467
        %6469 = vdwg.mxu0
        %6470 = vmatpush.msra.mxu0 %v5587
        %6471 = vmatpush.msra.mxu0 %v5580
        %6472 = vmatpush.msra.mxu0 %v5573
        %6473 = vmatpush.msra.mxu0 %v5566
        %6474 = vmatpush.msra.mxu0 %v5559
        %6475 = vmatpush.msra.mxu0 %v5552
        %6476 = vmatpush.msra.mxu0 %v5545
        %6477 = vmatpush.msra.mxu0 %v5538
        %6478 = vmatpush.msra.mxu0 %v5531
        %6479 = vmatpush.msra.mxu0 %v5524
        %6480 = vmatpush.msra.mxu0 %v5517
        %6481 = vmatpush.msra.mxu0 %v5510
        %6482 = vmatpush.msra.mxu0 %v5503
        %6483 = vmatpush.msra.mxu0 %v5496
        %6484 = vmatpush.msra.mxu0 %v5489
        %6485 = vmatpush.msra.mxu0 %v5482
        %6486 = vmatmul.f32.gmra.mxu0 %v4357
        %v6487 = vpop.f32.mrf.mxu0
        %v6488 = vadd.f32 %v6468, %v6487
        %6489 = vdwg.mxu0
        %6490 = vmatpush.msra.mxu0 %v5699
        %6491 = vmatpush.msra.mxu0 %v5692
        %6492 = vmatpush.msra.mxu0 %v5685
        %6493 = vmatpush.msra.mxu0 %v5678
        %6494 = vmatpush.msra.mxu0 %v5671
        %6495 = vmatpush.msra.mxu0 %v5664
        %6496 = vmatpush.msra.mxu0 %v5657
        %6497 = vmatpush.msra.mxu0 %v5650
        %6498 = vmatpush.msra.mxu0 %v5643
        %6499 = vmatpush.msra.mxu0 %v5636
        %6500 = vmatpush.msra.mxu0 %v5629
        %6501 = vmatpush.msra.mxu0 %v5622
        %6502 = vmatpush.msra.mxu0 %v5615
        %6503 = vmatpush.msra.mxu0 %v5608
        %6504 = vmatpush.msra.mxu0 %v5601
        %6505 = vmatpush.msra.mxu0 %v5594
        %6506 = vmatmul.f32.gmra.mxu0 %v4358
        %v6507 = vpop.f32.mrf.mxu0
        %v6508 = vadd.f32 %v6488, %v6507
        %6509 = vdwg.mxu0
        %6510 = vmatpush.msra.mxu0 0.0
        %6511 = vmatpush.msra.mxu0 0.0
        %6512 = vmatpush.msra.mxu0 0.0
        %6513 = vmatpush.msra.mxu0 0.0
        %6514 = vmatpush.msra.mxu0 0.0
        %6515 = vmatpush.msra.mxu0 0.0
        %6516 = vmatpush.msra.mxu0 0.0
        %6517 = vmatpush.msra.mxu0 0.0
        %6518 = vmatpush.msra.mxu0 0.0
        %6519 = vmatpush.msra.mxu0 0.0
        %6520 = vmatpush.msra.mxu0 0.0
        %6521 = vmatpush.msra.mxu0 0.0
        %6522 = vmatpush.msra.mxu0 %v5727
        %6523 = vmatpush.msra.mxu0 %v5720
        %6524 = vmatpush.msra.mxu0 %v5713
        %6525 = vmatpush.msra.mxu0 %v5706
        %6526 = vmatmul.f32.gmra.mxu0 %v5748
        %v6527 = vpop.f32.mrf.mxu0
        %v6528 = vadd.f32 %v6508, %v6527
        %6529 = vdwg.mxu0
        %6530 = vmatpush.msra.mxu0 %v4468
        %6531 = vmatpush.msra.mxu0 %v4461
        %6532 = vmatpush.msra.mxu0 %v4454
        %6533 = vmatpush.msra.mxu0 %v4447
        %6534 = vmatpush.msra.mxu0 %v4440
        %6535 = vmatpush.msra.mxu0 %v4433
        %6536 = vmatpush.msra.mxu0 %v4426
        %6537 = vmatpush.msra.mxu0 %v4419
        %6538 = vmatpush.msra.mxu0 %v4412
        %6539 = vmatpush.msra.mxu0 %v4405
        %6540 = vmatpush.msra.mxu0 %v4398
        %6541 = vmatpush.msra.mxu0 %v4391
        %6542 = vmatpush.msra.mxu0 %v4384
        %6543 = vmatpush.msra.mxu0 %v4377
        %6544 = vmatpush.msra.mxu0 %v4370
        %6545 = vmatpush.msra.mxu0 %v4363
        %6546 = vmatmul.f32.gmra.mxu0 %v4347
        %v6547 = vpop.f32.mrf.mxu0
        %v6548 = vadd.f32 %v5736, %v6547
        %6549 = vdwg.mxu0
        %6550 = vmatpush.msra.mxu0 %v4580
        %6551 = vmatpush.msra.mxu0 %v4573
        %6552 = vmatpush.msra.mxu0 %v4566
        %6553 = vmatpush.msra.mxu0 %v4559
        %6554 = vmatpush.msra.mxu0 %v4552
        %6555 = vmatpush.msra.mxu0 %v4545
        %6556 = vmatpush.msra.mxu0 %v4538
        %6557 = vmatpush.msra.mxu0 %v4531
        %6558 = vmatpush.msra.mxu0 %v4524
        %6559 = vmatpush.msra.mxu0 %v4517
        %6560 = vmatpush.msra.mxu0 %v4510
        %6561 = vmatpush.msra.mxu0 %v4503
        %6562 = vmatpush.msra.mxu0 %v4496
        %6563 = vmatpush.msra.mxu0 %v4489
        %6564 = vmatpush.msra.mxu0 %v4482
        %6565 = vmatpush.msra.mxu0 %v4475
        %6566 = vmatmul.f32.gmra.mxu0 %v4348
        %v6567 = vpop.f32.mrf.mxu0
        %v6568 = vadd.f32 %v6548, %v6567
        %6569 = vdwg.mxu0
        %6570 = vmatpush.msra.mxu0 %v4692
        %6571 = vmatpush.msra.mxu0 %v4685
        %6572 = vmatpush.msra.mxu0 %v4678
        %6573 = vmatpush.msra.mxu0 %v4671
        %6574 = vmatpush.msra.mxu0 %v4664
        %6575 = vmatpush.msra.mxu0 %v4657
        %6576 = vmatpush.msra.mxu0 %v4650
        %6577 = vmatpush.msra.mxu0 %v4643
        %6578 = vmatpush.msra.mxu0 %v4636
        %6579 = vmatpush.msra.mxu0 %v4629
        %6580 = vmatpush.msra.mxu0 %v4622
        %6581 = vmatpush.msra.mxu0 %v4615
        %6582 = vmatpush.msra.mxu0 %v4608
        %6583 = vmatpush.msra.mxu0 %v4601
        %6584 = vmatpush.msra.mxu0 %v4594
        %6585 = vmatpush.msra.mxu0 %v4587
        %6586 = vmatmul.f32.gmra.mxu0 %v4349
        %v6587 = vpop.f32.mrf.mxu0
        %v6588 = vadd.f32 %v6568, %v6587
        %6589 = vdwg.mxu0
        %6590 = vmatpush.msra.mxu0 %v4804
        %6591 = vmatpush.msra.mxu0 %v4797
        %6592 = vmatpush.msra.mxu0 %v4790
        %6593 = vmatpush.msra.mxu0 %v4783
        %6594 = vmatpush.msra.mxu0 %v4776
        %6595 = vmatpush.msra.mxu0 %v4769
        %6596 = vmatpush.msra.mxu0 %v4762
        %6597 = vmatpush.msra.mxu0 %v4755
        %6598 = vmatpush.msra.mxu0 %v4748
        %6599 = vmatpush.msra.mxu0 %v4741
        %6600 = vmatpush.msra.mxu0 %v4734
        %6601 = vmatpush.msra.mxu0 %v4727
        %6602 = vmatpush.msra.mxu0 %v4720
        %6603 = vmatpush.msra.mxu0 %v4713
        %6604 = vmatpush.msra.mxu0 %v4706
        %6605 = vmatpush.msra.mxu0 %v4699
        %6606 = vmatmul.f32.gmra.mxu0 %v4350
        %v6607 = vpop.f32.mrf.mxu0
        %v6608 = vadd.f32 %v6588, %v6607
        %6609 = vdwg.mxu0
        %6610 = vmatpush.msra.mxu0 %v4916
        %6611 = vmatpush.msra.mxu0 %v4909
        %6612 = vmatpush.msra.mxu0 %v4902
        %6613 = vmatpush.msra.mxu0 %v4895
        %6614 = vmatpush.msra.mxu0 %v4888
        %6615 = vmatpush.msra.mxu0 %v4881
        %6616 = vmatpush.msra.mxu0 %v4874
        %6617 = vmatpush.msra.mxu0 %v4867
        %6618 = vmatpush.msra.mxu0 %v4860
        %6619 = vmatpush.msra.mxu0 %v4853
        %6620 = vmatpush.msra.mxu0 %v4846
        %6621 = vmatpush.msra.mxu0 %v4839
        %6622 = vmatpush.msra.mxu0 %v4832
        %6623 = vmatpush.msra.mxu0 %v4825
        %6624 = vmatpush.msra.mxu0 %v4818
        %6625 = vmatpush.msra.mxu0 %v4811
        %6626 = vmatmul.f32.gmra.mxu0 %v4351
        %v6627 = vpop.f32.mrf.mxu0
        %v6628 = vadd.f32 %v6608, %v6627
        %6629 = vdwg.mxu0
        %6630 = vmatpush.msra.mxu0 %v5028
        %6631 = vmatpush.msra.mxu0 %v5021
        %6632 = vmatpush.msra.mxu0 %v5014
        %6633 = vmatpush.msra.mxu0 %v5007
        %6634 = vmatpush.msra.mxu0 %v5000
        %6635 = vmatpush.msra.mxu0 %v4993
        %6636 = vmatpush.msra.mxu0 %v4986
        %6637 = vmatpush.msra.mxu0 %v4979
        %6638 = vmatpush.msra.mxu0 %v4972
        %6639 = vmatpush.msra.mxu0 %v4965
        %6640 = vmatpush.msra.mxu0 %v4958
        %6641 = vmatpush.msra.mxu0 %v4951
        %6642 = vmatpush.msra.mxu0 %v4944
        %6643 = vmatpush.msra.mxu0 %v4937
        %6644 = vmatpush.msra.mxu0 %v4930
        %6645 = vmatpush.msra.mxu0 %v4923
        %6646 = vmatmul.f32.gmra.mxu0 %v4352
        %v6647 = vpop.f32.mrf.mxu0
        %v6648 = vadd.f32 %v6628, %v6647
        %6649 = vdwg.mxu0
        %6650 = vmatpush.msra.mxu0 %v5140
        %6651 = vmatpush.msra.mxu0 %v5133
        %6652 = vmatpush.msra.mxu0 %v5126
        %6653 = vmatpush.msra.mxu0 %v5119
        %6654 = vmatpush.msra.mxu0 %v5112
        %6655 = vmatpush.msra.mxu0 %v5105
        %6656 = vmatpush.msra.mxu0 %v5098
        %6657 = vmatpush.msra.mxu0 %v5091
        %6658 = vmatpush.msra.mxu0 %v5084
        %6659 = vmatpush.msra.mxu0 %v5077
        %6660 = vmatpush.msra.mxu0 %v5070
        %6661 = vmatpush.msra.mxu0 %v5063
        %6662 = vmatpush.msra.mxu0 %v5056
        %6663 = vmatpush.msra.mxu0 %v5049
        %6664 = vmatpush.msra.mxu0 %v5042
        %6665 = vmatpush.msra.mxu0 %v5035
        %6666 = vmatmul.f32.gmra.mxu0 %v4353
        %v6667 = vpop.f32.mrf.mxu0
        %v6668 = vadd.f32 %v6648, %v6667
        %6669 = vdwg.mxu0
        %6670 = vmatpush.msra.mxu0 %v5252
        %6671 = vmatpush.msra.mxu0 %v5245
        %6672 = vmatpush.msra.mxu0 %v5238
        %6673 = vmatpush.msra.mxu0 %v5231
        %6674 = vmatpush.msra.mxu0 %v5224
        %6675 = vmatpush.msra.mxu0 %v5217
        %6676 = vmatpush.msra.mxu0 %v5210
        %6677 = vmatpush.msra.mxu0 %v5203
        %6678 = vmatpush.msra.mxu0 %v5196
        %6679 = vmatpush.msra.mxu0 %v5189
        %6680 = vmatpush.msra.mxu0 %v5182
        %6681 = vmatpush.msra.mxu0 %v5175
        %6682 = vmatpush.msra.mxu0 %v5168
        %6683 = vmatpush.msra.mxu0 %v5161
        %6684 = vmatpush.msra.mxu0 %v5154
        %6685 = vmatpush.msra.mxu0 %v5147
        %6686 = vmatmul.f32.gmra.mxu0 %v4354
        %v6687 = vpop.f32.mrf.mxu0
        %v6688 = vadd.f32 %v6668, %v6687
        %6689 = vdwg.mxu0
        %6690 = vmatpush.msra.mxu0 %v5364
        %6691 = vmatpush.msra.mxu0 %v5357
        %6692 = vmatpush.msra.mxu0 %v5350
        %6693 = vmatpush.msra.mxu0 %v5343
        %6694 = vmatpush.msra.mxu0 %v5336
        %6695 = vmatpush.msra.mxu0 %v5329
        %6696 = vmatpush.msra.mxu0 %v5322
        %6697 = vmatpush.msra.mxu0 %v5315
        %6698 = vmatpush.msra.mxu0 %v5308
        %6699 = vmatpush.msra.mxu0 %v5301
        %6700 = vmatpush.msra.mxu0 %v5294
        %6701 = vmatpush.msra.mxu0 %v5287
        %6702 = vmatpush.msra.mxu0 %v5280
        %6703 = vmatpush.msra.mxu0 %v5273
        %6704 = vmatpush.msra.mxu0 %v5266
        %6705 = vmatpush.msra.mxu0 %v5259
        %6706 = vmatmul.f32.gmra.mxu0 %v4355
        %v6707 = vpop.f32.mrf.mxu0
        %v6708 = vadd.f32 %v6688, %v6707
        %6709 = vdwg.mxu0
        %6710 = vmatpush.msra.mxu0 %v5476
        %6711 = vmatpush.msra.mxu0 %v5469
        %6712 = vmatpush.msra.mxu0 %v5462
        %6713 = vmatpush.msra.mxu0 %v5455
        %6714 = vmatpush.msra.mxu0 %v5448
        %6715 = vmatpush.msra.mxu0 %v5441
        %6716 = vmatpush.msra.mxu0 %v5434
        %6717 = vmatpush.msra.mxu0 %v5427
        %6718 = vmatpush.msra.mxu0 %v5420
        %6719 = vmatpush.msra.mxu0 %v5413
        %6720 = vmatpush.msra.mxu0 %v5406
        %6721 = vmatpush.msra.mxu0 %v5399
        %6722 = vmatpush.msra.mxu0 %v5392
        %6723 = vmatpush.msra.mxu0 %v5385
        %6724 = vmatpush.msra.mxu0 %v5378
        %6725 = vmatpush.msra.mxu0 %v5371
        %6726 = vmatmul.f32.gmra.mxu0 %v4356
        %v6727 = vpop.f32.mrf.mxu0
        %v6728 = vadd.f32 %v6708, %v6727
        %6729 = vdwg.mxu0
        %6730 = vmatpush.msra.mxu0 %v5588
        %6731 = vmatpush.msra.mxu0 %v5581
        %6732 = vmatpush.msra.mxu0 %v5574
        %6733 = vmatpush.msra.mxu0 %v5567
        %6734 = vmatpush.msra.mxu0 %v5560
        %6735 = vmatpush.msra.mxu0 %v5553
        %6736 = vmatpush.msra.mxu0 %v5546
        %6737 = vmatpush.msra.mxu0 %v5539
        %6738 = vmatpush.msra.mxu0 %v5532
        %6739 = vmatpush.msra.mxu0 %v5525
        %6740 = vmatpush.msra.mxu0 %v5518
        %6741 = vmatpush.msra.mxu0 %v5511
        %6742 = vmatpush.msra.mxu0 %v5504
        %6743 = vmatpush.msra.mxu0 %v5497
        %6744 = vmatpush.msra.mxu0 %v5490
        %6745 = vmatpush.msra.mxu0 %v5483
        %6746 = vmatmul.f32.gmra.mxu0 %v4357
        %v6747 = vpop.f32.mrf.mxu0
        %v6748 = vadd.f32 %v6728, %v6747
        %6749 = vdwg.mxu0
        %6750 = vmatpush.msra.mxu0 %v5700
        %6751 = vmatpush.msra.mxu0 %v5693
        %6752 = vmatpush.msra.mxu0 %v5686
        %6753 = vmatpush.msra.mxu0 %v5679
        %6754 = vmatpush.msra.mxu0 %v5672
        %6755 = vmatpush.msra.mxu0 %v5665
        %6756 = vmatpush.msra.mxu0 %v5658
        %6757 = vmatpush.msra.mxu0 %v5651
        %6758 = vmatpush.msra.mxu0 %v5644
        %6759 = vmatpush.msra.mxu0 %v5637
        %6760 = vmatpush.msra.mxu0 %v5630
        %6761 = vmatpush.msra.mxu0 %v5623
        %6762 = vmatpush.msra.mxu0 %v5616
        %6763 = vmatpush.msra.mxu0 %v5609
        %6764 = vmatpush.msra.mxu0 %v5602
        %6765 = vmatpush.msra.mxu0 %v5595
        %6766 = vmatmul.f32.gmra.mxu0 %v4358
        %v6767 = vpop.f32.mrf.mxu0
        %v6768 = vadd.f32 %v6748, %v6767
        %6769 = vdwg.mxu0
        %6770 = vmatpush.msra.mxu0 0.0
        %6771 = vmatpush.msra.mxu0 0.0
        %6772 = vmatpush.msra.mxu0 0.0
        %6773 = vmatpush.msra.mxu0 0.0
        %6774 = vmatpush.msra.mxu0 0.0
        %6775 = vmatpush.msra.mxu0 0.0
        %6776 = vmatpush.msra.mxu0 0.0
        %6777 = vmatpush.msra.mxu0 0.0
        %6778 = vmatpush.msra.mxu0 0.0
        %6779 = vmatpush.msra.mxu0 0.0
        %6780 = vmatpush.msra.mxu0 0.0
        %6781 = vmatpush.msra.mxu0 0.0
        %6782 = vmatpush.msra.mxu0 %v5728
        %6783 = vmatpush.msra.mxu0 %v5721
        %6784 = vmatpush.msra.mxu0 %v5714
        %6785 = vmatpush.msra.mxu0 %v5707
        %6786 = vmatmul.f32.gmra.mxu0 %v5748
        %v6787 = vpop.f32.mrf.mxu0
        %v6788 = vadd.f32 %v6768, %v6787
        %6789 = vdwg.mxu0
        %6790 = vmatpush.msra.mxu0 %v4469
        %6791 = vmatpush.msra.mxu0 %v4462
        %6792 = vmatpush.msra.mxu0 %v4455
        %6793 = vmatpush.msra.mxu0 %v4448
        %6794 = vmatpush.msra.mxu0 %v4441
        %6795 = vmatpush.msra.mxu0 %v4434
        %6796 = vmatpush.msra.mxu0 %v4427
        %6797 = vmatpush.msra.mxu0 %v4420
        %6798 = vmatpush.msra.mxu0 %v4413
        %6799 = vmatpush.msra.mxu0 %v4406
        %6800 = vmatpush.msra.mxu0 %v4399
        %6801 = vmatpush.msra.mxu0 %v4392
        %6802 = vmatpush.msra.mxu0 %v4385
        %6803 = vmatpush.msra.mxu0 %v4378
        %6804 = vmatpush.msra.mxu0 %v4371
        %6805 = vmatpush.msra.mxu0 %v4364
        %6806 = vmatmul.f32.gmra.mxu0 %v4347
        %v6807 = vpop.f32.mrf.mxu0
        %v6808 = vadd.f32 %v5737, %v6807
        %6809 = vdwg.mxu0
        %6810 = vmatpush.msra.mxu0 %v4581
        %6811 = vmatpush.msra.mxu0 %v4574
        %6812 = vmatpush.msra.mxu0 %v4567
        %6813 = vmatpush.msra.mxu0 %v4560
        %6814 = vmatpush.msra.mxu0 %v4553
        %6815 = vmatpush.msra.mxu0 %v4546
        %6816 = vmatpush.msra.mxu0 %v4539
        %6817 = vmatpush.msra.mxu0 %v4532
        %6818 = vmatpush.msra.mxu0 %v4525
        %6819 = vmatpush.msra.mxu0 %v4518
        %6820 = vmatpush.msra.mxu0 %v4511
        %6821 = vmatpush.msra.mxu0 %v4504
        %6822 = vmatpush.msra.mxu0 %v4497
        %6823 = vmatpush.msra.mxu0 %v4490
        %6824 = vmatpush.msra.mxu0 %v4483
        %6825 = vmatpush.msra.mxu0 %v4476
        %6826 = vmatmul.f32.gmra.mxu0 %v4348
        %v6827 = vpop.f32.mrf.mxu0
        %v6828 = vadd.f32 %v6808, %v6827
        %6829 = vdwg.mxu0
        %6830 = vmatpush.msra.mxu0 %v4693
        %6831 = vmatpush.msra.mxu0 %v4686
        %6832 = vmatpush.msra.mxu0 %v4679
        %6833 = vmatpush.msra.mxu0 %v4672
        %6834 = vmatpush.msra.mxu0 %v4665
        %6835 = vmatpush.msra.mxu0 %v4658
        %6836 = vmatpush.msra.mxu0 %v4651
        %6837 = vmatpush.msra.mxu0 %v4644
        %6838 = vmatpush.msra.mxu0 %v4637
        %6839 = vmatpush.msra.mxu0 %v4630
        %6840 = vmatpush.msra.mxu0 %v4623
        %6841 = vmatpush.msra.mxu0 %v4616
        %6842 = vmatpush.msra.mxu0 %v4609
        %6843 = vmatpush.msra.mxu0 %v4602
        %6844 = vmatpush.msra.mxu0 %v4595
        %6845 = vmatpush.msra.mxu0 %v4588
        %6846 = vmatmul.f32.gmra.mxu0 %v4349
        %v6847 = vpop.f32.mrf.mxu0
        %v6848 = vadd.f32 %v6828, %v6847
        %6849 = vdwg.mxu0
        %6850 = vmatpush.msra.mxu0 %v4805
        %6851 = vmatpush.msra.mxu0 %v4798
        %6852 = vmatpush.msra.mxu0 %v4791
        %6853 = vmatpush.msra.mxu0 %v4784
        %6854 = vmatpush.msra.mxu0 %v4777
        %6855 = vmatpush.msra.mxu0 %v4770
        %6856 = vmatpush.msra.mxu0 %v4763
        %6857 = vmatpush.msra.mxu0 %v4756
        %6858 = vmatpush.msra.mxu0 %v4749
        %6859 = vmatpush.msra.mxu0 %v4742
        %6860 = vmatpush.msra.mxu0 %v4735
        %6861 = vmatpush.msra.mxu0 %v4728
        %6862 = vmatpush.msra.mxu0 %v4721
        %6863 = vmatpush.msra.mxu0 %v4714
        %6864 = vmatpush.msra.mxu0 %v4707
        %6865 = vmatpush.msra.mxu0 %v4700
        %6866 = vmatmul.f32.gmra.mxu0 %v4350
        %v6867 = vpop.f32.mrf.mxu0
        %v6868 = vadd.f32 %v6848, %v6867
        %6869 = vdwg.mxu0
        %6870 = vmatpush.msra.mxu0 %v4917
        %6871 = vmatpush.msra.mxu0 %v4910
        %6872 = vmatpush.msra.mxu0 %v4903
        %6873 = vmatpush.msra.mxu0 %v4896
        %6874 = vmatpush.msra.mxu0 %v4889
        %6875 = vmatpush.msra.mxu0 %v4882
        %6876 = vmatpush.msra.mxu0 %v4875
        %6877 = vmatpush.msra.mxu0 %v4868
        %6878 = vmatpush.msra.mxu0 %v4861
        %6879 = vmatpush.msra.mxu0 %v4854
        %6880 = vmatpush.msra.mxu0 %v4847
        %6881 = vmatpush.msra.mxu0 %v4840
        %6882 = vmatpush.msra.mxu0 %v4833
        %6883 = vmatpush.msra.mxu0 %v4826
        %6884 = vmatpush.msra.mxu0 %v4819
        %6885 = vmatpush.msra.mxu0 %v4812
        %6886 = vmatmul.f32.gmra.mxu0 %v4351
        %v6887 = vpop.f32.mrf.mxu0
        %v6888 = vadd.f32 %v6868, %v6887
        %6889 = vdwg.mxu0
        %6890 = vmatpush.msra.mxu0 %v5029
        %6891 = vmatpush.msra.mxu0 %v5022
        %6892 = vmatpush.msra.mxu0 %v5015
        %6893 = vmatpush.msra.mxu0 %v5008
        %6894 = vmatpush.msra.mxu0 %v5001
        %6895 = vmatpush.msra.mxu0 %v4994
        %6896 = vmatpush.msra.mxu0 %v4987
        %6897 = vmatpush.msra.mxu0 %v4980
        %6898 = vmatpush.msra.mxu0 %v4973
        %6899 = vmatpush.msra.mxu0 %v4966
        %6900 = vmatpush.msra.mxu0 %v4959
        %6901 = vmatpush.msra.mxu0 %v4952
        %6902 = vmatpush.msra.mxu0 %v4945
        %6903 = vmatpush.msra.mxu0 %v4938
        %6904 = vmatpush.msra.mxu0 %v4931
        %6905 = vmatpush.msra.mxu0 %v4924
        %6906 = vmatmul.f32.gmra.mxu0 %v4352
        %v6907 = vpop.f32.mrf.mxu0
        %v6908 = vadd.f32 %v6888, %v6907
        %6909 = vdwg.mxu0
        %6910 = vmatpush.msra.mxu0 %v5141
        %6911 = vmatpush.msra.mxu0 %v5134
        %6912 = vmatpush.msra.mxu0 %v5127
        %6913 = vmatpush.msra.mxu0 %v5120
        %6914 = vmatpush.msra.mxu0 %v5113
        %6915 = vmatpush.msra.mxu0 %v5106
        %6916 = vmatpush.msra.mxu0 %v5099
        %6917 = vmatpush.msra.mxu0 %v5092
        %6918 = vmatpush.msra.mxu0 %v5085
        %6919 = vmatpush.msra.mxu0 %v5078
        %6920 = vmatpush.msra.mxu0 %v5071
        %6921 = vmatpush.msra.mxu0 %v5064
        %6922 = vmatpush.msra.mxu0 %v5057
        %6923 = vmatpush.msra.mxu0 %v5050
        %6924 = vmatpush.msra.mxu0 %v5043
        %6925 = vmatpush.msra.mxu0 %v5036
        %6926 = vmatmul.f32.gmra.mxu0 %v4353
        %v6927 = vpop.f32.mrf.mxu0
        %v6928 = vadd.f32 %v6908, %v6927
        %6929 = vdwg.mxu0
        %6930 = vmatpush.msra.mxu0 %v5253
        %6931 = vmatpush.msra.mxu0 %v5246
        %6932 = vmatpush.msra.mxu0 %v5239
        %6933 = vmatpush.msra.mxu0 %v5232
        %6934 = vmatpush.msra.mxu0 %v5225
        %6935 = vmatpush.msra.mxu0 %v5218
        %6936 = vmatpush.msra.mxu0 %v5211
        %6937 = vmatpush.msra.mxu0 %v5204
        %6938 = vmatpush.msra.mxu0 %v5197
        %6939 = vmatpush.msra.mxu0 %v5190
        %6940 = vmatpush.msra.mxu0 %v5183
        %6941 = vmatpush.msra.mxu0 %v5176
        %6942 = vmatpush.msra.mxu0 %v5169
        %6943 = vmatpush.msra.mxu0 %v5162
        %6944 = vmatpush.msra.mxu0 %v5155
        %6945 = vmatpush.msra.mxu0 %v5148
        %6946 = vmatmul.f32.gmra.mxu0 %v4354
        %v6947 = vpop.f32.mrf.mxu0
        %v6948 = vadd.f32 %v6928, %v6947
        %6949 = vdwg.mxu0
        %6950 = vmatpush.msra.mxu0 %v5365
        %6951 = vmatpush.msra.mxu0 %v5358
        %6952 = vmatpush.msra.mxu0 %v5351
        %6953 = vmatpush.msra.mxu0 %v5344
        %6954 = vmatpush.msra.mxu0 %v5337
        %6955 = vmatpush.msra.mxu0 %v5330
        %6956 = vmatpush.msra.mxu0 %v5323
        %6957 = vmatpush.msra.mxu0 %v5316
        %6958 = vmatpush.msra.mxu0 %v5309
        %6959 = vmatpush.msra.mxu0 %v5302
        %6960 = vmatpush.msra.mxu0 %v5295
        %6961 = vmatpush.msra.mxu0 %v5288
        %6962 = vmatpush.msra.mxu0 %v5281
        %6963 = vmatpush.msra.mxu0 %v5274
        %6964 = vmatpush.msra.mxu0 %v5267
        %6965 = vmatpush.msra.mxu0 %v5260
        %6966 = vmatmul.f32.gmra.mxu0 %v4355
        %v6967 = vpop.f32.mrf.mxu0
        %v6968 = vadd.f32 %v6948, %v6967
        %6969 = vdwg.mxu0
        %6970 = vmatpush.msra.mxu0 %v5477
        %6971 = vmatpush.msra.mxu0 %v5470
        %6972 = vmatpush.msra.mxu0 %v5463
        %6973 = vmatpush.msra.mxu0 %v5456
        %6974 = vmatpush.msra.mxu0 %v5449
        %6975 = vmatpush.msra.mxu0 %v5442
        %6976 = vmatpush.msra.mxu0 %v5435
        %6977 = vmatpush.msra.mxu0 %v5428
        %6978 = vmatpush.msra.mxu0 %v5421
        %6979 = vmatpush.msra.mxu0 %v5414
        %6980 = vmatpush.msra.mxu0 %v5407
        %6981 = vmatpush.msra.mxu0 %v5400
        %6982 = vmatpush.msra.mxu0 %v5393
        %6983 = vmatpush.msra.mxu0 %v5386
        %6984 = vmatpush.msra.mxu0 %v5379
        %6985 = vmatpush.msra.mxu0 %v5372
        %6986 = vmatmul.f32.gmra.mxu0 %v4356
        %v6987 = vpop.f32.mrf.mxu0
        %v6988 = vadd.f32 %v6968, %v6987
        %6989 = vdwg.mxu0
        %6990 = vmatpush.msra.mxu0 %v5589
        %6991 = vmatpush.msra.mxu0 %v5582
        %6992 = vmatpush.msra.mxu0 %v5575
        %6993 = vmatpush.msra.mxu0 %v5568
        %6994 = vmatpush.msra.mxu0 %v5561
        %6995 = vmatpush.msra.mxu0 %v5554
        %6996 = vmatpush.msra.mxu0 %v5547
        %6997 = vmatpush.msra.mxu0 %v5540
        %6998 = vmatpush.msra.mxu0 %v5533
        %6999 = vmatpush.msra.mxu0 %v5526
        %7000 = vmatpush.msra.mxu0 %v5519
        %7001 = vmatpush.msra.mxu0 %v5512
        %7002 = vmatpush.msra.mxu0 %v5505
        %7003 = vmatpush.msra.mxu0 %v5498
        %7004 = vmatpush.msra.mxu0 %v5491
        %7005 = vmatpush.msra.mxu0 %v5484
        %7006 = vmatmul.f32.gmra.mxu0 %v4357
        %v7007 = vpop.f32.mrf.mxu0
        %v7008 = vadd.f32 %v6988, %v7007
        %7009 = vdwg.mxu0
        %7010 = vmatpush.msra.mxu0 %v5701
        %7011 = vmatpush.msra.mxu0 %v5694
        %7012 = vmatpush.msra.mxu0 %v5687
        %7013 = vmatpush.msra.mxu0 %v5680
        %7014 = vmatpush.msra.mxu0 %v5673
        %7015 = vmatpush.msra.mxu0 %v5666
        %7016 = vmatpush.msra.mxu0 %v5659
        %7017 = vmatpush.msra.mxu0 %v5652
        %7018 = vmatpush.msra.mxu0 %v5645
        %7019 = vmatpush.msra.mxu0 %v5638
        %7020 = vmatpush.msra.mxu0 %v5631
        %7021 = vmatpush.msra.mxu0 %v5624
        %7022 = vmatpush.msra.mxu0 %v5617
        %7023 = vmatpush.msra.mxu0 %v5610
        %7024 = vmatpush.msra.mxu0 %v5603
        %7025 = vmatpush.msra.mxu0 %v5596
        %7026 = vmatmul.f32.gmra.mxu0 %v4358
        %v7027 = vpop.f32.mrf.mxu0
        %v7028 = vadd.f32 %v7008, %v7027
        %7029 = vdwg.mxu0
        %7030 = vmatpush.msra.mxu0 0.0
        %7031 = vmatpush.msra.mxu0 0.0
        %7032 = vmatpush.msra.mxu0 0.0
        %7033 = vmatpush.msra.mxu0 0.0
        %7034 = vmatpush.msra.mxu0 0.0
        %7035 = vmatpush.msra.mxu0 0.0
        %7036 = vmatpush.msra.mxu0 0.0
        %7037 = vmatpush.msra.mxu0 0.0
        %7038 = vmatpush.msra.mxu0 0.0
        %7039 = vmatpush.msra.mxu0 0.0
        %7040 = vmatpush.msra.mxu0 0.0
        %7041 = vmatpush.msra.mxu0 0.0
        %7042 = vmatpush.msra.mxu0 %v5729
        %7043 = vmatpush.msra.mxu0 %v5722
        %7044 = vmatpush.msra.mxu0 %v5715
        %7045 = vmatpush.msra.mxu0 %v5708
        %7046 = vmatmul.f32.gmra.mxu0 %v5748
        %v7047 = vpop.f32.mrf.mxu0
        %v7048 = vadd.f32 %v7028, %v7047
        %7049 = vdwg.mxu0
        %7050 = vmatpush.msra.mxu0 %v4470
        %7051 = vmatpush.msra.mxu0 %v4463
        %7052 = vmatpush.msra.mxu0 %v4456
        %7053 = vmatpush.msra.mxu0 %v4449
        %7054 = vmatpush.msra.mxu0 %v4442
        %7055 = vmatpush.msra.mxu0 %v4435
        %7056 = vmatpush.msra.mxu0 %v4428
        %7057 = vmatpush.msra.mxu0 %v4421
        %7058 = vmatpush.msra.mxu0 %v4414
        %7059 = vmatpush.msra.mxu0 %v4407
        %7060 = vmatpush.msra.mxu0 %v4400
        %7061 = vmatpush.msra.mxu0 %v4393
        %7062 = vmatpush.msra.mxu0 %v4386
        %7063 = vmatpush.msra.mxu0 %v4379
        %7064 = vmatpush.msra.mxu0 %v4372
        %7065 = vmatpush.msra.mxu0 %v4365
        %7066 = vmatmul.f32.gmra.mxu0 %v4347
        %v7067 = vpop.f32.mrf.mxu0
        %v7068 = vadd.f32 %v5738, %v7067
        %7069 = vdwg.mxu0
        %7070 = vmatpush.msra.mxu0 %v4582
        %7071 = vmatpush.msra.mxu0 %v4575
        %7072 = vmatpush.msra.mxu0 %v4568
        %7073 = vmatpush.msra.mxu0 %v4561
        %7074 = vmatpush.msra.mxu0 %v4554
        %7075 = vmatpush.msra.mxu0 %v4547
        %7076 = vmatpush.msra.mxu0 %v4540
        %7077 = vmatpush.msra.mxu0 %v4533
        %7078 = vmatpush.msra.mxu0 %v4526
        %7079 = vmatpush.msra.mxu0 %v4519
        %7080 = vmatpush.msra.mxu0 %v4512
        %7081 = vmatpush.msra.mxu0 %v4505
        %7082 = vmatpush.msra.mxu0 %v4498
        %7083 = vmatpush.msra.mxu0 %v4491
        %7084 = vmatpush.msra.mxu0 %v4484
        %7085 = vmatpush.msra.mxu0 %v4477
        %7086 = vmatmul.f32.gmra.mxu0 %v4348
        %v7087 = vpop.f32.mrf.mxu0
        %v7088 = vadd.f32 %v7068, %v7087
        %7089 = vdwg.mxu0
        %7090 = vmatpush.msra.mxu0 %v4694
        %7091 = vmatpush.msra.mxu0 %v4687
        %7092 = vmatpush.msra.mxu0 %v4680
        %7093 = vmatpush.msra.mxu0 %v4673
        %7094 = vmatpush.msra.mxu0 %v4666
        %7095 = vmatpush.msra.mxu0 %v4659
        %7096 = vmatpush.msra.mxu0 %v4652
        %7097 = vmatpush.msra.mxu0 %v4645
        %7098 = vmatpush.msra.mxu0 %v4638
        %7099 = vmatpush.msra.mxu0 %v4631
        %7100 = vmatpush.msra.mxu0 %v4624
        %7101 = vmatpush.msra.mxu0 %v4617
        %7102 = vmatpush.msra.mxu0 %v4610
        %7103 = vmatpush.msra.mxu0 %v4603
        %7104 = vmatpush.msra.mxu0 %v4596
        %7105 = vmatpush.msra.mxu0 %v4589
        %7106 = vmatmul.f32.gmra.mxu0 %v4349
        %v7107 = vpop.f32.mrf.mxu0
        %v7108 = vadd.f32 %v7088, %v7107
        %7109 = vdwg.mxu0
        %7110 = vmatpush.msra.mxu0 %v4806
        %7111 = vmatpush.msra.mxu0 %v4799
        %7112 = vmatpush.msra.mxu0 %v4792
        %7113 = vmatpush.msra.mxu0 %v4785
        %7114 = vmatpush.msra.mxu0 %v4778
        %7115 = vmatpush.msra.mxu0 %v4771
        %7116 = vmatpush.msra.mxu0 %v4764
        %7117 = vmatpush.msra.mxu0 %v4757
        %7118 = vmatpush.msra.mxu0 %v4750
        %7119 = vmatpush.msra.mxu0 %v4743
        %7120 = vmatpush.msra.mxu0 %v4736
        %7121 = vmatpush.msra.mxu0 %v4729
        %7122 = vmatpush.msra.mxu0 %v4722
        %7123 = vmatpush.msra.mxu0 %v4715
        %7124 = vmatpush.msra.mxu0 %v4708
        %7125 = vmatpush.msra.mxu0 %v4701
        %7126 = vmatmul.f32.gmra.mxu0 %v4350
        %v7127 = vpop.f32.mrf.mxu0
        %v7128 = vadd.f32 %v7108, %v7127
        %7129 = vdwg.mxu0
        %7130 = vmatpush.msra.mxu0 %v4918
        %7131 = vmatpush.msra.mxu0 %v4911
        %7132 = vmatpush.msra.mxu0 %v4904
        %7133 = vmatpush.msra.mxu0 %v4897
        %7134 = vmatpush.msra.mxu0 %v4890
        %7135 = vmatpush.msra.mxu0 %v4883
        %7136 = vmatpush.msra.mxu0 %v4876
        %7137 = vmatpush.msra.mxu0 %v4869
        %7138 = vmatpush.msra.mxu0 %v4862
        %7139 = vmatpush.msra.mxu0 %v4855
        %7140 = vmatpush.msra.mxu0 %v4848
        %7141 = vmatpush.msra.mxu0 %v4841
        %7142 = vmatpush.msra.mxu0 %v4834
        %7143 = vmatpush.msra.mxu0 %v4827
        %7144 = vmatpush.msra.mxu0 %v4820
        %7145 = vmatpush.msra.mxu0 %v4813
        %7146 = vmatmul.f32.gmra.mxu0 %v4351
        %v7147 = vpop.f32.mrf.mxu0
        %v7148 = vadd.f32 %v7128, %v7147
        %7149 = vdwg.mxu0
        %7150 = vmatpush.msra.mxu0 %v5030
        %7151 = vmatpush.msra.mxu0 %v5023
        %7152 = vmatpush.msra.mxu0 %v5016
        %7153 = vmatpush.msra.mxu0 %v5009
        %7154 = vmatpush.msra.mxu0 %v5002
        %7155 = vmatpush.msra.mxu0 %v4995
        %7156 = vmatpush.msra.mxu0 %v4988
        %7157 = vmatpush.msra.mxu0 %v4981
        %7158 = vmatpush.msra.mxu0 %v4974
        %7159 = vmatpush.msra.mxu0 %v4967
        %7160 = vmatpush.msra.mxu0 %v4960
        %7161 = vmatpush.msra.mxu0 %v4953
        %7162 = vmatpush.msra.mxu0 %v4946
        %7163 = vmatpush.msra.mxu0 %v4939
        %7164 = vmatpush.msra.mxu0 %v4932
        %7165 = vmatpush.msra.mxu0 %v4925
        %7166 = vmatmul.f32.gmra.mxu0 %v4352
        %v7167 = vpop.f32.mrf.mxu0
        %v7168 = vadd.f32 %v7148, %v7167
        %7169 = vdwg.mxu0
        %7170 = vmatpush.msra.mxu0 %v5142
        %7171 = vmatpush.msra.mxu0 %v5135
        %7172 = vmatpush.msra.mxu0 %v5128
        %7173 = vmatpush.msra.mxu0 %v5121
        %7174 = vmatpush.msra.mxu0 %v5114
        %7175 = vmatpush.msra.mxu0 %v5107
        %7176 = vmatpush.msra.mxu0 %v5100
        %7177 = vmatpush.msra.mxu0 %v5093
        %7178 = vmatpush.msra.mxu0 %v5086
        %7179 = vmatpush.msra.mxu0 %v5079
        %7180 = vmatpush.msra.mxu0 %v5072
        %7181 = vmatpush.msra.mxu0 %v5065
        %7182 = vmatpush.msra.mxu0 %v5058
        %7183 = vmatpush.msra.mxu0 %v5051
        %7184 = vmatpush.msra.mxu0 %v5044
        %7185 = vmatpush.msra.mxu0 %v5037
        %7186 = vmatmul.f32.gmra.mxu0 %v4353
        %v7187 = vpop.f32.mrf.mxu0
        %v7188 = vadd.f32 %v7168, %v7187
        %7189 = vdwg.mxu0
        %7190 = vmatpush.msra.mxu0 %v5254
        %7191 = vmatpush.msra.mxu0 %v5247
        %7192 = vmatpush.msra.mxu0 %v5240
        %7193 = vmatpush.msra.mxu0 %v5233
        %7194 = vmatpush.msra.mxu0 %v5226
        %7195 = vmatpush.msra.mxu0 %v5219
        %7196 = vmatpush.msra.mxu0 %v5212
        %7197 = vmatpush.msra.mxu0 %v5205
        %7198 = vmatpush.msra.mxu0 %v5198
        %7199 = vmatpush.msra.mxu0 %v5191
        %7200 = vmatpush.msra.mxu0 %v5184
        %7201 = vmatpush.msra.mxu0 %v5177
        %7202 = vmatpush.msra.mxu0 %v5170
        %7203 = vmatpush.msra.mxu0 %v5163
        %7204 = vmatpush.msra.mxu0 %v5156
        %7205 = vmatpush.msra.mxu0 %v5149
        %7206 = vmatmul.f32.gmra.mxu0 %v4354
        %v7207 = vpop.f32.mrf.mxu0
        %v7208 = vadd.f32 %v7188, %v7207
        %7209 = vdwg.mxu0
        %7210 = vmatpush.msra.mxu0 %v5366
        %7211 = vmatpush.msra.mxu0 %v5359
        %7212 = vmatpush.msra.mxu0 %v5352
        %7213 = vmatpush.msra.mxu0 %v5345
        %7214 = vmatpush.msra.mxu0 %v5338
        %7215 = vmatpush.msra.mxu0 %v5331
        %7216 = vmatpush.msra.mxu0 %v5324
        %7217 = vmatpush.msra.mxu0 %v5317
        %7218 = vmatpush.msra.mxu0 %v5310
        %7219 = vmatpush.msra.mxu0 %v5303
        %7220 = vmatpush.msra.mxu0 %v5296
        %7221 = vmatpush.msra.mxu0 %v5289
        %7222 = vmatpush.msra.mxu0 %v5282
        %7223 = vmatpush.msra.mxu0 %v5275
        %7224 = vmatpush.msra.mxu0 %v5268
        %7225 = vmatpush.msra.mxu0 %v5261
        %7226 = vmatmul.f32.gmra.mxu0 %v4355
        %v7227 = vpop.f32.mrf.mxu0
        %v7228 = vadd.f32 %v7208, %v7227
        %7229 = vdwg.mxu0
        %7230 = vmatpush.msra.mxu0 %v5478
        %7231 = vmatpush.msra.mxu0 %v5471
        %7232 = vmatpush.msra.mxu0 %v5464
        %7233 = vmatpush.msra.mxu0 %v5457
        %7234 = vmatpush.msra.mxu0 %v5450
        %7235 = vmatpush.msra.mxu0 %v5443
        %7236 = vmatpush.msra.mxu0 %v5436
        %7237 = vmatpush.msra.mxu0 %v5429
        %7238 = vmatpush.msra.mxu0 %v5422
        %7239 = vmatpush.msra.mxu0 %v5415
        %7240 = vmatpush.msra.mxu0 %v5408
        %7241 = vmatpush.msra.mxu0 %v5401
        %7242 = vmatpush.msra.mxu0 %v5394
        %7243 = vmatpush.msra.mxu0 %v5387
        %7244 = vmatpush.msra.mxu0 %v5380
        %7245 = vmatpush.msra.mxu0 %v5373
        %7246 = vmatmul.f32.gmra.mxu0 %v4356
        %v7247 = vpop.f32.mrf.mxu0
        %v7248 = vadd.f32 %v7228, %v7247
        %7249 = vdwg.mxu0
        %7250 = vmatpush.msra.mxu0 %v5590
        %7251 = vmatpush.msra.mxu0 %v5583
        %7252 = vmatpush.msra.mxu0 %v5576
        %7253 = vmatpush.msra.mxu0 %v5569
        %7254 = vmatpush.msra.mxu0 %v5562
        %7255 = vmatpush.msra.mxu0 %v5555
        %7256 = vmatpush.msra.mxu0 %v5548
        %7257 = vmatpush.msra.mxu0 %v5541
        %7258 = vmatpush.msra.mxu0 %v5534
        %7259 = vmatpush.msra.mxu0 %v5527
        %7260 = vmatpush.msra.mxu0 %v5520
        %7261 = vmatpush.msra.mxu0 %v5513
        %7262 = vmatpush.msra.mxu0 %v5506
        %7263 = vmatpush.msra.mxu0 %v5499
        %7264 = vmatpush.msra.mxu0 %v5492
        %7265 = vmatpush.msra.mxu0 %v5485
        %7266 = vmatmul.f32.gmra.mxu0 %v4357
        %v7267 = vpop.f32.mrf.mxu0
        %v7268 = vadd.f32 %v7248, %v7267
        %7269 = vdwg.mxu0
        %7270 = vmatpush.msra.mxu0 %v5702
        %7271 = vmatpush.msra.mxu0 %v5695
        %7272 = vmatpush.msra.mxu0 %v5688
        %7273 = vmatpush.msra.mxu0 %v5681
        %7274 = vmatpush.msra.mxu0 %v5674
        %7275 = vmatpush.msra.mxu0 %v5667
        %7276 = vmatpush.msra.mxu0 %v5660
        %7277 = vmatpush.msra.mxu0 %v5653
        %7278 = vmatpush.msra.mxu0 %v5646
        %7279 = vmatpush.msra.mxu0 %v5639
        %7280 = vmatpush.msra.mxu0 %v5632
        %7281 = vmatpush.msra.mxu0 %v5625
        %7282 = vmatpush.msra.mxu0 %v5618
        %7283 = vmatpush.msra.mxu0 %v5611
        %7284 = vmatpush.msra.mxu0 %v5604
        %7285 = vmatpush.msra.mxu0 %v5597
        %7286 = vmatmul.f32.gmra.mxu0 %v4358
        %v7287 = vpop.f32.mrf.mxu0
        %v7288 = vadd.f32 %v7268, %v7287
        %7289 = vdwg.mxu0
        %7290 = vmatpush.msra.mxu0 0.0
        %7291 = vmatpush.msra.mxu0 0.0
        %7292 = vmatpush.msra.mxu0 0.0
        %7293 = vmatpush.msra.mxu0 0.0
        %7294 = vmatpush.msra.mxu0 0.0
        %7295 = vmatpush.msra.mxu0 0.0
        %7296 = vmatpush.msra.mxu0 0.0
        %7297 = vmatpush.msra.mxu0 0.0
        %7298 = vmatpush.msra.mxu0 0.0
        %7299 = vmatpush.msra.mxu0 0.0
        %7300 = vmatpush.msra.mxu0 0.0
        %7301 = vmatpush.msra.mxu0 0.0
        %7302 = vmatpush.msra.mxu0 %v5730
        %7303 = vmatpush.msra.mxu0 %v5723
        %7304 = vmatpush.msra.mxu0 %v5716
        %7305 = vmatpush.msra.mxu0 %v5709
        %7306 = vmatmul.f32.gmra.mxu0 %v5748
        %v7307 = vpop.f32.mrf.mxu0
        %v7308 = vadd.f32 %v7288, %v7307
        %7309 = vdwg.mxu0
        %7310 = vmatpush.msra.mxu0 %v4471
        %7311 = vmatpush.msra.mxu0 %v4464
        %7312 = vmatpush.msra.mxu0 %v4457
        %7313 = vmatpush.msra.mxu0 %v4450
        %7314 = vmatpush.msra.mxu0 %v4443
        %7315 = vmatpush.msra.mxu0 %v4436
        %7316 = vmatpush.msra.mxu0 %v4429
        %7317 = vmatpush.msra.mxu0 %v4422
        %7318 = vmatpush.msra.mxu0 %v4415
        %7319 = vmatpush.msra.mxu0 %v4408
        %7320 = vmatpush.msra.mxu0 %v4401
        %7321 = vmatpush.msra.mxu0 %v4394
        %7322 = vmatpush.msra.mxu0 %v4387
        %7323 = vmatpush.msra.mxu0 %v4380
        %7324 = vmatpush.msra.mxu0 %v4373
        %7325 = vmatpush.msra.mxu0 %v4366
        %7326 = vmatmul.f32.gmra.mxu0 %v4347
        %v7327 = vpop.f32.mrf.mxu0
        %v7328 = vadd.f32 %v5739, %v7327
        %7329 = vdwg.mxu0
        %7330 = vmatpush.msra.mxu0 %v4583
        %7331 = vmatpush.msra.mxu0 %v4576
        %7332 = vmatpush.msra.mxu0 %v4569
        %7333 = vmatpush.msra.mxu0 %v4562
        %7334 = vmatpush.msra.mxu0 %v4555
        %7335 = vmatpush.msra.mxu0 %v4548
        %7336 = vmatpush.msra.mxu0 %v4541
        %7337 = vmatpush.msra.mxu0 %v4534
        %7338 = vmatpush.msra.mxu0 %v4527
        %7339 = vmatpush.msra.mxu0 %v4520
        %7340 = vmatpush.msra.mxu0 %v4513
        %7341 = vmatpush.msra.mxu0 %v4506
        %7342 = vmatpush.msra.mxu0 %v4499
        %7343 = vmatpush.msra.mxu0 %v4492
        %7344 = vmatpush.msra.mxu0 %v4485
        %7345 = vmatpush.msra.mxu0 %v4478
        %7346 = vmatmul.f32.gmra.mxu0 %v4348
        %v7347 = vpop.f32.mrf.mxu0
        %v7348 = vadd.f32 %v7328, %v7347
        %7349 = vdwg.mxu0
        %7350 = vmatpush.msra.mxu0 %v4695
        %7351 = vmatpush.msra.mxu0 %v4688
        %7352 = vmatpush.msra.mxu0 %v4681
        %7353 = vmatpush.msra.mxu0 %v4674
        %7354 = vmatpush.msra.mxu0 %v4667
        %7355 = vmatpush.msra.mxu0 %v4660
        %7356 = vmatpush.msra.mxu0 %v4653
        %7357 = vmatpush.msra.mxu0 %v4646
        %7358 = vmatpush.msra.mxu0 %v4639
        %7359 = vmatpush.msra.mxu0 %v4632
        %7360 = vmatpush.msra.mxu0 %v4625
        %7361 = vmatpush.msra.mxu0 %v4618
        %7362 = vmatpush.msra.mxu0 %v4611
        %7363 = vmatpush.msra.mxu0 %v4604
        %7364 = vmatpush.msra.mxu0 %v4597
        %7365 = vmatpush.msra.mxu0 %v4590
        %7366 = vmatmul.f32.gmra.mxu0 %v4349
        %v7367 = vpop.f32.mrf.mxu0
        %v7368 = vadd.f32 %v7348, %v7367
        %7369 = vdwg.mxu0
        %7370 = vmatpush.msra.mxu0 %v4807
        %7371 = vmatpush.msra.mxu0 %v4800
        %7372 = vmatpush.msra.mxu0 %v4793
        %7373 = vmatpush.msra.mxu0 %v4786
        %7374 = vmatpush.msra.mxu0 %v4779
        %7375 = vmatpush.msra.mxu0 %v4772
        %7376 = vmatpush.msra.mxu0 %v4765
        %7377 = vmatpush.msra.mxu0 %v4758
        %7378 = vmatpush.msra.mxu0 %v4751
        %7379 = vmatpush.msra.mxu0 %v4744
        %7380 = vmatpush.msra.mxu0 %v4737
        %7381 = vmatpush.msra.mxu0 %v4730
        %7382 = vmatpush.msra.mxu0 %v4723
        %7383 = vmatpush.msra.mxu0 %v4716
        %7384 = vmatpush.msra.mxu0 %v4709
        %7385 = vmatpush.msra.mxu0 %v4702
        %7386 = vmatmul.f32.gmra.mxu0 %v4350
        %v7387 = vpop.f32.mrf.mxu0
        %v7388 = vadd.f32 %v7368, %v7387
        %7389 = vdwg.mxu0
        %7390 = vmatpush.msra.mxu0 %v4919
        %7391 = vmatpush.msra.mxu0 %v4912
        %7392 = vmatpush.msra.mxu0 %v4905
        %7393 = vmatpush.msra.mxu0 %v4898
        %7394 = vmatpush.msra.mxu0 %v4891
        %7395 = vmatpush.msra.mxu0 %v4884
        %7396 = vmatpush.msra.mxu0 %v4877
        %7397 = vmatpush.msra.mxu0 %v4870
        %7398 = vmatpush.msra.mxu0 %v4863
        %7399 = vmatpush.msra.mxu0 %v4856
        %7400 = vmatpush.msra.mxu0 %v4849
        %7401 = vmatpush.msra.mxu0 %v4842
        %7402 = vmatpush.msra.mxu0 %v4835
        %7403 = vmatpush.msra.mxu0 %v4828
        %7404 = vmatpush.msra.mxu0 %v4821
        %7405 = vmatpush.msra.mxu0 %v4814
        %7406 = vmatmul.f32.gmra.mxu0 %v4351
        %v7407 = vpop.f32.mrf.mxu0
        %v7408 = vadd.f32 %v7388, %v7407
        %7409 = vdwg.mxu0
        %7410 = vmatpush.msra.mxu0 %v5031
        %7411 = vmatpush.msra.mxu0 %v5024
        %7412 = vmatpush.msra.mxu0 %v5017
        %7413 = vmatpush.msra.mxu0 %v5010
        %7414 = vmatpush.msra.mxu0 %v5003
        %7415 = vmatpush.msra.mxu0 %v4996
        %7416 = vmatpush.msra.mxu0 %v4989
        %7417 = vmatpush.msra.mxu0 %v4982
        %7418 = vmatpush.msra.mxu0 %v4975
        %7419 = vmatpush.msra.mxu0 %v4968
        %7420 = vmatpush.msra.mxu0 %v4961
        %7421 = vmatpush.msra.mxu0 %v4954
        %7422 = vmatpush.msra.mxu0 %v4947
        %7423 = vmatpush.msra.mxu0 %v4940
        %7424 = vmatpush.msra.mxu0 %v4933
        %7425 = vmatpush.msra.mxu0 %v4926
        %7426 = vmatmul.f32.gmra.mxu0 %v4352
        %v7427 = vpop.f32.mrf.mxu0
        %v7428 = vadd.f32 %v7408, %v7427
        %7429 = vdwg.mxu0
        %7430 = vmatpush.msra.mxu0 %v5143
        %7431 = vmatpush.msra.mxu0 %v5136
        %7432 = vmatpush.msra.mxu0 %v5129
        %7433 = vmatpush.msra.mxu0 %v5122
        %7434 = vmatpush.msra.mxu0 %v5115
        %7435 = vmatpush.msra.mxu0 %v5108
        %7436 = vmatpush.msra.mxu0 %v5101
        %7437 = vmatpush.msra.mxu0 %v5094
        %7438 = vmatpush.msra.mxu0 %v5087
        %7439 = vmatpush.msra.mxu0 %v5080
        %7440 = vmatpush.msra.mxu0 %v5073
        %7441 = vmatpush.msra.mxu0 %v5066
        %7442 = vmatpush.msra.mxu0 %v5059
        %7443 = vmatpush.msra.mxu0 %v5052
        %7444 = vmatpush.msra.mxu0 %v5045
        %7445 = vmatpush.msra.mxu0 %v5038
        %7446 = vmatmul.f32.gmra.mxu0 %v4353
        %v7447 = vpop.f32.mrf.mxu0
        %v7448 = vadd.f32 %v7428, %v7447
        %7449 = vdwg.mxu0
        %7450 = vmatpush.msra.mxu0 %v5255
        %7451 = vmatpush.msra.mxu0 %v5248
        %7452 = vmatpush.msra.mxu0 %v5241
        %7453 = vmatpush.msra.mxu0 %v5234
        %7454 = vmatpush.msra.mxu0 %v5227
        %7455 = vmatpush.msra.mxu0 %v5220
        %7456 = vmatpush.msra.mxu0 %v5213
        %7457 = vmatpush.msra.mxu0 %v5206
        %7458 = vmatpush.msra.mxu0 %v5199
        %7459 = vmatpush.msra.mxu0 %v5192
        %7460 = vmatpush.msra.mxu0 %v5185
        %7461 = vmatpush.msra.mxu0 %v5178
        %7462 = vmatpush.msra.mxu0 %v5171
        %7463 = vmatpush.msra.mxu0 %v5164
        %7464 = vmatpush.msra.mxu0 %v5157
        %7465 = vmatpush.msra.mxu0 %v5150
        %7466 = vmatmul.f32.gmra.mxu0 %v4354
        %v7467 = vpop.f32.mrf.mxu0
        %v7468 = vadd.f32 %v7448, %v7467
        %7469 = vdwg.mxu0
        %7470 = vmatpush.msra.mxu0 %v5367
        %7471 = vmatpush.msra.mxu0 %v5360
        %7472 = vmatpush.msra.mxu0 %v5353
        %7473 = vmatpush.msra.mxu0 %v5346
        %7474 = vmatpush.msra.mxu0 %v5339
        %7475 = vmatpush.msra.mxu0 %v5332
        %7476 = vmatpush.msra.mxu0 %v5325
        %7477 = vmatpush.msra.mxu0 %v5318
        %7478 = vmatpush.msra.mxu0 %v5311
        %7479 = vmatpush.msra.mxu0 %v5304
        %7480 = vmatpush.msra.mxu0 %v5297
        %7481 = vmatpush.msra.mxu0 %v5290
        %7482 = vmatpush.msra.mxu0 %v5283
        %7483 = vmatpush.msra.mxu0 %v5276
        %7484 = vmatpush.msra.mxu0 %v5269
        %7485 = vmatpush.msra.mxu0 %v5262
        %7486 = vmatmul.f32.gmra.mxu0 %v4355
        %v7487 = vpop.f32.mrf.mxu0
        %v7488 = vadd.f32 %v7468, %v7487
        %7489 = vdwg.mxu0
        %7490 = vmatpush.msra.mxu0 %v5479
        %7491 = vmatpush.msra.mxu0 %v5472
        %7492 = vmatpush.msra.mxu0 %v5465
        %7493 = vmatpush.msra.mxu0 %v5458
        %7494 = vmatpush.msra.mxu0 %v5451
        %7495 = vmatpush.msra.mxu0 %v5444
        %7496 = vmatpush.msra.mxu0 %v5437
        %7497 = vmatpush.msra.mxu0 %v5430
        %7498 = vmatpush.msra.mxu0 %v5423
        %7499 = vmatpush.msra.mxu0 %v5416
        %7500 = vmatpush.msra.mxu0 %v5409
        %7501 = vmatpush.msra.mxu0 %v5402
        %7502 = vmatpush.msra.mxu0 %v5395
        %7503 = vmatpush.msra.mxu0 %v5388
        %7504 = vmatpush.msra.mxu0 %v5381
        %7505 = vmatpush.msra.mxu0 %v5374
        %7506 = vmatmul.f32.gmra.mxu0 %v4356
        %v7507 = vpop.f32.mrf.mxu0
        %v7508 = vadd.f32 %v7488, %v7507
        %7509 = vdwg.mxu0
        %7510 = vmatpush.msra.mxu0 %v5591
        %7511 = vmatpush.msra.mxu0 %v5584
        %7512 = vmatpush.msra.mxu0 %v5577
        %7513 = vmatpush.msra.mxu0 %v5570
        %7514 = vmatpush.msra.mxu0 %v5563
        %7515 = vmatpush.msra.mxu0 %v5556
        %7516 = vmatpush.msra.mxu0 %v5549
        %7517 = vmatpush.msra.mxu0 %v5542
        %7518 = vmatpush.msra.mxu0 %v5535
        %7519 = vmatpush.msra.mxu0 %v5528
        %7520 = vmatpush.msra.mxu0 %v5521
        %7521 = vmatpush.msra.mxu0 %v5514
        %7522 = vmatpush.msra.mxu0 %v5507
        %7523 = vmatpush.msra.mxu0 %v5500
        %7524 = vmatpush.msra.mxu0 %v5493
        %7525 = vmatpush.msra.mxu0 %v5486
        %7526 = vmatmul.f32.gmra.mxu0 %v4357
        %v7527 = vpop.f32.mrf.mxu0
        %v7528 = vadd.f32 %v7508, %v7527
        %7529 = vdwg.mxu0
        %7530 = vmatpush.msra.mxu0 %v5703
        %7531 = vmatpush.msra.mxu0 %v5696
        %7532 = vmatpush.msra.mxu0 %v5689
        %7533 = vmatpush.msra.mxu0 %v5682
        %7534 = vmatpush.msra.mxu0 %v5675
        %7535 = vmatpush.msra.mxu0 %v5668
        %7536 = vmatpush.msra.mxu0 %v5661
        %7537 = vmatpush.msra.mxu0 %v5654
        %7538 = vmatpush.msra.mxu0 %v5647
        %7539 = vmatpush.msra.mxu0 %v5640
        %7540 = vmatpush.msra.mxu0 %v5633
        %7541 = vmatpush.msra.mxu0 %v5626
        %7542 = vmatpush.msra.mxu0 %v5619
        %7543 = vmatpush.msra.mxu0 %v5612
        %7544 = vmatpush.msra.mxu0 %v5605
        %7545 = vmatpush.msra.mxu0 %v5598
        %7546 = vmatmul.f32.gmra.mxu0 %v4358
        %v7547 = vpop.f32.mrf.mxu0
        %v7548 = vadd.f32 %v7528, %v7547
        %7549 = vdwg.mxu0
        %7550 = vmatpush.msra.mxu0 0.0
        %7551 = vmatpush.msra.mxu0 0.0
        %7552 = vmatpush.msra.mxu0 0.0
        %7553 = vmatpush.msra.mxu0 0.0
        %7554 = vmatpush.msra.mxu0 0.0
        %7555 = vmatpush.msra.mxu0 0.0
        %7556 = vmatpush.msra.mxu0 0.0
        %7557 = vmatpush.msra.mxu0 0.0
        %7558 = vmatpush.msra.mxu0 0.0
        %7559 = vmatpush.msra.mxu0 0.0
        %7560 = vmatpush.msra.mxu0 0.0
        %7561 = vmatpush.msra.mxu0 0.0
        %7562 = vmatpush.msra.mxu0 %v5731
        %7563 = vmatpush.msra.mxu0 %v5724
        %7564 = vmatpush.msra.mxu0 %v5717
        %7565 = vmatpush.msra.mxu0 %v5710
        %7566 = vmatmul.f32.gmra.mxu0 %v5748
        %v7567 = vpop.f32.mrf.mxu0
        %v7568 = vadd.f32 %v7548, %v7567
        %7569 = vdwg.mxu0
        %v7570 = vsub.f32 0.0, %v6008
        %v7571 = vsub.f32 0.0, %v6268
        %v7572 = vsub.f32 0.0, %v6528
        %v7573 = vsub.f32 0.0, %v6788
        %v7574 = vsub.f32 0.0, %v7048
        %v7575 = vsub.f32 0.0, %v7308
        %v7576 = vsub.f32 0.0, %v7568
        %v7577 = vmul.f32 %v7570, 1.442695
        %v7578 = vpow.pop %v7577
        %v7579 = vmul.f32 %v7571, 1.442695
        %v7580 = vpow.pop %v7579
        %v7581 = vmul.f32 %v7572, 1.442695
        %v7582 = vpow.pop %v7581
        %v7583 = vmul.f32 %v7573, 1.442695
        %v7584 = vpow.pop %v7583
        %v7585 = vmul.f32 %v7574, 1.442695
        %v7586 = vpow.pop %v7585
        %v7587 = vmul.f32 %v7575, 1.442695
        %v7588 = vpow.pop %v7587
        %v7589 = vmul.f32 %v7576, 1.442695
        %v7590 = vpow.pop %v7589
        %v7591 = vadd.f32 %v7578, 1.0
        %v7592 = vadd.f32 %v7580, 1.0
        %v7593 = vadd.f32 %v7582, 1.0
        %v7594 = vadd.f32 %v7584, 1.0
        %v7595 = vadd.f32 %v7586, 1.0
        %v7596 = vadd.f32 %v7588, 1.0
        %v7597 = vadd.f32 %v7590, 1.0
        %v7598 = vrcp.pop %v7591
        %v7599 = vmul.f32 %v7591, %v7598
        %v7600 = vsub.f32 1.0, %v7599
        %v7601 = vmul.f32 %v7598, %v7600
        %v7602 = vadd.f32 %v7598, %v7601
        %vm7603 = vweird.f32 %v7591
        %vm7604 = vweird.f32 %v7598
        %vm7605 = vmor %vm7603, %vm7604
        %v7606 = vsel %vm7605, %v7598, %v7602
        %v7607 = vand.u32 2147483647, %v7591
        %vm7608 = vcmp.eq.f32.partialorder %v7607, 8.507059e+37
        %v7609 = vand.u32 %v7591, 2147483648
        %v7610 = vor.u32 1.1754944e-38, %v7609
        %v7611 = vsel %vm7608, %v7610, %v7606
        %v7612 = vrcp.pop %v7592
        %v7613 = vmul.f32 %v7592, %v7612
        %v7614 = vsub.f32 1.0, %v7613
        %v7615 = vmul.f32 %v7612, %v7614
        %v7616 = vadd.f32 %v7612, %v7615
        %vm7617 = vweird.f32 %v7592
        %vm7618 = vweird.f32 %v7612
        %vm7619 = vmor %vm7617, %vm7618
        %v7620 = vsel %vm7619, %v7612, %v7616
        %v7621 = vand.u32 2147483647, %v7592
        %vm7622 = vcmp.eq.f32.partialorder %v7621, 8.507059e+37
        %v7623 = vand.u32 %v7592, 2147483648
        %v7624 = vor.u32 1.1754944e-38, %v7623
        %v7625 = vsel %vm7622, %v7624, %v7620
        %v7626 = vrcp.pop %v7593
        %v7627 = vmul.f32 %v7593, %v7626
        %v7628 = vsub.f32 1.0, %v7627
        %v7629 = vmul.f32 %v7626, %v7628
        %v7630 = vadd.f32 %v7626, %v7629
        %vm7631 = vweird.f32 %v7593
        %vm7632 = vweird.f32 %v7626
        %vm7633 = vmor %vm7631, %vm7632
        %v7634 = vsel %vm7633, %v7626, %v7630
        %v7635 = vand.u32 2147483647, %v7593
        %vm7636 = vcmp.eq.f32.partialorder %v7635, 8.507059e+37
        %v7637 = vand.u32 %v7593, 2147483648
        %v7638 = vor.u32 1.1754944e-38, %v7637
        %v7639 = vsel %vm7636, %v7638, %v7634
        %v7640 = vrcp.pop %v7594
        %v7641 = vmul.f32 %v7594, %v7640
        %v7642 = vsub.f32 1.0, %v7641
        %v7643 = vmul.f32 %v7640, %v7642
        %v7644 = vadd.f32 %v7640, %v7643
        %vm7645 = vweird.f32 %v7594
        %vm7646 = vweird.f32 %v7640
        %vm7647 = vmor %vm7645, %vm7646
        %v7648 = vsel %vm7647, %v7640, %v7644
        %v7649 = vand.u32 2147483647, %v7594
        %vm7650 = vcmp.eq.f32.partialorder %v7649, 8.507059e+37
        %v7651 = vand.u32 %v7594, 2147483648
        %v7652 = vor.u32 1.1754944e-38, %v7651
        %v7653 = vsel %vm7650, %v7652, %v7648
        %v7654 = vrcp.pop %v7595
        %v7655 = vmul.f32 %v7595, %v7654
        %v7656 = vsub.f32 1.0, %v7655
        %v7657 = vmul.f32 %v7654, %v7656
        %v7658 = vadd.f32 %v7654, %v7657
        %vm7659 = vweird.f32 %v7595
        %vm7660 = vweird.f32 %v7654
        %vm7661 = vmor %vm7659, %vm7660
        %v7662 = vsel %vm7661, %v7654, %v7658
        %v7663 = vand.u32 2147483647, %v7595
        %vm7664 = vcmp.eq.f32.partialorder %v7663, 8.507059e+37
        %v7665 = vand.u32 %v7595, 2147483648
        %v7666 = vor.u32 1.1754944e-38, %v7665
        %v7667 = vsel %vm7664, %v7666, %v7662
        %v7668 = vrcp.pop %v7596
        %v7669 = vmul.f32 %v7596, %v7668
        %v7670 = vsub.f32 1.0, %v7669
        %v7671 = vmul.f32 %v7668, %v7670
        %v7672 = vadd.f32 %v7668, %v7671
        %vm7673 = vweird.f32 %v7596
        %vm7674 = vweird.f32 %v7668
        %vm7675 = vmor %vm7673, %vm7674
        %v7676 = vsel %vm7675, %v7668, %v7672
        %v7677 = vand.u32 2147483647, %v7596
        %vm7678 = vcmp.eq.f32.partialorder %v7677, 8.507059e+37
        %v7679 = vand.u32 %v7596, 2147483648
        %v7680 = vor.u32 1.1754944e-38, %v7679
        %v7681 = vsel %vm7678, %v7680, %v7676
        %v7682 = vrcp.pop %v7597
        %v7683 = vmul.f32 %v7597, %v7682
        %v7684 = vsub.f32 1.0, %v7683
        %v7685 = vmul.f32 %v7682, %v7684
        %v7686 = vadd.f32 %v7682, %v7685
        %vm7687 = vweird.f32 %v7597
        %vm7688 = vweird.f32 %v7682
        %vm7689 = vmor %vm7687, %vm7688
        %v7690 = vsel %vm7689, %v7682, %v7686
        %v7691 = vand.u32 2147483647, %v7597
        %vm7692 = vcmp.eq.f32.partialorder %v7691, 8.507059e+37
        %v7693 = vand.u32 %v7597, 2147483648
        %v7694 = vor.u32 1.1754944e-38, %v7693
        %v7695 = vsel %vm7692, %v7694, %v7690
        %7696 = vst [vmem:[%s354] sm:$0xff] %v7611
        %7697 = vst [vmem:[%s354 + $0x8] sm:$0xff] %v7625
        %7698 = vst [vmem:[%s354 + $0x10] sm:$0xff] %v7639
        %7699 = vst [vmem:[%s354 + $0x18] sm:$0xff] %v7653
        %7700 = vst [vmem:[%s354 + $0x20] sm:$0xff] %v7667
        %7701 = vst [vmem:[%s354 + $0x28] sm:$0xff] %v7681
        %7702 = vst [vmem:[%s354 + $0x30] sm:$0xff] %v7695
        %p7703 = scmp.lt.s32.totalorder %s21, 1
        %s7704 = scalar_select %p7703, %s21, 1
        %s7705 = smul.addr %s7704, 7
        %s7706 = smul.addr %s7705, 8
        %s7707 = scalar_lea.vmem %s7, %s7706
        // Predicated region
        $region69: #{_lambda_.1} parent=47 // pred_check
          %p7708 = pneg %p191
        $region70: #{_lambda_.1} parent=47 // pred_check_branch
          %7710 = sbr.rel (%p7708) target = $region72
        $region71: #{_lambda_.1} parent=47 // pred_region
          _
        $region72: #{_lambda_.1} parent=47 // pred_fallthru
          _
      $region48: #{_lambda_.1} parent=5 // pred_fallthru
        _
      %p7711 = scmp.le.s32.totalorder 2, %s16
      // Predicated region
      $region73: #{_lambda_.1} parent=5 // pred_check
        %p7712 = pneg %p7711
      $region74: #{_lambda_.1} parent=5 // pred_check_branch
        %7714 = sbr.rel (%p7712) target = $region76
      $region75: #{_lambda_.1} parent=5 // pred_region
        %s7715 = ssub.s32 %s16, 2
        // Predicated region
        $region77: #{_lambda_.1} parent=75 // pred_check
          %p7716 = pneg %p197
        $region78: #{_lambda_.1} parent=75 // pred_check_branch
          %7718 = sbr.rel (%p7716) target = $region80
        $region79: #{_lambda_.1} parent=75 // pred_region
          %p7719 = scmp.lt.s32.totalorder %s22, 1
          %s7720 = scalar_select %p7719, %s22, 1
          %s7721 = smul.addr %s7720, 7
          %s7722 = smul.addr %s7721, 8
          %s7723 = scalar_lea.vmem %s7, %s7722
        $region80: #{_lambda_.1} parent=75 // pred_fallthru
          _
      $region76: #{_lambda_.1} parent=5 // pred_fallthru
        _
    $region6: #{_lambda_.1} parent=1 // loop_footer
      %s20 = sadd.s32 1, %s16
    $region7: #{_lambda_.1} parent=1 // loop_footer_branch
      %15 = sbr.rel target = $region3
    $region8: #{_lambda_.1} parent=1 // loop_exit
      _
    %7724 = vsyncpa [#allocation3], 1
    %s7725 = scalar_lea.sflag [#allocation3], 1
    %7726 = vsyncpa %s7725, 1
    %7727 = vsyncpa [#allocation5], 1
    %7728 = vsyncpa [#allocation8], 1

</llo_original>
